<compile_context>
chip_gen: v7x
topology: tpu7x:2x2x1
jax: 0.10.0
libtpu: 0.0.40
codegen_flags: <defaults>
</compile_context>

<pallas_src>
import functools
import math

import jax
import jax.numpy as jnp
from jax import lax
from jax.experimental import pallas as pl
from jax.experimental.pallas import tpu as pltpu


NEG_INF = -1e30  # finite mask sentinel (avoids -inf - -inf = NaN in online softmax)


def _layer_norm(x, gamma, beta, eps=1e-5):
    mu = jnp.mean(x, axis=-1, keepdims=True)
    var = jnp.mean((x - mu) ** 2, axis=-1, keepdims=True)
    return (x - mu) * lax.rsqrt(var + eps) * gamma + beta


def _split_heads(t, n_heads, head_dim):
    # (T, H*D) -> (H, T, D) using static lane slices + leading-axis concat
    # (no 3-D transposes / lane-splitting reshapes inside the kernel).
    parts = []
    for h in range(n_heads):
        ph = t[:, h * head_dim:(h + 1) * head_dim]
        parts.append(ph.reshape((1,) + ph.shape))
    return jnp.concatenate(parts, axis=0)


def _merge_heads(t_h):
    # (H, T, D) -> (T, H*D)
    n_heads = t_h.shape[0]
    return jnp.concatenate([t_h[h] for h in range(n_heads)], axis=-1)


def transformer_block_kernel(
    # inputs
    x_q_ref,                    # (1, TQ, E) f32  query tile of x
    x_kv_ref,                   # (1, S,  E) f32  full sequence (K/V recomputed per tile)
    ln1g_ref, ln1b_ref,         # (1, E) f32
    wq_ref, wk_ref, wv_ref,     # (E, E) bf16
    bq_ref, bk_ref, bv_ref,     # (1, E) f32
    wproj_ref, bproj_ref,       # (E, E) bf16, (1, E) f32
    ln2g_ref, ln2b_ref,         # (1, E) f32
    w1_ref, b1_ref,             # (NC, E, FC) bf16, (NC, 1, FC) f32
    w2_ref, b2_ref,             # (NC, FC, E) bf16, (1, E) f32
    # output
    out_ref,                    # (1, TQ, E)
    # scratch
    m_scr, l_scr, acc_scr,      # (H, TQ, 1) f32, (H, TQ, 1) f32, (H, TQ, D) f32
    *, n_heads,
):
    qi = pl.program_id(1)
    TQ = x_q_ref.shape[1]
    E = x_q_ref.shape[2]
    H = n_heads
    D = E // H
    scale = 1.0 / math.sqrt(D)           # SDPA default scaling

    bf16 = jnp.bfloat16

    # ---- LayerNorm 1 + Q projection for this query tile (stats in f32) ----
    x_q = x_q_ref[0]                                             # (TQ, E) f32
    xn_q = _layer_norm(x_q, ln1g_ref[...], ln1b_ref[...])
    q = jnp.dot(xn_q.astype(bf16), wq_ref[...],
                preferred_element_type=jnp.float32) + bq_ref[...]
    q = q * scale                                                # fold 1/sqrt(D) into Q
    q_h = _split_heads(q, H, D).astype(bf16)                     # (H, TQ, D) bf16

    # ---- online-softmax (flash) state ----
    m_scr[...] = jnp.full(m_scr.shape, -jnp.inf, dtype=m_scr.dtype)
    l_scr[...] = jnp.zeros(l_scr.shape, dtype=l_scr.dtype)
    acc_scr[...] = jnp.zeros(acc_scr.shape, dtype=acc_scr.dtype)

    def kv_step(kv_i, carry):
        start = pl.multiple_of(kv_i * TQ, TQ)
        x_kv = x_kv_ref[0, pl.ds(start, TQ), :]                  # (TK=TQ, E) f32
        xn_kv = _layer_norm(x_kv, ln1g_ref[...], ln1b_ref[...]).astype(bf16)
        k = jnp.dot(xn_kv, wk_ref[...],
                    preferred_element_type=jnp.float32) + bk_ref[...]
        v = jnp.dot(xn_kv, wv_ref[...],
                    preferred_element_type=jnp.float32) + bv_ref[...]
        k_h = _split_heads(k, H, D).astype(bf16)                 # (H, TK, D)
        v_h = _split_heads(v, H, D).astype(bf16)                 # (H, TK, D)

        # all heads in one batched MXU contraction
        s = jnp.einsum('hqd,hkd->hqk', q_h, k_h,
                       preferred_element_type=jnp.float32)       # (H, TQ, TK) f32

        # per-tile causal mask (only the diagonal tile is actually partial)
        rows = qi * TQ + lax.broadcasted_iota(jnp.int32, (1, TQ, TQ), 1)
        cols = kv_i * TQ + lax.broadcasted_iota(jnp.int32, (1, TQ, TQ), 2)
        s = jnp.where(rows >= cols, s, NEG_INF)

        m_prev = m_scr[...]
        m_new = jnp.maximum(m_prev, jnp.max(s, axis=-1, keepdims=True))
        alpha = jnp.exp(m_prev - m_new)
        p = jnp.exp(s - m_new)                                   # f32
        l_scr[...] = alpha * l_scr[...] + jnp.sum(p, axis=-1, keepdims=True)
        acc_scr[...] = alpha * acc_scr[...] + jnp.einsum(
            'hqk,hkd->hqd', p.astype(bf16), v_h,
            preferred_element_type=jnp.float32)
        m_scr[...] = m_new
        return carry

    # causal: only KV tiles 0..qi contribute to this query tile
    lax.fori_loop(0, qi + 1, kv_step, 0)

    inv_l = pl.reciprocal(l_scr[...], approx=True)               # EUP divide
    attn_h = acc_scr[...] * inv_l                                # (H, TQ, D) f32
    attn = _merge_heads(attn_h)                                  # (TQ, E) f32
    attn = jnp.dot(attn.astype(bf16), wproj_ref[...],
                   preferred_element_type=jnp.float32) + bproj_ref[...]
    # dropout(0.1) -> identity (eval mode)
    x1 = x_q + attn                                              # residual, f32

    # ---- LayerNorm 2 + GELU MLP (hidden dim processed in chunks) ----
    xn2 = _layer_norm(x1, ln2g_ref[...], ln2b_ref[...]).astype(bf16)
    n_chunks = w1_ref.shape[0]
    h2 = jnp.zeros((TQ, E), jnp.float32)
    for c in range(n_chunks):                                    # static unroll
        h1 = jnp.dot(xn2, w1_ref[c],
                     preferred_element_type=jnp.float32) + b1_ref[c]
        h1 = 0.5 * h1 * (1.0 + lax.erf(h1 * (1.0 / math.sqrt(2.0))))  # exact GELU
        h2 = h2 + jnp.dot(h1.astype(bf16), w2_ref[c],
                          preferred_element_type=jnp.float32)
    h2 = h2 + b2_ref[...]
    # dropout(0.1) -> identity (eval mode)

    out_ref[0] = (x1 + h2).astype(out_ref.dtype)


def transformer_block(x, params, n_heads, *, block_q=128, ff_chunk=512):
    """x: (B, S, E) float32; params: dict produced by init_params."""
    B, S, E = x.shape
    assert E % n_heads == 0, "n_embeddings must be divisible by n_heads"
    block_q = min(block_q, S)
    assert S % block_q == 0, "seq_len must be divisible by block_q"
    num_q = S // block_q
    H = n_heads
    D = E // H

    F4 = 4 * E
    if F4 > ff_chunk and F4 % ff_chunk == 0:
        n_chunks = F4 // ff_chunk
    else:
        n_chunks = 1
    fc = F4 // n_chunks

    f32, bf16 = jnp.float32, jnp.bfloat16

    # Host-side (trace-time) weight re-layout: split qkv on the output axis,
    # chunk the MLP weights on a leading axis, cast matmul operands to bf16.
    w_qkv, b_qkv = params["w_qkv"], params["b_qkv"]
    wq = w_qkv[:, 0 * E:1 * E].astype(bf16)
    wk = w_qkv[:, 1 * E:2 * E].astype(bf16)
    wv = w_qkv[:, 2 * E:3 * E].astype(bf16)
    bq = b_qkv[:, 0 * E:1 * E].astype(f32)
    bk = b_qkv[:, 1 * E:2 * E].astype(f32)
    bv = b_qkv[:, 2 * E:3 * E].astype(f32)
    wproj = params["w_proj"].astype(bf16)
    bproj = params["b_proj"].astype(f32)
    w1 = params["w_ff1"].reshape(E, n_chunks, fc).transpose(1, 0, 2).astype(bf16)
    b1 = params["b_ff1"].reshape(1, n_chunks, fc).transpose(1, 0, 2).astype(f32)
    w2 = params["w_ff2"].reshape(n_chunks, fc, E).astype(bf16)
    b2 = params["b_ff2"].astype(f32)
    ln1g, ln1b = params["ln1_g"].astype(f32), params["ln1_b"].astype(f32)
    ln2g, ln2b = params["ln2_g"].astype(f32), params["ln2_b"].astype(f32)

    kernel = functools.partial(transformer_block_kernel, n_heads=H)

    # weights: whole-array VMEM residents (constant across the grid -> no pipelining)
    vmem_spec = pl.BlockSpec(memory_space=pltpu.MemorySpace.VMEM)
    in_specs = [
        pl.BlockSpec((1, block_q, E), lambda b, q: (b, q, 0)),   # x, query tile
        pl.BlockSpec((1, S, E), lambda b, q: (b, 0, 0)),         # x, full sequence (K/V)
    ] + [vmem_spec] * 16
    out_specs = pl.BlockSpec((1, block_q, E), lambda b, q: (b, q, 0))

    scratch_shapes = [
        pltpu.VMEM((H, block_q, 1), f32),   # running row max m
        pltpu.VMEM((H, block_q, 1), f32),   # running denominator l
        pltpu.VMEM((H, block_q, D), f32),   # attention output accumulator
    ]

    return pl.pallas_call(
        kernel,
        out_shape=jax.ShapeDtypeStruct((B, S, E), x.dtype),
        grid=(B, num_q),
        in_specs=in_specs,
        out_specs=out_specs,
        scratch_shapes=scratch_shapes,
        compiler_params=pltpu.CompilerParams(
            dimension_semantics=("parallel", "parallel"),
            vmem_limit_bytes=48 * 1024 * 1024,   # within v7x's 64 MiB, above defaults
        ),
    )(x, x, ln1g, ln1b, wq, wk, wv, bq, bk, bv, wproj, bproj,
      ln2g, ln2b, w1, b1, w2, b2)


def init_params(key, n_embeddings):
    E = n_embeddings
    ks = jax.random.split(key, 4)
    std = 0.02

    def lin(k, fan_in, fan_out):
        kw, kb = jax.random.split(k)
        w = jax.random.normal(kw, (fan_in, fan_out), jnp.float32) * std
        b = jax.random.normal(kb, (1, fan_out), jnp.float32) * std
        return w, b

    w_qkv, b_qkv = lin(ks[0], E, 3 * E)
    w_proj, b_proj = lin(ks[1], E, E)
    w_ff1, b_ff1 = lin(ks[2], E, 4 * E)
    w_ff2, b_ff2 = lin(ks[3], 4 * E, E)
    return {
        "ln1_g": jnp.ones((1, E), jnp.float32),
        "ln1_b": jnp.zeros((1, E), jnp.float32),
        "ln2_g": jnp.ones((1, E), jnp.float32),
        "ln2_b": jnp.zeros((1, E), jnp.float32),
        "w_qkv": w_qkv, "b_qkv": b_qkv,
        "w_proj": w_proj, "b_proj": b_proj,
        "w_ff1": w_ff1, "b_ff1": b_ff1,
        "w_ff2": w_ff2, "b_ff2": b_ff2,
    }


if __name__ == "__main__":
    # Small but lane-dense config (E multiple of 128 per review); S=256 with
    # block_q=128 exercises both the single-tile and two-tile causal paths.
    B, S, E, H = 2, 256, 256, 4
    key = jax.random.PRNGKey(0)
    kx, kp = jax.random.split(key)
    x = jax.random.normal(kx, (B, S, E), jnp.float32)
    params = init_params(kp, E)

    out = transformer_block(x, params, n_heads=H)
    jax.block_until_ready(out)
    assert out.shape == (B, S, E)
    assert bool(jnp.all(jnp.isfinite(out)))
    print("KERNEL_OK")
</pallas_src>

<mosaic_0001>
module attributes {stable_mosaic.version = 11 : i64} {
  func.func @transformer_block_kernel(%arg0: i32, %arg1: i32, %arg2: memref<1x128x256xf32, #tpu.memory_space<vmem>>, %arg3: memref<1x256x256xf32, #tpu.memory_space<vmem>>, %arg4: memref<1x256xf32, #tpu.memory_space<vmem>>, %arg5: memref<1x256xf32, #tpu.memory_space<vmem>>, %arg6: memref<256x256xbf16, #tpu.memory_space<vmem>>, %arg7: memref<256x256xbf16, #tpu.memory_space<vmem>>, %arg8: memref<256x256xbf16, #tpu.memory_space<vmem>>, %arg9: memref<1x256xf32, #tpu.memory_space<vmem>>, %arg10: memref<1x256xf32, #tpu.memory_space<vmem>>, %arg11: memref<1x256xf32, #tpu.memory_space<vmem>>, %arg12: memref<256x256xbf16, #tpu.memory_space<vmem>>, %arg13: memref<1x256xf32, #tpu.memory_space<vmem>>, %arg14: memref<1x256xf32, #tpu.memory_space<vmem>>, %arg15: memref<1x256xf32, #tpu.memory_space<vmem>>, %arg16: memref<2x256x512xbf16, #tpu.memory_space<vmem>>, %arg17: memref<2x1x512xf32, #tpu.memory_space<vmem>>, %arg18: memref<2x512x256xbf16, #tpu.memory_space<vmem>>, %arg19: memref<1x256xf32, #tpu.memory_space<vmem>>, %arg20: memref<1x128x256xf32, #tpu.memory_space<vmem>>, %arg21: memref<4x128x1xf32, #tpu.memory_space<vmem>>, %arg22: memref<4x128x1xf32, #tpu.memory_space<vmem>>, %arg23: memref<4x128x64xf32, #tpu.memory_space<vmem>>) attributes {dimension_semantics = [#tpu.dimension_semantics<parallel>, #tpu.dimension_semantics<parallel>], iteration_bounds = array<i64: 2, 2>, scalar_prefetch = 0 : i64, scratch_operands = 3 : i64, tpu.core_type = #tpu.core_type<tc>, window_params = [{transform_indices = @transform_0, window_bounds = array<i64: 1, 128, 256>}, {transform_indices = @transform_1, window_bounds = array<i64: 1, 256, 256>}, {pipeline_mode = #tpu.pipeline_mode<synchronous>, transform_indices = @transform_2, window_bounds = array<i64: 1, 256>}, {pipeline_mode = #tpu.pipeline_mode<synchronous>, transform_indices = @transform_3, window_bounds = array<i64: 1, 256>}, {pipeline_mode = #tpu.pipeline_mode<synchronous>, transform_indices = @transform_4, window_bounds = array<i64: 256, 256>}, {pipeline_mode = #tpu.pipeline_mode<synchronous>, transform_indices = @transform_5, window_bounds = array<i64: 256, 256>}, {pipeline_mode = #tpu.pipeline_mode<synchronous>, transform_indices = @transform_6, window_bounds = array<i64: 256, 256>}, {pipeline_mode = #tpu.pipeline_mode<synchronous>, transform_indices = @transform_7, window_bounds = array<i64: 1, 256>}, {pipeline_mode = #tpu.pipeline_mode<synchronous>, transform_indices = @transform_8, window_bounds = array<i64: 1, 256>}, {pipeline_mode = #tpu.pipeline_mode<synchronous>, transform_indices = @transform_9, window_bounds = array<i64: 1, 256>}, {pipeline_mode = #tpu.pipeline_mode<synchronous>, transform_indices = @transform_10, window_bounds = array<i64: 256, 256>}, {pipeline_mode = #tpu.pipeline_mode<synchronous>, transform_indices = @transform_11, window_bounds = array<i64: 1, 256>}, {pipeline_mode = #tpu.pipeline_mode<synchronous>, transform_indices = @transform_12, window_bounds = array<i64: 1, 256>}, {pipeline_mode = #tpu.pipeline_mode<synchronous>, transform_indices = @transform_13, window_bounds = array<i64: 1, 256>}, {pipeline_mode = #tpu.pipeline_mode<synchronous>, transform_indices = @transform_14, window_bounds = array<i64: 2, 256, 512>}, {pipeline_mode = #tpu.pipeline_mode<synchronous>, transform_indices = @transform_15, window_bounds = array<i64: 2, 1, 512>}, {pipeline_mode = #tpu.pipeline_mode<synchronous>, transform_indices = @transform_16, window_bounds = array<i64: 2, 512, 256>}, {pipeline_mode = #tpu.pipeline_mode<synchronous>, transform_indices = @transform_17, window_bounds = array<i64: 1, 256>}, {transform_indices = @transform_18, window_bounds = array<i64: 1, 128, 256>}]} {
    %c0 = arith.constant 0 : index
    %c0_0 = arith.constant 0 : index
    %c0_1 = arith.constant 0 : index
    %0 = vector.load %arg2[%c0, %c0_0, %c0_1] : memref<1x128x256xf32, #tpu.memory_space<vmem>>, vector<1x128x256xf32>
    %1 = vector.shape_cast %0 : vector<1x128x256xf32> to vector<128x256xf32>
    %c0_2 = arith.constant 0 : index
    %c0_3 = arith.constant 0 : index
    %2 = vector.load %arg4[%c0_2, %c0_3] : memref<1x256xf32, #tpu.memory_space<vmem>>, vector<1x256xf32>
    %c0_4 = arith.constant 0 : index
    %c0_5 = arith.constant 0 : index
    %3 = vector.load %arg5[%c0_4, %c0_5] : memref<1x256xf32, #tpu.memory_space<vmem>>, vector<1x256xf32>
    %cst = arith.constant dense<0.000000e+00> : vector<128xf32>
    %4 = vector.multi_reduction <add>, %1, %cst [1] : vector<128x256xf32> to vector<128xf32>
    %5 = vector.shape_cast %4 : vector<128xf32> to vector<128x1xf32>
    %cst_6 = arith.constant 2.560000e+02 : f32
    %6 = vector.broadcast %cst_6 : f32 to vector<128x1xf32>
    %7 = arith.divf %5, %6 : vector<128x1xf32>
    %8 = vector.broadcast %7 : vector<128x1xf32> to vector<128x256xf32>
    %9 = arith.subf %1, %8 : vector<128x256xf32>
    %10 = arith.mulf %9, %9 : vector<128x256xf32>
    %cst_7 = arith.constant dense<0.000000e+00> : vector<128xf32>
    %11 = vector.multi_reduction <add>, %10, %cst_7 [1] : vector<128x256xf32> to vector<128xf32>
    %12 = vector.shape_cast %11 : vector<128xf32> to vector<128x1xf32>
    %cst_8 = arith.constant 2.560000e+02 : f32
    %13 = vector.broadcast %cst_8 : f32 to vector<128x1xf32>
    %14 = arith.divf %12, %13 : vector<128x1xf32>
    %15 = vector.broadcast %7 : vector<128x1xf32> to vector<128x256xf32>
    %16 = arith.subf %1, %15 : vector<128x256xf32>
    %cst_9 = arith.constant 9.99999974E-6 : f32
    %17 = vector.broadcast %cst_9 : f32 to vector<128x1xf32>
    %18 = arith.addf %14, %17 : vector<128x1xf32>
    %19 = math.rsqrt %18 : vector<128x1xf32>
    %20 = vector.broadcast %19 : vector<128x1xf32> to vector<128x256xf32>
    %21 = arith.mulf %16, %20 : vector<128x256xf32>
    %22 = vector.broadcast %2 : vector<1x256xf32> to vector<128x256xf32>
    %23 = arith.mulf %21, %22 : vector<128x256xf32>
    %24 = vector.broadcast %3 : vector<1x256xf32> to vector<128x256xf32>
    %25 = arith.addf %23, %24 : vector<128x256xf32>
    %26 = arith.truncf %25 : vector<128x256xf32> to vector<128x256xbf16>
    %c0_10 = arith.constant 0 : index
    %c0_11 = arith.constant 0 : index
    %27 = vector.load %arg6[%c0_10, %c0_11] : memref<256x256xbf16, #tpu.memory_space<vmem>>, vector<256x256xbf16>
    %cst_12 = arith.constant dense<0.000000e+00> : vector<128x256xf32>
    %28 = tpu.matmul %26, %27, %cst_12 {dimension_numbers = #tpu.dot_dimension_numbers<[1], [0], [0], [1], [0, 0, 1, 1], [], []>} : vector<128x256xbf16>, vector<256x256xbf16>, vector<128x256xf32> -> vector<128x256xf32>
    %c0_13 = arith.constant 0 : index
    %c0_14 = arith.constant 0 : index
    %29 = vector.load %arg9[%c0_13, %c0_14] : memref<1x256xf32, #tpu.memory_space<vmem>>, vector<1x256xf32>
    %30 = vector.broadcast %29 : vector<1x256xf32> to vector<128x256xf32>
    %31 = arith.addf %28, %30 : vector<128x256xf32>
    %cst_15 = arith.constant 1.250000e-01 : f32
    %32 = vector.broadcast %cst_15 : f32 to vector<128x256xf32>
    %33 = arith.mulf %31, %32 : vector<128x256xf32>
    %34 = vector.extract_strided_slice %33 {offsets = [0, 0], sizes = [128, 64], strides = [1, 1]} : vector<128x256xf32> to vector<128x64xf32>
    %35 = vector.shape_cast %34 : vector<128x64xf32> to vector<1x128x64xf32>
    %36 = vector.extract_strided_slice %33 {offsets = [0, 64], sizes = [128, 64], strides = [1, 1]} : vector<128x256xf32> to vector<128x64xf32>
    %37 = vector.shape_cast %36 : vector<128x64xf32> to vector<1x128x64xf32>
    %38 = vector.extract_strided_slice %33 {offsets = [0, 128], sizes = [128, 64], strides = [1, 1]} : vector<128x256xf32> to vector<128x64xf32>
    %39 = vector.shape_cast %38 : vector<128x64xf32> to vector<1x128x64xf32>
    %40 = vector.extract_strided_slice %33 {offsets = [0, 192], sizes = [128, 64], strides = [1, 1]} : vector<128x256xf32> to vector<128x64xf32>
    %41 = vector.shape_cast %40 : vector<128x64xf32> to vector<1x128x64xf32>
    %42 = tpu.concatenate %35, %37, %39, %41 in 0 : vector<1x128x64xf32>, vector<1x128x64xf32>, vector<1x128x64xf32>, vector<1x128x64xf32> -> vector<4x128x64xf32>
    %43 = arith.truncf %42 : vector<4x128x64xf32> to vector<4x128x64xbf16>
    %cst_16 = arith.constant 0xFF800000 : f32
    %44 = vector.broadcast %cst_16 : f32 to vector<4x128x1xf32>
    %c0_17 = arith.constant 0 : index
    %c0_18 = arith.constant 0 : index
    %c0_19 = arith.constant 0 : index
    %45 = vector.load %arg21[%c0_17, %c0_18, %c0_19] : memref<4x128x1xf32, #tpu.memory_space<vmem>>, vector<4x128x1xf32>
    tpu.vector_store %arg21[%c0_17, %c0_18, %c0_19], %44 {strides = array<i32>} : memref<4x128x1xf32, #tpu.memory_space<vmem>>, vector<4x128x1xf32>,
    %cst_20 = arith.constant 0.000000e+00 : f32
    %46 = vector.broadcast %cst_20 : f32 to vector<4x128x1xf32>
    %c0_21 = arith.constant 0 : index
    %c0_22 = arith.constant 0 : index
    %c0_23 = arith.constant 0 : index
    %47 = vector.load %arg22[%c0_21, %c0_22, %c0_23] : memref<4x128x1xf32, #tpu.memory_space<vmem>>, vector<4x128x1xf32>
    tpu.vector_store %arg22[%c0_21, %c0_22, %c0_23], %46 {strides = array<i32>} : memref<4x128x1xf32, #tpu.memory_space<vmem>>, vector<4x128x1xf32>,
    %cst_24 = arith.constant 0.000000e+00 : f32
    %48 = vector.broadcast %cst_24 : f32 to vector<4x128x64xf32>
    %c0_25 = arith.constant 0 : index
    %c0_26 = arith.constant 0 : index
    %c0_27 = arith.constant 0 : index
    %49 = vector.load %arg23[%c0_25, %c0_26, %c0_27] : memref<4x128x64xf32, #tpu.memory_space<vmem>>, vector<4x128x64xf32>
    tpu.vector_store %arg23[%c0_25, %c0_26, %c0_27], %48 {strides = array<i32>} : memref<4x128x64xf32, #tpu.memory_space<vmem>>, vector<4x128x64xf32>,
    %c1_i32 = arith.constant 1 : i32
    %50 = arith.addi %arg1, %c1_i32 : i32
    %c0_i32 = arith.constant 0 : i32
    %c0_i32_28 = arith.constant 0 : i32
    %51 = arith.subi %50, %c0_i32_28 : i32
    %52 = arith.addi %c0_i32_28, %51 : i32
    %c1_i32_29 = arith.constant 1 : i32
    scf.for %arg24 = %c0_i32_28 to %52 step %c1_i32_29  : i32 {
      %c128_i32 = arith.constant 128 : i32
      %147 = arith.muli %arg24, %c128_i32 : i32
      %148 = tpu.assume_multiple %147, 128 : i32
      %c0_83 = arith.constant 0 : index
      %149 = arith.index_cast %148 : i32 to index
      %c0_84 = arith.constant 0 : index
      %150 = vector.load %arg3[%c0_83, %149, %c0_84] : memref<1x256x256xf32, #tpu.memory_space<vmem>>, vector<1x128x256xf32>
      %151 = vector.shape_cast %150 : vector<1x128x256xf32> to vector<128x256xf32>
      %c0_85 = arith.constant 0 : index
      %c0_86 = arith.constant 0 : index
      %152 = vector.load %arg4[%c0_85, %c0_86] : memref<1x256xf32, #tpu.memory_space<vmem>>, vector<1x256xf32>
      %c0_87 = arith.constant 0 : index
      %c0_88 = arith.constant 0 : index
      %153 = vector.load %arg5[%c0_87, %c0_88] : memref<1x256xf32, #tpu.memory_space<vmem>>, vector<1x256xf32>
      %cst_89 = arith.constant dense<0.000000e+00> : vector<128xf32>
      %154 = vector.multi_reduction <add>, %151, %cst_89 [1] : vector<128x256xf32> to vector<128xf32>
      %155 = vector.shape_cast %154 : vector<128xf32> to vector<128x1xf32>
      %cst_90 = arith.constant 2.560000e+02 : f32
      %156 = vector.broadcast %cst_90 : f32 to vector<128x1xf32>
      %157 = arith.divf %155, %156 : vector<128x1xf32>
      %158 = vector.broadcast %157 : vector<128x1xf32> to vector<128x256xf32>
      %159 = arith.subf %151, %158 : vector<128x256xf32>
      %160 = arith.mulf %159, %159 : vector<128x256xf32>
      %cst_91 = arith.constant dense<0.000000e+00> : vector<128xf32>
      %161 = vector.multi_reduction <add>, %160, %cst_91 [1] : vector<128x256xf32> to vector<128xf32>
      %162 = vector.shape_cast %161 : vector<128xf32> to vector<128x1xf32>
      %cst_92 = arith.constant 2.560000e+02 : f32
      %163 = vector.broadcast %cst_92 : f32 to vector<128x1xf32>
      %164 = arith.divf %162, %163 : vector<128x1xf32>
      %165 = vector.broadcast %157 : vector<128x1xf32> to vector<128x256xf32>
      %166 = arith.subf %151, %165 : vector<128x256xf32>
      %cst_93 = arith.constant 9.99999974E-6 : f32
      %167 = vector.broadcast %cst_93 : f32 to vector<128x1xf32>
      %168 = arith.addf %164, %167 : vector<128x1xf32>
      %169 = math.rsqrt %168 : vector<128x1xf32>
      %170 = vector.broadcast %169 : vector<128x1xf32> to vector<128x256xf32>
      %171 = arith.mulf %166, %170 : vector<128x256xf32>
      %172 = vector.broadcast %152 : vector<1x256xf32> to vector<128x256xf32>
      %173 = arith.mulf %171, %172 : vector<128x256xf32>
      %174 = vector.broadcast %153 : vector<1x256xf32> to vector<128x256xf32>
      %175 = arith.addf %173, %174 : vector<128x256xf32>
      %176 = arith.truncf %175 : vector<128x256xf32> to vector<128x256xbf16>
      %c0_94 = arith.constant 0 : index
      %c0_95 = arith.constant 0 : index
      %177 = vector.load %arg7[%c0_94, %c0_95] : memref<256x256xbf16, #tpu.memory_space<vmem>>, vector<256x256xbf16>
      %cst_96 = arith.constant dense<0.000000e+00> : vector<128x256xf32>
      %178 = tpu.matmul %176, %177, %cst_96 {dimension_numbers = #tpu.dot_dimension_numbers<[1], [0], [0], [1], [0, 0, 1, 1], [], []>} : vector<128x256xbf16>, vector<256x256xbf16>, vector<128x256xf32> -> vector<128x256xf32>
      %c0_97 = arith.constant 0 : index
      %c0_98 = arith.constant 0 : index
      %179 = vector.load %arg10[%c0_97, %c0_98] : memref<1x256xf32, #tpu.memory_space<vmem>>, vector<1x256xf32>
      %180 = vector.broadcast %179 : vector<1x256xf32> to vector<128x256xf32>
      %181 = arith.addf %178, %180 : vector<128x256xf32>
      %c0_99 = arith.constant 0 : index
      %c0_100 = arith.constant 0 : index
      %182 = vector.load %arg8[%c0_99, %c0_100] : memref<256x256xbf16, #tpu.memory_space<vmem>>, vector<256x256xbf16>
      %cst_101 = arith.constant dense<0.000000e+00> : vector<128x256xf32>
      %183 = tpu.matmul %176, %182, %cst_101 {dimension_numbers = #tpu.dot_dimension_numbers<[1], [0], [0], [1], [0, 0, 1, 1], [], []>} : vector<128x256xbf16>, vector<256x256xbf16>, vector<128x256xf32> -> vector<128x256xf32>
      %c0_102 = arith.constant 0 : index
      %c0_103 = arith.constant 0 : index
      %184 = vector.load %arg11[%c0_102, %c0_103] : memref<1x256xf32, #tpu.memory_space<vmem>>, vector<1x256xf32>
      %185 = vector.broadcast %184 : vector<1x256xf32> to vector<128x256xf32>
      %186 = arith.addf %183, %185 : vector<128x256xf32>
      %187 = vector.extract_strided_slice %181 {offsets = [0, 0], sizes = [128, 64], strides = [1, 1]} : vector<128x256xf32> to vector<128x64xf32>
      %188 = vector.shape_cast %187 : vector<128x64xf32> to vector<1x128x64xf32>
      %189 = vector.extract_strided_slice %181 {offsets = [0, 64], sizes = [128, 64], strides = [1, 1]} : vector<128x256xf32> to vector<128x64xf32>
      %190 = vector.shape_cast %189 : vector<128x64xf32> to vector<1x128x64xf32>
      %191 = vector.extract_strided_slice %181 {offsets = [0, 128], sizes = [128, 64], strides = [1, 1]} : vector<128x256xf32> to vector<128x64xf32>
      %192 = vector.shape_cast %191 : vector<128x64xf32> to vector<1x128x64xf32>
      %193 = vector.extract_strided_slice %181 {offsets = [0, 192], sizes = [128, 64], strides = [1, 1]} : vector<128x256xf32> to vector<128x64xf32>
      %194 = vector.shape_cast %193 : vector<128x64xf32> to vector<1x128x64xf32>
      %195 = tpu.concatenate %188, %190, %192, %194 in 0 : vector<1x128x64xf32>, vector<1x128x64xf32>, vector<1x128x64xf32>, vector<1x128x64xf32> -> vector<4x128x64xf32>
      %196 = arith.truncf %195 : vector<4x128x64xf32> to vector<4x128x64xbf16>
      %197 = vector.extract_strided_slice %186 {offsets = [0, 0], sizes = [128, 64], strides = [1, 1]} : vector<128x256xf32> to vector<128x64xf32>
      %198 = vector.shape_cast %197 : vector<128x64xf32> to vector<1x128x64xf32>
      %199 = vector.extract_strided_slice %186 {offsets = [0, 64], sizes = [128, 64], strides = [1, 1]} : vector<128x256xf32> to vector<128x64xf32>
      %200 = vector.shape_cast %199 : vector<128x64xf32> to vector<1x128x64xf32>
      %201 = vector.extract_strided_slice %186 {offsets = [0, 128], sizes = [128, 64], strides = [1, 1]} : vector<128x256xf32> to vector<128x64xf32>
      %202 = vector.shape_cast %201 : vector<128x64xf32> to vector<1x128x64xf32>
      %203 = vector.extract_strided_slice %186 {offsets = [0, 192], sizes = [128, 64], strides = [1, 1]} : vector<128x256xf32> to vector<128x64xf32>
      %204 = vector.shape_cast %203 : vector<128x64xf32> to vector<1x128x64xf32>
      %205 = tpu.concatenate %198, %200, %202, %204 in 0 : vector<1x128x64xf32>, vector<1x128x64xf32>, vector<1x128x64xf32>, vector<1x128x64xf32> -> vector<4x128x64xf32>
      %206 = arith.truncf %205 : vector<4x128x64xf32> to vector<4x128x64xbf16>
      "tpu.trace_start"() <{level = 10 : i32, message = "hqd,hkd->hqk"}> : () -> ()
      %cst_104 = arith.constant dense<0.000000e+00> : vector<4x128x128xf32>
      %207 = tpu.matmul %43, %196, %cst_104 {dimension_numbers = #tpu.dot_dimension_numbers<[2], [2], [1], [1], [0, 0, 0, 1, 1, 1], [0], [0]>} : vector<4x128x64xbf16>, vector<4x128x64xbf16>, vector<4x128x128xf32> -> vector<4x128x128xf32>
      "tpu.trace_stop"() : () -> ()
      %c128_i32_105 = arith.constant 128 : i32
      %208 = arith.muli %arg1, %c128_i32_105 : i32
      %209 = tpu.iota {dimensions = array<i32: 1>} : vector<1x128x128xi32>
      %210 = vector.broadcast %208 : i32 to vector<1x128x128xi32>
      %211 = arith.addi %210, %209 : vector<1x128x128xi32>
      %c128_i32_106 = arith.constant 128 : i32
      %212 = arith.muli %arg24, %c128_i32_106 : i32
      %213 = tpu.iota {dimensions = array<i32: 2>} : vector<1x128x128xi32>
      %214 = vector.broadcast %212 : i32 to vector<1x128x128xi32>
      %215 = arith.addi %214, %213 : vector<1x128x128xi32>
      %216 = arith.cmpi sge, %211, %215 : vector<1x128x128xi32>
      %cst_107 = arith.constant -1.000000e+30 : f32
      %217 = vector.shape_cast %216 : vector<1x128x128xi1> to vector<1x128x128xi1>
      %218 = vector.broadcast %217 : vector<1x128x128xi1> to vector<4x128x128xi1>
      %219 = vector.broadcast %cst_107 : f32 to vector<4x128x128xf32>
      %220 = arith.select %218, %207, %219 : vector<4x128x128xi1>, vector<4x128x128xf32>
      %c0_108 = arith.constant 0 : index
      %c0_109 = arith.constant 0 : index
      %c0_110 = arith.constant 0 : index
      %221 = vector.load %arg21[%c0_108, %c0_109, %c0_110] : memref<4x128x1xf32, #tpu.memory_space<vmem>>, vector<4x128x1xf32>
      %cst_111 = arith.constant dense<0xFF800000> : vector<4x128xf32>
      %222 = vector.multi_reduction <maximumf>, %220, %cst_111 [2] : vector<4x128x128xf32> to vector<4x128xf32>
      %223 = vector.shape_cast %222 : vector<4x128xf32> to vector<4x128x1xf32>
      %224 = arith.maximumf %221, %223 : vector<4x128x1xf32>
      %225 = arith.subf %221, %224 : vector<4x128x1xf32>
      %226 = math.exp %225 : vector<4x128x1xf32>
      %227 = vector.broadcast %224 : vector<4x128x1xf32> to vector<4x128x128xf32>
      %228 = arith.subf %220, %227 : vector<4x128x128xf32>
      %229 = math.exp %228 : vector<4x128x128xf32>
      %c0_112 = arith.constant 0 : index
      %c0_113 = arith.constant 0 : index
      %c0_114 = arith.constant 0 : index
      %230 = vector.load %arg22[%c0_112, %c0_113, %c0_114] : memref<4x128x1xf32, #tpu.memory_space<vmem>>, vector<4x128x1xf32>
      %231 = arith.mulf %226, %230 : vector<4x128x1xf32>
      %cst_115 = arith.constant dense<0.000000e+00> : vector<4x128xf32>
      %232 = vector.multi_reduction <add>, %229, %cst_115 [2] : vector<4x128x128xf32> to vector<4x128xf32>
      %233 = vector.shape_cast %232 : vector<4x128xf32> to vector<4x128x1xf32>
      %234 = arith.addf %231, %233 : vector<4x128x1xf32>
      %c0_116 = arith.constant 0 : index
      %c0_117 = arith.constant 0 : index
      %c0_118 = arith.constant 0 : index
      %235 = vector.load %arg22[%c0_116, %c0_117, %c0_118] : memref<4x128x1xf32, #tpu.memory_space<vmem>>, vector<4x128x1xf32>
      tpu.vector_store %arg22[%c0_116, %c0_117, %c0_118], %234 {strides = array<i32>} : memref<4x128x1xf32, #tpu.memory_space<vmem>>, vector<4x128x1xf32>,
      %c0_119 = arith.constant 0 : index
      %c0_120 = arith.constant 0 : index
      %c0_121 = arith.constant 0 : index
      %236 = vector.load %arg23[%c0_119, %c0_120, %c0_121] : memref<4x128x64xf32, #tpu.memory_space<vmem>>, vector<4x128x64xf32>
      %237 = vector.broadcast %226 : vector<4x128x1xf32> to vector<4x128x64xf32>
      %238 = arith.mulf %237, %236 : vector<4x128x64xf32>
      %239 = arith.truncf %229 : vector<4x128x128xf32> to vector<4x128x128xbf16>
      "tpu.trace_start"() <{level = 10 : i32, message = "hqk,hkd->hqd"}> : () -> ()
      %cst_122 = arith.constant dense<0.000000e+00> : vector<4x128x64xf32>
      %240 = tpu.matmul %239, %206, %cst_122 {dimension_numbers = #tpu.dot_dimension_numbers<[2], [1], [1], [2], [0, 0, 0, 1, 1, 2], [0], [0]>} : vector<4x128x128xbf16>, vector<4x128x64xbf16>, vector<4x128x64xf32> -> vector<4x128x64xf32>
      "tpu.trace_stop"() : () -> ()
      %241 = arith.addf %238, %240 : vector<4x128x64xf32>
      %c0_123 = arith.constant 0 : index
      %c0_124 = arith.constant 0 : index
      %c0_125 = arith.constant 0 : index
      %242 = vector.load %arg23[%c0_123, %c0_124, %c0_125] : memref<4x128x64xf32, #tpu.memory_space<vmem>>, vector<4x128x64xf32>
      tpu.vector_store %arg23[%c0_123, %c0_124, %c0_125], %241 {strides = array<i32>} : memref<4x128x64xf32, #tpu.memory_space<vmem>>, vector<4x128x64xf32>,
      %c0_126 = arith.constant 0 : index
      %c0_127 = arith.constant 0 : index
      %c0_128 = arith.constant 0 : index
      %243 = vector.load %arg21[%c0_126, %c0_127, %c0_128] : memref<4x128x1xf32, #tpu.memory_space<vmem>>, vector<4x128x1xf32>
      tpu.vector_store %arg21[%c0_126, %c0_127, %c0_128], %224 {strides = array<i32>} : memref<4x128x1xf32, #tpu.memory_space<vmem>>, vector<4x128x1xf32>,
    }
    %c0_30 = arith.constant 0 : index
    %c0_31 = arith.constant 0 : index
    %c0_32 = arith.constant 0 : index
    %53 = vector.load %arg22[%c0_30, %c0_31, %c0_32] : memref<4x128x1xf32, #tpu.memory_space<vmem>>, vector<4x128x1xf32>
    %54 = tpu.reciprocal %53 {approx = true} : vector<4x128x1xf32> -> vector<4x128x1xf32>
    %c0_33 = arith.constant 0 : index
    %c0_34 = arith.constant 0 : index
    %c0_35 = arith.constant 0 : index
    %55 = vector.load %arg23[%c0_33, %c0_34, %c0_35] : memref<4x128x64xf32, #tpu.memory_space<vmem>>, vector<4x128x64xf32>
    %56 = vector.broadcast %54 : vector<4x128x1xf32> to vector<4x128x64xf32>
    %57 = arith.mulf %55, %56 : vector<4x128x64xf32>
    %58 = vector.extract_strided_slice %57 {offsets = [0, 0, 0], sizes = [1, 128, 64], strides = [1, 1, 1]} : vector<4x128x64xf32> to vector<1x128x64xf32>
    %59 = vector.shape_cast %58 : vector<1x128x64xf32> to vector<128x64xf32>
    %60 = vector.extract_strided_slice %57 {offsets = [1, 0, 0], sizes = [1, 128, 64], strides = [1, 1, 1]} : vector<4x128x64xf32> to vector<1x128x64xf32>
    %61 = vector.shape_cast %60 : vector<1x128x64xf32> to vector<128x64xf32>
    %62 = vector.extract_strided_slice %57 {offsets = [2, 0, 0], sizes = [1, 128, 64], strides = [1, 1, 1]} : vector<4x128x64xf32> to vector<1x128x64xf32>
    %63 = vector.shape_cast %62 : vector<1x128x64xf32> to vector<128x64xf32>
    %64 = vector.extract_strided_slice %57 {offsets = [3, 0, 0], sizes = [1, 128, 64], strides = [1, 1, 1]} : vector<4x128x64xf32> to vector<1x128x64xf32>
    %65 = vector.shape_cast %64 : vector<1x128x64xf32> to vector<128x64xf32>
    %66 = tpu.concatenate %59, %61, %63, %65 in 1 : vector<128x64xf32>, vector<128x64xf32>, vector<128x64xf32>, vector<128x64xf32> -> vector<128x256xf32>
    %67 = arith.truncf %66 : vector<128x256xf32> to vector<128x256xbf16>
    %c0_36 = arith.constant 0 : index
    %c0_37 = arith.constant 0 : index
    %68 = vector.load %arg12[%c0_36, %c0_37] : memref<256x256xbf16, #tpu.memory_space<vmem>>, vector<256x256xbf16>
    %cst_38 = arith.constant dense<0.000000e+00> : vector<128x256xf32>
    %69 = tpu.matmul %67, %68, %cst_38 {dimension_numbers = #tpu.dot_dimension_numbers<[1], [0], [0], [1], [0, 0, 1, 1], [], []>} : vector<128x256xbf16>, vector<256x256xbf16>, vector<128x256xf32> -> vector<128x256xf32>
    %c0_39 = arith.constant 0 : index
    %c0_40 = arith.constant 0 : index
    %70 = vector.load %arg13[%c0_39, %c0_40] : memref<1x256xf32, #tpu.memory_space<vmem>>, vector<1x256xf32>
    %71 = vector.broadcast %70 : vector<1x256xf32> to vector<128x256xf32>
    %72 = arith.addf %69, %71 : vector<128x256xf32>
    %73 = arith.addf %1, %72 : vector<128x256xf32>
    %c0_41 = arith.constant 0 : index
    %c0_42 = arith.constant 0 : index
    %74 = vector.load %arg14[%c0_41, %c0_42] : memref<1x256xf32, #tpu.memory_space<vmem>>, vector<1x256xf32>
    %c0_43 = arith.constant 0 : index
    %c0_44 = arith.constant 0 : index
    %75 = vector.load %arg15[%c0_43, %c0_44] : memref<1x256xf32, #tpu.memory_space<vmem>>, vector<1x256xf32>
    %cst_45 = arith.constant dense<0.000000e+00> : vector<128xf32>
    %76 = vector.multi_reduction <add>, %73, %cst_45 [1] : vector<128x256xf32> to vector<128xf32>
    %77 = vector.shape_cast %76 : vector<128xf32> to vector<128x1xf32>
    %cst_46 = arith.constant 2.560000e+02 : f32
    %78 = vector.broadcast %cst_46 : f32 to vector<128x1xf32>
    %79 = arith.divf %77, %78 : vector<128x1xf32>
    %80 = vector.broadcast %79 : vector<128x1xf32> to vector<128x256xf32>
    %81 = arith.subf %73, %80 : vector<128x256xf32>
    %82 = arith.mulf %81, %81 : vector<128x256xf32>
    %cst_47 = arith.constant dense<0.000000e+00> : vector<128xf32>
    %83 = vector.multi_reduction <add>, %82, %cst_47 [1] : vector<128x256xf32> to vector<128xf32>
    %84 = vector.shape_cast %83 : vector<128xf32> to vector<128x1xf32>
    %cst_48 = arith.constant 2.560000e+02 : f32
    %85 = vector.broadcast %cst_48 : f32 to vector<128x1xf32>
    %86 = arith.divf %84, %85 : vector<128x1xf32>
    %87 = vector.broadcast %79 : vector<128x1xf32> to vector<128x256xf32>
    %88 = arith.subf %73, %87 : vector<128x256xf32>
    %cst_49 = arith.constant 9.99999974E-6 : f32
    %89 = vector.broadcast %cst_49 : f32 to vector<128x1xf32>
    %90 = arith.addf %86, %89 : vector<128x1xf32>
    %91 = math.rsqrt %90 : vector<128x1xf32>
    %92 = vector.broadcast %91 : vector<128x1xf32> to vector<128x256xf32>
    %93 = arith.mulf %88, %92 : vector<128x256xf32>
    %94 = vector.broadcast %74 : vector<1x256xf32> to vector<128x256xf32>
    %95 = arith.mulf %93, %94 : vector<128x256xf32>
    %96 = vector.broadcast %75 : vector<1x256xf32> to vector<128x256xf32>
    %97 = arith.addf %95, %96 : vector<128x256xf32>
    %98 = arith.truncf %97 : vector<128x256xf32> to vector<128x256xbf16>
    %cst_50 = arith.constant 0.000000e+00 : f32
    %99 = vector.broadcast %cst_50 : f32 to vector<128x256xf32>
    %c0_51 = arith.constant 0 : index
    %c0_52 = arith.constant 0 : index
    %c0_53 = arith.constant 0 : index
    %100 = vector.load %arg16[%c0_51, %c0_52, %c0_53] : memref<2x256x512xbf16, #tpu.memory_space<vmem>>, vector<1x256x512xbf16>
    %101 = vector.shape_cast %100 : vector<1x256x512xbf16> to vector<256x512xbf16>
    %cst_54 = arith.constant dense<0.000000e+00> : vector<128x512xf32>
    %102 = tpu.matmul %98, %101, %cst_54 {dimension_numbers = #tpu.dot_dimension_numbers<[1], [0], [0], [1], [0, 0, 1, 1], [], []>} : vector<128x256xbf16>, vector<256x512xbf16>, vector<128x512xf32> -> vector<128x512xf32>
    %c0_55 = arith.constant 0 : index
    %c0_56 = arith.constant 0 : index
    %c0_57 = arith.constant 0 : index
    %103 = vector.load %arg17[%c0_55, %c0_56, %c0_57] : memref<2x1x512xf32, #tpu.memory_space<vmem>>, vector<1x1x512xf32>
    %104 = vector.shape_cast %103 : vector<1x1x512xf32> to vector<1x512xf32>
    %105 = vector.broadcast %104 : vector<1x512xf32> to vector<128x512xf32>
    %106 = arith.addf %102, %105 : vector<128x512xf32>
    %cst_58 = arith.constant 5.000000e-01 : f32
    %107 = vector.broadcast %cst_58 : f32 to vector<128x512xf32>
    %108 = arith.mulf %107, %106 : vector<128x512xf32>
    %cst_59 = arith.constant 0.707106769 : f32
    %109 = vector.broadcast %cst_59 : f32 to vector<128x512xf32>
    %110 = arith.mulf %106, %109 : vector<128x512xf32>
    %111 = math.erf %110 : vector<128x512xf32>
    %cst_60 = arith.constant 1.000000e+00 : f32
    %112 = vector.broadcast %cst_60 : f32 to vector<128x512xf32>
    %113 = arith.addf %112, %111 : vector<128x512xf32>
    %114 = arith.mulf %108, %113 : vector<128x512xf32>
    %115 = arith.truncf %114 : vector<128x512xf32> to vector<128x512xbf16>
    %c0_61 = arith.constant 0 : index
    %c0_62 = arith.constant 0 : index
    %c0_63 = arith.constant 0 : index
    %116 = vector.load %arg18[%c0_61, %c0_62, %c0_63] : memref<2x512x256xbf16, #tpu.memory_space<vmem>>, vector<1x512x256xbf16>
    %117 = vector.shape_cast %116 : vector<1x512x256xbf16> to vector<512x256xbf16>
    %cst_64 = arith.constant dense<0.000000e+00> : vector<128x256xf32>
    %118 = tpu.matmul %115, %117, %cst_64 {dimension_numbers = #tpu.dot_dimension_numbers<[1], [0], [0], [1], [0, 0, 1, 1], [], []>} : vector<128x512xbf16>, vector<512x256xbf16>, vector<128x256xf32> -> vector<128x256xf32>
    %119 = arith.addf %99, %118 : vector<128x256xf32>
    %c1 = arith.constant 1 : index
    %c0_65 = arith.constant 0 : index
    %c0_66 = arith.constant 0 : index
    %120 = vector.load %arg16[%c1, %c0_65, %c0_66] : memref<2x256x512xbf16, #tpu.memory_space<vmem>>, vector<1x256x512xbf16>
    %121 = vector.shape_cast %120 : vector<1x256x512xbf16> to vector<256x512xbf16>
    %cst_67 = arith.constant dense<0.000000e+00> : vector<128x512xf32>
    %122 = tpu.matmul %98, %121, %cst_67 {dimension_numbers = #tpu.dot_dimension_numbers<[1], [0], [0], [1], [0, 0, 1, 1], [], []>} : vector<128x256xbf16>, vector<256x512xbf16>, vector<128x512xf32> -> vector<128x512xf32>
    %c1_68 = arith.constant 1 : index
    %c0_69 = arith.constant 0 : index
    %c0_70 = arith.constant 0 : index
    %123 = vector.load %arg17[%c1_68, %c0_69, %c0_70] : memref<2x1x512xf32, #tpu.memory_space<vmem>>, vector<1x1x512xf32>
    %124 = vector.shape_cast %123 : vector<1x1x512xf32> to vector<1x512xf32>
    %125 = vector.broadcast %124 : vector<1x512xf32> to vector<128x512xf32>
    %126 = arith.addf %122, %125 : vector<128x512xf32>
    %cst_71 = arith.constant 5.000000e-01 : f32
    %127 = vector.broadcast %cst_71 : f32 to vector<128x512xf32>
    %128 = arith.mulf %127, %126 : vector<128x512xf32>
    %cst_72 = arith.constant 0.707106769 : f32
    %129 = vector.broadcast %cst_72 : f32 to vector<128x512xf32>
    %130 = arith.mulf %126, %129 : vector<128x512xf32>
    %131 = math.erf %130 : vector<128x512xf32>
    %cst_73 = arith.constant 1.000000e+00 : f32
    %132 = vector.broadcast %cst_73 : f32 to vector<128x512xf32>
    %133 = arith.addf %132, %131 : vector<128x512xf32>
    %134 = arith.mulf %128, %133 : vector<128x512xf32>
    %135 = arith.truncf %134 : vector<128x512xf32> to vector<128x512xbf16>
    %c1_74 = arith.constant 1 : index
    %c0_75 = arith.constant 0 : index
    %c0_76 = arith.constant 0 : index
    %136 = vector.load %arg18[%c1_74, %c0_75, %c0_76] : memref<2x512x256xbf16, #tpu.memory_space<vmem>>, vector<1x512x256xbf16>
    %137 = vector.shape_cast %136 : vector<1x512x256xbf16> to vector<512x256xbf16>
    %cst_77 = arith.constant dense<0.000000e+00> : vector<128x256xf32>
    %138 = tpu.matmul %135, %137, %cst_77 {dimension_numbers = #tpu.dot_dimension_numbers<[1], [0], [0], [1], [0, 0, 1, 1], [], []>} : vector<128x512xbf16>, vector<512x256xbf16>, vector<128x256xf32> -> vector<128x256xf32>
    %139 = arith.addf %119, %138 : vector<128x256xf32>
    %c0_78 = arith.constant 0 : index
    %c0_79 = arith.constant 0 : index
    %140 = vector.load %arg19[%c0_78, %c0_79] : memref<1x256xf32, #tpu.memory_space<vmem>>, vector<1x256xf32>
    %141 = vector.broadcast %140 : vector<1x256xf32> to vector<128x256xf32>
    %142 = arith.addf %139, %141 : vector<128x256xf32>
    %143 = arith.addf %73, %142 : vector<128x256xf32>
    %c0_80 = arith.constant 0 : index
    %c0_81 = arith.constant 0 : index
    %c0_82 = arith.constant 0 : index
    %144 = vector.load %arg20[%c0_80, %c0_81, %c0_82] : memref<1x128x256xf32, #tpu.memory_space<vmem>>, vector<1x128x256xf32>
    %145 = vector.shape_cast %144 : vector<1x128x256xf32> to vector<128x256xf32>
    %146 = vector.shape_cast %143 : vector<128x256xf32> to vector<1x128x256xf32>
    tpu.vector_store %arg20[%c0_80, %c0_81, %c0_82], %146 {strides = array<i32>} : memref<1x128x256xf32, #tpu.memory_space<vmem>>, vector<1x128x256xf32>,
    return
  }
  func.func @transform_0(%arg0: i32, %arg1: i32) -> (i32, i32, i32) {
    %c0_i32 = arith.constant 0 : i32
    %c0_i32_0 = arith.constant 0 : i32
    return %arg0, %arg1, %c0_i32 : i32, i32, i32
  }
  func.func @transform_1(%arg0: i32, %arg1: i32) -> (i32, i32, i32) {
    %c0_i32 = arith.constant 0 : i32
    %c0_i32_0 = arith.constant 0 : i32
    %c0_i32_1 = arith.constant 0 : i32
    return %arg0, %c0_i32, %c0_i32_0 : i32, i32, i32
  }
  func.func @transform_2(%arg0: i32, %arg1: i32) -> (i32, i32) {
    %c0_i32 = arith.constant 0 : i32
    %c0_i32_0 = arith.constant 0 : i32
    %c0_i32_1 = arith.constant 0 : i32
    return %c0_i32, %c0_i32_0 : i32, i32
  }
  func.func @transform_3(%arg0: i32, %arg1: i32) -> (i32, i32) {
    %c0_i32 = arith.constant 0 : i32
    %c0_i32_0 = arith.constant 0 : i32
    %c0_i32_1 = arith.constant 0 : i32
    return %c0_i32, %c0_i32_0 : i32, i32
  }
  func.func @transform_4(%arg0: i32, %arg1: i32) -> (i32, i32) {
    %c0_i32 = arith.constant 0 : i32
    %c0_i32_0 = arith.constant 0 : i32
    %c0_i32_1 = arith.constant 0 : i32
    return %c0_i32, %c0_i32_0 : i32, i32
  }
  func.func @transform_5(%arg0: i32, %arg1: i32) -> (i32, i32) {
    %c0_i32 = arith.constant 0 : i32
    %c0_i32_0 = arith.constant 0 : i32
    %c0_i32_1 = arith.constant 0 : i32
    return %c0_i32, %c0_i32_0 : i32, i32
  }
  func.func @transform_6(%arg0: i32, %arg1: i32) -> (i32, i32) {
    %c0_i32 = arith.constant 0 : i32
    %c0_i32_0 = arith.constant 0 : i32
    %c0_i32_1 = arith.constant 0 : i32
    return %c0_i32, %c0_i32_0 : i32, i32
  }
  func.func @transform_7(%arg0: i32, %arg1: i32) -> (i32, i32) {
    %c0_i32 = arith.constant 0 : i32
    %c0_i32_0 = arith.constant 0 : i32
    %c0_i32_1 = arith.constant 0 : i32
    return %c0_i32, %c0_i32_0 : i32, i32
  }
  func.func @transform_8(%arg0: i32, %arg1: i32) -> (i32, i32) {
    %c0_i32 = arith.constant 0 : i32
    %c0_i32_0 = arith.constant 0 : i32
    %c0_i32_1 = arith.constant 0 : i32
    return %c0_i32, %c0_i32_0 : i32, i32
  }
  func.func @transform_9(%arg0: i32, %arg1: i32) -> (i32, i32) {
    %c0_i32 = arith.constant 0 : i32
    %c0_i32_0 = arith.constant 0 : i32
    %c0_i32_1 = arith.constant 0 : i32
    return %c0_i32, %c0_i32_0 : i32, i32
  }
  func.func @transform_10(%arg0: i32, %arg1: i32) -> (i32, i32) {
    %c0_i32 = arith.constant 0 : i32
    %c0_i32_0 = arith.constant 0 : i32
    %c0_i32_1 = arith.constant 0 : i32
    return %c0_i32, %c0_i32_0 : i32, i32
  }
  func.func @transform_11(%arg0: i32, %arg1: i32) -> (i32, i32) {
    %c0_i32 = arith.constant 0 : i32
    %c0_i32_0 = arith.constant 0 : i32
    %c0_i32_1 = arith.constant 0 : i32
    return %c0_i32, %c0_i32_0 : i32, i32
  }
  func.func @transform_12(%arg0: i32, %arg1: i32) -> (i32, i32) {
    %c0_i32 = arith.constant 0 : i32
    %c0_i32_0 = arith.constant 0 : i32
    %c0_i32_1 = arith.constant 0 : i32
    return %c0_i32, %c0_i32_0 : i32, i32
  }
  func.func @transform_13(%arg0: i32, %arg1: i32) -> (i32, i32) {
    %c0_i32 = arith.constant 0 : i32
    %c0_i32_0 = arith.constant 0 : i32
    %c0_i32_1 = arith.constant 0 : i32
    return %c0_i32, %c0_i32_0 : i32, i32
  }
  func.func @transform_14(%arg0: i32, %arg1: i32) -> (i32, i32, i32) {
    %c0_i32 = arith.constant 0 : i32
    %c0_i32_0 = arith.constant 0 : i32
    %c0_i32_1 = arith.constant 0 : i32
    %c0_i32_2 = arith.constant 0 : i32
    return %c0_i32, %c0_i32_0, %c0_i32_1 : i32, i32, i32
  }
  func.func @transform_15(%arg0: i32, %arg1: i32) -> (i32, i32, i32) {
    %c0_i32 = arith.constant 0 : i32
    %c0_i32_0 = arith.constant 0 : i32
    %c0_i32_1 = arith.constant 0 : i32
    %c0_i32_2 = arith.constant 0 : i32
    return %c0_i32, %c0_i32_0, %c0_i32_1 : i32, i32, i32
  }
  func.func @transform_16(%arg0: i32, %arg1: i32) -> (i32, i32, i32) {
    %c0_i32 = arith.constant 0 : i32
    %c0_i32_0 = arith.constant 0 : i32
    %c0_i32_1 = arith.constant 0 : i32
    %c0_i32_2 = arith.constant 0 : i32
    return %c0_i32, %c0_i32_0, %c0_i32_1 : i32, i32, i32
  }
  func.func @transform_17(%arg0: i32, %arg1: i32) -> (i32, i32) {
    %c0_i32 = arith.constant 0 : i32
    %c0_i32_0 = arith.constant 0 : i32
    %c0_i32_1 = arith.constant 0 : i32
    return %c0_i32, %c0_i32_0 : i32, i32
  }
  func.func @transform_18(%arg0: i32, %arg1: i32) -> (i32, i32, i32) {
    %c0_i32 = arith.constant 0 : i32
    %c0_i32_0 = arith.constant 0 : i32
    return %arg0, %arg1, %c0_i32 : i32, i32, i32
  }
}

</mosaic_0001>

<llo_original>
// kernel: tpu_custom_call.1
$region0: #{tpu_custom_call.1}
  #allocation0 [shape = 'u32[]', space=smem, size = 0x4, offset = 0x4, fixed_abs, tag = 'smem constant byte address 0x4 - core index']
  #allocation1 [shape = 'u32[144,128]{1,0:T(1,128)}', space=vmem, size = 0x12000, scoped, tag = 'internal scratch']
  #allocation2 [shape = 'f32[4,128,1]{2,1,0:T(8,128)}', space=vmem, size = 0x40000, scoped, tag = 'scratch operand']
  #allocation3 [shape = 'f32[4,128,1]{2,1,0:T(8,128)}', space=vmem, size = 0x40000, scoped, tag = 'scratch operand']
  #allocation4 [shape = 'f32[4,128,64]{2,1,0:T(8,128)}', space=vmem, size = 0x40000, scoped, tag = 'scratch operand']
  %s0 = inlined_call_operand.hbm [shape: f32[2,256,256], index: 0, kind: input, shape index: {}]
  %s1 = inlined_call_operand.hbm [shape: f32[2,256,256], index: 1, kind: input, shape index: {}]
  %s2 = inlined_call_operand.vmem [shape: f32[1,256], index: 2, kind: input, shape index: {}]
  %s3 = inlined_call_operand.vmem [shape: f32[1,256], index: 3, kind: input, shape index: {}]
  %s4 = inlined_call_operand.hbm [shape: bf16[256,256], index: 4, kind: input, shape index: {}]
  %s5 = inlined_call_operand.hbm [shape: bf16[256,256], index: 5, kind: input, shape index: {}]
  %s6 = inlined_call_operand.hbm [shape: bf16[256,256], index: 6, kind: input, shape index: {}]
  %s7 = inlined_call_operand.vmem [shape: f32[1,256], index: 7, kind: input, shape index: {}]
  %s8 = inlined_call_operand.vmem [shape: f32[1,256], index: 8, kind: input, shape index: {}]
  %s9 = inlined_call_operand.vmem [shape: f32[1,256], index: 9, kind: input, shape index: {}]
  %s10 = inlined_call_operand.hbm [shape: bf16[256,256], index: 10, kind: input, shape index: {}]
  %s11 = inlined_call_operand.vmem [shape: f32[1,256], index: 11, kind: input, shape index: {}]
  %s12 = inlined_call_operand.vmem [shape: f32[1,256], index: 12, kind: input, shape index: {}]
  %s13 = inlined_call_operand.vmem [shape: f32[1,256], index: 13, kind: input, shape index: {}]
  %s14 = inlined_call_operand.hbm [shape: bf16[2,256,512], index: 14, kind: input, shape index: {}]
  %s15 = inlined_call_operand.vmem [shape: f32[2,1,512], index: 15, kind: input, shape index: {}]
  %s16 = inlined_call_operand.hbm [shape: bf16[2,512,256], index: 16, kind: input, shape index: {}]
  %s17 = inlined_call_operand.vmem [shape: f32[1,256], index: 17, kind: input, shape index: {}]
  %s18 = inlined_call_operand.hbm [shape: f32[2,256,256], index: 18, kind: output, shape index: {}]
  %s19 = sld [smem:[#allocation0]]
  $region144: #{tpu_custom_call.1} parent=0
    _
  %s21 = ssub.s32 1, %s19
  %s22 = scalar_select 0, %s21, %s19
  $region1: #{tpu_custom_call.1} parent=0
    #allocation5 [shape = 'u8[262144]{0}', space=vmem, size = 0x40000, scoped, tag = 'input window, operand 0']
    #allocation6 [shape = 's32[2]{0}', space=sflag, size = 0x8, scoped, tag = 'scoped memory for tpu_custom_call.1']
    #allocation7 [shape = 's32[2]{0}', space=sflag, size = 0x8, scoped, tag = 'scoped memory for tpu_custom_call.1']
    #allocation8 [shape = 'u8[524288]{0}', space=vmem, size = 0x80000, scoped, tag = 'input window, operand 1']
    #allocation9 [shape = 's32[2]{0}', space=sflag, size = 0x8, scoped, tag = 'scoped memory for tpu_custom_call.1']
    #allocation10 [shape = 'u8[131072]{0}', space=vmem, size = 0x20000, scoped, tag = 'input window, operand 4, single buffered']
    #allocation11 [shape = 'u8[131072]{0}', space=vmem, size = 0x20000, scoped, tag = 'input window, operand 5, single buffered']
    #allocation12 [shape = 's32[1]{0}', space=sflag, size = 0x4, scoped, tag = 'scoped memory for tpu_custom_call.1']
    #allocation13 [shape = 'u8[131072]{0}', space=vmem, size = 0x20000, scoped, tag = 'input window, operand 6, single buffered']
    #allocation14 [shape = 'u8[131072]{0}', space=vmem, size = 0x20000, scoped, tag = 'input window, operand 10, single buffered']
    #allocation15 [shape = 's32[1]{0}', space=sflag, size = 0x4, scoped, tag = 'scoped memory for tpu_custom_call.1']
    #allocation16 [shape = 'u8[524288]{0}', space=vmem, size = 0x80000, scoped, tag = 'input window, operand 14, single buffered']
    #allocation17 [shape = 'u8[524288]{0}', space=vmem, size = 0x80000, scoped, tag = 'input window, operand 16, single buffered']
    #allocation18 [shape = 's32[1]{0}', space=sflag, size = 0x4, scoped, tag = 'scoped memory for tpu_custom_call.1']
    #allocation19 [shape = 'u8[262144]{0}', space=vmem, size = 0x40000, scoped, tag = 'output window, operand 0']
    %23 = vsyncpa [#allocation6], 0
    %s24 = scalar_lea.sflag [#allocation6], 1
    %25 = vsyncpa %s24, 0
    %26 = vsyncpa [#allocation9], 0
    %s27 = scalar_lea.sflag [#allocation9], 1
    %28 = vsyncpa %s27, 0
    %29 = vsyncpa [#allocation12], 0
    %30 = vsyncpa [#allocation15], 0
    %31 = vsyncpa [#allocation18], 0
    %32 = vsyncpa [#allocation7], 0
    %s33 = scalar_lea.sflag [#allocation7], 1
    %34 = vsyncpa %s33, 0
    loop: start=0, step=1, limit=6
    $region2: #{tpu_custom_call.1} parent=1 // loop_pre_header
      _
    $region3: #{tpu_custom_call.1} parent=1 // loop_header
      %s36 = sphi 0, %s40
      %p37 = scmp.ge.s32.totalorder %s36, 6
      %s43 = sphi 0, %s55
      %s44 = sphi 0, %s51
      %s45 = sphi 0, %s43
      %s46 = sphi 0, %s44
      %s47 = sphi 0, %s45
      %s48 = sphi 0, %s46
      %s60 = sphi 0, %s62
      %s63 = sphi 0, %s60
      %s64 = sphi 0, %s63
      %s80 = sphi 0, %s64
      %s86 = sphi 0, %s88
      %s89 = sphi 0, %s86
      %s90 = sphi 0, %s89
      %s106 = sphi 0, %s90
      %s110 = sphi 0, %s110
      %s112 = sphi 0, %s110
      %s113 = sphi 0, %s112
      %s127 = sphi 0, %s113
      %s131 = sphi 0, %s131
      %s133 = sphi 0, %s131
      %s134 = sphi 0, %s133
      %s148 = sphi 0, %s134
      %s152 = sphi 0, %s152
      %s154 = sphi 0, %s152
      %s155 = sphi 0, %s154
      %s169 = sphi 0, %s155
      %s173 = sphi 0, %s173
      %s175 = sphi 0, %s173
      %s176 = sphi 0, %s175
      %s190 = sphi 0, %s176
      %s194 = sphi 0, %s194
      %s196 = sphi 0, %s194
      %s197 = sphi 0, %s196
      %s211 = sphi 0, %s197
      %s215 = sphi 0, %s215
      %s217 = sphi 0, %s215
      %s218 = sphi 0, %s217
      %s232 = sphi 0, %s218
      %s236 = sphi 0, %s236
      %s238 = sphi 0, %s236
      %s239 = sphi 0, %s238
      %s253 = sphi 0, %s239
      %s257 = sphi 0, %s257
      %s259 = sphi 0, %s257
      %s260 = sphi 0, %s259
      %s274 = sphi 0, %s260
      %s278 = sphi 0, %s278
      %s280 = sphi 0, %s278
      %s281 = sphi 0, %s280
      %s295 = sphi 0, %s281
      %s299 = sphi 0, %s299
      %s301 = sphi 0, %s299
      %s302 = sphi 0, %s301
      %s316 = sphi 0, %s302
      %s320 = sphi 0, %s320
      %s322 = sphi 0, %s320
      %s323 = sphi 0, %s322
      %s337 = sphi 0, %s323
      %s341 = sphi 0, %s341
      %s343 = sphi 0, %s341
      %s344 = sphi 0, %s343
      %s358 = sphi 0, %s344
      %s362 = sphi 0, %s362
      %s364 = sphi 0, %s362
      %s365 = sphi 0, %s364
      %s379 = sphi 0, %s365
      %s383 = sphi 0, %s383
      %s385 = sphi 0, %s383
      %s386 = sphi 0, %s385
      %s400 = sphi 0, %s386
      %s404 = sphi 0, %s404
      %s406 = sphi 0, %s404
      %s407 = sphi 0, %s406
      %s421 = sphi 0, %s407
      %s425 = sphi 0, %s425
      %s427 = sphi 0, %s425
      %s428 = sphi 0, %s427
      %s442 = sphi 0, %s428
      %s450 = sphi 0, %s452
      %s453 = sphi 0, %s450
      %s454 = sphi 0, %s453
      %s470 = sphi 0, %s454
    $region4: #{tpu_custom_call.1} parent=1 // loop_header_branch
      %39 = sbr.rel (%p37) target = $region8
    $region5: #{tpu_custom_call.1} parent=1 // loop_body
      %s41 = ssub.s32 %s36, 1
      %s42 = ssub.s32 %s36, 2
      %s49 = sadd.s32 1, %s44
      %p50 = scmp.ge.s32.totalorder %s49, 2
      %s51 = scalar_select %p50, 0, %s49
      %s52 = sadd.s32 1, %s43
      %s53 = scalar_select %p50, %s52, %s43
      %p54 = scmp.ge.s32.totalorder %s53, 2
      %s55 = scalar_select %p54, 0, %s53
      %s56 = ssub.s32 %s43, %s55
      %s57 = ssub.s32 %s44, %s51
      %s58 = sor.u32 %s56, %s57
      %p59 = scmp.eq.s32.totalorder %s58, 0
      %s61 = sadd.s32 %s60, 1
      %s62 = scalar_select %p59, %s60, %s61
      %p65 = pneg %p59
      %p66 = scmp.eq.s32.totalorder %s36, 3
      %p67 = por %p65, %p66
      %p68 = scmp.ne.s32.totalorder %s60, %s63
      %p69 = scmp.eq.s32.totalorder %s36, 0
      %p70 = por %p68, %p69
      %p71 = scmp.ne.s32.totalorder %s60, %s63
      %p72 = scmp.eq.s32.totalorder %s41, 3
      %p73 = por %p71, %p72
      %p74 = scmp.ne.s32.totalorder %s63, %s64
      %p75 = scmp.eq.s32.totalorder %s41, 0
      %p76 = por %p74, %p75
      %p77 = scmp.ne.s32.totalorder %s63, %s64
      %p78 = scmp.eq.s32.totalorder %s42, 3
      %p79 = por %p77, %p78
      %p81 = scmp.ne.s32.totalorder %s64, %s80
      %p82 = scmp.eq.s32.totalorder %s42, 0
      %p83 = por %p81, %p82
      %s84 = ssub.s32 %s43, %s55
      %p85 = scmp.eq.s32.totalorder %s84, 0
      %s87 = sadd.s32 %s86, 1
      %s88 = scalar_select %p85, %s86, %s87
      %p91 = pneg %p85
      %p92 = scmp.eq.s32.totalorder %s36, 3
      %p93 = por %p91, %p92
      %p94 = scmp.ne.s32.totalorder %s86, %s89
      %p95 = scmp.eq.s32.totalorder %s36, 0
      %p96 = por %p94, %p95
      %p97 = scmp.ne.s32.totalorder %s86, %s89
      %p98 = scmp.eq.s32.totalorder %s41, 3
      %p99 = por %p97, %p98
      %p100 = scmp.ne.s32.totalorder %s89, %s90
      %p101 = scmp.eq.s32.totalorder %s41, 0
      %p102 = por %p100, %p101
      %p103 = scmp.ne.s32.totalorder %s89, %s90
      %p104 = scmp.eq.s32.totalorder %s42, 3
      %p105 = por %p103, %p104
      %p107 = scmp.ne.s32.totalorder %s90, %s106
      %p108 = scmp.eq.s32.totalorder %s42, 0
      %p109 = por %p107, %p108
      %s111 = sadd.s32 %s110, 1
      %p114 = scmp.eq.s32.totalorder %s36, 3
      %p115 = scmp.ne.s32.totalorder %s110, %s112
      %p116 = scmp.eq.s32.totalorder %s36, 0
      %p117 = por %p115, %p116
      %p118 = scmp.ne.s32.totalorder %s110, %s112
      %p119 = scmp.eq.s32.totalorder %s41, 3
      %p120 = por %p118, %p119
      %p121 = scmp.ne.s32.totalorder %s112, %s113
      %p122 = scmp.eq.s32.totalorder %s41, 0
      %p123 = por %p121, %p122
      %p124 = scmp.ne.s32.totalorder %s112, %s113
      %p125 = scmp.eq.s32.totalorder %s42, 3
      %p126 = por %p124, %p125
      %p128 = scmp.ne.s32.totalorder %s113, %s127
      %p129 = scmp.eq.s32.totalorder %s42, 0
      %p130 = por %p128, %p129
      %s132 = sadd.s32 %s131, 1
      %p135 = scmp.eq.s32.totalorder %s36, 3
      %p136 = scmp.ne.s32.totalorder %s131, %s133
      %p137 = scmp.eq.s32.totalorder %s36, 0
      %p138 = por %p136, %p137
      %p139 = scmp.ne.s32.totalorder %s131, %s133
      %p140 = scmp.eq.s32.totalorder %s41, 3
      %p141 = por %p139, %p140
      %p142 = scmp.ne.s32.totalorder %s133, %s134
      %p143 = scmp.eq.s32.totalorder %s41, 0
      %p144 = por %p142, %p143
      %p145 = scmp.ne.s32.totalorder %s133, %s134
      %p146 = scmp.eq.s32.totalorder %s42, 3
      %p147 = por %p145, %p146
      %p149 = scmp.ne.s32.totalorder %s134, %s148
      %p150 = scmp.eq.s32.totalorder %s42, 0
      %p151 = por %p149, %p150
      %s153 = sadd.s32 %s152, 1
      %p156 = scmp.eq.s32.totalorder %s36, 3
      %p157 = scmp.ne.s32.totalorder %s152, %s154
      %p158 = scmp.eq.s32.totalorder %s36, 0
      %p159 = por %p157, %p158
      %p160 = scmp.ne.s32.totalorder %s152, %s154
      %p161 = scmp.eq.s32.totalorder %s41, 3
      %p162 = por %p160, %p161
      %p163 = scmp.ne.s32.totalorder %s154, %s155
      %p164 = scmp.eq.s32.totalorder %s41, 0
      %p165 = por %p163, %p164
      %p166 = scmp.ne.s32.totalorder %s154, %s155
      %p167 = scmp.eq.s32.totalorder %s42, 3
      %p168 = por %p166, %p167
      %p170 = scmp.ne.s32.totalorder %s155, %s169
      %p171 = scmp.eq.s32.totalorder %s42, 0
      %p172 = por %p170, %p171
      %s174 = sadd.s32 %s173, 1
      %p177 = scmp.eq.s32.totalorder %s36, 3
      %p178 = scmp.ne.s32.totalorder %s173, %s175
      %p179 = scmp.eq.s32.totalorder %s36, 0
      %p180 = por %p178, %p179
      %p181 = scmp.ne.s32.totalorder %s173, %s175
      %p182 = scmp.eq.s32.totalorder %s41, 3
      %p183 = por %p181, %p182
      %p184 = scmp.ne.s32.totalorder %s175, %s176
      %p185 = scmp.eq.s32.totalorder %s41, 0
      %p186 = por %p184, %p185
      %p187 = scmp.ne.s32.totalorder %s175, %s176
      %p188 = scmp.eq.s32.totalorder %s42, 3
      %p189 = por %p187, %p188
      %p191 = scmp.ne.s32.totalorder %s176, %s190
      %p192 = scmp.eq.s32.totalorder %s42, 0
      %p193 = por %p191, %p192
      %s195 = sadd.s32 %s194, 1
      %p198 = scmp.eq.s32.totalorder %s36, 3
      %p199 = scmp.ne.s32.totalorder %s194, %s196
      %p200 = scmp.eq.s32.totalorder %s36, 0
      %p201 = por %p199, %p200
      %p202 = scmp.ne.s32.totalorder %s194, %s196
      %p203 = scmp.eq.s32.totalorder %s41, 3
      %p204 = por %p202, %p203
      %p205 = scmp.ne.s32.totalorder %s196, %s197
      %p206 = scmp.eq.s32.totalorder %s41, 0
      %p207 = por %p205, %p206
      %p208 = scmp.ne.s32.totalorder %s196, %s197
      %p209 = scmp.eq.s32.totalorder %s42, 3
      %p210 = por %p208, %p209
      %p212 = scmp.ne.s32.totalorder %s197, %s211
      %p213 = scmp.eq.s32.totalorder %s42, 0
      %p214 = por %p212, %p213
      %s216 = sadd.s32 %s215, 1
      %p219 = scmp.eq.s32.totalorder %s36, 3
      %p220 = scmp.ne.s32.totalorder %s215, %s217
      %p221 = scmp.eq.s32.totalorder %s36, 0
      %p222 = por %p220, %p221
      %p223 = scmp.ne.s32.totalorder %s215, %s217
      %p224 = scmp.eq.s32.totalorder %s41, 3
      %p225 = por %p223, %p224
      %p226 = scmp.ne.s32.totalorder %s217, %s218
      %p227 = scmp.eq.s32.totalorder %s41, 0
      %p228 = por %p226, %p227
      %p229 = scmp.ne.s32.totalorder %s217, %s218
      %p230 = scmp.eq.s32.totalorder %s42, 3
      %p231 = por %p229, %p230
      %p233 = scmp.ne.s32.totalorder %s218, %s232
      %p234 = scmp.eq.s32.totalorder %s42, 0
      %p235 = por %p233, %p234
      %s237 = sadd.s32 %s236, 1
      %p240 = scmp.eq.s32.totalorder %s36, 3
      %p241 = scmp.ne.s32.totalorder %s236, %s238
      %p242 = scmp.eq.s32.totalorder %s36, 0
      %p243 = por %p241, %p242
      %p244 = scmp.ne.s32.totalorder %s236, %s238
      %p245 = scmp.eq.s32.totalorder %s41, 3
      %p246 = por %p244, %p245
      %p247 = scmp.ne.s32.totalorder %s238, %s239
      %p248 = scmp.eq.s32.totalorder %s41, 0
      %p249 = por %p247, %p248
      %p250 = scmp.ne.s32.totalorder %s238, %s239
      %p251 = scmp.eq.s32.totalorder %s42, 3
      %p252 = por %p250, %p251
      %p254 = scmp.ne.s32.totalorder %s239, %s253
      %p255 = scmp.eq.s32.totalorder %s42, 0
      %p256 = por %p254, %p255
      %s258 = sadd.s32 %s257, 1
      %p261 = scmp.eq.s32.totalorder %s36, 3
      %p262 = scmp.ne.s32.totalorder %s257, %s259
      %p263 = scmp.eq.s32.totalorder %s36, 0
      %p264 = por %p262, %p263
      %p265 = scmp.ne.s32.totalorder %s257, %s259
      %p266 = scmp.eq.s32.totalorder %s41, 3
      %p267 = por %p265, %p266
      %p268 = scmp.ne.s32.totalorder %s259, %s260
      %p269 = scmp.eq.s32.totalorder %s41, 0
      %p270 = por %p268, %p269
      %p271 = scmp.ne.s32.totalorder %s259, %s260
      %p272 = scmp.eq.s32.totalorder %s42, 3
      %p273 = por %p271, %p272
      %p275 = scmp.ne.s32.totalorder %s260, %s274
      %p276 = scmp.eq.s32.totalorder %s42, 0
      %p277 = por %p275, %p276
      %s279 = sadd.s32 %s278, 1
      %p282 = scmp.eq.s32.totalorder %s36, 3
      %p283 = scmp.ne.s32.totalorder %s278, %s280
      %p284 = scmp.eq.s32.totalorder %s36, 0
      %p285 = por %p283, %p284
      %p286 = scmp.ne.s32.totalorder %s278, %s280
      %p287 = scmp.eq.s32.totalorder %s41, 3
      %p288 = por %p286, %p287
      %p289 = scmp.ne.s32.totalorder %s280, %s281
      %p290 = scmp.eq.s32.totalorder %s41, 0
      %p291 = por %p289, %p290
      %p292 = scmp.ne.s32.totalorder %s280, %s281
      %p293 = scmp.eq.s32.totalorder %s42, 3
      %p294 = por %p292, %p293
      %p296 = scmp.ne.s32.totalorder %s281, %s295
      %p297 = scmp.eq.s32.totalorder %s42, 0
      %p298 = por %p296, %p297
      %s300 = sadd.s32 %s299, 1
      %p303 = scmp.eq.s32.totalorder %s36, 3
      %p304 = scmp.ne.s32.totalorder %s299, %s301
      %p305 = scmp.eq.s32.totalorder %s36, 0
      %p306 = por %p304, %p305
      %p307 = scmp.ne.s32.totalorder %s299, %s301
      %p308 = scmp.eq.s32.totalorder %s41, 3
      %p309 = por %p307, %p308
      %p310 = scmp.ne.s32.totalorder %s301, %s302
      %p311 = scmp.eq.s32.totalorder %s41, 0
      %p312 = por %p310, %p311
      %p313 = scmp.ne.s32.totalorder %s301, %s302
      %p314 = scmp.eq.s32.totalorder %s42, 3
      %p315 = por %p313, %p314
      %p317 = scmp.ne.s32.totalorder %s302, %s316
      %p318 = scmp.eq.s32.totalorder %s42, 0
      %p319 = por %p317, %p318
      %s321 = sadd.s32 %s320, 1
      %p324 = scmp.eq.s32.totalorder %s36, 3
      %p325 = scmp.ne.s32.totalorder %s320, %s322
      %p326 = scmp.eq.s32.totalorder %s36, 0
      %p327 = por %p325, %p326
      %p328 = scmp.ne.s32.totalorder %s320, %s322
      %p329 = scmp.eq.s32.totalorder %s41, 3
      %p330 = por %p328, %p329
      %p331 = scmp.ne.s32.totalorder %s322, %s323
      %p332 = scmp.eq.s32.totalorder %s41, 0
      %p333 = por %p331, %p332
      %p334 = scmp.ne.s32.totalorder %s322, %s323
      %p335 = scmp.eq.s32.totalorder %s42, 3
      %p336 = por %p334, %p335
      %p338 = scmp.ne.s32.totalorder %s323, %s337
      %p339 = scmp.eq.s32.totalorder %s42, 0
      %p340 = por %p338, %p339
      %s342 = sadd.s32 %s341, 1
      %p345 = scmp.eq.s32.totalorder %s36, 3
      %p346 = scmp.ne.s32.totalorder %s341, %s343
      %p347 = scmp.eq.s32.totalorder %s36, 0
      %p348 = por %p346, %p347
      %p349 = scmp.ne.s32.totalorder %s341, %s343
      %p350 = scmp.eq.s32.totalorder %s41, 3
      %p351 = por %p349, %p350
      %p352 = scmp.ne.s32.totalorder %s343, %s344
      %p353 = scmp.eq.s32.totalorder %s41, 0
      %p354 = por %p352, %p353
      %p355 = scmp.ne.s32.totalorder %s343, %s344
      %p356 = scmp.eq.s32.totalorder %s42, 3
      %p357 = por %p355, %p356
      %p359 = scmp.ne.s32.totalorder %s344, %s358
      %p360 = scmp.eq.s32.totalorder %s42, 0
      %p361 = por %p359, %p360
      %s363 = sadd.s32 %s362, 1
      %p366 = scmp.eq.s32.totalorder %s36, 3
      %p367 = scmp.ne.s32.totalorder %s362, %s364
      %p368 = scmp.eq.s32.totalorder %s36, 0
      %p369 = por %p367, %p368
      %p370 = scmp.ne.s32.totalorder %s362, %s364
      %p371 = scmp.eq.s32.totalorder %s41, 3
      %p372 = por %p370, %p371
      %p373 = scmp.ne.s32.totalorder %s364, %s365
      %p374 = scmp.eq.s32.totalorder %s41, 0
      %p375 = por %p373, %p374
      %p376 = scmp.ne.s32.totalorder %s364, %s365
      %p377 = scmp.eq.s32.totalorder %s42, 3
      %p378 = por %p376, %p377
      %p380 = scmp.ne.s32.totalorder %s365, %s379
      %p381 = scmp.eq.s32.totalorder %s42, 0
      %p382 = por %p380, %p381
      %s384 = sadd.s32 %s383, 1
      %p387 = scmp.eq.s32.totalorder %s36, 3
      %p388 = scmp.ne.s32.totalorder %s383, %s385
      %p389 = scmp.eq.s32.totalorder %s36, 0
      %p390 = por %p388, %p389
      %p391 = scmp.ne.s32.totalorder %s383, %s385
      %p392 = scmp.eq.s32.totalorder %s41, 3
      %p393 = por %p391, %p392
      %p394 = scmp.ne.s32.totalorder %s385, %s386
      %p395 = scmp.eq.s32.totalorder %s41, 0
      %p396 = por %p394, %p395
      %p397 = scmp.ne.s32.totalorder %s385, %s386
      %p398 = scmp.eq.s32.totalorder %s42, 3
      %p399 = por %p397, %p398
      %p401 = scmp.ne.s32.totalorder %s386, %s400
      %p402 = scmp.eq.s32.totalorder %s42, 0
      %p403 = por %p401, %p402
      %s405 = sadd.s32 %s404, 1
      %p408 = scmp.eq.s32.totalorder %s36, 3
      %p409 = scmp.ne.s32.totalorder %s404, %s406
      %p410 = scmp.eq.s32.totalorder %s36, 0
      %p411 = por %p409, %p410
      %p412 = scmp.ne.s32.totalorder %s404, %s406
      %p413 = scmp.eq.s32.totalorder %s41, 3
      %p414 = por %p412, %p413
      %p415 = scmp.ne.s32.totalorder %s406, %s407
      %p416 = scmp.eq.s32.totalorder %s41, 0
      %p417 = por %p415, %p416
      %p418 = scmp.ne.s32.totalorder %s406, %s407
      %p419 = scmp.eq.s32.totalorder %s42, 3
      %p420 = por %p418, %p419
      %p422 = scmp.ne.s32.totalorder %s407, %s421
      %p423 = scmp.eq.s32.totalorder %s42, 0
      %p424 = por %p422, %p423
      %s426 = sadd.s32 %s425, 1
      %p429 = scmp.eq.s32.totalorder %s36, 3
      %p430 = scmp.ne.s32.totalorder %s425, %s427
      %p431 = scmp.eq.s32.totalorder %s36, 0
      %p432 = por %p430, %p431
      %p433 = scmp.ne.s32.totalorder %s425, %s427
      %p434 = scmp.eq.s32.totalorder %s41, 3
      %p435 = por %p433, %p434
      %p436 = scmp.ne.s32.totalorder %s427, %s428
      %p437 = scmp.eq.s32.totalorder %s41, 0
      %p438 = por %p436, %p437
      %p439 = scmp.ne.s32.totalorder %s427, %s428
      %p440 = scmp.eq.s32.totalorder %s42, 3
      %p441 = por %p439, %p440
      %p443 = scmp.ne.s32.totalorder %s428, %s442
      %p444 = scmp.eq.s32.totalorder %s42, 0
      %p445 = por %p443, %p444
      %s446 = ssub.s32 %s43, %s55
      %s447 = ssub.s32 %s44, %s51
      %s448 = sor.u32 %s446, %s447
      %p449 = scmp.eq.s32.totalorder %s448, 0
      %s451 = sadd.s32 %s450, 1
      %s452 = scalar_select %p449, %s450, %s451
      %p455 = pneg %p449
      %p456 = scmp.eq.s32.totalorder %s36, 3
      %p457 = por %p455, %p456
      %p458 = scmp.ne.s32.totalorder %s450, %s453
      %p459 = scmp.eq.s32.totalorder %s36, 0
      %p460 = por %p458, %p459
      %p461 = scmp.ne.s32.totalorder %s450, %s453
      %p462 = scmp.eq.s32.totalorder %s41, 3
      %p463 = por %p461, %p462
      %p464 = scmp.ne.s32.totalorder %s453, %s454
      %p465 = scmp.eq.s32.totalorder %s41, 0
      %p466 = por %p464, %p465
      %p467 = scmp.ne.s32.totalorder %s453, %s454
      %p468 = scmp.eq.s32.totalorder %s42, 3
      %p469 = por %p467, %p468
      %p471 = scmp.ne.s32.totalorder %s454, %s470
      %p472 = scmp.eq.s32.totalorder %s42, 0
      %p473 = por %p471, %p472
      %p474 = scmp.le.s32.totalorder 1, %s36
      %p475 = scmp.lt.s32.totalorder %s36, 5
      %p476 = pnand %p474, %p475
      %p477 = pneg %p476
      // Predicated region
      $region9: #{tpu_custom_call.1} parent=5 // pred_check
        _
      $region10: #{tpu_custom_call.1} parent=5 // pred_check_branch
        %479 = sbr.rel (%p476) target = $region12
      $region11: #{tpu_custom_call.1} parent=5 // pred_region
        %s480 = ssub.s32 %s36, 1
        // Predicated region
        $region13: #{tpu_custom_call.1} parent=11 // pred_check
          %p481 = pneg %p123
        $region14: #{tpu_custom_call.1} parent=11 // pred_check_branch
          %483 = sbr.rel (%p481) target = $region16
        $region15: #{tpu_custom_call.1} parent=11 // pred_region
          _
        $region16: #{tpu_custom_call.1} parent=11 // pred_fallthru
          _
        // Predicated region
        $region17: #{tpu_custom_call.1} parent=11 // pred_check
          %p484 = pneg %p144
        $region18: #{tpu_custom_call.1} parent=11 // pred_check_branch
          %486 = sbr.rel (%p484) target = $region20
        $region19: #{tpu_custom_call.1} parent=11 // pred_region
          _
        $region20: #{tpu_custom_call.1} parent=11 // pred_fallthru
          _
        // Predicated region
        $region21: #{tpu_custom_call.1} parent=11 // pred_check
          %p487 = pneg %p165
        $region22: #{tpu_custom_call.1} parent=11 // pred_check_branch
          %489 = sbr.rel (%p487) target = $region24
        $region23: #{tpu_custom_call.1} parent=11 // pred_region
          %s491 = ssub.s32 4096, 4096
          %492 = vsyncadd [#allocation9], %s491
          %s493 = sshll.u32 [#allocation10], 4
          %s494 = int_to_ptr.vmem [resolvable:$true] %s493
          %499 = dma.hbm_to_vmem [thread:$0]  %s4, 4096, %s494, [#allocation9], 128, 128, 8
        $region24: #{tpu_custom_call.1} parent=11 // pred_fallthru
          _
        // Predicated region
        $region25: #{tpu_custom_call.1} parent=11 // pred_check
          %p500 = pneg %p186
        $region26: #{tpu_custom_call.1} parent=11 // pred_check_branch
          %502 = sbr.rel (%p500) target = $region28
        $region27: #{tpu_custom_call.1} parent=11 // pred_region
          %s504 = ssub.s32 4096, 4096
          %505 = vsyncadd [#allocation12], %s504
          %s506 = sshll.u32 [#allocation11], 4
          %s507 = int_to_ptr.vmem [resolvable:$true] %s506
          %512 = dma.hbm_to_vmem [thread:$0]  %s5, 4096, %s507, [#allocation12], 128, 128, 8
        $region28: #{tpu_custom_call.1} parent=11 // pred_fallthru
          _
        // Predicated region
        $region29: #{tpu_custom_call.1} parent=11 // pred_check
          %p513 = pneg %p207
        $region30: #{tpu_custom_call.1} parent=11 // pred_check_branch
          %515 = sbr.rel (%p513) target = $region32
        $region31: #{tpu_custom_call.1} parent=11 // pred_region
          %s517 = ssub.s32 4096, 4096
          %518 = vsyncadd [#allocation12], %s517
          %s519 = sshll.u32 [#allocation13], 4
          %s520 = int_to_ptr.vmem [resolvable:$true] %s519
          %525 = dma.hbm_to_vmem [thread:$0]  %s6, 4096, %s520, [#allocation12], 128, 128, 8
        $region32: #{tpu_custom_call.1} parent=11 // pred_fallthru
          _
        // Predicated region
        $region33: #{tpu_custom_call.1} parent=11 // pred_check
          %p526 = pneg %p228
        $region34: #{tpu_custom_call.1} parent=11 // pred_check_branch
          %528 = sbr.rel (%p526) target = $region36
        $region35: #{tpu_custom_call.1} parent=11 // pred_region
          _
        $region36: #{tpu_custom_call.1} parent=11 // pred_fallthru
          _
        // Predicated region
        $region37: #{tpu_custom_call.1} parent=11 // pred_check
          %p529 = pneg %p249
        $region38: #{tpu_custom_call.1} parent=11 // pred_check_branch
          %531 = sbr.rel (%p529) target = $region40
        $region39: #{tpu_custom_call.1} parent=11 // pred_region
          _
        $region40: #{tpu_custom_call.1} parent=11 // pred_fallthru
          _
        // Predicated region
        $region41: #{tpu_custom_call.1} parent=11 // pred_check
          %p532 = pneg %p270
        $region42: #{tpu_custom_call.1} parent=11 // pred_check_branch
          %534 = sbr.rel (%p532) target = $region44
        $region43: #{tpu_custom_call.1} parent=11 // pred_region
          _
        $region44: #{tpu_custom_call.1} parent=11 // pred_fallthru
          _
        // Predicated region
        $region45: #{tpu_custom_call.1} parent=11 // pred_check
          %p535 = pneg %p291
        $region46: #{tpu_custom_call.1} parent=11 // pred_check_branch
          %537 = sbr.rel (%p535) target = $region48
        $region47: #{tpu_custom_call.1} parent=11 // pred_region
          %s539 = ssub.s32 4096, 4096
          %540 = vsyncadd [#allocation15], %s539
          %s541 = sshll.u32 [#allocation14], 4
          %s542 = int_to_ptr.vmem [resolvable:$true] %s541
          %547 = dma.hbm_to_vmem [thread:$0]  %s10, 4096, %s542, [#allocation15], 128, 128, 8
        $region48: #{tpu_custom_call.1} parent=11 // pred_fallthru
          _
        // Predicated region
        $region49: #{tpu_custom_call.1} parent=11 // pred_check
          %p548 = pneg %p312
        $region50: #{tpu_custom_call.1} parent=11 // pred_check_branch
          %550 = sbr.rel (%p548) target = $region52
        $region51: #{tpu_custom_call.1} parent=11 // pred_region
          _
        $region52: #{tpu_custom_call.1} parent=11 // pred_fallthru
          _
        // Predicated region
        $region53: #{tpu_custom_call.1} parent=11 // pred_check
          %p551 = pneg %p333
        $region54: #{tpu_custom_call.1} parent=11 // pred_check_branch
          %553 = sbr.rel (%p551) target = $region56
        $region55: #{tpu_custom_call.1} parent=11 // pred_region
          _
        $region56: #{tpu_custom_call.1} parent=11 // pred_fallthru
          _
        // Predicated region
        $region57: #{tpu_custom_call.1} parent=11 // pred_check
          %p554 = pneg %p354
        $region58: #{tpu_custom_call.1} parent=11 // pred_check_branch
          %556 = sbr.rel (%p554) target = $region60
        $region59: #{tpu_custom_call.1} parent=11 // pred_region
          _
        $region60: #{tpu_custom_call.1} parent=11 // pred_fallthru
          _
        // Predicated region
        $region61: #{tpu_custom_call.1} parent=11 // pred_check
          %p557 = pneg %p375
        $region62: #{tpu_custom_call.1} parent=11 // pred_check_branch
          %559 = sbr.rel (%p557) target = $region64
        $region63: #{tpu_custom_call.1} parent=11 // pred_region
          %s561 = ssub.s32 16384, 16384
          %562 = vsyncadd [#allocation15], %s561
          %s563 = sshll.u32 [#allocation16], 4
          %s564 = int_to_ptr.vmem [resolvable:$true] %s563
          %569 = dma.hbm_to_vmem [thread:$0]  %s14, 16384, %s564, [#allocation15], 256, 256, 16
        $region64: #{tpu_custom_call.1} parent=11 // pred_fallthru
          _
        // Predicated region
        $region65: #{tpu_custom_call.1} parent=11 // pred_check
          %p570 = pneg %p396
        $region66: #{tpu_custom_call.1} parent=11 // pred_check_branch
          %572 = sbr.rel (%p570) target = $region68
        $region67: #{tpu_custom_call.1} parent=11 // pred_region
          _
        $region68: #{tpu_custom_call.1} parent=11 // pred_fallthru
          _
        // Predicated region
        $region69: #{tpu_custom_call.1} parent=11 // pred_check
          %p573 = pneg %p417
        $region70: #{tpu_custom_call.1} parent=11 // pred_check_branch
          %575 = sbr.rel (%p573) target = $region72
        $region71: #{tpu_custom_call.1} parent=11 // pred_region
          %s577 = ssub.s32 16384, 16384
          %578 = vsyncadd [#allocation18], %s577
          %s579 = sshll.u32 [#allocation17], 4
          %s580 = int_to_ptr.vmem [resolvable:$true] %s579
          %585 = dma.hbm_to_vmem [thread:$0]  %s16, 16384, %s580, [#allocation18], 128, 128, 8
        $region72: #{tpu_custom_call.1} parent=11 // pred_fallthru
          _
        // Predicated region
        $region73: #{tpu_custom_call.1} parent=11 // pred_check
          %p586 = pneg %p438
        $region74: #{tpu_custom_call.1} parent=11 // pred_check_branch
          %588 = sbr.rel (%p586) target = $region76
        $region75: #{tpu_custom_call.1} parent=11 // pred_region
          _
        $region76: #{tpu_custom_call.1} parent=11 // pred_fallthru
          _
      $region12: #{tpu_custom_call.1} parent=5 // pred_fallthru
        _
      %p589 = scmp.lt.s32.totalorder %s36, 4
      // Predicated region
      $region77: #{tpu_custom_call.1} parent=5 // pred_check
        %p590 = pneg %p589
      $region78: #{tpu_custom_call.1} parent=5 // pred_check_branch
        %592 = sbr.rel (%p590) target = $region80
      $region79: #{tpu_custom_call.1} parent=5 // pred_region
        // Predicated region
        $region81: #{tpu_custom_call.1} parent=79 // pred_check
          %p593 = pneg %p70
        $region82: #{tpu_custom_call.1} parent=79 // pred_check_branch
          %595 = sbr.rel (%p593) target = $region84
        $region83: #{tpu_custom_call.1} parent=79 // pred_region
          %s596 = sand.u32 %s60, 1
          %s597 = scalar_lea.sflag [#allocation6], %s596
          %s598 = sand.u32 %s60, 1
          %s599 = smul.addr %s598, 256
          %s600 = scalar_lea.vmem [#allocation5], %s599
          %s601 = smul.u32 16, %s44
          %s603 = ssub.s32 4096, 4096
          %604 = vsyncadd %s597, %s603
          %s605 = smul.addr %s601, 2
          %s606 = smul.addr %s43, 64
          %s607 = sadd.s32 %s605, %s606
          %s608 = smul.addr %s607, 128
          %s609 = scalar_lea.hbm %s0, %s608
          %s610 = sshll.u32 %s600, 4
          %s611 = int_to_ptr.vmem [resolvable:$true] %s610
          %616 = dma.hbm_to_vmem [thread:$0]  %s609, 4096, %s611, %s597, 256, 256, 16
        $region84: #{tpu_custom_call.1} parent=79 // pred_fallthru
          _
        // Predicated region
        $region85: #{tpu_custom_call.1} parent=79 // pred_check
          %p617 = pneg %p96
        $region86: #{tpu_custom_call.1} parent=79 // pred_check_branch
          %619 = sbr.rel (%p617) target = $region88
        $region87: #{tpu_custom_call.1} parent=79 // pred_region
          %s620 = sand.u32 %s36, 1
          %s621 = scalar_lea.sflag [#allocation9], %s620
          %s622 = sand.u32 %s86, 1
          %s623 = smul.addr %s622, 512
          %s624 = scalar_lea.vmem [#allocation8], %s623
          %s626 = ssub.s32 8192, 8192
          %627 = vsyncadd %s621, %s626
          %s628 = smul.addr %s43, 64
          %s629 = smul.addr %s628, 128
          %s630 = scalar_lea.hbm %s1, %s629
          %s631 = sshll.u32 %s624, 4
          %s632 = int_to_ptr.vmem [resolvable:$true] %s631
          %637 = dma.hbm_to_vmem [thread:$0]  %s630, 8192, %s632, %s621, 256, 256, 16
        $region88: #{tpu_custom_call.1} parent=79 // pred_fallthru
          _
      $region80: #{tpu_custom_call.1} parent=5 // pred_fallthru
        _
      %p638 = scmp.le.s32.totalorder 1, %s36
      %p639 = scmp.lt.s32.totalorder %s36, 5
      %p640 = pnand %p638, %p639
      %p641 = pneg %p640
      // Predicated region
      $region89: #{tpu_custom_call.1} parent=5 // pred_check
        _
      $region90: #{tpu_custom_call.1} parent=5 // pred_check_branch
        %643 = sbr.rel (%p640) target = $region92
      $region91: #{tpu_custom_call.1} parent=5 // pred_region
        %s644 = ssub.s32 %s36, 1
        %s645 = sand.u32 %s63, 1
        %s646 = scalar_lea.sflag [#allocation6], %s645
        %s647 = sand.u32 %s63, 1
        %s648 = smul.addr %s647, 256
        %s649 = scalar_lea.vmem [#allocation5], %s648
        // Predicated region
        $region93: #{tpu_custom_call.1} parent=91 // pred_check
          %p650 = pneg %p76
        $region94: #{tpu_custom_call.1} parent=91 // pred_check_branch
          %652 = sbr.rel (%p650) target = $region96
        $region95: #{tpu_custom_call.1} parent=91 // pred_region
          %653 = dma.done %s646, 4096
        $region96: #{tpu_custom_call.1} parent=91 // pred_fallthru
          _
        %s654 = sand.u32 %s41, 1
        %s655 = scalar_lea.sflag [#allocation9], %s654
        %s656 = sand.u32 %s89, 1
        %s657 = smul.addr %s656, 512
        %s658 = scalar_lea.vmem [#allocation8], %s657
        // Predicated region
        $region97: #{tpu_custom_call.1} parent=91 // pred_check
          %p659 = pneg %p102
        $region98: #{tpu_custom_call.1} parent=91 // pred_check_branch
          %661 = sbr.rel (%p659) target = $region100
        $region99: #{tpu_custom_call.1} parent=91 // pred_region
          %662 = dma.done %s655, 8192
        $region100: #{tpu_custom_call.1} parent=91 // pred_fallthru
          _
        // Predicated region
        $region101: #{tpu_custom_call.1} parent=91 // pred_check
          %p663 = pneg %p165
        $region102: #{tpu_custom_call.1} parent=91 // pred_check_branch
          %665 = sbr.rel (%p663) target = $region104
        $region103: #{tpu_custom_call.1} parent=91 // pred_region
          %666 = dma.done [#allocation9], 4096
        $region104: #{tpu_custom_call.1} parent=91 // pred_fallthru
          _
        // Predicated region
        $region105: #{tpu_custom_call.1} parent=91 // pred_check
          %p667 = pneg %p186
        $region106: #{tpu_custom_call.1} parent=91 // pred_check_branch
          %669 = sbr.rel (%p667) target = $region108
        $region107: #{tpu_custom_call.1} parent=91 // pred_region
          %670 = dma.done [#allocation12], 4096
        $region108: #{tpu_custom_call.1} parent=91 // pred_fallthru
          _
        // Predicated region
        $region109: #{tpu_custom_call.1} parent=91 // pred_check
          %p671 = pneg %p207
        $region110: #{tpu_custom_call.1} parent=91 // pred_check_branch
          %673 = sbr.rel (%p671) target = $region112
        $region111: #{tpu_custom_call.1} parent=91 // pred_region
          %674 = dma.done [#allocation12], 4096
        $region112: #{tpu_custom_call.1} parent=91 // pred_fallthru
          _
        // Predicated region
        $region113: #{tpu_custom_call.1} parent=91 // pred_check
          %p675 = pneg %p291
        $region114: #{tpu_custom_call.1} parent=91 // pred_check_branch
          %677 = sbr.rel (%p675) target = $region116
        $region115: #{tpu_custom_call.1} parent=91 // pred_region
          %678 = dma.done [#allocation15], 4096
        $region116: #{tpu_custom_call.1} parent=91 // pred_fallthru
          _
        // Predicated region
        $region117: #{tpu_custom_call.1} parent=91 // pred_check
          %p679 = pneg %p375
        $region118: #{tpu_custom_call.1} parent=91 // pred_check_branch
          %681 = sbr.rel (%p679) target = $region120
        $region119: #{tpu_custom_call.1} parent=91 // pred_region
          %682 = dma.done [#allocation15], 16384
        $region120: #{tpu_custom_call.1} parent=91 // pred_fallthru
          _
        // Predicated region
        $region121: #{tpu_custom_call.1} parent=91 // pred_check
          %p683 = pneg %p417
        $region122: #{tpu_custom_call.1} parent=91 // pred_check_branch
          %685 = sbr.rel (%p683) target = $region124
        $region123: #{tpu_custom_call.1} parent=91 // pred_region
          %686 = dma.done [#allocation18], 16384
        $region124: #{tpu_custom_call.1} parent=91 // pred_fallthru
          _
        %s687 = sand.u32 %s63, 1
        %s688 = scalar_lea.sflag [#allocation6], %s687
        %s689 = sand.u32 %s63, 1
        %s690 = smul.addr %s689, 256
        %s691 = scalar_lea.vmem [#allocation5], %s690
        %p692 = pneg %p76
        %p693 = pneg %p73
        %s694 = sand.u32 %s41, 1
        %s695 = scalar_lea.sflag [#allocation9], %s694
        %s696 = sand.u32 %s89, 1
        %s697 = smul.addr %s696, 512
        %s698 = scalar_lea.vmem [#allocation8], %s697
        %p699 = pneg %p102
        %p700 = pneg %p99
        %p701 = pneg %p123
        %p702 = pneg %p120
        %p703 = pneg %p144
        %p704 = pneg %p141
        %p705 = pneg %p165
        %p706 = pneg %p162
        %p707 = pneg %p186
        %p708 = pneg %p183
        %p709 = pneg %p207
        %p710 = pneg %p204
        %p711 = pneg %p228
        %p712 = pneg %p225
        %p713 = pneg %p249
        %p714 = pneg %p246
        %p715 = pneg %p270
        %p716 = pneg %p267
        %p717 = pneg %p291
        %p718 = pneg %p288
        %p719 = pneg %p312
        %p720 = pneg %p309
        %p721 = pneg %p333
        %p722 = pneg %p330
        %p723 = pneg %p354
        %p724 = pneg %p351
        %p725 = pneg %p375
        %p726 = pneg %p372
        %p727 = pneg %p396
        %p728 = pneg %p393
        %p729 = pneg %p417
        %p730 = pneg %p414
        %p731 = pneg %p438
        %p732 = pneg %p435
        %p733 = pneg %p466
        %p734 = pneg %p463
        %s735 = sand.u32 %s453, 1
        %s736 = scalar_lea.sflag [#allocation7], %s735
        %s737 = sand.u32 %s453, 1
        %s738 = smul.addr %s737, 256
        %s739 = scalar_lea.vmem [#allocation19], %s738
        %s740 = smul.u32 16, %s46
        %s741 = smul.u32 16, %s46
        %v743 = vld [vmem:[%s649] sm:$0xff]
        %v744 = vld [vmem:[%s649 + $0x8] sm:$0xff]
        %v745 = vld [vmem:[%s649 + $0x10] sm:$0xff]
        %v746 = vld [vmem:[%s649 + $0x18] sm:$0xff]
        %v747 = vld [vmem:[%s649 + $0x20] sm:$0xff]
        %v748 = vld [vmem:[%s649 + $0x28] sm:$0xff]
        %v749 = vld [vmem:[%s649 + $0x30] sm:$0xff]
        %v750 = vld [vmem:[%s649 + $0x38] sm:$0xff]
        %v751 = vld [vmem:[%s649 + $0x40] sm:$0xff]
        %v752 = vld [vmem:[%s649 + $0x48] sm:$0xff]
        %v753 = vld [vmem:[%s649 + $0x50] sm:$0xff]
        %v754 = vld [vmem:[%s649 + $0x58] sm:$0xff]
        %v755 = vld [vmem:[%s649 + $0x60] sm:$0xff]
        %v756 = vld [vmem:[%s649 + $0x68] sm:$0xff]
        %v757 = vld [vmem:[%s649 + $0x70] sm:$0xff]
        %v758 = vld [vmem:[%s649 + $0x78] sm:$0xff]
        %v759 = vld [vmem:[%s649 + $0x80] sm:$0xff]
        %v760 = vld [vmem:[%s649 + $0x88] sm:$0xff]
        %v761 = vld [vmem:[%s649 + $0x90] sm:$0xff]
        %v762 = vld [vmem:[%s649 + $0x98] sm:$0xff]
        %v763 = vld [vmem:[%s649 + $0xa0] sm:$0xff]
        %v764 = vld [vmem:[%s649 + $0xa8] sm:$0xff]
        %v765 = vld [vmem:[%s649 + $0xb0] sm:$0xff]
        %v766 = vld [vmem:[%s649 + $0xb8] sm:$0xff]
        %v767 = vld [vmem:[%s649 + $0xc0] sm:$0xff]
        %v768 = vld [vmem:[%s649 + $0xc8] sm:$0xff]
        %v769 = vld [vmem:[%s649 + $0xd0] sm:$0xff]
        %v770 = vld [vmem:[%s649 + $0xd8] sm:$0xff]
        %v771 = vld [vmem:[%s649 + $0xe0] sm:$0xff]
        %v772 = vld [vmem:[%s649 + $0xe8] sm:$0xff]
        %v773 = vld [vmem:[%s649 + $0xf0] sm:$0xff]
        %v774 = vld [vmem:[%s649 + $0xf8] sm:$0xff]
        %v775 = vld [vmem:[%s2] sm:$0x3]
        %v776 = vld [vmem:[%s3] sm:$0x3]
        %v777 = vadd.f32 %v743, %v744
        %778 = vadd.xlane.f32.xlu0 %v777
        %v779 = vpop.xlane.xlu0 %778
        %v780 = vadd.f32 %v745, %v746
        %781 = vadd.xlane.f32.xlu0 %v780
        %v782 = vpop.xlane.xlu0 %781
        %v783 = vadd.f32 %v747, %v748
        %784 = vadd.xlane.f32.xlu0 %v783
        %v785 = vpop.xlane.xlu0 %784
        %v786 = vadd.f32 %v749, %v750
        %787 = vadd.xlane.f32.xlu0 %v786
        %v788 = vpop.xlane.xlu0 %787
        %v789 = vadd.f32 %v751, %v752
        %790 = vadd.xlane.f32.xlu0 %v789
        %v791 = vpop.xlane.xlu0 %790
        %v792 = vadd.f32 %v753, %v754
        %793 = vadd.xlane.f32.xlu0 %v792
        %v794 = vpop.xlane.xlu0 %793
        %v795 = vadd.f32 %v755, %v756
        %796 = vadd.xlane.f32.xlu0 %v795
        %v797 = vpop.xlane.xlu0 %796
        %v798 = vadd.f32 %v757, %v758
        %799 = vadd.xlane.f32.xlu0 %v798
        %v800 = vpop.xlane.xlu0 %799
        %v801 = vadd.f32 %v759, %v760
        %802 = vadd.xlane.f32.xlu0 %v801
        %v803 = vpop.xlane.xlu0 %802
        %v804 = vadd.f32 %v761, %v762
        %805 = vadd.xlane.f32.xlu0 %v804
        %v806 = vpop.xlane.xlu0 %805
        %v807 = vadd.f32 %v763, %v764
        %808 = vadd.xlane.f32.xlu0 %v807
        %v809 = vpop.xlane.xlu0 %808
        %v810 = vadd.f32 %v765, %v766
        %811 = vadd.xlane.f32.xlu0 %v810
        %v812 = vpop.xlane.xlu0 %811
        %v813 = vadd.f32 %v767, %v768
        %814 = vadd.xlane.f32.xlu0 %v813
        %v815 = vpop.xlane.xlu0 %814
        %v816 = vadd.f32 %v769, %v770
        %817 = vadd.xlane.f32.xlu0 %v816
        %v818 = vpop.xlane.xlu0 %817
        %v819 = vadd.f32 %v771, %v772
        %820 = vadd.xlane.f32.xlu0 %v819
        %v821 = vpop.xlane.xlu0 %820
        %v822 = vadd.f32 %v773, %v774
        %823 = vadd.xlane.f32.xlu0 %v822
        %v824 = vpop.xlane.xlu0 %823
        %v825 = vrcp.pop 256.0
        %v826 = vmul.f32 %v779, %v825
        %v827 = vmul.f32 %v782, %v825
        %v828 = vmul.f32 %v785, %v825
        %v829 = vmul.f32 %v788, %v825
        %v830 = vmul.f32 %v791, %v825
        %v831 = vmul.f32 %v794, %v825
        %v832 = vmul.f32 %v797, %v825
        %v833 = vmul.f32 %v800, %v825
        %v834 = vmul.f32 %v803, %v825
        %v835 = vmul.f32 %v806, %v825
        %v836 = vmul.f32 %v809, %v825
        %v837 = vmul.f32 %v812, %v825
        %v838 = vmul.f32 %v815, %v825
        %v839 = vmul.f32 %v818, %v825
        %v840 = vmul.f32 %v821, %v825
        %v841 = vmul.f32 %v824, %v825
        %v842 = vsub.f32 %v743, %v826
        %v843 = vsub.f32 %v744, %v826
        %v844 = vsub.f32 %v745, %v827
        %v845 = vsub.f32 %v746, %v827
        %v846 = vsub.f32 %v747, %v828
        %v847 = vsub.f32 %v748, %v828
        %v848 = vsub.f32 %v749, %v829
        %v849 = vsub.f32 %v750, %v829
        %v850 = vsub.f32 %v751, %v830
        %v851 = vsub.f32 %v752, %v830
        %v852 = vsub.f32 %v753, %v831
        %v853 = vsub.f32 %v754, %v831
        %v854 = vsub.f32 %v755, %v832
        %v855 = vsub.f32 %v756, %v832
        %v856 = vsub.f32 %v757, %v833
        %v857 = vsub.f32 %v758, %v833
        %v858 = vsub.f32 %v759, %v834
        %v859 = vsub.f32 %v760, %v834
        %v860 = vsub.f32 %v761, %v835
        %v861 = vsub.f32 %v762, %v835
        %v862 = vsub.f32 %v763, %v836
        %v863 = vsub.f32 %v764, %v836
        %v864 = vsub.f32 %v765, %v837
        %v865 = vsub.f32 %v766, %v837
        %v866 = vsub.f32 %v767, %v838
        %v867 = vsub.f32 %v768, %v838
        %v868 = vsub.f32 %v769, %v839
        %v869 = vsub.f32 %v770, %v839
        %v870 = vsub.f32 %v771, %v840
        %v871 = vsub.f32 %v772, %v840
        %v872 = vsub.f32 %v773, %v841
        %v873 = vsub.f32 %v774, %v841
        %v874 = vmul.f32 %v842, %v842
        %v875 = vmul.f32 %v843, %v843
        %v876 = vmul.f32 %v844, %v844
        %v877 = vmul.f32 %v845, %v845
        %v878 = vmul.f32 %v846, %v846
        %v879 = vmul.f32 %v847, %v847
        %v880 = vmul.f32 %v848, %v848
        %v881 = vmul.f32 %v849, %v849
        %v882 = vmul.f32 %v850, %v850
        %v883 = vmul.f32 %v851, %v851
        %v884 = vmul.f32 %v852, %v852
        %v885 = vmul.f32 %v853, %v853
        %v886 = vmul.f32 %v854, %v854
        %v887 = vmul.f32 %v855, %v855
        %v888 = vmul.f32 %v856, %v856
        %v889 = vmul.f32 %v857, %v857
        %v890 = vmul.f32 %v858, %v858
        %v891 = vmul.f32 %v859, %v859
        %v892 = vmul.f32 %v860, %v860
        %v893 = vmul.f32 %v861, %v861
        %v894 = vmul.f32 %v862, %v862
        %v895 = vmul.f32 %v863, %v863
        %v896 = vmul.f32 %v864, %v864
        %v897 = vmul.f32 %v865, %v865
        %v898 = vmul.f32 %v866, %v866
        %v899 = vmul.f32 %v867, %v867
        %v900 = vmul.f32 %v868, %v868
        %v901 = vmul.f32 %v869, %v869
        %v902 = vmul.f32 %v870, %v870
        %v903 = vmul.f32 %v871, %v871
        %v904 = vmul.f32 %v872, %v872
        %v905 = vmul.f32 %v873, %v873
        %v906 = vadd.f32 %v874, %v875
        %907 = vadd.xlane.f32.xlu0 %v906
        %v908 = vpop.xlane.xlu0 %907
        %v909 = vadd.f32 %v876, %v877
        %910 = vadd.xlane.f32.xlu0 %v909
        %v911 = vpop.xlane.xlu0 %910
        %v912 = vadd.f32 %v878, %v879
        %913 = vadd.xlane.f32.xlu0 %v912
        %v914 = vpop.xlane.xlu0 %913
        %v915 = vadd.f32 %v880, %v881
        %916 = vadd.xlane.f32.xlu0 %v915
        %v917 = vpop.xlane.xlu0 %916
        %v918 = vadd.f32 %v882, %v883
        %919 = vadd.xlane.f32.xlu0 %v918
        %v920 = vpop.xlane.xlu0 %919
        %v921 = vadd.f32 %v884, %v885
        %922 = vadd.xlane.f32.xlu0 %v921
        %v923 = vpop.xlane.xlu0 %922
        %v924 = vadd.f32 %v886, %v887
        %925 = vadd.xlane.f32.xlu0 %v924
        %v926 = vpop.xlane.xlu0 %925
        %v927 = vadd.f32 %v888, %v889
        %928 = vadd.xlane.f32.xlu0 %v927
        %v929 = vpop.xlane.xlu0 %928
        %v930 = vadd.f32 %v890, %v891
        %931 = vadd.xlane.f32.xlu0 %v930
        %v932 = vpop.xlane.xlu0 %931
        %v933 = vadd.f32 %v892, %v893
        %934 = vadd.xlane.f32.xlu0 %v933
        %v935 = vpop.xlane.xlu0 %934
        %v936 = vadd.f32 %v894, %v895
        %937 = vadd.xlane.f32.xlu0 %v936
        %v938 = vpop.xlane.xlu0 %937
        %v939 = vadd.f32 %v896, %v897
        %940 = vadd.xlane.f32.xlu0 %v939
        %v941 = vpop.xlane.xlu0 %940
        %v942 = vadd.f32 %v898, %v899
        %943 = vadd.xlane.f32.xlu0 %v942
        %v944 = vpop.xlane.xlu0 %943
        %v945 = vadd.f32 %v900, %v901
        %946 = vadd.xlane.f32.xlu0 %v945
        %v947 = vpop.xlane.xlu0 %946
        %v948 = vadd.f32 %v902, %v903
        %949 = vadd.xlane.f32.xlu0 %v948
        %v950 = vpop.xlane.xlu0 %949
        %v951 = vadd.f32 %v904, %v905
        %952 = vadd.xlane.f32.xlu0 %v951
        %v953 = vpop.xlane.xlu0 %952
        %v954 = vmul.f32 %v908, %v825
        %v955 = vmul.f32 %v911, %v825
        %v956 = vmul.f32 %v914, %v825
        %v957 = vmul.f32 %v917, %v825
        %v958 = vmul.f32 %v920, %v825
        %v959 = vmul.f32 %v923, %v825
        %v960 = vmul.f32 %v926, %v825
        %v961 = vmul.f32 %v929, %v825
        %v962 = vmul.f32 %v932, %v825
        %v963 = vmul.f32 %v935, %v825
        %v964 = vmul.f32 %v938, %v825
        %v965 = vmul.f32 %v941, %v825
        %v966 = vmul.f32 %v944, %v825
        %v967 = vmul.f32 %v947, %v825
        %v968 = vmul.f32 %v950, %v825
        %v969 = vmul.f32 %v953, %v825
        %v970 = vadd.f32 %v954, 1e-05
        %v971 = vadd.f32 %v955, 1e-05
        %v972 = vadd.f32 %v956, 1e-05
        %v973 = vadd.f32 %v957, 1e-05
        %v974 = vadd.f32 %v958, 1e-05
        %v975 = vadd.f32 %v959, 1e-05
        %v976 = vadd.f32 %v960, 1e-05
        %v977 = vadd.f32 %v961, 1e-05
        %v978 = vadd.f32 %v962, 1e-05
        %v979 = vadd.f32 %v963, 1e-05
        %v980 = vadd.f32 %v964, 1e-05
        %v981 = vadd.f32 %v965, 1e-05
        %v982 = vadd.f32 %v966, 1e-05
        %v983 = vadd.f32 %v967, 1e-05
        %v984 = vadd.f32 %v968, 1e-05
        %v985 = vadd.f32 %v969, 1e-05
        %v986 = vrsqrt.pop %v970
        %v987 = vrsqrt.pop %v971
        %v988 = vrsqrt.pop %v972
        %v989 = vrsqrt.pop %v973
        %v990 = vrsqrt.pop %v974
        %v991 = vrsqrt.pop %v975
        %v992 = vrsqrt.pop %v976
        %v993 = vrsqrt.pop %v977
        %v994 = vrsqrt.pop %v978
        %v995 = vrsqrt.pop %v979
        %v996 = vrsqrt.pop %v980
        %v997 = vrsqrt.pop %v981
        %v998 = vrsqrt.pop %v982
        %v999 = vrsqrt.pop %v983
        %v1000 = vrsqrt.pop %v984
        %v1001 = vrsqrt.pop %v985
        %v1002 = vmul.f32 %v842, %v986
        %v1003 = vmul.f32 %v843, %v986
        %v1004 = vmul.f32 %v844, %v987
        %v1005 = vmul.f32 %v845, %v987
        %v1006 = vmul.f32 %v846, %v988
        %v1007 = vmul.f32 %v847, %v988
        %v1008 = vmul.f32 %v848, %v989
        %v1009 = vmul.f32 %v849, %v989
        %v1010 = vmul.f32 %v850, %v990
        %v1011 = vmul.f32 %v851, %v990
        %v1012 = vmul.f32 %v852, %v991
        %v1013 = vmul.f32 %v853, %v991
        %v1014 = vmul.f32 %v854, %v992
        %v1015 = vmul.f32 %v855, %v992
        %v1016 = vmul.f32 %v856, %v993
        %v1017 = vmul.f32 %v857, %v993
        %v1018 = vmul.f32 %v858, %v994
        %v1019 = vmul.f32 %v859, %v994
        %v1020 = vmul.f32 %v860, %v995
        %v1021 = vmul.f32 %v861, %v995
        %v1022 = vmul.f32 %v862, %v996
        %v1023 = vmul.f32 %v863, %v996
        %v1024 = vmul.f32 %v864, %v997
        %v1025 = vmul.f32 %v865, %v997
        %v1026 = vmul.f32 %v866, %v998
        %v1027 = vmul.f32 %v867, %v998
        %v1028 = vmul.f32 %v868, %v999
        %v1029 = vmul.f32 %v869, %v999
        %v1030 = vmul.f32 %v870, %v1000
        %v1031 = vmul.f32 %v871, %v1000
        %v1032 = vmul.f32 %v872, %v1001
        %v1033 = vmul.f32 %v873, %v1001
        %v1035 = vlaneseq
        %v1036 = vshrl.u32 %v1035, 7
        %v1037 = vsub.s32 0, %v1036
        %v1038 = vrot.slane %v775, %v1037
        %v1039 = vlaneseq
        %v1040 = vshrl.u32 %v1039, 7
        %v1041 = vsub.s32 1, %v1040
        %v1042 = vrot.slane %v775, %v1041
        %v1045 = vmul.f32 %v1002, %v1038
        %v1046 = vmul.f32 %v1003, %v1042
        %v1047 = vmul.f32 %v1004, %v1038
        %v1048 = vmul.f32 %v1005, %v1042
        %v1049 = vmul.f32 %v1006, %v1038
        %v1050 = vmul.f32 %v1007, %v1042
        %v1051 = vmul.f32 %v1008, %v1038
        %v1052 = vmul.f32 %v1009, %v1042
        %v1053 = vmul.f32 %v1010, %v1038
        %v1054 = vmul.f32 %v1011, %v1042
        %v1055 = vmul.f32 %v1012, %v1038
        %v1056 = vmul.f32 %v1013, %v1042
        %v1057 = vmul.f32 %v1014, %v1038
        %v1058 = vmul.f32 %v1015, %v1042
        %v1059 = vmul.f32 %v1016, %v1038
        %v1060 = vmul.f32 %v1017, %v1042
        %v1061 = vmul.f32 %v1018, %v1038
        %v1062 = vmul.f32 %v1019, %v1042
        %v1063 = vmul.f32 %v1020, %v1038
        %v1064 = vmul.f32 %v1021, %v1042
        %v1065 = vmul.f32 %v1022, %v1038
        %v1066 = vmul.f32 %v1023, %v1042
        %v1067 = vmul.f32 %v1024, %v1038
        %v1068 = vmul.f32 %v1025, %v1042
        %v1069 = vmul.f32 %v1026, %v1038
        %v1070 = vmul.f32 %v1027, %v1042
        %v1071 = vmul.f32 %v1028, %v1038
        %v1072 = vmul.f32 %v1029, %v1042
        %v1073 = vmul.f32 %v1030, %v1038
        %v1074 = vmul.f32 %v1031, %v1042
        %v1075 = vmul.f32 %v1032, %v1038
        %v1076 = vmul.f32 %v1033, %v1042
        %v1078 = vlaneseq
        %v1079 = vshrl.u32 %v1078, 7
        %v1080 = vsub.s32 0, %v1079
        %v1081 = vrot.slane %v776, %v1080
        %v1082 = vlaneseq
        %v1083 = vshrl.u32 %v1082, 7
        %v1084 = vsub.s32 1, %v1083
        %v1085 = vrot.slane %v776, %v1084
        %v1088 = vadd.f32 %v1045, %v1081
        %v1089 = vadd.f32 %v1046, %v1085
        %v1090 = vadd.f32 %v1047, %v1081
        %v1091 = vadd.f32 %v1048, %v1085
        %v1092 = vadd.f32 %v1049, %v1081
        %v1093 = vadd.f32 %v1050, %v1085
        %v1094 = vadd.f32 %v1051, %v1081
        %v1095 = vadd.f32 %v1052, %v1085
        %v1096 = vadd.f32 %v1053, %v1081
        %v1097 = vadd.f32 %v1054, %v1085
        %v1098 = vadd.f32 %v1055, %v1081
        %v1099 = vadd.f32 %v1056, %v1085
        %v1100 = vadd.f32 %v1057, %v1081
        %v1101 = vadd.f32 %v1058, %v1085
        %v1102 = vadd.f32 %v1059, %v1081
        %v1103 = vadd.f32 %v1060, %v1085
        %v1104 = vadd.f32 %v1061, %v1081
        %v1105 = vadd.f32 %v1062, %v1085
        %v1106 = vadd.f32 %v1063, %v1081
        %v1107 = vadd.f32 %v1064, %v1085
        %v1108 = vadd.f32 %v1065, %v1081
        %v1109 = vadd.f32 %v1066, %v1085
        %v1110 = vadd.f32 %v1067, %v1081
        %v1111 = vadd.f32 %v1068, %v1085
        %v1112 = vadd.f32 %v1069, %v1081
        %v1113 = vadd.f32 %v1070, %v1085
        %v1114 = vadd.f32 %v1071, %v1081
        %v1115 = vadd.f32 %v1072, %v1085
        %v1116 = vadd.f32 %v1073, %v1081
        %v1117 = vadd.f32 %v1074, %v1085
        %v1118 = vadd.f32 %v1075, %v1081
        %v1119 = vadd.f32 %v1076, %v1085
        %v1120 = vpack.c.bf16 %v1090, %v1088
        %v1121 = vpack.c.bf16 %v1091, %v1089
        %v1122 = vpack.c.bf16 %v1094, %v1092
        %v1123 = vpack.c.bf16 %v1095, %v1093
        %v1124 = vpack.c.bf16 %v1098, %v1096
        %v1125 = vpack.c.bf16 %v1099, %v1097
        %v1126 = vpack.c.bf16 %v1102, %v1100
        %v1127 = vpack.c.bf16 %v1103, %v1101
        %v1128 = vpack.c.bf16 %v1106, %v1104
        %v1129 = vpack.c.bf16 %v1107, %v1105
        %v1130 = vpack.c.bf16 %v1110, %v1108
        %v1131 = vpack.c.bf16 %v1111, %v1109
        %v1132 = vpack.c.bf16 %v1114, %v1112
        %v1133 = vpack.c.bf16 %v1115, %v1113
        %v1134 = vpack.c.bf16 %v1118, %v1116
        %v1135 = vpack.c.bf16 %v1119, %v1117
        %v1136 = vld [vmem:[#allocation10] sm:$0xff]
        %v1137 = vld [vmem:[#allocation10 + $0x8] sm:$0xff]
        %v1138 = vld [vmem:[#allocation10 + $0x10] sm:$0xff]
        %v1139 = vld [vmem:[#allocation10 + $0x18] sm:$0xff]
        %v1140 = vld [vmem:[#allocation10 + $0x20] sm:$0xff]
        %v1141 = vld [vmem:[#allocation10 + $0x28] sm:$0xff]
        %v1142 = vld [vmem:[#allocation10 + $0x30] sm:$0xff]
        %v1143 = vld [vmem:[#allocation10 + $0x38] sm:$0xff]
        %v1144 = vld [vmem:[#allocation10 + $0x40] sm:$0xff]
        %v1145 = vld [vmem:[#allocation10 + $0x48] sm:$0xff]
        %v1146 = vld [vmem:[#allocation10 + $0x50] sm:$0xff]
        %v1147 = vld [vmem:[#allocation10 + $0x58] sm:$0xff]
        %v1148 = vld [vmem:[#allocation10 + $0x60] sm:$0xff]
        %v1149 = vld [vmem:[#allocation10 + $0x68] sm:$0xff]
        %v1150 = vld [vmem:[#allocation10 + $0x70] sm:$0xff]
        %v1151 = vld [vmem:[#allocation10 + $0x78] sm:$0xff]
        %v1152 = vld [vmem:[#allocation10 + $0x80] sm:$0xff]
        %v1153 = vld [vmem:[#allocation10 + $0x88] sm:$0xff]
        %v1154 = vld [vmem:[#allocation10 + $0x90] sm:$0xff]
        %v1155 = vld [vmem:[#allocation10 + $0x98] sm:$0xff]
        %v1156 = vld [vmem:[#allocation10 + $0xa0] sm:$0xff]
        %v1157 = vld [vmem:[#allocation10 + $0xa8] sm:$0xff]
        %v1158 = vld [vmem:[#allocation10 + $0xb0] sm:$0xff]
        %v1159 = vld [vmem:[#allocation10 + $0xb8] sm:$0xff]
        %v1160 = vld [vmem:[#allocation10 + $0xc0] sm:$0xff]
        %v1161 = vld [vmem:[#allocation10 + $0xc8] sm:$0xff]
        %v1162 = vld [vmem:[#allocation10 + $0xd0] sm:$0xff]
        %v1163 = vld [vmem:[#allocation10 + $0xd8] sm:$0xff]
        %v1164 = vld [vmem:[#allocation10 + $0xe0] sm:$0xff]
        %v1165 = vld [vmem:[#allocation10 + $0xe8] sm:$0xff]
        %v1166 = vld [vmem:[#allocation10 + $0xf0] sm:$0xff]
        %v1167 = vld [vmem:[#allocation10 + $0xf8] sm:$0xff]
        %v1168 = vld [vmem:[%s7] sm:$0x3]
        %v1170 = vlaneseq
        %v1171 = vshrl.u32 %v1170, 7
        %v1172 = vsub.s32 0, %v1171
        %v1173 = vrot.slane %v1168, %v1172
        %v1174 = vlaneseq
        %v1175 = vshrl.u32 %v1174, 7
        %v1176 = vsub.s32 1, %v1175
        %v1177 = vrot.slane %v1168, %v1176
        %v1212 = vunpack.c.l.b16 %v1136
        %v1213 = vunpack.c.h.b16 %v1136
        %v1214 = vunpack.c.l.b16 %v1137
        %v1215 = vunpack.c.h.b16 %v1137
        %v1216 = vunpack.c.l.b16 %v1138
        %v1217 = vunpack.c.h.b16 %v1138
        %v1218 = vunpack.c.l.b16 %v1139
        %v1219 = vunpack.c.h.b16 %v1139
        %v1220 = vunpack.c.l.b16 %v1140
        %v1221 = vunpack.c.h.b16 %v1140
        %v1222 = vunpack.c.l.b16 %v1141
        %v1223 = vunpack.c.h.b16 %v1141
        %v1224 = vunpack.c.l.b16 %v1142
        %v1225 = vunpack.c.h.b16 %v1142
        %v1226 = vunpack.c.l.b16 %v1143
        %v1227 = vunpack.c.h.b16 %v1143
        %v1228 = vunpack.c.l.b16 %v1144
        %v1229 = vunpack.c.h.b16 %v1144
        %v1230 = vunpack.c.l.b16 %v1145
        %v1231 = vunpack.c.h.b16 %v1145
        %v1232 = vunpack.c.l.b16 %v1146
        %v1233 = vunpack.c.h.b16 %v1146
        %v1234 = vunpack.c.l.b16 %v1147
        %v1235 = vunpack.c.h.b16 %v1147
        %v1236 = vunpack.c.l.b16 %v1148
        %v1237 = vunpack.c.h.b16 %v1148
        %v1238 = vunpack.c.l.b16 %v1149
        %v1239 = vunpack.c.h.b16 %v1149
        %v1240 = vunpack.c.l.b16 %v1150
        %v1241 = vunpack.c.h.b16 %v1150
        %v1242 = vunpack.c.l.b16 %v1151
        %v1243 = vunpack.c.h.b16 %v1151
        %v1244 = vunpack.c.l.b16 %v1152
        %v1245 = vunpack.c.h.b16 %v1152
        %v1246 = vunpack.c.l.b16 %v1153
        %v1247 = vunpack.c.h.b16 %v1153
        %v1248 = vunpack.c.l.b16 %v1154
        %v1249 = vunpack.c.h.b16 %v1154
        %v1250 = vunpack.c.l.b16 %v1155
        %v1251 = vunpack.c.h.b16 %v1155
        %v1252 = vunpack.c.l.b16 %v1156
        %v1253 = vunpack.c.h.b16 %v1156
        %v1254 = vunpack.c.l.b16 %v1157
        %v1255 = vunpack.c.h.b16 %v1157
        %v1256 = vunpack.c.l.b16 %v1158
        %v1257 = vunpack.c.h.b16 %v1158
        %v1258 = vunpack.c.l.b16 %v1159
        %v1259 = vunpack.c.h.b16 %v1159
        %v1260 = vunpack.c.l.b16 %v1160
        %v1261 = vunpack.c.h.b16 %v1160
        %v1262 = vunpack.c.l.b16 %v1161
        %v1263 = vunpack.c.h.b16 %v1161
        %v1264 = vunpack.c.l.b16 %v1162
        %v1265 = vunpack.c.h.b16 %v1162
        %v1266 = vunpack.c.l.b16 %v1163
        %v1267 = vunpack.c.h.b16 %v1163
        %v1268 = vunpack.c.l.b16 %v1164
        %v1269 = vunpack.c.h.b16 %v1164
        %v1270 = vunpack.c.l.b16 %v1165
        %v1271 = vunpack.c.h.b16 %v1165
        %v1272 = vunpack.c.l.b16 %v1166
        %v1273 = vunpack.c.h.b16 %v1166
        %v1274 = vunpack.c.l.b16 %v1167
        %v1275 = vunpack.c.h.b16 %v1167
        %v1276 = vpack.c.b16 %v1214, %v1212
        %v1277 = vpack.c.b16 %v1215, %v1213
        %v1278 = vpack.c.b16 %v1218, %v1216
        %v1279 = vpack.c.b16 %v1219, %v1217
        %v1280 = vpack.c.b16 %v1222, %v1220
        %v1281 = vpack.c.b16 %v1223, %v1221
        %v1282 = vpack.c.b16 %v1226, %v1224
        %v1283 = vpack.c.b16 %v1227, %v1225
        %v1284 = vpack.c.b16 %v1230, %v1228
        %v1285 = vpack.c.b16 %v1231, %v1229
        %v1286 = vpack.c.b16 %v1234, %v1232
        %v1287 = vpack.c.b16 %v1235, %v1233
        %v1288 = vpack.c.b16 %v1238, %v1236
        %v1289 = vpack.c.b16 %v1239, %v1237
        %v1290 = vpack.c.b16 %v1242, %v1240
        %v1291 = vpack.c.b16 %v1243, %v1241
        %v1292 = vpack.c.b16 %v1246, %v1244
        %v1293 = vpack.c.b16 %v1247, %v1245
        %v1294 = vpack.c.b16 %v1250, %v1248
        %v1295 = vpack.c.b16 %v1251, %v1249
        %v1296 = vpack.c.b16 %v1254, %v1252
        %v1297 = vpack.c.b16 %v1255, %v1253
        %v1298 = vpack.c.b16 %v1258, %v1256
        %v1299 = vpack.c.b16 %v1259, %v1257
        %v1300 = vpack.c.b16 %v1262, %v1260
        %v1301 = vpack.c.b16 %v1263, %v1261
        %v1302 = vpack.c.b16 %v1266, %v1264
        %v1303 = vpack.c.b16 %v1267, %v1265
        %v1304 = vpack.c.b16 %v1270, %v1268
        %v1305 = vpack.c.b16 %v1271, %v1269
        %v1306 = vpack.c.b16 %v1274, %v1272
        %v1307 = vpack.c.b16 %v1275, %v1273
        %1340 = vmatprep.subr.bf16.mxu0 %v1277
        %1341 = vmatpush1.bf16.msra.mxu0 %v1276
        %1342 = vmatprep.subr.bf16.mxu0 %v1279
        %1343 = vmatpush1.bf16.msra.mxu0 %v1278
        %1344 = vmatprep.subr.bf16.mxu0 %v1281
        %1345 = vmatpush1.bf16.msra.mxu0 %v1280
        %1346 = vmatprep.subr.bf16.mxu0 %v1283
        %1347 = vmatpush1.bf16.msra.mxu0 %v1282
        %1348 = vmatprep.subr.bf16.mxu0 %v1285
        %1349 = vmatpush1.bf16.msra.mxu0 %v1284
        %1350 = vmatprep.subr.bf16.mxu0 %v1287
        %1351 = vmatpush1.bf16.msra.mxu0 %v1286
        %1352 = vmatprep.subr.bf16.mxu0 %v1289
        %1353 = vmatpush1.bf16.msra.mxu0 %v1288
        %1354 = vmatprep.subr.bf16.mxu0 %v1291
        %1355 = vmatpush1.bf16.msra.mxu0 %v1290
        %1356 = vmatprep.subr.bf16.mxu0 %v1293
        %1357 = vmatpush1.bf16.msra.mxu0 %v1292
        %1358 = vmatprep.subr.bf16.mxu0 %v1295
        %1359 = vmatpush1.bf16.msra.mxu0 %v1294
        %1360 = vmatprep.subr.bf16.mxu0 %v1297
        %1361 = vmatpush1.bf16.msra.mxu0 %v1296
        %1362 = vmatprep.subr.bf16.mxu0 %v1299
        %1363 = vmatpush1.bf16.msra.mxu0 %v1298
        %1364 = vmatprep.subr.bf16.mxu0 %v1301
        %1365 = vmatpush1.bf16.msra.mxu0 %v1300
        %1366 = vmatprep.subr.bf16.mxu0 %v1303
        %1367 = vmatpush1.bf16.msra.mxu0 %v1302
        %1368 = vmatprep.subr.bf16.mxu0 %v1305
        %1369 = vmatpush1.bf16.msra.mxu0 %v1304
        %1370 = vmatprep.subr.bf16.mxu0 %v1307
        %1371 = vmatpush1.bf16.msra.mxu0 %v1306
        %1372 = vmatprep.mubr.bf16.mxu0 %v1121
        %1373 = vmatmul.mubr.bf16.gmra.mrb[0].mxu0 %v1120
        %v1374 = vpop.f32.mrb[0].mxu0
        %v1375 = vadd.f32 %v1173, %v1374
        %v1376 = vpop.f32.mrb[0].mxu0
        %v1377 = vadd.f32 %v1177, %v1376
        %v1378 = vpop.f32.mrb[0].mxu0
        %v1379 = vadd.f32 %v1173, %v1378
        %v1380 = vpop.f32.mrb[0].mxu0
        %v1381 = vadd.f32 %v1177, %v1380
        %1382 = vmatprep.mubr.bf16.mxu0 %v1123
        %1383 = vmatmul.mubr.bf16.gmra.mrb[0].mxu0 %v1122
        %v1384 = vpop.f32.mrb[0].mxu0
        %v1385 = vadd.f32 %v1173, %v1384
        %v1386 = vpop.f32.mrb[0].mxu0
        %v1387 = vadd.f32 %v1177, %v1386
        %v1388 = vpop.f32.mrb[0].mxu0
        %v1389 = vadd.f32 %v1173, %v1388
        %v1390 = vpop.f32.mrb[0].mxu0
        %v1391 = vadd.f32 %v1177, %v1390
        %1392 = vmatprep.mubr.bf16.mxu0 %v1125
        %1393 = vmatmul.mubr.bf16.gmra.mrb[0].mxu0 %v1124
        %v1394 = vpop.f32.mrb[0].mxu0
        %v1395 = vadd.f32 %v1173, %v1394
        %v1396 = vpop.f32.mrb[0].mxu0
        %v1397 = vadd.f32 %v1177, %v1396
        %v1398 = vpop.f32.mrb[0].mxu0
        %v1399 = vadd.f32 %v1173, %v1398
        %v1400 = vpop.f32.mrb[0].mxu0
        %v1401 = vadd.f32 %v1177, %v1400
        %1402 = vmatprep.mubr.bf16.mxu0 %v1127
        %1403 = vmatmul.mubr.bf16.gmra.mrb[0].mxu0 %v1126
        %v1404 = vpop.f32.mrb[0].mxu0
        %v1405 = vadd.f32 %v1173, %v1404
        %v1406 = vpop.f32.mrb[0].mxu0
        %v1407 = vadd.f32 %v1177, %v1406
        %v1408 = vpop.f32.mrb[0].mxu0
        %v1409 = vadd.f32 %v1173, %v1408
        %v1410 = vpop.f32.mrb[0].mxu0
        %v1411 = vadd.f32 %v1177, %v1410
        %1412 = vmatprep.mubr.bf16.mxu0 %v1129
        %1413 = vmatmul.mubr.bf16.gmra.mrb[0].mxu0 %v1128
        %v1414 = vpop.f32.mrb[0].mxu0
        %v1415 = vadd.f32 %v1173, %v1414
        %v1416 = vpop.f32.mrb[0].mxu0
        %v1417 = vadd.f32 %v1177, %v1416
        %v1418 = vpop.f32.mrb[0].mxu0
        %v1419 = vadd.f32 %v1173, %v1418
        %v1420 = vpop.f32.mrb[0].mxu0
        %v1421 = vadd.f32 %v1177, %v1420
        %1422 = vmatprep.mubr.bf16.mxu0 %v1131
        %1423 = vmatmul.mubr.bf16.gmra.mrb[0].mxu0 %v1130
        %v1424 = vpop.f32.mrb[0].mxu0
        %v1425 = vadd.f32 %v1173, %v1424
        %v1426 = vpop.f32.mrb[0].mxu0
        %v1427 = vadd.f32 %v1177, %v1426
        %v1428 = vpop.f32.mrb[0].mxu0
        %v1429 = vadd.f32 %v1173, %v1428
        %v1430 = vpop.f32.mrb[0].mxu0
        %v1431 = vadd.f32 %v1177, %v1430
        %1432 = vmatprep.mubr.bf16.mxu0 %v1133
        %1433 = vmatmul.mubr.bf16.gmra.mrb[0].mxu0 %v1132
        %v1434 = vpop.f32.mrb[0].mxu0
        %v1435 = vadd.f32 %v1173, %v1434
        %v1436 = vpop.f32.mrb[0].mxu0
        %v1437 = vadd.f32 %v1177, %v1436
        %v1438 = vpop.f32.mrb[0].mxu0
        %v1439 = vadd.f32 %v1173, %v1438
        %v1440 = vpop.f32.mrb[0].mxu0
        %v1441 = vadd.f32 %v1177, %v1440
        %1442 = vmatprep.mubr.bf16.mxu0 %v1135
        %1443 = vmatmul.mubr.bf16.gmra.mrb[0].mxu0 %v1134
        %v1444 = vpop.f32.mrb[0].mxu0
        %v1445 = vadd.f32 %v1173, %v1444
        %v1446 = vpop.f32.mrb[0].mxu0
        %v1447 = vadd.f32 %v1177, %v1446
        %v1448 = vpop.f32.mrb[0].mxu0
        %v1449 = vadd.f32 %v1173, %v1448
        %v1450 = vpop.f32.mrb[0].mxu0
        %v1451 = vadd.f32 %v1177, %v1450
        %1452 = vdwg.mxu0
        %v1453 = vmul.f32 %v1375, 0.125
        %v1454 = vmul.f32 %v1377, 0.125
        %v1455 = vmul.f32 %v1379, 0.125
        %v1456 = vmul.f32 %v1381, 0.125
        %v1457 = vmul.f32 %v1385, 0.125
        %v1458 = vmul.f32 %v1387, 0.125
        %v1459 = vmul.f32 %v1389, 0.125
        %v1460 = vmul.f32 %v1391, 0.125
        %v1461 = vmul.f32 %v1395, 0.125
        %v1462 = vmul.f32 %v1397, 0.125
        %v1463 = vmul.f32 %v1399, 0.125
        %v1464 = vmul.f32 %v1401, 0.125
        %v1465 = vmul.f32 %v1405, 0.125
        %v1466 = vmul.f32 %v1407, 0.125
        %v1467 = vmul.f32 %v1409, 0.125
        %v1468 = vmul.f32 %v1411, 0.125
        %v1469 = vmul.f32 %v1415, 0.125
        %v1470 = vmul.f32 %v1417, 0.125
        %v1471 = vmul.f32 %v1419, 0.125
        %v1472 = vmul.f32 %v1421, 0.125
        %v1473 = vmul.f32 %v1425, 0.125
        %v1474 = vmul.f32 %v1427, 0.125
        %v1475 = vmul.f32 %v1429, 0.125
        %v1476 = vmul.f32 %v1431, 0.125
        %v1477 = vmul.f32 %v1435, 0.125
        %v1478 = vmul.f32 %v1437, 0.125
        %v1479 = vmul.f32 %v1439, 0.125
        %v1480 = vmul.f32 %v1441, 0.125
        %v1481 = vmul.f32 %v1445, 0.125
        %v1482 = vmul.f32 %v1447, 0.125
        %v1483 = vmul.f32 %v1449, 0.125
        %v1484 = vmul.f32 %v1451, 0.125
        %1501 = vrot.lane.b32.xlu0 %v1453, 64
        %v1502 = vpop.permute.xlu0 %1501
        %1503 = vrot.lane.b32.xlu0 %v1455, 64
        %v1504 = vpop.permute.xlu0 %1503
        %1505 = vrot.lane.b32.xlu0 %v1457, 64
        %v1506 = vpop.permute.xlu0 %1505
        %1507 = vrot.lane.b32.xlu0 %v1459, 64
        %v1508 = vpop.permute.xlu0 %1507
        %1509 = vrot.lane.b32.xlu0 %v1461, 64
        %v1510 = vpop.permute.xlu0 %1509
        %1511 = vrot.lane.b32.xlu0 %v1463, 64
        %v1512 = vpop.permute.xlu0 %1511
        %1513 = vrot.lane.b32.xlu0 %v1465, 64
        %v1514 = vpop.permute.xlu0 %1513
        %1515 = vrot.lane.b32.xlu0 %v1467, 64
        %v1516 = vpop.permute.xlu0 %1515
        %1517 = vrot.lane.b32.xlu0 %v1469, 64
        %v1518 = vpop.permute.xlu0 %1517
        %1519 = vrot.lane.b32.xlu0 %v1471, 64
        %v1520 = vpop.permute.xlu0 %1519
        %1521 = vrot.lane.b32.xlu0 %v1473, 64
        %v1522 = vpop.permute.xlu0 %1521
        %1523 = vrot.lane.b32.xlu0 %v1475, 64
        %v1524 = vpop.permute.xlu0 %1523
        %1525 = vrot.lane.b32.xlu0 %v1477, 64
        %v1526 = vpop.permute.xlu0 %1525
        %1527 = vrot.lane.b32.xlu0 %v1479, 64
        %v1528 = vpop.permute.xlu0 %1527
        %1529 = vrot.lane.b32.xlu0 %v1481, 64
        %v1530 = vpop.permute.xlu0 %1529
        %1531 = vrot.lane.b32.xlu0 %v1483, 64
        %v1532 = vpop.permute.xlu0 %1531
        %1565 = vrot.lane.b32.xlu0 %v1454, 64
        %v1566 = vpop.permute.xlu0 %1565
        %1567 = vrot.lane.b32.xlu0 %v1456, 64
        %v1568 = vpop.permute.xlu0 %1567
        %1569 = vrot.lane.b32.xlu0 %v1458, 64
        %v1570 = vpop.permute.xlu0 %1569
        %1571 = vrot.lane.b32.xlu0 %v1460, 64
        %v1572 = vpop.permute.xlu0 %1571
        %1573 = vrot.lane.b32.xlu0 %v1462, 64
        %v1574 = vpop.permute.xlu0 %1573
        %1575 = vrot.lane.b32.xlu0 %v1464, 64
        %v1576 = vpop.permute.xlu0 %1575
        %1577 = vrot.lane.b32.xlu0 %v1466, 64
        %v1578 = vpop.permute.xlu0 %1577
        %1579 = vrot.lane.b32.xlu0 %v1468, 64
        %v1580 = vpop.permute.xlu0 %1579
        %1581 = vrot.lane.b32.xlu0 %v1470, 64
        %v1582 = vpop.permute.xlu0 %1581
        %1583 = vrot.lane.b32.xlu0 %v1472, 64
        %v1584 = vpop.permute.xlu0 %1583
        %1585 = vrot.lane.b32.xlu0 %v1474, 64
        %v1586 = vpop.permute.xlu0 %1585
        %1587 = vrot.lane.b32.xlu0 %v1476, 64
        %v1588 = vpop.permute.xlu0 %1587
        %1589 = vrot.lane.b32.xlu0 %v1478, 64
        %v1590 = vpop.permute.xlu0 %1589
        %1591 = vrot.lane.b32.xlu0 %v1480, 64
        %v1592 = vpop.permute.xlu0 %1591
        %1593 = vrot.lane.b32.xlu0 %v1482, 64
        %v1594 = vpop.permute.xlu0 %1593
        %1595 = vrot.lane.b32.xlu0 %v1484, 64
        %v1596 = vpop.permute.xlu0 %1595
        %v1613 = vpack.c.bf16 %v1455, %v1453
        %v1614 = vpack.c.bf16 %v1459, %v1457
        %v1615 = vpack.c.bf16 %v1463, %v1461
        %v1616 = vpack.c.bf16 %v1467, %v1465
        %v1617 = vpack.c.bf16 %v1471, %v1469
        %v1618 = vpack.c.bf16 %v1475, %v1473
        %v1619 = vpack.c.bf16 %v1479, %v1477
        %v1620 = vpack.c.bf16 %v1483, %v1481
        %v1621 = vpack.c.bf16 %v1504, %v1502
        %v1622 = vpack.c.bf16 %v1508, %v1506
        %v1623 = vpack.c.bf16 %v1512, %v1510
        %v1624 = vpack.c.bf16 %v1516, %v1514
        %v1625 = vpack.c.bf16 %v1520, %v1518
        %v1626 = vpack.c.bf16 %v1524, %v1522
        %v1627 = vpack.c.bf16 %v1528, %v1526
        %v1628 = vpack.c.bf16 %v1532, %v1530
        %v1629 = vpack.c.bf16 %v1456, %v1454
        %v1630 = vpack.c.bf16 %v1460, %v1458
        %v1631 = vpack.c.bf16 %v1464, %v1462
        %v1632 = vpack.c.bf16 %v1468, %v1466
        %v1633 = vpack.c.bf16 %v1472, %v1470
        %v1634 = vpack.c.bf16 %v1476, %v1474
        %v1635 = vpack.c.bf16 %v1480, %v1478
        %v1636 = vpack.c.bf16 %v1484, %v1482
        %v1637 = vpack.c.bf16 %v1568, %v1566
        %v1638 = vpack.c.bf16 %v1572, %v1570
        %v1639 = vpack.c.bf16 %v1576, %v1574
        %v1640 = vpack.c.bf16 %v1580, %v1578
        %v1641 = vpack.c.bf16 %v1584, %v1582
        %v1642 = vpack.c.bf16 %v1588, %v1586
        %v1643 = vpack.c.bf16 %v1592, %v1590
        %v1644 = vpack.c.bf16 %v1596, %v1594
        %vm1645 = vcmask 7168
        %1646 = vst.msk [vmem:[#allocation2] sm:$0xff] %vm1645, -inf
        %1647 = vst.msk [vmem:[#allocation2 + $0x8] sm:$0xff] %vm1645, -inf
        %1648 = vst.msk [vmem:[#allocation2 + $0x10] sm:$0xff] %vm1645, -inf
        %1649 = vst.msk [vmem:[#allocation2 + $0x18] sm:$0xff] %vm1645, -inf
        %1650 = vst.msk [vmem:[#allocation2 + $0x20] sm:$0xff] %vm1645, -inf
        %1651 = vst.msk [vmem:[#allocation2 + $0x28] sm:$0xff] %vm1645, -inf
        %1652 = vst.msk [vmem:[#allocation2 + $0x30] sm:$0xff] %vm1645, -inf
        %1653 = vst.msk [vmem:[#allocation2 + $0x38] sm:$0xff] %vm1645, -inf
        %1654 = vst.msk [vmem:[#allocation2 + $0x40] sm:$0xff] %vm1645, -inf
        %1655 = vst.msk [vmem:[#allocation2 + $0x48] sm:$0xff] %vm1645, -inf
        %1656 = vst.msk [vmem:[#allocation2 + $0x50] sm:$0xff] %vm1645, -inf
        %1657 = vst.msk [vmem:[#allocation2 + $0x58] sm:$0xff] %vm1645, -inf
        %1658 = vst.msk [vmem:[#allocation2 + $0x60] sm:$0xff] %vm1645, -inf
        %1659 = vst.msk [vmem:[#allocation2 + $0x68] sm:$0xff] %vm1645, -inf
        %1660 = vst.msk [vmem:[#allocation2 + $0x70] sm:$0xff] %vm1645, -inf
        %1661 = vst.msk [vmem:[#allocation2 + $0x78] sm:$0xff] %vm1645, -inf
        %1662 = vst.msk [vmem:[#allocation2 + $0x80] sm:$0xff] %vm1645, -inf
        %1663 = vst.msk [vmem:[#allocation2 + $0x88] sm:$0xff] %vm1645, -inf
        %1664 = vst.msk [vmem:[#allocation2 + $0x90] sm:$0xff] %vm1645, -inf
        %1665 = vst.msk [vmem:[#allocation2 + $0x98] sm:$0xff] %vm1645, -inf
        %1666 = vst.msk [vmem:[#allocation2 + $0xa0] sm:$0xff] %vm1645, -inf
        %1667 = vst.msk [vmem:[#allocation2 + $0xa8] sm:$0xff] %vm1645, -inf
        %1668 = vst.msk [vmem:[#allocation2 + $0xb0] sm:$0xff] %vm1645, -inf
        %1669 = vst.msk [vmem:[#allocation2 + $0xb8] sm:$0xff] %vm1645, -inf
        %1670 = vst.msk [vmem:[#allocation2 + $0xc0] sm:$0xff] %vm1645, -inf
        %1671 = vst.msk [vmem:[#allocation2 + $0xc8] sm:$0xff] %vm1645, -inf
        %1672 = vst.msk [vmem:[#allocation2 + $0xd0] sm:$0xff] %vm1645, -inf
        %1673 = vst.msk [vmem:[#allocation2 + $0xd8] sm:$0xff] %vm1645, -inf
        %1674 = vst.msk [vmem:[#allocation2 + $0xe0] sm:$0xff] %vm1645, -inf
        %1675 = vst.msk [vmem:[#allocation2 + $0xe8] sm:$0xff] %vm1645, -inf
        %1676 = vst.msk [vmem:[#allocation2 + $0xf0] sm:$0xff] %vm1645, -inf
        %1677 = vst.msk [vmem:[#allocation2 + $0xf8] sm:$0xff] %vm1645, -inf
        %1678 = vst.msk [vmem:[#allocation2 + $0x100] sm:$0xff] %vm1645, -inf
        %1679 = vst.msk [vmem:[#allocation2 + $0x108] sm:$0xff] %vm1645, -inf
        %1680 = vst.msk [vmem:[#allocation2 + $0x110] sm:$0xff] %vm1645, -inf
        %1681 = vst.msk [vmem:[#allocation2 + $0x118] sm:$0xff] %vm1645, -inf
        %1682 = vst.msk [vmem:[#allocation2 + $0x120] sm:$0xff] %vm1645, -inf
        %1683 = vst.msk [vmem:[#allocation2 + $0x128] sm:$0xff] %vm1645, -inf
        %1684 = vst.msk [vmem:[#allocation2 + $0x130] sm:$0xff] %vm1645, -inf
        %1685 = vst.msk [vmem:[#allocation2 + $0x138] sm:$0xff] %vm1645, -inf
        %1686 = vst.msk [vmem:[#allocation2 + $0x140] sm:$0xff] %vm1645, -inf
        %1687 = vst.msk [vmem:[#allocation2 + $0x148] sm:$0xff] %vm1645, -inf
        %1688 = vst.msk [vmem:[#allocation2 + $0x150] sm:$0xff] %vm1645, -inf
        %1689 = vst.msk [vmem:[#allocation2 + $0x158] sm:$0xff] %vm1645, -inf
        %1690 = vst.msk [vmem:[#allocation2 + $0x160] sm:$0xff] %vm1645, -inf
        %1691 = vst.msk [vmem:[#allocation2 + $0x168] sm:$0xff] %vm1645, -inf
        %1692 = vst.msk [vmem:[#allocation2 + $0x170] sm:$0xff] %vm1645, -inf
        %1693 = vst.msk [vmem:[#allocation2 + $0x178] sm:$0xff] %vm1645, -inf
        %1694 = vst.msk [vmem:[#allocation2 + $0x180] sm:$0xff] %vm1645, -inf
        %1695 = vst.msk [vmem:[#allocation2 + $0x188] sm:$0xff] %vm1645, -inf
        %1696 = vst.msk [vmem:[#allocation2 + $0x190] sm:$0xff] %vm1645, -inf
        %1697 = vst.msk [vmem:[#allocation2 + $0x198] sm:$0xff] %vm1645, -inf
        %1698 = vst.msk [vmem:[#allocation2 + $0x1a0] sm:$0xff] %vm1645, -inf
        %1699 = vst.msk [vmem:[#allocation2 + $0x1a8] sm:$0xff] %vm1645, -inf
        %1700 = vst.msk [vmem:[#allocation2 + $0x1b0] sm:$0xff] %vm1645, -inf
        %1701 = vst.msk [vmem:[#allocation2 + $0x1b8] sm:$0xff] %vm1645, -inf
        %1702 = vst.msk [vmem:[#allocation2 + $0x1c0] sm:$0xff] %vm1645, -inf
        %1703 = vst.msk [vmem:[#allocation2 + $0x1c8] sm:$0xff] %vm1645, -inf
        %1704 = vst.msk [vmem:[#allocation2 + $0x1d0] sm:$0xff] %vm1645, -inf
        %1705 = vst.msk [vmem:[#allocation2 + $0x1d8] sm:$0xff] %vm1645, -inf
        %1706 = vst.msk [vmem:[#allocation2 + $0x1e0] sm:$0xff] %vm1645, -inf
        %1707 = vst.msk [vmem:[#allocation2 + $0x1e8] sm:$0xff] %vm1645, -inf
        %1708 = vst.msk [vmem:[#allocation2 + $0x1f0] sm:$0xff] %vm1645, -inf
        %1709 = vst.msk [vmem:[#allocation2 + $0x1f8] sm:$0xff] %vm1645, -inf
        %1710 = vst.msk [vmem:[#allocation3] sm:$0xff] %vm1645, 0.0
        %1711 = vst.msk [vmem:[#allocation3 + $0x8] sm:$0xff] %vm1645, 0.0
        %1712 = vst.msk [vmem:[#allocation3 + $0x10] sm:$0xff] %vm1645, 0.0
        %1713 = vst.msk [vmem:[#allocation3 + $0x18] sm:$0xff] %vm1645, 0.0
        %1714 = vst.msk [vmem:[#allocation3 + $0x20] sm:$0xff] %vm1645, 0.0
        %1715 = vst.msk [vmem:[#allocation3 + $0x28] sm:$0xff] %vm1645, 0.0
        %1716 = vst.msk [vmem:[#allocation3 + $0x30] sm:$0xff] %vm1645, 0.0
        %1717 = vst.msk [vmem:[#allocation3 + $0x38] sm:$0xff] %vm1645, 0.0
        %1718 = vst.msk [vmem:[#allocation3 + $0x40] sm:$0xff] %vm1645, 0.0
        %1719 = vst.msk [vmem:[#allocation3 + $0x48] sm:$0xff] %vm1645, 0.0
        %1720 = vst.msk [vmem:[#allocation3 + $0x50] sm:$0xff] %vm1645, 0.0
        %1721 = vst.msk [vmem:[#allocation3 + $0x58] sm:$0xff] %vm1645, 0.0
        %1722 = vst.msk [vmem:[#allocation3 + $0x60] sm:$0xff] %vm1645, 0.0
        %1723 = vst.msk [vmem:[#allocation3 + $0x68] sm:$0xff] %vm1645, 0.0
        %1724 = vst.msk [vmem:[#allocation3 + $0x70] sm:$0xff] %vm1645, 0.0
        %1725 = vst.msk [vmem:[#allocation3 + $0x78] sm:$0xff] %vm1645, 0.0
        %1726 = vst.msk [vmem:[#allocation3 + $0x80] sm:$0xff] %vm1645, 0.0
        %1727 = vst.msk [vmem:[#allocation3 + $0x88] sm:$0xff] %vm1645, 0.0
        %1728 = vst.msk [vmem:[#allocation3 + $0x90] sm:$0xff] %vm1645, 0.0
        %1729 = vst.msk [vmem:[#allocation3 + $0x98] sm:$0xff] %vm1645, 0.0
        %1730 = vst.msk [vmem:[#allocation3 + $0xa0] sm:$0xff] %vm1645, 0.0
        %1731 = vst.msk [vmem:[#allocation3 + $0xa8] sm:$0xff] %vm1645, 0.0
        %1732 = vst.msk [vmem:[#allocation3 + $0xb0] sm:$0xff] %vm1645, 0.0
        %1733 = vst.msk [vmem:[#allocation3 + $0xb8] sm:$0xff] %vm1645, 0.0
        %1734 = vst.msk [vmem:[#allocation3 + $0xc0] sm:$0xff] %vm1645, 0.0
        %1735 = vst.msk [vmem:[#allocation3 + $0xc8] sm:$0xff] %vm1645, 0.0
        %1736 = vst.msk [vmem:[#allocation3 + $0xd0] sm:$0xff] %vm1645, 0.0
        %1737 = vst.msk [vmem:[#allocation3 + $0xd8] sm:$0xff] %vm1645, 0.0
        %1738 = vst.msk [vmem:[#allocation3 + $0xe0] sm:$0xff] %vm1645, 0.0
        %1739 = vst.msk [vmem:[#allocation3 + $0xe8] sm:$0xff] %vm1645, 0.0
        %1740 = vst.msk [vmem:[#allocation3 + $0xf0] sm:$0xff] %vm1645, 0.0
        %1741 = vst.msk [vmem:[#allocation3 + $0xf8] sm:$0xff] %vm1645, 0.0
        %1742 = vst.msk [vmem:[#allocation3 + $0x100] sm:$0xff] %vm1645, 0.0
        %1743 = vst.msk [vmem:[#allocation3 + $0x108] sm:$0xff] %vm1645, 0.0
        %1744 = vst.msk [vmem:[#allocation3 + $0x110] sm:$0xff] %vm1645, 0.0
        %1745 = vst.msk [vmem:[#allocation3 + $0x118] sm:$0xff] %vm1645, 0.0
        %1746 = vst.msk [vmem:[#allocation3 + $0x120] sm:$0xff] %vm1645, 0.0
        %1747 = vst.msk [vmem:[#allocation3 + $0x128] sm:$0xff] %vm1645, 0.0
        %1748 = vst.msk [vmem:[#allocation3 + $0x130] sm:$0xff] %vm1645, 0.0
        %1749 = vst.msk [vmem:[#allocation3 + $0x138] sm:$0xff] %vm1645, 0.0
        %1750 = vst.msk [vmem:[#allocation3 + $0x140] sm:$0xff] %vm1645, 0.0
        %1751 = vst.msk [vmem:[#allocation3 + $0x148] sm:$0xff] %vm1645, 0.0
        %1752 = vst.msk [vmem:[#allocation3 + $0x150] sm:$0xff] %vm1645, 0.0
        %1753 = vst.msk [vmem:[#allocation3 + $0x158] sm:$0xff] %vm1645, 0.0
        %1754 = vst.msk [vmem:[#allocation3 + $0x160] sm:$0xff] %vm1645, 0.0
        %1755 = vst.msk [vmem:[#allocation3 + $0x168] sm:$0xff] %vm1645, 0.0
        %1756 = vst.msk [vmem:[#allocation3 + $0x170] sm:$0xff] %vm1645, 0.0
        %1757 = vst.msk [vmem:[#allocation3 + $0x178] sm:$0xff] %vm1645, 0.0
        %1758 = vst.msk [vmem:[#allocation3 + $0x180] sm:$0xff] %vm1645, 0.0
        %1759 = vst.msk [vmem:[#allocation3 + $0x188] sm:$0xff] %vm1645, 0.0
        %1760 = vst.msk [vmem:[#allocation3 + $0x190] sm:$0xff] %vm1645, 0.0
        %1761 = vst.msk [vmem:[#allocation3 + $0x198] sm:$0xff] %vm1645, 0.0
        %1762 = vst.msk [vmem:[#allocation3 + $0x1a0] sm:$0xff] %vm1645, 0.0
        %1763 = vst.msk [vmem:[#allocation3 + $0x1a8] sm:$0xff] %vm1645, 0.0
        %1764 = vst.msk [vmem:[#allocation3 + $0x1b0] sm:$0xff] %vm1645, 0.0
        %1765 = vst.msk [vmem:[#allocation3 + $0x1b8] sm:$0xff] %vm1645, 0.0
        %1766 = vst.msk [vmem:[#allocation3 + $0x1c0] sm:$0xff] %vm1645, 0.0
        %1767 = vst.msk [vmem:[#allocation3 + $0x1c8] sm:$0xff] %vm1645, 0.0
        %1768 = vst.msk [vmem:[#allocation3 + $0x1d0] sm:$0xff] %vm1645, 0.0
        %1769 = vst.msk [vmem:[#allocation3 + $0x1d8] sm:$0xff] %vm1645, 0.0
        %1770 = vst.msk [vmem:[#allocation3 + $0x1e0] sm:$0xff] %vm1645, 0.0
        %1771 = vst.msk [vmem:[#allocation3 + $0x1e8] sm:$0xff] %vm1645, 0.0
        %1772 = vst.msk [vmem:[#allocation3 + $0x1f0] sm:$0xff] %vm1645, 0.0
        %1773 = vst.msk [vmem:[#allocation3 + $0x1f8] sm:$0xff] %vm1645, 0.0
        %vm1774 = vcmask 523264
        %1775 = vst.msk [vmem:[#allocation4] sm:$0xff] %vm1774, 0.0
        %1776 = vst.msk [vmem:[#allocation4 + $0x8] sm:$0xff] %vm1774, 0.0
        %1777 = vst.msk [vmem:[#allocation4 + $0x10] sm:$0xff] %vm1774, 0.0
        %1778 = vst.msk [vmem:[#allocation4 + $0x18] sm:$0xff] %vm1774, 0.0
        %1779 = vst.msk [vmem:[#allocation4 + $0x20] sm:$0xff] %vm1774, 0.0
        %1780 = vst.msk [vmem:[#allocation4 + $0x28] sm:$0xff] %vm1774, 0.0
        %1781 = vst.msk [vmem:[#allocation4 + $0x30] sm:$0xff] %vm1774, 0.0
        %1782 = vst.msk [vmem:[#allocation4 + $0x38] sm:$0xff] %vm1774, 0.0
        %1783 = vst.msk [vmem:[#allocation4 + $0x40] sm:$0xff] %vm1774, 0.0
        %1784 = vst.msk [vmem:[#allocation4 + $0x48] sm:$0xff] %vm1774, 0.0
        %1785 = vst.msk [vmem:[#allocation4 + $0x50] sm:$0xff] %vm1774, 0.0
        %1786 = vst.msk [vmem:[#allocation4 + $0x58] sm:$0xff] %vm1774, 0.0
        %1787 = vst.msk [vmem:[#allocation4 + $0x60] sm:$0xff] %vm1774, 0.0
        %1788 = vst.msk [vmem:[#allocation4 + $0x68] sm:$0xff] %vm1774, 0.0
        %1789 = vst.msk [vmem:[#allocation4 + $0x70] sm:$0xff] %vm1774, 0.0
        %1790 = vst.msk [vmem:[#allocation4 + $0x78] sm:$0xff] %vm1774, 0.0
        %1791 = vst.msk [vmem:[#allocation4 + $0x80] sm:$0xff] %vm1774, 0.0
        %1792 = vst.msk [vmem:[#allocation4 + $0x88] sm:$0xff] %vm1774, 0.0
        %1793 = vst.msk [vmem:[#allocation4 + $0x90] sm:$0xff] %vm1774, 0.0
        %1794 = vst.msk [vmem:[#allocation4 + $0x98] sm:$0xff] %vm1774, 0.0
        %1795 = vst.msk [vmem:[#allocation4 + $0xa0] sm:$0xff] %vm1774, 0.0
        %1796 = vst.msk [vmem:[#allocation4 + $0xa8] sm:$0xff] %vm1774, 0.0
        %1797 = vst.msk [vmem:[#allocation4 + $0xb0] sm:$0xff] %vm1774, 0.0
        %1798 = vst.msk [vmem:[#allocation4 + $0xb8] sm:$0xff] %vm1774, 0.0
        %1799 = vst.msk [vmem:[#allocation4 + $0xc0] sm:$0xff] %vm1774, 0.0
        %1800 = vst.msk [vmem:[#allocation4 + $0xc8] sm:$0xff] %vm1774, 0.0
        %1801 = vst.msk [vmem:[#allocation4 + $0xd0] sm:$0xff] %vm1774, 0.0
        %1802 = vst.msk [vmem:[#allocation4 + $0xd8] sm:$0xff] %vm1774, 0.0
        %1803 = vst.msk [vmem:[#allocation4 + $0xe0] sm:$0xff] %vm1774, 0.0
        %1804 = vst.msk [vmem:[#allocation4 + $0xe8] sm:$0xff] %vm1774, 0.0
        %1805 = vst.msk [vmem:[#allocation4 + $0xf0] sm:$0xff] %vm1774, 0.0
        %1806 = vst.msk [vmem:[#allocation4 + $0xf8] sm:$0xff] %vm1774, 0.0
        %1807 = vst.msk [vmem:[#allocation4 + $0x100] sm:$0xff] %vm1774, 0.0
        %1808 = vst.msk [vmem:[#allocation4 + $0x108] sm:$0xff] %vm1774, 0.0
        %1809 = vst.msk [vmem:[#allocation4 + $0x110] sm:$0xff] %vm1774, 0.0
        %1810 = vst.msk [vmem:[#allocation4 + $0x118] sm:$0xff] %vm1774, 0.0
        %1811 = vst.msk [vmem:[#allocation4 + $0x120] sm:$0xff] %vm1774, 0.0
        %1812 = vst.msk [vmem:[#allocation4 + $0x128] sm:$0xff] %vm1774, 0.0
        %1813 = vst.msk [vmem:[#allocation4 + $0x130] sm:$0xff] %vm1774, 0.0
        %1814 = vst.msk [vmem:[#allocation4 + $0x138] sm:$0xff] %vm1774, 0.0
        %1815 = vst.msk [vmem:[#allocation4 + $0x140] sm:$0xff] %vm1774, 0.0
        %1816 = vst.msk [vmem:[#allocation4 + $0x148] sm:$0xff] %vm1774, 0.0
        %1817 = vst.msk [vmem:[#allocation4 + $0x150] sm:$0xff] %vm1774, 0.0
        %1818 = vst.msk [vmem:[#allocation4 + $0x158] sm:$0xff] %vm1774, 0.0
        %1819 = vst.msk [vmem:[#allocation4 + $0x160] sm:$0xff] %vm1774, 0.0
        %1820 = vst.msk [vmem:[#allocation4 + $0x168] sm:$0xff] %vm1774, 0.0
        %1821 = vst.msk [vmem:[#allocation4 + $0x170] sm:$0xff] %vm1774, 0.0
        %1822 = vst.msk [vmem:[#allocation4 + $0x178] sm:$0xff] %vm1774, 0.0
        %1823 = vst.msk [vmem:[#allocation4 + $0x180] sm:$0xff] %vm1774, 0.0
        %1824 = vst.msk [vmem:[#allocation4 + $0x188] sm:$0xff] %vm1774, 0.0
        %1825 = vst.msk [vmem:[#allocation4 + $0x190] sm:$0xff] %vm1774, 0.0
        %1826 = vst.msk [vmem:[#allocation4 + $0x198] sm:$0xff] %vm1774, 0.0
        %1827 = vst.msk [vmem:[#allocation4 + $0x1a0] sm:$0xff] %vm1774, 0.0
        %1828 = vst.msk [vmem:[#allocation4 + $0x1a8] sm:$0xff] %vm1774, 0.0
        %1829 = vst.msk [vmem:[#allocation4 + $0x1b0] sm:$0xff] %vm1774, 0.0
        %1830 = vst.msk [vmem:[#allocation4 + $0x1b8] sm:$0xff] %vm1774, 0.0
        %1831 = vst.msk [vmem:[#allocation4 + $0x1c0] sm:$0xff] %vm1774, 0.0
        %1832 = vst.msk [vmem:[#allocation4 + $0x1c8] sm:$0xff] %vm1774, 0.0
        %1833 = vst.msk [vmem:[#allocation4 + $0x1d0] sm:$0xff] %vm1774, 0.0
        %1834 = vst.msk [vmem:[#allocation4 + $0x1d8] sm:$0xff] %vm1774, 0.0
        %1835 = vst.msk [vmem:[#allocation4 + $0x1e0] sm:$0xff] %vm1774, 0.0
        %1836 = vst.msk [vmem:[#allocation4 + $0x1e8] sm:$0xff] %vm1774, 0.0
        %1837 = vst.msk [vmem:[#allocation4 + $0x1f0] sm:$0xff] %vm1774, 0.0
        %1838 = vst.msk [vmem:[#allocation4 + $0x1f8] sm:$0xff] %vm1774, 0.0
        %s1839 = sadd.s32 %s46, 1
        // While loop
        $region125: #{tpu_custom_call.1} parent=91 // loop_pre_header
          _
        $region126: #{tpu_custom_call.1} parent=91 // loop_header
          %s1841 = sphi 0, %s1843
          %p1842 = scmp.ge.s32.totalorder %s1841, %s1839
        $region127: #{tpu_custom_call.1} parent=91 // loop_header_branch
          %1845 = sbr.rel (%p1842) target = $region131
        $region128: #{tpu_custom_call.1} parent=91 // loop_body
          %s1846 = smul.u32 %s1841, 128
          %s1847 = sshra.s32 %s1846, 3
          %s1848 = sand.u32 %s1846, 7
          %s1849 = smul.u32 %s1847, 2
          %s1850 = smul.addr %s1849, 8
          %s1851 = scalar_lea.vmem %s658, %s1850 [#allocation8]
          %v1852 = vld [vmem:[%s1851] sm:$0xff]
          %v1853 = vld [vmem:[%s1851 + $0x8] sm:$0xff]
          %v1854 = vld [vmem:[%s1851 + $0x10] sm:$0xff]
          %v1855 = vld [vmem:[%s1851 + $0x18] sm:$0xff]
          %v1856 = vld [vmem:[%s1851 + $0x20] sm:$0xff]
          %v1857 = vld [vmem:[%s1851 + $0x28] sm:$0xff]
          %v1858 = vld [vmem:[%s1851 + $0x30] sm:$0xff]
          %v1859 = vld [vmem:[%s1851 + $0x38] sm:$0xff]
          %v1860 = vld [vmem:[%s1851 + $0x40] sm:$0xff]
          %v1861 = vld [vmem:[%s1851 + $0x48] sm:$0xff]
          %v1862 = vld [vmem:[%s1851 + $0x50] sm:$0xff]
          %v1863 = vld [vmem:[%s1851 + $0x58] sm:$0xff]
          %v1864 = vld [vmem:[%s1851 + $0x60] sm:$0xff]
          %v1865 = vld [vmem:[%s1851 + $0x68] sm:$0xff]
          %v1866 = vld [vmem:[%s1851 + $0x70] sm:$0xff]
          %v1867 = vld [vmem:[%s1851 + $0x78] sm:$0xff]
          %v1868 = vld [vmem:[%s1851 + $0x80] sm:$0xff]
          %v1869 = vld [vmem:[%s1851 + $0x88] sm:$0xff]
          %v1870 = vld [vmem:[%s1851 + $0x90] sm:$0xff]
          %v1871 = vld [vmem:[%s1851 + $0x98] sm:$0xff]
          %v1872 = vld [vmem:[%s1851 + $0xa0] sm:$0xff]
          %v1873 = vld [vmem:[%s1851 + $0xa8] sm:$0xff]
          %v1874 = vld [vmem:[%s1851 + $0xb0] sm:$0xff]
          %v1875 = vld [vmem:[%s1851 + $0xb8] sm:$0xff]
          %v1876 = vld [vmem:[%s1851 + $0xc0] sm:$0xff]
          %v1877 = vld [vmem:[%s1851 + $0xc8] sm:$0xff]
          %v1878 = vld [vmem:[%s1851 + $0xd0] sm:$0xff]
          %v1879 = vld [vmem:[%s1851 + $0xd8] sm:$0xff]
          %v1880 = vld [vmem:[%s1851 + $0xe0] sm:$0xff]
          %v1881 = vld [vmem:[%s1851 + $0xe8] sm:$0xff]
          %v1882 = vld [vmem:[%s1851 + $0xf0] sm:$0xff]
          %v1883 = vld [vmem:[%s1851 + $0xf8] sm:$0xff]
          %v1884 = vld [vmem:[%s2] sm:$0x3]
          %v1885 = vld [vmem:[%s3] sm:$0x3]
          %v1886 = vadd.f32 %v1852, %v1853
          %1887 = vadd.xlane.f32.xlu0 %v1886
          %v1888 = vpop.xlane.xlu0 %1887
          %v1889 = vadd.f32 %v1854, %v1855
          %1890 = vadd.xlane.f32.xlu0 %v1889
          %v1891 = vpop.xlane.xlu0 %1890
          %v1892 = vadd.f32 %v1856, %v1857
          %1893 = vadd.xlane.f32.xlu0 %v1892
          %v1894 = vpop.xlane.xlu0 %1893
          %v1895 = vadd.f32 %v1858, %v1859
          %1896 = vadd.xlane.f32.xlu0 %v1895
          %v1897 = vpop.xlane.xlu0 %1896
          %v1898 = vadd.f32 %v1860, %v1861
          %1899 = vadd.xlane.f32.xlu0 %v1898
          %v1900 = vpop.xlane.xlu0 %1899
          %v1901 = vadd.f32 %v1862, %v1863
          %1902 = vadd.xlane.f32.xlu0 %v1901
          %v1903 = vpop.xlane.xlu0 %1902
          %v1904 = vadd.f32 %v1864, %v1865
          %1905 = vadd.xlane.f32.xlu0 %v1904
          %v1906 = vpop.xlane.xlu0 %1905
          %v1907 = vadd.f32 %v1866, %v1867
          %1908 = vadd.xlane.f32.xlu0 %v1907
          %v1909 = vpop.xlane.xlu0 %1908
          %v1910 = vadd.f32 %v1868, %v1869
          %1911 = vadd.xlane.f32.xlu0 %v1910
          %v1912 = vpop.xlane.xlu0 %1911
          %v1913 = vadd.f32 %v1870, %v1871
          %1914 = vadd.xlane.f32.xlu0 %v1913
          %v1915 = vpop.xlane.xlu0 %1914
          %v1916 = vadd.f32 %v1872, %v1873
          %1917 = vadd.xlane.f32.xlu0 %v1916
          %v1918 = vpop.xlane.xlu0 %1917
          %v1919 = vadd.f32 %v1874, %v1875
          %1920 = vadd.xlane.f32.xlu0 %v1919
          %v1921 = vpop.xlane.xlu0 %1920
          %v1922 = vadd.f32 %v1876, %v1877
          %1923 = vadd.xlane.f32.xlu0 %v1922
          %v1924 = vpop.xlane.xlu0 %1923
          %v1925 = vadd.f32 %v1878, %v1879
          %1926 = vadd.xlane.f32.xlu0 %v1925
          %v1927 = vpop.xlane.xlu0 %1926
          %v1928 = vadd.f32 %v1880, %v1881
          %1929 = vadd.xlane.f32.xlu0 %v1928
          %v1930 = vpop.xlane.xlu0 %1929
          %v1931 = vadd.f32 %v1882, %v1883
          %1932 = vadd.xlane.f32.xlu0 %v1931
          %v1933 = vpop.xlane.xlu0 %1932
          %v1934 = vmul.f32 %v1888, %v825
          %v1935 = vmul.f32 %v1891, %v825
          %v1936 = vmul.f32 %v1894, %v825
          %v1937 = vmul.f32 %v1897, %v825
          %v1938 = vmul.f32 %v1900, %v825
          %v1939 = vmul.f32 %v1903, %v825
          %v1940 = vmul.f32 %v1906, %v825
          %v1941 = vmul.f32 %v1909, %v825
          %v1942 = vmul.f32 %v1912, %v825
          %v1943 = vmul.f32 %v1915, %v825
          %v1944 = vmul.f32 %v1918, %v825
          %v1945 = vmul.f32 %v1921, %v825
          %v1946 = vmul.f32 %v1924, %v825
          %v1947 = vmul.f32 %v1927, %v825
          %v1948 = vmul.f32 %v1930, %v825
          %v1949 = vmul.f32 %v1933, %v825
          %v1950 = vsub.f32 %v1852, %v1934
          %v1951 = vsub.f32 %v1853, %v1934
          %v1952 = vsub.f32 %v1854, %v1935
          %v1953 = vsub.f32 %v1855, %v1935
          %v1954 = vsub.f32 %v1856, %v1936
          %v1955 = vsub.f32 %v1857, %v1936
          %v1956 = vsub.f32 %v1858, %v1937
          %v1957 = vsub.f32 %v1859, %v1937
          %v1958 = vsub.f32 %v1860, %v1938
          %v1959 = vsub.f32 %v1861, %v1938
          %v1960 = vsub.f32 %v1862, %v1939
          %v1961 = vsub.f32 %v1863, %v1939
          %v1962 = vsub.f32 %v1864, %v1940
          %v1963 = vsub.f32 %v1865, %v1940
          %v1964 = vsub.f32 %v1866, %v1941
          %v1965 = vsub.f32 %v1867, %v1941
          %v1966 = vsub.f32 %v1868, %v1942
          %v1967 = vsub.f32 %v1869, %v1942
          %v1968 = vsub.f32 %v1870, %v1943
          %v1969 = vsub.f32 %v1871, %v1943
          %v1970 = vsub.f32 %v1872, %v1944
          %v1971 = vsub.f32 %v1873, %v1944
          %v1972 = vsub.f32 %v1874, %v1945
          %v1973 = vsub.f32 %v1875, %v1945
          %v1974 = vsub.f32 %v1876, %v1946
          %v1975 = vsub.f32 %v1877, %v1946
          %v1976 = vsub.f32 %v1878, %v1947
          %v1977 = vsub.f32 %v1879, %v1947
          %v1978 = vsub.f32 %v1880, %v1948
          %v1979 = vsub.f32 %v1881, %v1948
          %v1980 = vsub.f32 %v1882, %v1949
          %v1981 = vsub.f32 %v1883, %v1949
          %v1982 = vmul.f32 %v1950, %v1950
          %v1983 = vmul.f32 %v1951, %v1951
          %v1984 = vmul.f32 %v1952, %v1952
          %v1985 = vmul.f32 %v1953, %v1953
          %v1986 = vmul.f32 %v1954, %v1954
          %v1987 = vmul.f32 %v1955, %v1955
          %v1988 = vmul.f32 %v1956, %v1956
          %v1989 = vmul.f32 %v1957, %v1957
          %v1990 = vmul.f32 %v1958, %v1958
          %v1991 = vmul.f32 %v1959, %v1959
          %v1992 = vmul.f32 %v1960, %v1960
          %v1993 = vmul.f32 %v1961, %v1961
          %v1994 = vmul.f32 %v1962, %v1962
          %v1995 = vmul.f32 %v1963, %v1963
          %v1996 = vmul.f32 %v1964, %v1964
          %v1997 = vmul.f32 %v1965, %v1965
          %v1998 = vmul.f32 %v1966, %v1966
          %v1999 = vmul.f32 %v1967, %v1967
          %v2000 = vmul.f32 %v1968, %v1968
          %v2001 = vmul.f32 %v1969, %v1969
          %v2002 = vmul.f32 %v1970, %v1970
          %v2003 = vmul.f32 %v1971, %v1971
          %v2004 = vmul.f32 %v1972, %v1972
          %v2005 = vmul.f32 %v1973, %v1973
          %v2006 = vmul.f32 %v1974, %v1974
          %v2007 = vmul.f32 %v1975, %v1975
          %v2008 = vmul.f32 %v1976, %v1976
          %v2009 = vmul.f32 %v1977, %v1977
          %v2010 = vmul.f32 %v1978, %v1978
          %v2011 = vmul.f32 %v1979, %v1979
          %v2012 = vmul.f32 %v1980, %v1980
          %v2013 = vmul.f32 %v1981, %v1981
          %v2014 = vadd.f32 %v1982, %v1983
          %2015 = vadd.xlane.f32.xlu0 %v2014
          %v2016 = vpop.xlane.xlu0 %2015
          %v2017 = vadd.f32 %v1984, %v1985
          %2018 = vadd.xlane.f32.xlu0 %v2017
          %v2019 = vpop.xlane.xlu0 %2018
          %v2020 = vadd.f32 %v1986, %v1987
          %2021 = vadd.xlane.f32.xlu0 %v2020
          %v2022 = vpop.xlane.xlu0 %2021
          %v2023 = vadd.f32 %v1988, %v1989
          %2024 = vadd.xlane.f32.xlu0 %v2023
          %v2025 = vpop.xlane.xlu0 %2024
          %v2026 = vadd.f32 %v1990, %v1991
          %2027 = vadd.xlane.f32.xlu0 %v2026
          %v2028 = vpop.xlane.xlu0 %2027
          %v2029 = vadd.f32 %v1992, %v1993
          %2030 = vadd.xlane.f32.xlu0 %v2029
          %v2031 = vpop.xlane.xlu0 %2030
          %v2032 = vadd.f32 %v1994, %v1995
          %2033 = vadd.xlane.f32.xlu0 %v2032
          %v2034 = vpop.xlane.xlu0 %2033
          %v2035 = vadd.f32 %v1996, %v1997
          %2036 = vadd.xlane.f32.xlu0 %v2035
          %v2037 = vpop.xlane.xlu0 %2036
          %v2038 = vadd.f32 %v1998, %v1999
          %2039 = vadd.xlane.f32.xlu0 %v2038
          %v2040 = vpop.xlane.xlu0 %2039
          %v2041 = vadd.f32 %v2000, %v2001
          %2042 = vadd.xlane.f32.xlu0 %v2041
          %v2043 = vpop.xlane.xlu0 %2042
          %v2044 = vadd.f32 %v2002, %v2003
          %2045 = vadd.xlane.f32.xlu0 %v2044
          %v2046 = vpop.xlane.xlu0 %2045
          %v2047 = vadd.f32 %v2004, %v2005
          %2048 = vadd.xlane.f32.xlu0 %v2047
          %v2049 = vpop.xlane.xlu0 %2048
          %v2050 = vadd.f32 %v2006, %v2007
          %2051 = vadd.xlane.f32.xlu0 %v2050
          %v2052 = vpop.xlane.xlu0 %2051
          %v2053 = vadd.f32 %v2008, %v2009
          %2054 = vadd.xlane.f32.xlu0 %v2053
          %v2055 = vpop.xlane.xlu0 %2054
          %v2056 = vadd.f32 %v2010, %v2011
          %2057 = vadd.xlane.f32.xlu0 %v2056
          %v2058 = vpop.xlane.xlu0 %2057
          %v2059 = vadd.f32 %v2012, %v2013
          %2060 = vadd.xlane.f32.xlu0 %v2059
          %v2061 = vpop.xlane.xlu0 %2060
          %v2062 = vmul.f32 %v2016, %v825
          %v2063 = vmul.f32 %v2019, %v825
          %v2064 = vmul.f32 %v2022, %v825
          %v2065 = vmul.f32 %v2025, %v825
          %v2066 = vmul.f32 %v2028, %v825
          %v2067 = vmul.f32 %v2031, %v825
          %v2068 = vmul.f32 %v2034, %v825
          %v2069 = vmul.f32 %v2037, %v825
          %v2070 = vmul.f32 %v2040, %v825
          %v2071 = vmul.f32 %v2043, %v825
          %v2072 = vmul.f32 %v2046, %v825
          %v2073 = vmul.f32 %v2049, %v825
          %v2074 = vmul.f32 %v2052, %v825
          %v2075 = vmul.f32 %v2055, %v825
          %v2076 = vmul.f32 %v2058, %v825
          %v2077 = vmul.f32 %v2061, %v825
          %v2078 = vadd.f32 %v2062, 1e-05
          %v2079 = vadd.f32 %v2063, 1e-05
          %v2080 = vadd.f32 %v2064, 1e-05
          %v2081 = vadd.f32 %v2065, 1e-05
          %v2082 = vadd.f32 %v2066, 1e-05
          %v2083 = vadd.f32 %v2067, 1e-05
          %v2084 = vadd.f32 %v2068, 1e-05
          %v2085 = vadd.f32 %v2069, 1e-05
          %v2086 = vadd.f32 %v2070, 1e-05
          %v2087 = vadd.f32 %v2071, 1e-05
          %v2088 = vadd.f32 %v2072, 1e-05
          %v2089 = vadd.f32 %v2073, 1e-05
          %v2090 = vadd.f32 %v2074, 1e-05
          %v2091 = vadd.f32 %v2075, 1e-05
          %v2092 = vadd.f32 %v2076, 1e-05
          %v2093 = vadd.f32 %v2077, 1e-05
          %v2094 = vrsqrt.pop %v2078
          %v2095 = vrsqrt.pop %v2079
          %v2096 = vrsqrt.pop %v2080
          %v2097 = vrsqrt.pop %v2081
          %v2098 = vrsqrt.pop %v2082
          %v2099 = vrsqrt.pop %v2083
          %v2100 = vrsqrt.pop %v2084
          %v2101 = vrsqrt.pop %v2085
          %v2102 = vrsqrt.pop %v2086
          %v2103 = vrsqrt.pop %v2087
          %v2104 = vrsqrt.pop %v2088
          %v2105 = vrsqrt.pop %v2089
          %v2106 = vrsqrt.pop %v2090
          %v2107 = vrsqrt.pop %v2091
          %v2108 = vrsqrt.pop %v2092
          %v2109 = vrsqrt.pop %v2093
          %v2110 = vmul.f32 %v1950, %v2094
          %v2111 = vmul.f32 %v1951, %v2094
          %v2112 = vmul.f32 %v1952, %v2095
          %v2113 = vmul.f32 %v1953, %v2095
          %v2114 = vmul.f32 %v1954, %v2096
          %v2115 = vmul.f32 %v1955, %v2096
          %v2116 = vmul.f32 %v1956, %v2097
          %v2117 = vmul.f32 %v1957, %v2097
          %v2118 = vmul.f32 %v1958, %v2098
          %v2119 = vmul.f32 %v1959, %v2098
          %v2120 = vmul.f32 %v1960, %v2099
          %v2121 = vmul.f32 %v1961, %v2099
          %v2122 = vmul.f32 %v1962, %v2100
          %v2123 = vmul.f32 %v1963, %v2100
          %v2124 = vmul.f32 %v1964, %v2101
          %v2125 = vmul.f32 %v1965, %v2101
          %v2126 = vmul.f32 %v1966, %v2102
          %v2127 = vmul.f32 %v1967, %v2102
          %v2128 = vmul.f32 %v1968, %v2103
          %v2129 = vmul.f32 %v1969, %v2103
          %v2130 = vmul.f32 %v1970, %v2104
          %v2131 = vmul.f32 %v1971, %v2104
          %v2132 = vmul.f32 %v1972, %v2105
          %v2133 = vmul.f32 %v1973, %v2105
          %v2134 = vmul.f32 %v1974, %v2106
          %v2135 = vmul.f32 %v1975, %v2106
          %v2136 = vmul.f32 %v1976, %v2107
          %v2137 = vmul.f32 %v1977, %v2107
          %v2138 = vmul.f32 %v1978, %v2108
          %v2139 = vmul.f32 %v1979, %v2108
          %v2140 = vmul.f32 %v1980, %v2109
          %v2141 = vmul.f32 %v1981, %v2109
          %v2143 = vlaneseq
          %v2144 = vshrl.u32 %v2143, 7
          %v2145 = vsub.s32 0, %v2144
          %v2146 = vrot.slane %v1884, %v2145
          %v2147 = vlaneseq
          %v2148 = vshrl.u32 %v2147, 7
          %v2149 = vsub.s32 1, %v2148
          %v2150 = vrot.slane %v1884, %v2149
          %v2153 = vmul.f32 %v2110, %v2146
          %v2154 = vmul.f32 %v2111, %v2150
          %v2155 = vmul.f32 %v2112, %v2146
          %v2156 = vmul.f32 %v2113, %v2150
          %v2157 = vmul.f32 %v2114, %v2146
          %v2158 = vmul.f32 %v2115, %v2150
          %v2159 = vmul.f32 %v2116, %v2146
          %v2160 = vmul.f32 %v2117, %v2150
          %v2161 = vmul.f32 %v2118, %v2146
          %v2162 = vmul.f32 %v2119, %v2150
          %v2163 = vmul.f32 %v2120, %v2146
          %v2164 = vmul.f32 %v2121, %v2150
          %v2165 = vmul.f32 %v2122, %v2146
          %v2166 = vmul.f32 %v2123, %v2150
          %v2167 = vmul.f32 %v2124, %v2146
          %v2168 = vmul.f32 %v2125, %v2150
          %v2169 = vmul.f32 %v2126, %v2146
          %v2170 = vmul.f32 %v2127, %v2150
          %v2171 = vmul.f32 %v2128, %v2146
          %v2172 = vmul.f32 %v2129, %v2150
          %v2173 = vmul.f32 %v2130, %v2146
          %v2174 = vmul.f32 %v2131, %v2150
          %v2175 = vmul.f32 %v2132, %v2146
          %v2176 = vmul.f32 %v2133, %v2150
          %v2177 = vmul.f32 %v2134, %v2146
          %v2178 = vmul.f32 %v2135, %v2150
          %v2179 = vmul.f32 %v2136, %v2146
          %v2180 = vmul.f32 %v2137, %v2150
          %v2181 = vmul.f32 %v2138, %v2146
          %v2182 = vmul.f32 %v2139, %v2150
          %v2183 = vmul.f32 %v2140, %v2146
          %v2184 = vmul.f32 %v2141, %v2150
          %v2186 = vlaneseq
          %v2187 = vshrl.u32 %v2186, 7
          %v2188 = vsub.s32 0, %v2187
          %v2189 = vrot.slane %v1885, %v2188
          %v2190 = vlaneseq
          %v2191 = vshrl.u32 %v2190, 7
          %v2192 = vsub.s32 1, %v2191
          %v2193 = vrot.slane %v1885, %v2192
          %v2196 = vadd.f32 %v2153, %v2189
          %v2197 = vadd.f32 %v2154, %v2193
          %v2198 = vadd.f32 %v2155, %v2189
          %v2199 = vadd.f32 %v2156, %v2193
          %v2200 = vadd.f32 %v2157, %v2189
          %v2201 = vadd.f32 %v2158, %v2193
          %v2202 = vadd.f32 %v2159, %v2189
          %v2203 = vadd.f32 %v2160, %v2193
          %v2204 = vadd.f32 %v2161, %v2189
          %v2205 = vadd.f32 %v2162, %v2193
          %v2206 = vadd.f32 %v2163, %v2189
          %v2207 = vadd.f32 %v2164, %v2193
          %v2208 = vadd.f32 %v2165, %v2189
          %v2209 = vadd.f32 %v2166, %v2193
          %v2210 = vadd.f32 %v2167, %v2189
          %v2211 = vadd.f32 %v2168, %v2193
          %v2212 = vadd.f32 %v2169, %v2189
          %v2213 = vadd.f32 %v2170, %v2193
          %v2214 = vadd.f32 %v2171, %v2189
          %v2215 = vadd.f32 %v2172, %v2193
          %v2216 = vadd.f32 %v2173, %v2189
          %v2217 = vadd.f32 %v2174, %v2193
          %v2218 = vadd.f32 %v2175, %v2189
          %v2219 = vadd.f32 %v2176, %v2193
          %v2220 = vadd.f32 %v2177, %v2189
          %v2221 = vadd.f32 %v2178, %v2193
          %v2222 = vadd.f32 %v2179, %v2189
          %v2223 = vadd.f32 %v2180, %v2193
          %v2224 = vadd.f32 %v2181, %v2189
          %v2225 = vadd.f32 %v2182, %v2193
          %v2226 = vadd.f32 %v2183, %v2189
          %v2227 = vadd.f32 %v2184, %v2193
          %v2228 = vpack.c.bf16 %v2198, %v2196
          %v2229 = vpack.c.bf16 %v2199, %v2197
          %v2230 = vpack.c.bf16 %v2202, %v2200
          %v2231 = vpack.c.bf16 %v2203, %v2201
          %v2232 = vpack.c.bf16 %v2206, %v2204
          %v2233 = vpack.c.bf16 %v2207, %v2205
          %v2234 = vpack.c.bf16 %v2210, %v2208
          %v2235 = vpack.c.bf16 %v2211, %v2209
          %v2236 = vpack.c.bf16 %v2214, %v2212
          %v2237 = vpack.c.bf16 %v2215, %v2213
          %v2238 = vpack.c.bf16 %v2218, %v2216
          %v2239 = vpack.c.bf16 %v2219, %v2217
          %v2240 = vpack.c.bf16 %v2222, %v2220
          %v2241 = vpack.c.bf16 %v2223, %v2221
          %v2242 = vpack.c.bf16 %v2226, %v2224
          %v2243 = vpack.c.bf16 %v2227, %v2225
          %v2244 = vld [vmem:[#allocation11] sm:$0xff]
          %v2245 = vld [vmem:[#allocation11 + $0x8] sm:$0xff]
          %v2246 = vld [vmem:[#allocation11 + $0x10] sm:$0xff]
          %v2247 = vld [vmem:[#allocation11 + $0x18] sm:$0xff]
          %v2248 = vld [vmem:[#allocation11 + $0x20] sm:$0xff]
          %v2249 = vld [vmem:[#allocation11 + $0x28] sm:$0xff]
          %v2250 = vld [vmem:[#allocation11 + $0x30] sm:$0xff]
          %v2251 = vld [vmem:[#allocation11 + $0x38] sm:$0xff]
          %v2252 = vld [vmem:[#allocation11 + $0x40] sm:$0xff]
          %v2253 = vld [vmem:[#allocation11 + $0x48] sm:$0xff]
          %v2254 = vld [vmem:[#allocation11 + $0x50] sm:$0xff]
          %v2255 = vld [vmem:[#allocation11 + $0x58] sm:$0xff]
          %v2256 = vld [vmem:[#allocation11 + $0x60] sm:$0xff]
          %v2257 = vld [vmem:[#allocation11 + $0x68] sm:$0xff]
          %v2258 = vld [vmem:[#allocation11 + $0x70] sm:$0xff]
          %v2259 = vld [vmem:[#allocation11 + $0x78] sm:$0xff]
          %v2260 = vld [vmem:[#allocation11 + $0x80] sm:$0xff]
          %v2261 = vld [vmem:[#allocation11 + $0x88] sm:$0xff]
          %v2262 = vld [vmem:[#allocation11 + $0x90] sm:$0xff]
          %v2263 = vld [vmem:[#allocation11 + $0x98] sm:$0xff]
          %v2264 = vld [vmem:[#allocation11 + $0xa0] sm:$0xff]
          %v2265 = vld [vmem:[#allocation11 + $0xa8] sm:$0xff]
          %v2266 = vld [vmem:[#allocation11 + $0xb0] sm:$0xff]
          %v2267 = vld [vmem:[#allocation11 + $0xb8] sm:$0xff]
          %v2268 = vld [vmem:[#allocation11 + $0xc0] sm:$0xff]
          %v2269 = vld [vmem:[#allocation11 + $0xc8] sm:$0xff]
          %v2270 = vld [vmem:[#allocation11 + $0xd0] sm:$0xff]
          %v2271 = vld [vmem:[#allocation11 + $0xd8] sm:$0xff]
          %v2272 = vld [vmem:[#allocation11 + $0xe0] sm:$0xff]
          %v2273 = vld [vmem:[#allocation11 + $0xe8] sm:$0xff]
          %v2274 = vld [vmem:[#allocation11 + $0xf0] sm:$0xff]
          %v2275 = vld [vmem:[#allocation11 + $0xf8] sm:$0xff]
          %v2276 = vld [vmem:[%s8] sm:$0x3]
          %v2278 = vlaneseq
          %v2279 = vshrl.u32 %v2278, 7
          %v2280 = vsub.s32 0, %v2279
          %v2281 = vrot.slane %v2276, %v2280
          %v2282 = vlaneseq
          %v2283 = vshrl.u32 %v2282, 7
          %v2284 = vsub.s32 1, %v2283
          %v2285 = vrot.slane %v2276, %v2284
          %v2320 = vunpack.c.l.b16 %v2244
          %v2321 = vunpack.c.h.b16 %v2244
          %v2322 = vunpack.c.l.b16 %v2245
          %v2323 = vunpack.c.h.b16 %v2245
          %v2324 = vunpack.c.l.b16 %v2246
          %v2325 = vunpack.c.h.b16 %v2246
          %v2326 = vunpack.c.l.b16 %v2247
          %v2327 = vunpack.c.h.b16 %v2247
          %v2328 = vunpack.c.l.b16 %v2248
          %v2329 = vunpack.c.h.b16 %v2248
          %v2330 = vunpack.c.l.b16 %v2249
          %v2331 = vunpack.c.h.b16 %v2249
          %v2332 = vunpack.c.l.b16 %v2250
          %v2333 = vunpack.c.h.b16 %v2250
          %v2334 = vunpack.c.l.b16 %v2251
          %v2335 = vunpack.c.h.b16 %v2251
          %v2336 = vunpack.c.l.b16 %v2252
          %v2337 = vunpack.c.h.b16 %v2252
          %v2338 = vunpack.c.l.b16 %v2253
          %v2339 = vunpack.c.h.b16 %v2253
          %v2340 = vunpack.c.l.b16 %v2254
          %v2341 = vunpack.c.h.b16 %v2254
          %v2342 = vunpack.c.l.b16 %v2255
          %v2343 = vunpack.c.h.b16 %v2255
          %v2344 = vunpack.c.l.b16 %v2256
          %v2345 = vunpack.c.h.b16 %v2256
          %v2346 = vunpack.c.l.b16 %v2257
          %v2347 = vunpack.c.h.b16 %v2257
          %v2348 = vunpack.c.l.b16 %v2258
          %v2349 = vunpack.c.h.b16 %v2258
          %v2350 = vunpack.c.l.b16 %v2259
          %v2351 = vunpack.c.h.b16 %v2259
          %v2352 = vunpack.c.l.b16 %v2260
          %v2353 = vunpack.c.h.b16 %v2260
          %v2354 = vunpack.c.l.b16 %v2261
          %v2355 = vunpack.c.h.b16 %v2261
          %v2356 = vunpack.c.l.b16 %v2262
          %v2357 = vunpack.c.h.b16 %v2262
          %v2358 = vunpack.c.l.b16 %v2263
          %v2359 = vunpack.c.h.b16 %v2263
          %v2360 = vunpack.c.l.b16 %v2264
          %v2361 = vunpack.c.h.b16 %v2264
          %v2362 = vunpack.c.l.b16 %v2265
          %v2363 = vunpack.c.h.b16 %v2265
          %v2364 = vunpack.c.l.b16 %v2266
          %v2365 = vunpack.c.h.b16 %v2266
          %v2366 = vunpack.c.l.b16 %v2267
          %v2367 = vunpack.c.h.b16 %v2267
          %v2368 = vunpack.c.l.b16 %v2268
          %v2369 = vunpack.c.h.b16 %v2268
          %v2370 = vunpack.c.l.b16 %v2269
          %v2371 = vunpack.c.h.b16 %v2269
          %v2372 = vunpack.c.l.b16 %v2270
          %v2373 = vunpack.c.h.b16 %v2270
          %v2374 = vunpack.c.l.b16 %v2271
          %v2375 = vunpack.c.h.b16 %v2271
          %v2376 = vunpack.c.l.b16 %v2272
          %v2377 = vunpack.c.h.b16 %v2272
          %v2378 = vunpack.c.l.b16 %v2273
          %v2379 = vunpack.c.h.b16 %v2273
          %v2380 = vunpack.c.l.b16 %v2274
          %v2381 = vunpack.c.h.b16 %v2274
          %v2382 = vunpack.c.l.b16 %v2275
          %v2383 = vunpack.c.h.b16 %v2275
          %v2384 = vpack.c.b16 %v2322, %v2320
          %v2385 = vpack.c.b16 %v2323, %v2321
          %v2386 = vpack.c.b16 %v2326, %v2324
          %v2387 = vpack.c.b16 %v2327, %v2325
          %v2388 = vpack.c.b16 %v2330, %v2328
          %v2389 = vpack.c.b16 %v2331, %v2329
          %v2390 = vpack.c.b16 %v2334, %v2332
          %v2391 = vpack.c.b16 %v2335, %v2333
          %v2392 = vpack.c.b16 %v2338, %v2336
          %v2393 = vpack.c.b16 %v2339, %v2337
          %v2394 = vpack.c.b16 %v2342, %v2340
          %v2395 = vpack.c.b16 %v2343, %v2341
          %v2396 = vpack.c.b16 %v2346, %v2344
          %v2397 = vpack.c.b16 %v2347, %v2345
          %v2398 = vpack.c.b16 %v2350, %v2348
          %v2399 = vpack.c.b16 %v2351, %v2349
          %v2400 = vpack.c.b16 %v2354, %v2352
          %v2401 = vpack.c.b16 %v2355, %v2353
          %v2402 = vpack.c.b16 %v2358, %v2356
          %v2403 = vpack.c.b16 %v2359, %v2357
          %v2404 = vpack.c.b16 %v2362, %v2360
          %v2405 = vpack.c.b16 %v2363, %v2361
          %v2406 = vpack.c.b16 %v2366, %v2364
          %v2407 = vpack.c.b16 %v2367, %v2365
          %v2408 = vpack.c.b16 %v2370, %v2368
          %v2409 = vpack.c.b16 %v2371, %v2369
          %v2410 = vpack.c.b16 %v2374, %v2372
          %v2411 = vpack.c.b16 %v2375, %v2373
          %v2412 = vpack.c.b16 %v2378, %v2376
          %v2413 = vpack.c.b16 %v2379, %v2377
          %v2414 = vpack.c.b16 %v2382, %v2380
          %v2415 = vpack.c.b16 %v2383, %v2381
          %2448 = vmatprep.subr.bf16.mxu0 %v2385
          %2449 = vmatpush1.bf16.msra.mxu0 %v2384
          %2450 = vmatprep.subr.bf16.mxu0 %v2387
          %2451 = vmatpush1.bf16.msra.mxu0 %v2386
          %2452 = vmatprep.subr.bf16.mxu0 %v2389
          %2453 = vmatpush1.bf16.msra.mxu0 %v2388
          %2454 = vmatprep.subr.bf16.mxu0 %v2391
          %2455 = vmatpush1.bf16.msra.mxu0 %v2390
          %2456 = vmatprep.subr.bf16.mxu0 %v2393
          %2457 = vmatpush1.bf16.msra.mxu0 %v2392
          %2458 = vmatprep.subr.bf16.mxu0 %v2395
          %2459 = vmatpush1.bf16.msra.mxu0 %v2394
          %2460 = vmatprep.subr.bf16.mxu0 %v2397
          %2461 = vmatpush1.bf16.msra.mxu0 %v2396
          %2462 = vmatprep.subr.bf16.mxu0 %v2399
          %2463 = vmatpush1.bf16.msra.mxu0 %v2398
          %2464 = vmatprep.subr.bf16.mxu0 %v2401
          %2465 = vmatpush1.bf16.msra.mxu0 %v2400
          %2466 = vmatprep.subr.bf16.mxu0 %v2403
          %2467 = vmatpush1.bf16.msra.mxu0 %v2402
          %2468 = vmatprep.subr.bf16.mxu0 %v2405
          %2469 = vmatpush1.bf16.msra.mxu0 %v2404
          %2470 = vmatprep.subr.bf16.mxu0 %v2407
          %2471 = vmatpush1.bf16.msra.mxu0 %v2406
          %2472 = vmatprep.subr.bf16.mxu0 %v2409
          %2473 = vmatpush1.bf16.msra.mxu0 %v2408
          %2474 = vmatprep.subr.bf16.mxu0 %v2411
          %2475 = vmatpush1.bf16.msra.mxu0 %v2410
          %2476 = vmatprep.subr.bf16.mxu0 %v2413
          %2477 = vmatpush1.bf16.msra.mxu0 %v2412
          %2478 = vmatprep.subr.bf16.mxu0 %v2415
          %2479 = vmatpush1.bf16.msra.mxu0 %v2414
          %2480 = vmatprep.mubr.bf16.mxu0 %v2229
          %2481 = vmatmul.mubr.bf16.gmra.mrb[0].mxu0 %v2228
          %v2482 = vpop.f32.mrb[0].mxu0
          %v2483 = vadd.f32 %v2281, %v2482
          %v2484 = vpop.f32.mrb[0].mxu0
          %v2485 = vadd.f32 %v2285, %v2484
          %v2486 = vpop.f32.mrb[0].mxu0
          %v2487 = vadd.f32 %v2281, %v2486
          %v2488 = vpop.f32.mrb[0].mxu0
          %v2489 = vadd.f32 %v2285, %v2488
          %2490 = vmatprep.mubr.bf16.mxu0 %v2231
          %2491 = vmatmul.mubr.bf16.gmra.mrb[0].mxu0 %v2230
          %v2492 = vpop.f32.mrb[0].mxu0
          %v2493 = vadd.f32 %v2281, %v2492
          %v2494 = vpop.f32.mrb[0].mxu0
          %v2495 = vadd.f32 %v2285, %v2494
          %v2496 = vpop.f32.mrb[0].mxu0
          %v2497 = vadd.f32 %v2281, %v2496
          %v2498 = vpop.f32.mrb[0].mxu0
          %v2499 = vadd.f32 %v2285, %v2498
          %2500 = vmatprep.mubr.bf16.mxu0 %v2233
          %2501 = vmatmul.mubr.bf16.gmra.mrb[0].mxu0 %v2232
          %v2502 = vpop.f32.mrb[0].mxu0
          %v2503 = vadd.f32 %v2281, %v2502
          %v2504 = vpop.f32.mrb[0].mxu0
          %v2505 = vadd.f32 %v2285, %v2504
          %v2506 = vpop.f32.mrb[0].mxu0
          %v2507 = vadd.f32 %v2281, %v2506
          %v2508 = vpop.f32.mrb[0].mxu0
          %v2509 = vadd.f32 %v2285, %v2508
          %2510 = vmatprep.mubr.bf16.mxu0 %v2235
          %2511 = vmatmul.mubr.bf16.gmra.mrb[0].mxu0 %v2234
          %v2512 = vpop.f32.mrb[0].mxu0
          %v2513 = vadd.f32 %v2281, %v2512
          %v2514 = vpop.f32.mrb[0].mxu0
          %v2515 = vadd.f32 %v2285, %v2514
          %v2516 = vpop.f32.mrb[0].mxu0
          %v2517 = vadd.f32 %v2281, %v2516
          %v2518 = vpop.f32.mrb[0].mxu0
          %v2519 = vadd.f32 %v2285, %v2518
          %2520 = vmatprep.mubr.bf16.mxu0 %v2237
          %2521 = vmatmul.mubr.bf16.gmra.mrb[0].mxu0 %v2236
          %v2522 = vpop.f32.mrb[0].mxu0
          %v2523 = vadd.f32 %v2281, %v2522
          %v2524 = vpop.f32.mrb[0].mxu0
          %v2525 = vadd.f32 %v2285, %v2524
          %v2526 = vpop.f32.mrb[0].mxu0
          %v2527 = vadd.f32 %v2281, %v2526
          %v2528 = vpop.f32.mrb[0].mxu0
          %v2529 = vadd.f32 %v2285, %v2528
          %2530 = vmatprep.mubr.bf16.mxu0 %v2239
          %2531 = vmatmul.mubr.bf16.gmra.mrb[0].mxu0 %v2238
          %v2532 = vpop.f32.mrb[0].mxu0
          %v2533 = vadd.f32 %v2281, %v2532
          %v2534 = vpop.f32.mrb[0].mxu0
          %v2535 = vadd.f32 %v2285, %v2534
          %v2536 = vpop.f32.mrb[0].mxu0
          %v2537 = vadd.f32 %v2281, %v2536
          %v2538 = vpop.f32.mrb[0].mxu0
          %v2539 = vadd.f32 %v2285, %v2538
          %2540 = vmatprep.mubr.bf16.mxu0 %v2241
          %2541 = vmatmul.mubr.bf16.gmra.mrb[0].mxu0 %v2240
          %v2542 = vpop.f32.mrb[0].mxu0
          %v2543 = vadd.f32 %v2281, %v2542
          %v2544 = vpop.f32.mrb[0].mxu0
          %v2545 = vadd.f32 %v2285, %v2544
          %v2546 = vpop.f32.mrb[0].mxu0
          %v2547 = vadd.f32 %v2281, %v2546
          %v2548 = vpop.f32.mrb[0].mxu0
          %v2549 = vadd.f32 %v2285, %v2548
          %2550 = vmatprep.mubr.bf16.mxu0 %v2243
          %2551 = vmatmul.mubr.bf16.gmra.mrb[0].mxu0 %v2242
          %v2552 = vpop.f32.mrb[0].mxu0
          %v2553 = vadd.f32 %v2281, %v2552
          %v2554 = vpop.f32.mrb[0].mxu0
          %v2555 = vadd.f32 %v2285, %v2554
          %v2556 = vpop.f32.mrb[0].mxu0
          %v2557 = vadd.f32 %v2281, %v2556
          %v2558 = vpop.f32.mrb[0].mxu0
          %v2559 = vadd.f32 %v2285, %v2558
          %2560 = vdwg.mxu0
          %v2561 = vld [vmem:[#allocation13] sm:$0xff]
          %v2562 = vld [vmem:[#allocation13 + $0x8] sm:$0xff]
          %v2563 = vld [vmem:[#allocation13 + $0x10] sm:$0xff]
          %v2564 = vld [vmem:[#allocation13 + $0x18] sm:$0xff]
          %v2565 = vld [vmem:[#allocation13 + $0x20] sm:$0xff]
          %v2566 = vld [vmem:[#allocation13 + $0x28] sm:$0xff]
          %v2567 = vld [vmem:[#allocation13 + $0x30] sm:$0xff]
          %v2568 = vld [vmem:[#allocation13 + $0x38] sm:$0xff]
          %v2569 = vld [vmem:[#allocation13 + $0x40] sm:$0xff]
          %v2570 = vld [vmem:[#allocation13 + $0x48] sm:$0xff]
          %v2571 = vld [vmem:[#allocation13 + $0x50] sm:$0xff]
          %v2572 = vld [vmem:[#allocation13 + $0x58] sm:$0xff]
          %v2573 = vld [vmem:[#allocation13 + $0x60] sm:$0xff]
          %v2574 = vld [vmem:[#allocation13 + $0x68] sm:$0xff]
          %v2575 = vld [vmem:[#allocation13 + $0x70] sm:$0xff]
          %v2576 = vld [vmem:[#allocation13 + $0x78] sm:$0xff]
          %v2577 = vld [vmem:[#allocation13 + $0x80] sm:$0xff]
          %v2578 = vld [vmem:[#allocation13 + $0x88] sm:$0xff]
          %v2579 = vld [vmem:[#allocation13 + $0x90] sm:$0xff]
          %v2580 = vld [vmem:[#allocation13 + $0x98] sm:$0xff]
          %v2581 = vld [vmem:[#allocation13 + $0xa0] sm:$0xff]
          %v2582 = vld [vmem:[#allocation13 + $0xa8] sm:$0xff]
          %v2583 = vld [vmem:[#allocation13 + $0xb0] sm:$0xff]
          %v2584 = vld [vmem:[#allocation13 + $0xb8] sm:$0xff]
          %v2585 = vld [vmem:[#allocation13 + $0xc0] sm:$0xff]
          %v2586 = vld [vmem:[#allocation13 + $0xc8] sm:$0xff]
          %v2587 = vld [vmem:[#allocation13 + $0xd0] sm:$0xff]
          %v2588 = vld [vmem:[#allocation13 + $0xd8] sm:$0xff]
          %v2589 = vld [vmem:[#allocation13 + $0xe0] sm:$0xff]
          %v2590 = vld [vmem:[#allocation13 + $0xe8] sm:$0xff]
          %v2591 = vld [vmem:[#allocation13 + $0xf0] sm:$0xff]
          %v2592 = vld [vmem:[#allocation13 + $0xf8] sm:$0xff]
          %v2593 = vld [vmem:[%s9] sm:$0x3]
          %v2595 = vlaneseq
          %v2596 = vshrl.u32 %v2595, 7
          %v2597 = vsub.s32 0, %v2596
          %v2598 = vrot.slane %v2593, %v2597
          %v2599 = vlaneseq
          %v2600 = vshrl.u32 %v2599, 7
          %v2601 = vsub.s32 1, %v2600
          %v2602 = vrot.slane %v2593, %v2601
          %v2637 = vunpack.c.l.b16 %v2561
          %v2638 = vunpack.c.h.b16 %v2561
          %v2639 = vunpack.c.l.b16 %v2562
          %v2640 = vunpack.c.h.b16 %v2562
          %v2641 = vunpack.c.l.b16 %v2563
          %v2642 = vunpack.c.h.b16 %v2563
          %v2643 = vunpack.c.l.b16 %v2564
          %v2644 = vunpack.c.h.b16 %v2564
          %v2645 = vunpack.c.l.b16 %v2565
          %v2646 = vunpack.c.h.b16 %v2565
          %v2647 = vunpack.c.l.b16 %v2566
          %v2648 = vunpack.c.h.b16 %v2566
          %v2649 = vunpack.c.l.b16 %v2567
          %v2650 = vunpack.c.h.b16 %v2567
          %v2651 = vunpack.c.l.b16 %v2568
          %v2652 = vunpack.c.h.b16 %v2568
          %v2653 = vunpack.c.l.b16 %v2569
          %v2654 = vunpack.c.h.b16 %v2569
          %v2655 = vunpack.c.l.b16 %v2570
          %v2656 = vunpack.c.h.b16 %v2570
          %v2657 = vunpack.c.l.b16 %v2571
          %v2658 = vunpack.c.h.b16 %v2571
          %v2659 = vunpack.c.l.b16 %v2572
          %v2660 = vunpack.c.h.b16 %v2572
          %v2661 = vunpack.c.l.b16 %v2573
          %v2662 = vunpack.c.h.b16 %v2573
          %v2663 = vunpack.c.l.b16 %v2574
          %v2664 = vunpack.c.h.b16 %v2574
          %v2665 = vunpack.c.l.b16 %v2575
          %v2666 = vunpack.c.h.b16 %v2575
          %v2667 = vunpack.c.l.b16 %v2576
          %v2668 = vunpack.c.h.b16 %v2576
          %v2669 = vunpack.c.l.b16 %v2577
          %v2670 = vunpack.c.h.b16 %v2577
          %v2671 = vunpack.c.l.b16 %v2578
          %v2672 = vunpack.c.h.b16 %v2578
          %v2673 = vunpack.c.l.b16 %v2579
          %v2674 = vunpack.c.h.b16 %v2579
          %v2675 = vunpack.c.l.b16 %v2580
          %v2676 = vunpack.c.h.b16 %v2580
          %v2677 = vunpack.c.l.b16 %v2581
          %v2678 = vunpack.c.h.b16 %v2581
          %v2679 = vunpack.c.l.b16 %v2582
          %v2680 = vunpack.c.h.b16 %v2582
          %v2681 = vunpack.c.l.b16 %v2583
          %v2682 = vunpack.c.h.b16 %v2583
          %v2683 = vunpack.c.l.b16 %v2584
          %v2684 = vunpack.c.h.b16 %v2584
          %v2685 = vunpack.c.l.b16 %v2585
          %v2686 = vunpack.c.h.b16 %v2585
          %v2687 = vunpack.c.l.b16 %v2586
          %v2688 = vunpack.c.h.b16 %v2586
          %v2689 = vunpack.c.l.b16 %v2587
          %v2690 = vunpack.c.h.b16 %v2587
          %v2691 = vunpack.c.l.b16 %v2588
          %v2692 = vunpack.c.h.b16 %v2588
          %v2693 = vunpack.c.l.b16 %v2589
          %v2694 = vunpack.c.h.b16 %v2589
          %v2695 = vunpack.c.l.b16 %v2590
          %v2696 = vunpack.c.h.b16 %v2590
          %v2697 = vunpack.c.l.b16 %v2591
          %v2698 = vunpack.c.h.b16 %v2591
          %v2699 = vunpack.c.l.b16 %v2592
          %v2700 = vunpack.c.h.b16 %v2592
          %v2701 = vpack.c.b16 %v2639, %v2637
          %v2702 = vpack.c.b16 %v2640, %v2638
          %v2703 = vpack.c.b16 %v2643, %v2641
          %v2704 = vpack.c.b16 %v2644, %v2642
          %v2705 = vpack.c.b16 %v2647, %v2645
          %v2706 = vpack.c.b16 %v2648, %v2646
          %v2707 = vpack.c.b16 %v2651, %v2649
          %v2708 = vpack.c.b16 %v2652, %v2650
          %v2709 = vpack.c.b16 %v2655, %v2653
          %v2710 = vpack.c.b16 %v2656, %v2654
          %v2711 = vpack.c.b16 %v2659, %v2657
          %v2712 = vpack.c.b16 %v2660, %v2658
          %v2713 = vpack.c.b16 %v2663, %v2661
          %v2714 = vpack.c.b16 %v2664, %v2662
          %v2715 = vpack.c.b16 %v2667, %v2665
          %v2716 = vpack.c.b16 %v2668, %v2666
          %v2717 = vpack.c.b16 %v2671, %v2669
          %v2718 = vpack.c.b16 %v2672, %v2670
          %v2719 = vpack.c.b16 %v2675, %v2673
          %v2720 = vpack.c.b16 %v2676, %v2674
          %v2721 = vpack.c.b16 %v2679, %v2677
          %v2722 = vpack.c.b16 %v2680, %v2678
          %v2723 = vpack.c.b16 %v2683, %v2681
          %v2724 = vpack.c.b16 %v2684, %v2682
          %v2725 = vpack.c.b16 %v2687, %v2685
          %v2726 = vpack.c.b16 %v2688, %v2686
          %v2727 = vpack.c.b16 %v2691, %v2689
          %v2728 = vpack.c.b16 %v2692, %v2690
          %v2729 = vpack.c.b16 %v2695, %v2693
          %v2730 = vpack.c.b16 %v2696, %v2694
          %v2731 = vpack.c.b16 %v2699, %v2697
          %v2732 = vpack.c.b16 %v2700, %v2698
          %2765 = vmatprep.subr.bf16.mxu0 %v2702
          %2766 = vmatpush1.bf16.msra.mxu0 %v2701
          %2767 = vmatprep.subr.bf16.mxu0 %v2704
          %2768 = vmatpush1.bf16.msra.mxu0 %v2703
          %2769 = vmatprep.subr.bf16.mxu0 %v2706
          %2770 = vmatpush1.bf16.msra.mxu0 %v2705
          %2771 = vmatprep.subr.bf16.mxu0 %v2708
          %2772 = vmatpush1.bf16.msra.mxu0 %v2707
          %2773 = vmatprep.subr.bf16.mxu0 %v2710
          %2774 = vmatpush1.bf16.msra.mxu0 %v2709
          %2775 = vmatprep.subr.bf16.mxu0 %v2712
          %2776 = vmatpush1.bf16.msra.mxu0 %v2711
          %2777 = vmatprep.subr.bf16.mxu0 %v2714
          %2778 = vmatpush1.bf16.msra.mxu0 %v2713
          %2779 = vmatprep.subr.bf16.mxu0 %v2716
          %2780 = vmatpush1.bf16.msra.mxu0 %v2715
          %2781 = vmatprep.subr.bf16.mxu0 %v2718
          %2782 = vmatpush1.bf16.msra.mxu0 %v2717
          %2783 = vmatprep.subr.bf16.mxu0 %v2720
          %2784 = vmatpush1.bf16.msra.mxu0 %v2719
          %2785 = vmatprep.subr.bf16.mxu0 %v2722
          %2786 = vmatpush1.bf16.msra.mxu0 %v2721
          %2787 = vmatprep.subr.bf16.mxu0 %v2724
          %2788 = vmatpush1.bf16.msra.mxu0 %v2723
          %2789 = vmatprep.subr.bf16.mxu0 %v2726
          %2790 = vmatpush1.bf16.msra.mxu0 %v2725
          %2791 = vmatprep.subr.bf16.mxu0 %v2728
          %2792 = vmatpush1.bf16.msra.mxu0 %v2727
          %2793 = vmatprep.subr.bf16.mxu0 %v2730
          %2794 = vmatpush1.bf16.msra.mxu0 %v2729
          %2795 = vmatprep.subr.bf16.mxu0 %v2732
          %2796 = vmatpush1.bf16.msra.mxu0 %v2731
          %2797 = vmatprep.mubr.bf16.mxu0 %v2229
          %2798 = vmatmul.mubr.bf16.gmra.mrb[0].mxu0 %v2228
          %v2799 = vpop.f32.mrb[0].mxu0
          %v2800 = vadd.f32 %v2598, %v2799
          %v2801 = vpop.f32.mrb[0].mxu0
          %v2802 = vadd.f32 %v2602, %v2801
          %v2803 = vpop.f32.mrb[0].mxu0
          %v2804 = vadd.f32 %v2598, %v2803
          %v2805 = vpop.f32.mrb[0].mxu0
          %v2806 = vadd.f32 %v2602, %v2805
          %2807 = vmatprep.mubr.bf16.mxu0 %v2231
          %2808 = vmatmul.mubr.bf16.gmra.mrb[0].mxu0 %v2230
          %v2809 = vpop.f32.mrb[0].mxu0
          %v2810 = vadd.f32 %v2598, %v2809
          %v2811 = vpop.f32.mrb[0].mxu0
          %v2812 = vadd.f32 %v2602, %v2811
          %v2813 = vpop.f32.mrb[0].mxu0
          %v2814 = vadd.f32 %v2598, %v2813
          %v2815 = vpop.f32.mrb[0].mxu0
          %v2816 = vadd.f32 %v2602, %v2815
          %2817 = vmatprep.mubr.bf16.mxu0 %v2233
          %2818 = vmatmul.mubr.bf16.gmra.mrb[0].mxu0 %v2232
          %v2819 = vpop.f32.mrb[0].mxu0
          %v2820 = vadd.f32 %v2598, %v2819
          %v2821 = vpop.f32.mrb[0].mxu0
          %v2822 = vadd.f32 %v2602, %v2821
          %v2823 = vpop.f32.mrb[0].mxu0
          %v2824 = vadd.f32 %v2598, %v2823
          %v2825 = vpop.f32.mrb[0].mxu0
          %v2826 = vadd.f32 %v2602, %v2825
          %2827 = vmatprep.mubr.bf16.mxu0 %v2235
          %2828 = vmatmul.mubr.bf16.gmra.mrb[0].mxu0 %v2234
          %v2829 = vpop.f32.mrb[0].mxu0
          %v2830 = vadd.f32 %v2598, %v2829
          %v2831 = vpop.f32.mrb[0].mxu0
          %v2832 = vadd.f32 %v2602, %v2831
          %v2833 = vpop.f32.mrb[0].mxu0
          %v2834 = vadd.f32 %v2598, %v2833
          %v2835 = vpop.f32.mrb[0].mxu0
          %v2836 = vadd.f32 %v2602, %v2835
          %2837 = vmatprep.mubr.bf16.mxu0 %v2237
          %2838 = vmatmul.mubr.bf16.gmra.mrb[0].mxu0 %v2236
          %v2839 = vpop.f32.mrb[0].mxu0
          %v2840 = vadd.f32 %v2598, %v2839
          %v2841 = vpop.f32.mrb[0].mxu0
          %v2842 = vadd.f32 %v2602, %v2841
          %v2843 = vpop.f32.mrb[0].mxu0
          %v2844 = vadd.f32 %v2598, %v2843
          %v2845 = vpop.f32.mrb[0].mxu0
          %v2846 = vadd.f32 %v2602, %v2845
          %2847 = vmatprep.mubr.bf16.mxu0 %v2239
          %2848 = vmatmul.mubr.bf16.gmra.mrb[0].mxu0 %v2238
          %v2849 = vpop.f32.mrb[0].mxu0
          %v2850 = vadd.f32 %v2598, %v2849
          %v2851 = vpop.f32.mrb[0].mxu0
          %v2852 = vadd.f32 %v2602, %v2851
          %v2853 = vpop.f32.mrb[0].mxu0
          %v2854 = vadd.f32 %v2598, %v2853
          %v2855 = vpop.f32.mrb[0].mxu0
          %v2856 = vadd.f32 %v2602, %v2855
          %2857 = vmatprep.mubr.bf16.mxu0 %v2241
          %2858 = vmatmul.mubr.bf16.gmra.mrb[0].mxu0 %v2240
          %v2859 = vpop.f32.mrb[0].mxu0
          %v2860 = vadd.f32 %v2598, %v2859
          %v2861 = vpop.f32.mrb[0].mxu0
          %v2862 = vadd.f32 %v2602, %v2861
          %v2863 = vpop.f32.mrb[0].mxu0
          %v2864 = vadd.f32 %v2598, %v2863
          %v2865 = vpop.f32.mrb[0].mxu0
          %v2866 = vadd.f32 %v2602, %v2865
          %2867 = vmatprep.mubr.bf16.mxu0 %v2243
          %2868 = vmatmul.mubr.bf16.gmra.mrb[0].mxu0 %v2242
          %v2869 = vpop.f32.mrb[0].mxu0
          %v2870 = vadd.f32 %v2598, %v2869
          %v2871 = vpop.f32.mrb[0].mxu0
          %v2872 = vadd.f32 %v2602, %v2871
          %v2873 = vpop.f32.mrb[0].mxu0
          %v2874 = vadd.f32 %v2598, %v2873
          %v2875 = vpop.f32.mrb[0].mxu0
          %v2876 = vadd.f32 %v2602, %v2875
          %2877 = vdwg.mxu0
          %2894 = vrot.lane.b32.xlu0 %v2483, 64
          %v2895 = vpop.permute.xlu0 %2894
          %2896 = vrot.lane.b32.xlu0 %v2487, 64
          %v2897 = vpop.permute.xlu0 %2896
          %2898 = vrot.lane.b32.xlu0 %v2493, 64
          %v2899 = vpop.permute.xlu0 %2898
          %2900 = vrot.lane.b32.xlu0 %v2497, 64
          %v2901 = vpop.permute.xlu0 %2900
          %2902 = vrot.lane.b32.xlu0 %v2503, 64
          %v2903 = vpop.permute.xlu0 %2902
          %2904 = vrot.lane.b32.xlu0 %v2507, 64
          %v2905 = vpop.permute.xlu0 %2904
          %2906 = vrot.lane.b32.xlu0 %v2513, 64
          %v2907 = vpop.permute.xlu0 %2906
          %2908 = vrot.lane.b32.xlu0 %v2517, 64
          %v2909 = vpop.permute.xlu0 %2908
          %2910 = vrot.lane.b32.xlu0 %v2523, 64
          %v2911 = vpop.permute.xlu0 %2910
          %2912 = vrot.lane.b32.xlu0 %v2527, 64
          %v2913 = vpop.permute.xlu0 %2912
          %2914 = vrot.lane.b32.xlu0 %v2533, 64
          %v2915 = vpop.permute.xlu0 %2914
          %2916 = vrot.lane.b32.xlu0 %v2537, 64
          %v2917 = vpop.permute.xlu0 %2916
          %2918 = vrot.lane.b32.xlu0 %v2543, 64
          %v2919 = vpop.permute.xlu0 %2918
          %2920 = vrot.lane.b32.xlu0 %v2547, 64
          %v2921 = vpop.permute.xlu0 %2920
          %2922 = vrot.lane.b32.xlu0 %v2553, 64
          %v2923 = vpop.permute.xlu0 %2922
          %2924 = vrot.lane.b32.xlu0 %v2557, 64
          %v2925 = vpop.permute.xlu0 %2924
          %2958 = vrot.lane.b32.xlu0 %v2485, 64
          %v2959 = vpop.permute.xlu0 %2958
          %2960 = vrot.lane.b32.xlu0 %v2489, 64
          %v2961 = vpop.permute.xlu0 %2960
          %2962 = vrot.lane.b32.xlu0 %v2495, 64
          %v2963 = vpop.permute.xlu0 %2962
          %2964 = vrot.lane.b32.xlu0 %v2499, 64
          %v2965 = vpop.permute.xlu0 %2964
          %2966 = vrot.lane.b32.xlu0 %v2505, 64
          %v2967 = vpop.permute.xlu0 %2966
          %2968 = vrot.lane.b32.xlu0 %v2509, 64
          %v2969 = vpop.permute.xlu0 %2968
          %2970 = vrot.lane.b32.xlu0 %v2515, 64
          %v2971 = vpop.permute.xlu0 %2970
          %2972 = vrot.lane.b32.xlu0 %v2519, 64
          %v2973 = vpop.permute.xlu0 %2972
          %2974 = vrot.lane.b32.xlu0 %v2525, 64
          %v2975 = vpop.permute.xlu0 %2974
          %2976 = vrot.lane.b32.xlu0 %v2529, 64
          %v2977 = vpop.permute.xlu0 %2976
          %2978 = vrot.lane.b32.xlu0 %v2535, 64
          %v2979 = vpop.permute.xlu0 %2978
          %2980 = vrot.lane.b32.xlu0 %v2539, 64
          %v2981 = vpop.permute.xlu0 %2980
          %2982 = vrot.lane.b32.xlu0 %v2545, 64
          %v2983 = vpop.permute.xlu0 %2982
          %2984 = vrot.lane.b32.xlu0 %v2549, 64
          %v2985 = vpop.permute.xlu0 %2984
          %2986 = vrot.lane.b32.xlu0 %v2555, 64
          %v2987 = vpop.permute.xlu0 %2986
          %2988 = vrot.lane.b32.xlu0 %v2559, 64
          %v2989 = vpop.permute.xlu0 %2988
          %v3006 = vpack.c.bf16 %v2487, %v2483
          %v3007 = vpack.c.bf16 %v2497, %v2493
          %v3008 = vpack.c.bf16 %v2507, %v2503
          %v3009 = vpack.c.bf16 %v2517, %v2513
          %v3010 = vpack.c.bf16 %v2527, %v2523
          %v3011 = vpack.c.bf16 %v2537, %v2533
          %v3012 = vpack.c.bf16 %v2547, %v2543
          %v3013 = vpack.c.bf16 %v2557, %v2553
          %v3014 = vpack.c.bf16 %v2897, %v2895
          %v3015 = vpack.c.bf16 %v2901, %v2899
          %v3016 = vpack.c.bf16 %v2905, %v2903
          %v3017 = vpack.c.bf16 %v2909, %v2907
          %v3018 = vpack.c.bf16 %v2913, %v2911
          %v3019 = vpack.c.bf16 %v2917, %v2915
          %v3020 = vpack.c.bf16 %v2921, %v2919
          %v3021 = vpack.c.bf16 %v2925, %v2923
          %v3022 = vpack.c.bf16 %v2489, %v2485
          %v3023 = vpack.c.bf16 %v2499, %v2495
          %v3024 = vpack.c.bf16 %v2509, %v2505
          %v3025 = vpack.c.bf16 %v2519, %v2515
          %v3026 = vpack.c.bf16 %v2529, %v2525
          %v3027 = vpack.c.bf16 %v2539, %v2535
          %v3028 = vpack.c.bf16 %v2549, %v2545
          %v3029 = vpack.c.bf16 %v2559, %v2555
          %v3030 = vpack.c.bf16 %v2961, %v2959
          %v3031 = vpack.c.bf16 %v2965, %v2963
          %v3032 = vpack.c.bf16 %v2969, %v2967
          %v3033 = vpack.c.bf16 %v2973, %v2971
          %v3034 = vpack.c.bf16 %v2977, %v2975
          %v3035 = vpack.c.bf16 %v2981, %v2979
          %v3036 = vpack.c.bf16 %v2985, %v2983
          %v3037 = vpack.c.bf16 %v2989, %v2987
          %3054 = vrot.lane.b32.xlu0 %v2800, 64
          %v3055 = vpop.permute.xlu0 %3054
          %3056 = vrot.lane.b32.xlu0 %v2804, 64
          %v3057 = vpop.permute.xlu0 %3056
          %3058 = vrot.lane.b32.xlu0 %v2810, 64
          %v3059 = vpop.permute.xlu0 %3058
          %3060 = vrot.lane.b32.xlu0 %v2814, 64
          %v3061 = vpop.permute.xlu0 %3060
          %3062 = vrot.lane.b32.xlu0 %v2820, 64
          %v3063 = vpop.permute.xlu0 %3062
          %3064 = vrot.lane.b32.xlu0 %v2824, 64
          %v3065 = vpop.permute.xlu0 %3064
          %3066 = vrot.lane.b32.xlu0 %v2830, 64
          %v3067 = vpop.permute.xlu0 %3066
          %3068 = vrot.lane.b32.xlu0 %v2834, 64
          %v3069 = vpop.permute.xlu0 %3068
          %3070 = vrot.lane.b32.xlu0 %v2840, 64
          %v3071 = vpop.permute.xlu0 %3070
          %3072 = vrot.lane.b32.xlu0 %v2844, 64
          %v3073 = vpop.permute.xlu0 %3072
          %3074 = vrot.lane.b32.xlu0 %v2850, 64
          %v3075 = vpop.permute.xlu0 %3074
          %3076 = vrot.lane.b32.xlu0 %v2854, 64
          %v3077 = vpop.permute.xlu0 %3076
          %3078 = vrot.lane.b32.xlu0 %v2860, 64
          %v3079 = vpop.permute.xlu0 %3078
          %3080 = vrot.lane.b32.xlu0 %v2864, 64
          %v3081 = vpop.permute.xlu0 %3080
          %3082 = vrot.lane.b32.xlu0 %v2870, 64
          %v3083 = vpop.permute.xlu0 %3082
          %3084 = vrot.lane.b32.xlu0 %v2874, 64
          %v3085 = vpop.permute.xlu0 %3084
          %3118 = vrot.lane.b32.xlu0 %v2802, 64
          %v3119 = vpop.permute.xlu0 %3118
          %3120 = vrot.lane.b32.xlu0 %v2806, 64
          %v3121 = vpop.permute.xlu0 %3120
          %3122 = vrot.lane.b32.xlu0 %v2812, 64
          %v3123 = vpop.permute.xlu0 %3122
          %3124 = vrot.lane.b32.xlu0 %v2816, 64
          %v3125 = vpop.permute.xlu0 %3124
          %3126 = vrot.lane.b32.xlu0 %v2822, 64
          %v3127 = vpop.permute.xlu0 %3126
          %3128 = vrot.lane.b32.xlu0 %v2826, 64
          %v3129 = vpop.permute.xlu0 %3128
          %3130 = vrot.lane.b32.xlu0 %v2832, 64
          %v3131 = vpop.permute.xlu0 %3130
          %3132 = vrot.lane.b32.xlu0 %v2836, 64
          %v3133 = vpop.permute.xlu0 %3132
          %3134 = vrot.lane.b32.xlu0 %v2842, 64
          %v3135 = vpop.permute.xlu0 %3134
          %3136 = vrot.lane.b32.xlu0 %v2846, 64
          %v3137 = vpop.permute.xlu0 %3136
          %3138 = vrot.lane.b32.xlu0 %v2852, 64
          %v3139 = vpop.permute.xlu0 %3138
          %3140 = vrot.lane.b32.xlu0 %v2856, 64
          %v3141 = vpop.permute.xlu0 %3140
          %3142 = vrot.lane.b32.xlu0 %v2862, 64
          %v3143 = vpop.permute.xlu0 %3142
          %3144 = vrot.lane.b32.xlu0 %v2866, 64
          %v3145 = vpop.permute.xlu0 %3144
          %3146 = vrot.lane.b32.xlu0 %v2872, 64
          %v3147 = vpop.permute.xlu0 %3146
          %3148 = vrot.lane.b32.xlu0 %v2876, 64
          %v3149 = vpop.permute.xlu0 %3148
          %v3166 = vpack.c.bf16 %v2804, %v2800
          %v3167 = vpack.c.bf16 %v2814, %v2810
          %v3168 = vpack.c.bf16 %v2824, %v2820
          %v3169 = vpack.c.bf16 %v2834, %v2830
          %v3170 = vpack.c.bf16 %v2844, %v2840
          %v3171 = vpack.c.bf16 %v2854, %v2850
          %v3172 = vpack.c.bf16 %v2864, %v2860
          %v3173 = vpack.c.bf16 %v2874, %v2870
          %v3174 = vpack.c.bf16 %v3057, %v3055
          %v3175 = vpack.c.bf16 %v3061, %v3059
          %v3176 = vpack.c.bf16 %v3065, %v3063
          %v3177 = vpack.c.bf16 %v3069, %v3067
          %v3178 = vpack.c.bf16 %v3073, %v3071
          %v3179 = vpack.c.bf16 %v3077, %v3075
          %v3180 = vpack.c.bf16 %v3081, %v3079
          %v3181 = vpack.c.bf16 %v3085, %v3083
          %v3182 = vpack.c.bf16 %v2806, %v2802
          %v3183 = vpack.c.bf16 %v2816, %v2812
          %v3184 = vpack.c.bf16 %v2826, %v2822
          %v3185 = vpack.c.bf16 %v2836, %v2832
          %v3186 = vpack.c.bf16 %v2846, %v2842
          %v3187 = vpack.c.bf16 %v2856, %v2852
          %v3188 = vpack.c.bf16 %v2866, %v2862
          %v3189 = vpack.c.bf16 %v2876, %v2872
          %v3190 = vpack.c.bf16 %v3121, %v3119
          %v3191 = vpack.c.bf16 %v3125, %v3123
          %v3192 = vpack.c.bf16 %v3129, %v3127
          %v3193 = vpack.c.bf16 %v3133, %v3131
          %v3194 = vpack.c.bf16 %v3137, %v3135
          %v3195 = vpack.c.bf16 %v3141, %v3139
          %v3196 = vpack.c.bf16 %v3145, %v3143
          %v3197 = vpack.c.bf16 %v3149, %v3147
          %v3199 = vsel %vm1774, %v1613, 0
          %v3202 = vsel %vm1774, %v1614, 0
          %v3205 = vsel %vm1774, %v1615, 0
          %v3208 = vsel %vm1774, %v1616, 0
          %v3211 = vsel %vm1774, %v1617, 0
          %v3214 = vsel %vm1774, %v1618, 0
          %v3217 = vsel %vm1774, %v1619, 0
          %v3220 = vsel %vm1774, %v1620, 0
          %v3223 = vsel %vm1774, %v3006, 0
          %v3226 = vsel %vm1774, %v3007, 0
          %v3229 = vsel %vm1774, %v3008, 0
          %v3232 = vsel %vm1774, %v3009, 0
          %v3235 = vsel %vm1774, %v3010, 0
          %v3238 = vsel %vm1774, %v3011, 0
          %v3241 = vsel %vm1774, %v3012, 0
          %v3244 = vsel %vm1774, %v3013, 0
          %3246 = vmatprep.subr.bf16.mxu0 0
          %3247 = vmatpush1.bf16.xpose.msra.mxu0 %v3223
          %3248 = vmatprep.subr.bf16.mxu0 0
          %3249 = vmatpush1.bf16.xpose.msra.mxu0 %v3226
          %3250 = vmatprep.subr.bf16.mxu0 0
          %3251 = vmatpush1.bf16.xpose.msra.mxu0 %v3229
          %3252 = vmatprep.subr.bf16.mxu0 0
          %3253 = vmatpush1.bf16.xpose.msra.mxu0 %v3232
          %3254 = vmatprep.subr.bf16.mxu0 0
          %3255 = vmatpush1.bf16.xpose.msra.mxu0 %v3235
          %3256 = vmatprep.subr.bf16.mxu0 0
          %3257 = vmatpush1.bf16.xpose.msra.mxu0 %v3238
          %3258 = vmatprep.subr.bf16.mxu0 0
          %3259 = vmatpush1.bf16.xpose.msra.mxu0 %v3241
          %3260 = vmatprep.subr.bf16.mxu0 0
          %3261 = vmatpush1.bf16.xpose.msra.mxu0 %v3244
          %3262 = vmatprep.subr.bf16.mxu0 0
          %3263 = vmatpush1.bf16.xpose.msra.mxu0 0
          %3264 = vmatprep.subr.bf16.mxu0 0
          %3265 = vmatpush1.bf16.xpose.msra.mxu0 0
          %3266 = vmatprep.subr.bf16.mxu0 0
          %3267 = vmatpush1.bf16.xpose.msra.mxu0 0
          %3268 = vmatprep.subr.bf16.mxu0 0
          %3269 = vmatpush1.bf16.xpose.msra.mxu0 0
          %3270 = vmatprep.subr.bf16.mxu0 0
          %3271 = vmatpush1.bf16.xpose.msra.mxu0 0
          %3272 = vmatprep.subr.bf16.mxu0 0
          %3273 = vmatpush1.bf16.xpose.msra.mxu0 0
          %3274 = vmatprep.subr.bf16.mxu0 0
          %3275 = vmatpush1.bf16.xpose.msra.mxu0 0
          %3276 = vmatprep.subr.bf16.mxu0 0
          %3277 = vmatpush1.bf16.xpose.msra.mxu0 0
          %3278 = vmatprep.mubr.bf16.mxu0 0
          %3279 = vmatmul.mubr.bf16.gmra.mrb[0].mxu0 %v3199
          %v3280 = vpop.f32.mrb[0].mxu0
          %v3281 = vadd.f32 0.0, %v3280
          %v3282 = vpop.f32.mrb[0].mxu0
          %v3283 = vpop.f32.mrb[0].mxu0
          %v3284 = vadd.f32 0.0, %v3283
          %v3285 = vpop.f32.mrb[0].mxu0
          %3286 = vmatprep.mubr.bf16.mxu0 0
          %3287 = vmatmul.mubr.bf16.gmra.mrb[0].mxu0 %v3202
          %v3288 = vpop.f32.mrb[0].mxu0
          %v3289 = vadd.f32 0.0, %v3288
          %v3290 = vpop.f32.mrb[0].mxu0
          %v3291 = vpop.f32.mrb[0].mxu0
          %v3292 = vadd.f32 0.0, %v3291
          %v3293 = vpop.f32.mrb[0].mxu0
          %3294 = vmatprep.mubr.bf16.mxu0 0
          %3295 = vmatmul.mubr.bf16.gmra.mrb[0].mxu0 %v3205
          %v3296 = vpop.f32.mrb[0].mxu0
          %v3297 = vadd.f32 0.0, %v3296
          %v3298 = vpop.f32.mrb[0].mxu0
          %v3299 = vpop.f32.mrb[0].mxu0
          %v3300 = vadd.f32 0.0, %v3299
          %v3301 = vpop.f32.mrb[0].mxu0
          %3302 = vmatprep.mubr.bf16.mxu0 0
          %3303 = vmatmul.mubr.bf16.gmra.mrb[0].mxu0 %v3208
          %v3304 = vpop.f32.mrb[0].mxu0
          %v3305 = vadd.f32 0.0, %v3304
          %v3306 = vpop.f32.mrb[0].mxu0
          %v3307 = vpop.f32.mrb[0].mxu0
          %v3308 = vadd.f32 0.0, %v3307
          %v3309 = vpop.f32.mrb[0].mxu0
          %3310 = vmatprep.mubr.bf16.mxu0 0
          %3311 = vmatmul.mubr.bf16.gmra.mrb[0].mxu0 %v3211
          %v3312 = vpop.f32.mrb[0].mxu0
          %v3313 = vadd.f32 0.0, %v3312
          %v3314 = vpop.f32.mrb[0].mxu0
          %v3315 = vpop.f32.mrb[0].mxu0
          %v3316 = vadd.f32 0.0, %v3315
          %v3317 = vpop.f32.mrb[0].mxu0
          %3318 = vmatprep.mubr.bf16.mxu0 0
          %3319 = vmatmul.mubr.bf16.gmra.mrb[0].mxu0 %v3214
          %v3320 = vpop.f32.mrb[0].mxu0
          %v3321 = vadd.f32 0.0, %v3320
          %v3322 = vpop.f32.mrb[0].mxu0
          %v3323 = vpop.f32.mrb[0].mxu0
          %v3324 = vadd.f32 0.0, %v3323
          %v3325 = vpop.f32.mrb[0].mxu0
          %3326 = vmatprep.mubr.bf16.mxu0 0
          %3327 = vmatmul.mubr.bf16.gmra.mrb[0].mxu0 %v3217
          %v3328 = vpop.f32.mrb[0].mxu0
          %v3329 = vadd.f32 0.0, %v3328
          %v3330 = vpop.f32.mrb[0].mxu0
          %v3331 = vpop.f32.mrb[0].mxu0
          %v3332 = vadd.f32 0.0, %v3331
          %v3333 = vpop.f32.mrb[0].mxu0
          %3334 = vmatprep.mubr.bf16.mxu0 0
          %3335 = vmatmul.mubr.bf16.gmra.mrb[0].mxu0 %v3220
          %v3336 = vpop.f32.mrb[0].mxu0
          %v3337 = vadd.f32 0.0, %v3336
          %v3338 = vpop.f32.mrb[0].mxu0
          %v3339 = vpop.f32.mrb[0].mxu0
          %v3340 = vadd.f32 0.0, %v3339
          %v3341 = vpop.f32.mrb[0].mxu0
          %3342 = vdwg.mxu0
          %v3344 = vsel %vm1774, %v1621, 0
          %v3347 = vsel %vm1774, %v1622, 0
          %v3350 = vsel %vm1774, %v1623, 0
          %v3353 = vsel %vm1774, %v1624, 0
          %v3356 = vsel %vm1774, %v1625, 0
          %v3359 = vsel %vm1774, %v1626, 0
          %v3362 = vsel %vm1774, %v1627, 0
          %v3365 = vsel %vm1774, %v1628, 0
          %v3368 = vsel %vm1774, %v3014, 0
          %v3371 = vsel %vm1774, %v3015, 0
          %v3374 = vsel %vm1774, %v3016, 0
          %v3377 = vsel %vm1774, %v3017, 0
          %v3380 = vsel %vm1774, %v3018, 0
          %v3383 = vsel %vm1774, %v3019, 0
          %v3386 = vsel %vm1774, %v3020, 0
          %v3389 = vsel %vm1774, %v3021, 0
          %3391 = vmatprep.subr.bf16.mxu0 0
          %3392 = vmatpush1.bf16.xpose.msra.mxu0 %v3368
          %3393 = vmatprep.subr.bf16.mxu0 0
          %3394 = vmatpush1.bf16.xpose.msra.mxu0 %v3371
          %3395 = vmatprep.subr.bf16.mxu0 0
          %3396 = vmatpush1.bf16.xpose.msra.mxu0 %v3374
          %3397 = vmatprep.subr.bf16.mxu0 0
          %3398 = vmatpush1.bf16.xpose.msra.mxu0 %v3377
          %3399 = vmatprep.subr.bf16.mxu0 0
          %3400 = vmatpush1.bf16.xpose.msra.mxu0 %v3380
          %3401 = vmatprep.subr.bf16.mxu0 0
          %3402 = vmatpush1.bf16.xpose.msra.mxu0 %v3383
          %3403 = vmatprep.subr.bf16.mxu0 0
          %3404 = vmatpush1.bf16.xpose.msra.mxu0 %v3386
          %3405 = vmatprep.subr.bf16.mxu0 0
          %3406 = vmatpush1.bf16.xpose.msra.mxu0 %v3389
          %3407 = vmatprep.subr.bf16.mxu0 0
          %3408 = vmatpush1.bf16.xpose.msra.mxu0 0
          %3409 = vmatprep.subr.bf16.mxu0 0
          %3410 = vmatpush1.bf16.xpose.msra.mxu0 0
          %3411 = vmatprep.subr.bf16.mxu0 0
          %3412 = vmatpush1.bf16.xpose.msra.mxu0 0
          %3413 = vmatprep.subr.bf16.mxu0 0
          %3414 = vmatpush1.bf16.xpose.msra.mxu0 0
          %3415 = vmatprep.subr.bf16.mxu0 0
          %3416 = vmatpush1.bf16.xpose.msra.mxu0 0
          %3417 = vmatprep.subr.bf16.mxu0 0
          %3418 = vmatpush1.bf16.xpose.msra.mxu0 0
          %3419 = vmatprep.subr.bf16.mxu0 0
          %3420 = vmatpush1.bf16.xpose.msra.mxu0 0
          %3421 = vmatprep.subr.bf16.mxu0 0
          %3422 = vmatpush1.bf16.xpose.msra.mxu0 0
          %3423 = vmatprep.mubr.bf16.mxu0 0
          %3424 = vmatmul.mubr.bf16.gmra.mrb[0].mxu0 %v3344
          %v3425 = vpop.f32.mrb[0].mxu0
          %v3426 = vadd.f32 0.0, %v3425
          %v3427 = vpop.f32.mrb[0].mxu0
          %v3428 = vpop.f32.mrb[0].mxu0
          %v3429 = vadd.f32 0.0, %v3428
          %v3430 = vpop.f32.mrb[0].mxu0
          %3431 = vmatprep.mubr.bf16.mxu0 0
          %3432 = vmatmul.mubr.bf16.gmra.mrb[0].mxu0 %v3347
          %v3433 = vpop.f32.mrb[0].mxu0
          %v3434 = vadd.f32 0.0, %v3433
          %v3435 = vpop.f32.mrb[0].mxu0
          %v3436 = vpop.f32.mrb[0].mxu0
          %v3437 = vadd.f32 0.0, %v3436
          %v3438 = vpop.f32.mrb[0].mxu0
          %3439 = vmatprep.mubr.bf16.mxu0 0
          %3440 = vmatmul.mubr.bf16.gmra.mrb[0].mxu0 %v3350
          %v3441 = vpop.f32.mrb[0].mxu0
          %v3442 = vadd.f32 0.0, %v3441
          %v3443 = vpop.f32.mrb[0].mxu0
          %v3444 = vpop.f32.mrb[0].mxu0
          %v3445 = vadd.f32 0.0, %v3444
          %v3446 = vpop.f32.mrb[0].mxu0
          %3447 = vmatprep.mubr.bf16.mxu0 0
          %3448 = vmatmul.mubr.bf16.gmra.mrb[0].mxu0 %v3353
          %v3449 = vpop.f32.mrb[0].mxu0
          %v3450 = vadd.f32 0.0, %v3449
          %v3451 = vpop.f32.mrb[0].mxu0
          %v3452 = vpop.f32.mrb[0].mxu0
          %v3453 = vadd.f32 0.0, %v3452
          %v3454 = vpop.f32.mrb[0].mxu0
          %3455 = vmatprep.mubr.bf16.mxu0 0
          %3456 = vmatmul.mubr.bf16.gmra.mrb[0].mxu0 %v3356
          %v3457 = vpop.f32.mrb[0].mxu0
          %v3458 = vadd.f32 0.0, %v3457
          %v3459 = vpop.f32.mrb[0].mxu0
          %v3460 = vpop.f32.mrb[0].mxu0
          %v3461 = vadd.f32 0.0, %v3460
          %v3462 = vpop.f32.mrb[0].mxu0
          %3463 = vmatprep.mubr.bf16.mxu0 0
          %3464 = vmatmul.mubr.bf16.gmra.mrb[0].mxu0 %v3359
          %v3465 = vpop.f32.mrb[0].mxu0
          %v3466 = vadd.f32 0.0, %v3465
          %v3467 = vpop.f32.mrb[0].mxu0
          %v3468 = vpop.f32.mrb[0].mxu0
          %v3469 = vadd.f32 0.0, %v3468
          %v3470 = vpop.f32.mrb[0].mxu0
          %3471 = vmatprep.mubr.bf16.mxu0 0
          %3472 = vmatmul.mubr.bf16.gmra.mrb[0].mxu0 %v3362
          %v3473 = vpop.f32.mrb[0].mxu0
          %v3474 = vadd.f32 0.0, %v3473
          %v3475 = vpop.f32.mrb[0].mxu0
          %v3476 = vpop.f32.mrb[0].mxu0
          %v3477 = vadd.f32 0.0, %v3476
          %v3478 = vpop.f32.mrb[0].mxu0
          %3479 = vmatprep.mubr.bf16.mxu0 0
          %3480 = vmatmul.mubr.bf16.gmra.mrb[0].mxu0 %v3365
          %v3481 = vpop.f32.mrb[0].mxu0
          %v3482 = vadd.f32 0.0, %v3481
          %v3483 = vpop.f32.mrb[0].mxu0
          %v3484 = vpop.f32.mrb[0].mxu0
          %v3485 = vadd.f32 0.0, %v3484
          %v3486 = vpop.f32.mrb[0].mxu0
          %3487 = vdwg.mxu0
          %v3489 = vsel %vm1774, %v1629, 0
          %v3492 = vsel %vm1774, %v1630, 0
          %v3495 = vsel %vm1774, %v1631, 0
          %v3498 = vsel %vm1774, %v1632, 0
          %v3501 = vsel %vm1774, %v1633, 0
          %v3504 = vsel %vm1774, %v1634, 0
          %v3507 = vsel %vm1774, %v1635, 0
          %v3510 = vsel %vm1774, %v1636, 0
          %v3513 = vsel %vm1774, %v3022, 0
          %v3516 = vsel %vm1774, %v3023, 0
          %v3519 = vsel %vm1774, %v3024, 0
          %v3522 = vsel %vm1774, %v3025, 0
          %v3525 = vsel %vm1774, %v3026, 0
          %v3528 = vsel %vm1774, %v3027, 0
          %v3531 = vsel %vm1774, %v3028, 0
          %v3534 = vsel %vm1774, %v3029, 0
          %3536 = vmatprep.subr.bf16.mxu0 0
          %3537 = vmatpush1.bf16.xpose.msra.mxu0 %v3513
          %3538 = vmatprep.subr.bf16.mxu0 0
          %3539 = vmatpush1.bf16.xpose.msra.mxu0 %v3516
          %3540 = vmatprep.subr.bf16.mxu0 0
          %3541 = vmatpush1.bf16.xpose.msra.mxu0 %v3519
          %3542 = vmatprep.subr.bf16.mxu0 0
          %3543 = vmatpush1.bf16.xpose.msra.mxu0 %v3522
          %3544 = vmatprep.subr.bf16.mxu0 0
          %3545 = vmatpush1.bf16.xpose.msra.mxu0 %v3525
          %3546 = vmatprep.subr.bf16.mxu0 0
          %3547 = vmatpush1.bf16.xpose.msra.mxu0 %v3528
          %3548 = vmatprep.subr.bf16.mxu0 0
          %3549 = vmatpush1.bf16.xpose.msra.mxu0 %v3531
          %3550 = vmatprep.subr.bf16.mxu0 0
          %3551 = vmatpush1.bf16.xpose.msra.mxu0 %v3534
          %3552 = vmatprep.subr.bf16.mxu0 0
          %3553 = vmatpush1.bf16.xpose.msra.mxu0 0
          %3554 = vmatprep.subr.bf16.mxu0 0
          %3555 = vmatpush1.bf16.xpose.msra.mxu0 0
          %3556 = vmatprep.subr.bf16.mxu0 0
          %3557 = vmatpush1.bf16.xpose.msra.mxu0 0
          %3558 = vmatprep.subr.bf16.mxu0 0
          %3559 = vmatpush1.bf16.xpose.msra.mxu0 0
          %3560 = vmatprep.subr.bf16.mxu0 0
          %3561 = vmatpush1.bf16.xpose.msra.mxu0 0
          %3562 = vmatprep.subr.bf16.mxu0 0
          %3563 = vmatpush1.bf16.xpose.msra.mxu0 0
          %3564 = vmatprep.subr.bf16.mxu0 0
          %3565 = vmatpush1.bf16.xpose.msra.mxu0 0
          %3566 = vmatprep.subr.bf16.mxu0 0
          %3567 = vmatpush1.bf16.xpose.msra.mxu0 0
          %3568 = vmatprep.mubr.bf16.mxu0 0
          %3569 = vmatmul.mubr.bf16.gmra.mrb[0].mxu0 %v3489
          %v3570 = vpop.f32.mrb[0].mxu0
          %v3571 = vadd.f32 0.0, %v3570
          %v3572 = vpop.f32.mrb[0].mxu0
          %v3573 = vpop.f32.mrb[0].mxu0
          %v3574 = vadd.f32 0.0, %v3573
          %v3575 = vpop.f32.mrb[0].mxu0
          %3576 = vmatprep.mubr.bf16.mxu0 0
          %3577 = vmatmul.mubr.bf16.gmra.mrb[0].mxu0 %v3492
          %v3578 = vpop.f32.mrb[0].mxu0
          %v3579 = vadd.f32 0.0, %v3578
          %v3580 = vpop.f32.mrb[0].mxu0
          %v3581 = vpop.f32.mrb[0].mxu0
          %v3582 = vadd.f32 0.0, %v3581
          %v3583 = vpop.f32.mrb[0].mxu0
          %3584 = vmatprep.mubr.bf16.mxu0 0
          %3585 = vmatmul.mubr.bf16.gmra.mrb[0].mxu0 %v3495
          %v3586 = vpop.f32.mrb[0].mxu0
          %v3587 = vadd.f32 0.0, %v3586
          %v3588 = vpop.f32.mrb[0].mxu0
          %v3589 = vpop.f32.mrb[0].mxu0
          %v3590 = vadd.f32 0.0, %v3589
          %v3591 = vpop.f32.mrb[0].mxu0
          %3592 = vmatprep.mubr.bf16.mxu0 0
          %3593 = vmatmul.mubr.bf16.gmra.mrb[0].mxu0 %v3498
          %v3594 = vpop.f32.mrb[0].mxu0
          %v3595 = vadd.f32 0.0, %v3594
          %v3596 = vpop.f32.mrb[0].mxu0
          %v3597 = vpop.f32.mrb[0].mxu0
          %v3598 = vadd.f32 0.0, %v3597
          %v3599 = vpop.f32.mrb[0].mxu0
          %3600 = vmatprep.mubr.bf16.mxu0 0
          %3601 = vmatmul.mubr.bf16.gmra.mrb[0].mxu0 %v3501
          %v3602 = vpop.f32.mrb[0].mxu0
          %v3603 = vadd.f32 0.0, %v3602
          %v3604 = vpop.f32.mrb[0].mxu0
          %v3605 = vpop.f32.mrb[0].mxu0
          %v3606 = vadd.f32 0.0, %v3605
          %v3607 = vpop.f32.mrb[0].mxu0
          %3608 = vmatprep.mubr.bf16.mxu0 0
          %3609 = vmatmul.mubr.bf16.gmra.mrb[0].mxu0 %v3504
          %v3610 = vpop.f32.mrb[0].mxu0
          %v3611 = vadd.f32 0.0, %v3610
          %v3612 = vpop.f32.mrb[0].mxu0
          %v3613 = vpop.f32.mrb[0].mxu0
          %v3614 = vadd.f32 0.0, %v3613
          %v3615 = vpop.f32.mrb[0].mxu0
          %3616 = vmatprep.mubr.bf16.mxu0 0
          %3617 = vmatmul.mubr.bf16.gmra.mrb[0].mxu0 %v3507
          %v3618 = vpop.f32.mrb[0].mxu0
          %v3619 = vadd.f32 0.0, %v3618
          %v3620 = vpop.f32.mrb[0].mxu0
          %v3621 = vpop.f32.mrb[0].mxu0
          %v3622 = vadd.f32 0.0, %v3621
          %v3623 = vpop.f32.mrb[0].mxu0
          %3624 = vmatprep.mubr.bf16.mxu0 0
          %3625 = vmatmul.mubr.bf16.gmra.mrb[0].mxu0 %v3510
          %v3626 = vpop.f32.mrb[0].mxu0
          %v3627 = vadd.f32 0.0, %v3626
          %v3628 = vpop.f32.mrb[0].mxu0
          %v3629 = vpop.f32.mrb[0].mxu0
          %v3630 = vadd.f32 0.0, %v3629
          %v3631 = vpop.f32.mrb[0].mxu0
          %3632 = vdwg.mxu0
          %v3634 = vsel %vm1774, %v1637, 0
          %v3637 = vsel %vm1774, %v1638, 0
          %v3640 = vsel %vm1774, %v1639, 0
          %v3643 = vsel %vm1774, %v1640, 0
          %v3646 = vsel %vm1774, %v1641, 0
          %v3649 = vsel %vm1774, %v1642, 0
          %v3652 = vsel %vm1774, %v1643, 0
          %v3655 = vsel %vm1774, %v1644, 0
          %v3658 = vsel %vm1774, %v3030, 0
          %v3661 = vsel %vm1774, %v3031, 0
          %v3664 = vsel %vm1774, %v3032, 0
          %v3667 = vsel %vm1774, %v3033, 0
          %v3670 = vsel %vm1774, %v3034, 0
          %v3673 = vsel %vm1774, %v3035, 0
          %v3676 = vsel %vm1774, %v3036, 0
          %v3679 = vsel %vm1774, %v3037, 0
          %3681 = vmatprep.subr.bf16.mxu0 0
          %3682 = vmatpush1.bf16.xpose.msra.mxu0 %v3658
          %3683 = vmatprep.subr.bf16.mxu0 0
          %3684 = vmatpush1.bf16.xpose.msra.mxu0 %v3661
          %3685 = vmatprep.subr.bf16.mxu0 0
          %3686 = vmatpush1.bf16.xpose.msra.mxu0 %v3664
          %3687 = vmatprep.subr.bf16.mxu0 0
          %3688 = vmatpush1.bf16.xpose.msra.mxu0 %v3667
          %3689 = vmatprep.subr.bf16.mxu0 0
          %3690 = vmatpush1.bf16.xpose.msra.mxu0 %v3670
          %3691 = vmatprep.subr.bf16.mxu0 0
          %3692 = vmatpush1.bf16.xpose.msra.mxu0 %v3673
          %3693 = vmatprep.subr.bf16.mxu0 0
          %3694 = vmatpush1.bf16.xpose.msra.mxu0 %v3676
          %3695 = vmatprep.subr.bf16.mxu0 0
          %3696 = vmatpush1.bf16.xpose.msra.mxu0 %v3679
          %3697 = vmatprep.subr.bf16.mxu0 0
          %3698 = vmatpush1.bf16.xpose.msra.mxu0 0
          %3699 = vmatprep.subr.bf16.mxu0 0
          %3700 = vmatpush1.bf16.xpose.msra.mxu0 0
          %3701 = vmatprep.subr.bf16.mxu0 0
          %3702 = vmatpush1.bf16.xpose.msra.mxu0 0
          %3703 = vmatprep.subr.bf16.mxu0 0
          %3704 = vmatpush1.bf16.xpose.msra.mxu0 0
          %3705 = vmatprep.subr.bf16.mxu0 0
          %3706 = vmatpush1.bf16.xpose.msra.mxu0 0
          %3707 = vmatprep.subr.bf16.mxu0 0
          %3708 = vmatpush1.bf16.xpose.msra.mxu0 0
          %3709 = vmatprep.subr.bf16.mxu0 0
          %3710 = vmatpush1.bf16.xpose.msra.mxu0 0
          %3711 = vmatprep.subr.bf16.mxu0 0
          %3712 = vmatpush1.bf16.xpose.msra.mxu0 0
          %3713 = vmatprep.mubr.bf16.mxu0 0
          %3714 = vmatmul.mubr.bf16.gmra.mrb[0].mxu0 %v3634
          %v3715 = vpop.f32.mrb[0].mxu0
          %v3716 = vadd.f32 0.0, %v3715
          %v3717 = vpop.f32.mrb[0].mxu0
          %v3718 = vpop.f32.mrb[0].mxu0
          %v3719 = vadd.f32 0.0, %v3718
          %v3720 = vpop.f32.mrb[0].mxu0
          %3721 = vmatprep.mubr.bf16.mxu0 0
          %3722 = vmatmul.mubr.bf16.gmra.mrb[0].mxu0 %v3637
          %v3723 = vpop.f32.mrb[0].mxu0
          %v3724 = vadd.f32 0.0, %v3723
          %v3725 = vpop.f32.mrb[0].mxu0
          %v3726 = vpop.f32.mrb[0].mxu0
          %v3727 = vadd.f32 0.0, %v3726
          %v3728 = vpop.f32.mrb[0].mxu0
          %3729 = vmatprep.mubr.bf16.mxu0 0
          %3730 = vmatmul.mubr.bf16.gmra.mrb[0].mxu0 %v3640
          %v3731 = vpop.f32.mrb[0].mxu0
          %v3732 = vadd.f32 0.0, %v3731
          %v3733 = vpop.f32.mrb[0].mxu0
          %v3734 = vpop.f32.mrb[0].mxu0
          %v3735 = vadd.f32 0.0, %v3734
          %v3736 = vpop.f32.mrb[0].mxu0
          %3737 = vmatprep.mubr.bf16.mxu0 0
          %3738 = vmatmul.mubr.bf16.gmra.mrb[0].mxu0 %v3643
          %v3739 = vpop.f32.mrb[0].mxu0
          %v3740 = vadd.f32 0.0, %v3739
          %v3741 = vpop.f32.mrb[0].mxu0
          %v3742 = vpop.f32.mrb[0].mxu0
          %v3743 = vadd.f32 0.0, %v3742
          %v3744 = vpop.f32.mrb[0].mxu0
          %3745 = vmatprep.mubr.bf16.mxu0 0
          %3746 = vmatmul.mubr.bf16.gmra.mrb[0].mxu0 %v3646
          %v3747 = vpop.f32.mrb[0].mxu0
          %v3748 = vadd.f32 0.0, %v3747
          %v3749 = vpop.f32.mrb[0].mxu0
          %v3750 = vpop.f32.mrb[0].mxu0
          %v3751 = vadd.f32 0.0, %v3750
          %v3752 = vpop.f32.mrb[0].mxu0
          %3753 = vmatprep.mubr.bf16.mxu0 0
          %3754 = vmatmul.mubr.bf16.gmra.mrb[0].mxu0 %v3649
          %v3755 = vpop.f32.mrb[0].mxu0
          %v3756 = vadd.f32 0.0, %v3755
          %v3757 = vpop.f32.mrb[0].mxu0
          %v3758 = vpop.f32.mrb[0].mxu0
          %v3759 = vadd.f32 0.0, %v3758
          %v3760 = vpop.f32.mrb[0].mxu0
          %3761 = vmatprep.mubr.bf16.mxu0 0
          %3762 = vmatmul.mubr.bf16.gmra.mrb[0].mxu0 %v3652
          %v3763 = vpop.f32.mrb[0].mxu0
          %v3764 = vadd.f32 0.0, %v3763
          %v3765 = vpop.f32.mrb[0].mxu0
          %v3766 = vpop.f32.mrb[0].mxu0
          %v3767 = vadd.f32 0.0, %v3766
          %v3768 = vpop.f32.mrb[0].mxu0
          %3769 = vmatprep.mubr.bf16.mxu0 0
          %3770 = vmatmul.mubr.bf16.gmra.mrb[0].mxu0 %v3655
          %v3771 = vpop.f32.mrb[0].mxu0
          %v3772 = vadd.f32 0.0, %v3771
          %v3773 = vpop.f32.mrb[0].mxu0
          %v3774 = vpop.f32.mrb[0].mxu0
          %v3775 = vadd.f32 0.0, %v3774
          %v3776 = vpop.f32.mrb[0].mxu0
          %3777 = vdwg.mxu0
          %s3778 = smul.u32 %s46, 128
          %v3779 = vlaneseq
          %v3780 = vshrl.u32 %v3779, 7
          %v3781 = vadd.s32 %v3780, 8
          %v3782 = vadd.s32 %v3780, 16
          %v3783 = vadd.s32 %v3780, 24
          %v3784 = vadd.s32 %v3780, 32
          %v3785 = vadd.s32 %v3780, 40
          %v3786 = vadd.s32 %v3780, 48
          %v3787 = vadd.s32 %v3780, 56
          %v3788 = vadd.s32 %v3780, 64
          %v3789 = vadd.s32 %v3780, 72
          %v3790 = vadd.s32 %v3780, 80
          %v3791 = vadd.s32 %v3780, 88
          %v3792 = vadd.s32 %v3780, 96
          %v3793 = vadd.s32 %v3780, 104
          %v3794 = vadd.s32 %v3780, 112
          %v3795 = vadd.s32 %v3780, 120
          %v3796 = vstv %s3778
          %v3797 = vadd.s32 %v3796, %v3780
          %v3798 = vadd.s32 %v3796, %v3781
          %v3799 = vadd.s32 %v3796, %v3782
          %v3800 = vadd.s32 %v3796, %v3783
          %v3801 = vadd.s32 %v3796, %v3784
          %v3802 = vadd.s32 %v3796, %v3785
          %v3803 = vadd.s32 %v3796, %v3786
          %v3804 = vadd.s32 %v3796, %v3787
          %v3805 = vadd.s32 %v3796, %v3788
          %v3806 = vadd.s32 %v3796, %v3789
          %v3807 = vadd.s32 %v3796, %v3790
          %v3808 = vadd.s32 %v3796, %v3791
          %v3809 = vadd.s32 %v3796, %v3792
          %v3810 = vadd.s32 %v3796, %v3793
          %v3811 = vadd.s32 %v3796, %v3794
          %v3812 = vadd.s32 %v3796, %v3795
          %v3813 = vlaneseq
          %v3814 = vand.u32 %v3813, 127
          %v3815 = vstv %s1846
          %v3816 = vadd.s32 %v3815, %v3814
          %vm3817 = vcmp.ge.s32.totalorder %v3797, %v3816
          %vm3818 = vcmp.ge.s32.totalorder %v3798, %v3816
          %vm3819 = vcmp.ge.s32.totalorder %v3799, %v3816
          %vm3820 = vcmp.ge.s32.totalorder %v3800, %v3816
          %vm3821 = vcmp.ge.s32.totalorder %v3801, %v3816
          %vm3822 = vcmp.ge.s32.totalorder %v3802, %v3816
          %vm3823 = vcmp.ge.s32.totalorder %v3803, %v3816
          %vm3824 = vcmp.ge.s32.totalorder %v3804, %v3816
          %vm3825 = vcmp.ge.s32.totalorder %v3805, %v3816
          %vm3826 = vcmp.ge.s32.totalorder %v3806, %v3816
          %vm3827 = vcmp.ge.s32.totalorder %v3807, %v3816
          %vm3828 = vcmp.ge.s32.totalorder %v3808, %v3816
          %vm3829 = vcmp.ge.s32.totalorder %v3809, %v3816
          %vm3830 = vcmp.ge.s32.totalorder %v3810, %v3816
          %vm3831 = vcmp.ge.s32.totalorder %v3811, %v3816
          %vm3832 = vcmp.ge.s32.totalorder %v3812, %v3816
          %v3833 = vsel %vm3817, 1, 0
          %v3834 = vsel %vm3818, 1, 0
          %v3835 = vsel %vm3819, 1, 0
          %v3836 = vsel %vm3820, 1, 0
          %v3837 = vsel %vm3821, 1, 0
          %v3838 = vsel %vm3822, 1, 0
          %v3839 = vsel %vm3823, 1, 0
          %v3840 = vsel %vm3824, 1, 0
          %v3841 = vsel %vm3825, 1, 0
          %v3842 = vsel %vm3826, 1, 0
          %v3843 = vsel %vm3827, 1, 0
          %v3844 = vsel %vm3828, 1, 0
          %v3845 = vsel %vm3829, 1, 0
          %v3846 = vsel %vm3830, 1, 0
          %v3847 = vsel %vm3831, 1, 0
          %v3848 = vsel %vm3832, 1, 0
          %vm3849 = vcmp.eq.s32.totalorder %v3833, 1
          %vm3850 = vcmp.eq.s32.totalorder %v3834, 1
          %vm3851 = vcmp.eq.s32.totalorder %v3835, 1
          %vm3852 = vcmp.eq.s32.totalorder %v3836, 1
          %vm3853 = vcmp.eq.s32.totalorder %v3837, 1
          %vm3854 = vcmp.eq.s32.totalorder %v3838, 1
          %vm3855 = vcmp.eq.s32.totalorder %v3839, 1
          %vm3856 = vcmp.eq.s32.totalorder %v3840, 1
          %vm3857 = vcmp.eq.s32.totalorder %v3841, 1
          %vm3858 = vcmp.eq.s32.totalorder %v3842, 1
          %vm3859 = vcmp.eq.s32.totalorder %v3843, 1
          %vm3860 = vcmp.eq.s32.totalorder %v3844, 1
          %vm3861 = vcmp.eq.s32.totalorder %v3845, 1
          %vm3862 = vcmp.eq.s32.totalorder %v3846, 1
          %vm3863 = vcmp.eq.s32.totalorder %v3847, 1
          %vm3864 = vcmp.eq.s32.totalorder %v3848, 1
          %v3865 = vsel %vm3849, %v3281, -1e+30
          %v3866 = vsel %vm3850, %v3284, -1e+30
          %v3867 = vsel %vm3851, %v3289, -1e+30
          %v3868 = vsel %vm3852, %v3292, -1e+30
          %v3869 = vsel %vm3853, %v3297, -1e+30
          %v3870 = vsel %vm3854, %v3300, -1e+30
          %v3871 = vsel %vm3855, %v3305, -1e+30
          %v3872 = vsel %vm3856, %v3308, -1e+30
          %v3873 = vsel %vm3857, %v3313, -1e+30
          %v3874 = vsel %vm3858, %v3316, -1e+30
          %v3875 = vsel %vm3859, %v3321, -1e+30
          %v3876 = vsel %vm3860, %v3324, -1e+30
          %v3877 = vsel %vm3861, %v3329, -1e+30
          %v3878 = vsel %vm3862, %v3332, -1e+30
          %v3879 = vsel %vm3863, %v3337, -1e+30
          %v3880 = vsel %vm3864, %v3340, -1e+30
          %v3881 = vsel %vm3849, %v3426, -1e+30
          %v3882 = vsel %vm3850, %v3429, -1e+30
          %v3883 = vsel %vm3851, %v3434, -1e+30
          %v3884 = vsel %vm3852, %v3437, -1e+30
          %v3885 = vsel %vm3853, %v3442, -1e+30
          %v3886 = vsel %vm3854, %v3445, -1e+30
          %v3887 = vsel %vm3855, %v3450, -1e+30
          %v3888 = vsel %vm3856, %v3453, -1e+30
          %v3889 = vsel %vm3857, %v3458, -1e+30
          %v3890 = vsel %vm3858, %v3461, -1e+30
          %v3891 = vsel %vm3859, %v3466, -1e+30
          %v3892 = vsel %vm3860, %v3469, -1e+30
          %v3893 = vsel %vm3861, %v3474, -1e+30
          %v3894 = vsel %vm3862, %v3477, -1e+30
          %v3895 = vsel %vm3863, %v3482, -1e+30
          %v3896 = vsel %vm3864, %v3485, -1e+30
          %v3897 = vsel %vm3849, %v3571, -1e+30
          %v3898 = vsel %vm3850, %v3574, -1e+30
          %v3899 = vsel %vm3851, %v3579, -1e+30
          %v3900 = vsel %vm3852, %v3582, -1e+30
          %v3901 = vsel %vm3853, %v3587, -1e+30
          %v3902 = vsel %vm3854, %v3590, -1e+30
          %v3903 = vsel %vm3855, %v3595, -1e+30
          %v3904 = vsel %vm3856, %v3598, -1e+30
          %v3905 = vsel %vm3857, %v3603, -1e+30
          %v3906 = vsel %vm3858, %v3606, -1e+30
          %v3907 = vsel %vm3859, %v3611, -1e+30
          %v3908 = vsel %vm3860, %v3614, -1e+30
          %v3909 = vsel %vm3861, %v3619, -1e+30
          %v3910 = vsel %vm3862, %v3622, -1e+30
          %v3911 = vsel %vm3863, %v3627, -1e+30
          %v3912 = vsel %vm3864, %v3630, -1e+30
          %v3913 = vsel %vm3849, %v3716, -1e+30
          %v3914 = vsel %vm3850, %v3719, -1e+30
          %v3915 = vsel %vm3851, %v3724, -1e+30
          %v3916 = vsel %vm3852, %v3727, -1e+30
          %v3917 = vsel %vm3853, %v3732, -1e+30
          %v3918 = vsel %vm3854, %v3735, -1e+30
          %v3919 = vsel %vm3855, %v3740, -1e+30
          %v3920 = vsel %vm3856, %v3743, -1e+30
          %v3921 = vsel %vm3857, %v3748, -1e+30
          %v3922 = vsel %vm3858, %v3751, -1e+30
          %v3923 = vsel %vm3859, %v3756, -1e+30
          %v3924 = vsel %vm3860, %v3759, -1e+30
          %v3925 = vsel %vm3861, %v3764, -1e+30
          %v3926 = vsel %vm3862, %v3767, -1e+30
          %v3927 = vsel %vm3863, %v3772, -1e+30
          %v3928 = vsel %vm3864, %v3775, -1e+30
          %v3929 = vld [vmem:[#allocation2] sm:$0xff]
          %v3930 = vld [vmem:[#allocation2 + $0x8] sm:$0xff]
          %v3931 = vld [vmem:[#allocation2 + $0x10] sm:$0xff]
          %v3932 = vld [vmem:[#allocation2 + $0x18] sm:$0xff]
          %v3933 = vld [vmem:[#allocation2 + $0x20] sm:$0xff]
          %v3934 = vld [vmem:[#allocation2 + $0x28] sm:$0xff]
          %v3935 = vld [vmem:[#allocation2 + $0x30] sm:$0xff]
          %v3936 = vld [vmem:[#allocation2 + $0x38] sm:$0xff]
          %v3937 = vld [vmem:[#allocation2 + $0x40] sm:$0xff]
          %v3938 = vld [vmem:[#allocation2 + $0x48] sm:$0xff]
          %v3939 = vld [vmem:[#allocation2 + $0x50] sm:$0xff]
          %v3940 = vld [vmem:[#allocation2 + $0x58] sm:$0xff]
          %v3941 = vld [vmem:[#allocation2 + $0x60] sm:$0xff]
          %v3942 = vld [vmem:[#allocation2 + $0x68] sm:$0xff]
          %v3943 = vld [vmem:[#allocation2 + $0x70] sm:$0xff]
          %v3944 = vld [vmem:[#allocation2 + $0x78] sm:$0xff]
          %v3945 = vld [vmem:[#allocation2 + $0x80] sm:$0xff]
          %v3946 = vld [vmem:[#allocation2 + $0x88] sm:$0xff]
          %v3947 = vld [vmem:[#allocation2 + $0x90] sm:$0xff]
          %v3948 = vld [vmem:[#allocation2 + $0x98] sm:$0xff]
          %v3949 = vld [vmem:[#allocation2 + $0xa0] sm:$0xff]
          %v3950 = vld [vmem:[#allocation2 + $0xa8] sm:$0xff]
          %v3951 = vld [vmem:[#allocation2 + $0xb0] sm:$0xff]
          %v3952 = vld [vmem:[#allocation2 + $0xb8] sm:$0xff]
          %v3953 = vld [vmem:[#allocation2 + $0xc0] sm:$0xff]
          %v3954 = vld [vmem:[#allocation2 + $0xc8] sm:$0xff]
          %v3955 = vld [vmem:[#allocation2 + $0xd0] sm:$0xff]
          %v3956 = vld [vmem:[#allocation2 + $0xd8] sm:$0xff]
          %v3957 = vld [vmem:[#allocation2 + $0xe0] sm:$0xff]
          %v3958 = vld [vmem:[#allocation2 + $0xe8] sm:$0xff]
          %v3959 = vld [vmem:[#allocation2 + $0xf0] sm:$0xff]
          %v3960 = vld [vmem:[#allocation2 + $0xf8] sm:$0xff]
          %v3961 = vld [vmem:[#allocation2 + $0x100] sm:$0xff]
          %v3962 = vld [vmem:[#allocation2 + $0x108] sm:$0xff]
          %v3963 = vld [vmem:[#allocation2 + $0x110] sm:$0xff]
          %v3964 = vld [vmem:[#allocation2 + $0x118] sm:$0xff]
          %v3965 = vld [vmem:[#allocation2 + $0x120] sm:$0xff]
          %v3966 = vld [vmem:[#allocation2 + $0x128] sm:$0xff]
          %v3967 = vld [vmem:[#allocation2 + $0x130] sm:$0xff]
          %v3968 = vld [vmem:[#allocation2 + $0x138] sm:$0xff]
          %v3969 = vld [vmem:[#allocation2 + $0x140] sm:$0xff]
          %v3970 = vld [vmem:[#allocation2 + $0x148] sm:$0xff]
          %v3971 = vld [vmem:[#allocation2 + $0x150] sm:$0xff]
          %v3972 = vld [vmem:[#allocation2 + $0x158] sm:$0xff]
          %v3973 = vld [vmem:[#allocation2 + $0x160] sm:$0xff]
          %v3974 = vld [vmem:[#allocation2 + $0x168] sm:$0xff]
          %v3975 = vld [vmem:[#allocation2 + $0x170] sm:$0xff]
          %v3976 = vld [vmem:[#allocation2 + $0x178] sm:$0xff]
          %v3977 = vld [vmem:[#allocation2 + $0x180] sm:$0xff]
          %v3978 = vld [vmem:[#allocation2 + $0x188] sm:$0xff]
          %v3979 = vld [vmem:[#allocation2 + $0x190] sm:$0xff]
          %v3980 = vld [vmem:[#allocation2 + $0x198] sm:$0xff]
          %v3981 = vld [vmem:[#allocation2 + $0x1a0] sm:$0xff]
          %v3982 = vld [vmem:[#allocation2 + $0x1a8] sm:$0xff]
          %v3983 = vld [vmem:[#allocation2 + $0x1b0] sm:$0xff]
          %v3984 = vld [vmem:[#allocation2 + $0x1b8] sm:$0xff]
          %v3985 = vld [vmem:[#allocation2 + $0x1c0] sm:$0xff]
          %v3986 = vld [vmem:[#allocation2 + $0x1c8] sm:$0xff]
          %v3987 = vld [vmem:[#allocation2 + $0x1d0] sm:$0xff]
          %v3988 = vld [vmem:[#allocation2 + $0x1d8] sm:$0xff]
          %v3989 = vld [vmem:[#allocation2 + $0x1e0] sm:$0xff]
          %v3990 = vld [vmem:[#allocation2 + $0x1e8] sm:$0xff]
          %v3991 = vld [vmem:[#allocation2 + $0x1f0] sm:$0xff]
          %v3992 = vld [vmem:[#allocation2 + $0x1f8] sm:$0xff]
          %3993 = vmax.xlane.f32.xlu0 %v3865
          %v3994 = vpop.xlane.xlu0 %3993
          %3995 = vmax.xlane.f32.xlu0 %v3866
          %v3996 = vpop.xlane.xlu0 %3995
          %3997 = vmax.xlane.f32.xlu0 %v3867
          %v3998 = vpop.xlane.xlu0 %3997
          %3999 = vmax.xlane.f32.xlu0 %v3868
          %v4000 = vpop.xlane.xlu0 %3999
          %4001 = vmax.xlane.f32.xlu0 %v3869
          %v4002 = vpop.xlane.xlu0 %4001
          %4003 = vmax.xlane.f32.xlu0 %v3870
          %v4004 = vpop.xlane.xlu0 %4003
          %4005 = vmax.xlane.f32.xlu0 %v3871
          %v4006 = vpop.xlane.xlu0 %4005
          %4007 = vmax.xlane.f32.xlu0 %v3872
          %v4008 = vpop.xlane.xlu0 %4007
          %4009 = vmax.xlane.f32.xlu0 %v3873
          %v4010 = vpop.xlane.xlu0 %4009
          %4011 = vmax.xlane.f32.xlu0 %v3874
          %v4012 = vpop.xlane.xlu0 %4011
          %4013 = vmax.xlane.f32.xlu0 %v3875
          %v4014 = vpop.xlane.xlu0 %4013
          %4015 = vmax.xlane.f32.xlu0 %v3876
          %v4016 = vpop.xlane.xlu0 %4015
          %4017 = vmax.xlane.f32.xlu0 %v3877
          %v4018 = vpop.xlane.xlu0 %4017
          %4019 = vmax.xlane.f32.xlu0 %v3878
          %v4020 = vpop.xlane.xlu0 %4019
          %4021 = vmax.xlane.f32.xlu0 %v3879
          %v4022 = vpop.xlane.xlu0 %4021
          %4023 = vmax.xlane.f32.xlu0 %v3880
          %v4024 = vpop.xlane.xlu0 %4023
          %4025 = vmax.xlane.f32.xlu0 %v3881
          %v4026 = vpop.xlane.xlu0 %4025
          %4027 = vmax.xlane.f32.xlu0 %v3882
          %v4028 = vpop.xlane.xlu0 %4027
          %4029 = vmax.xlane.f32.xlu0 %v3883
          %v4030 = vpop.xlane.xlu0 %4029
          %4031 = vmax.xlane.f32.xlu0 %v3884
          %v4032 = vpop.xlane.xlu0 %4031
          %4033 = vmax.xlane.f32.xlu0 %v3885
          %v4034 = vpop.xlane.xlu0 %4033
          %4035 = vmax.xlane.f32.xlu0 %v3886
          %v4036 = vpop.xlane.xlu0 %4035
          %4037 = vmax.xlane.f32.xlu0 %v3887
          %v4038 = vpop.xlane.xlu0 %4037
          %4039 = vmax.xlane.f32.xlu0 %v3888
          %v4040 = vpop.xlane.xlu0 %4039
          %4041 = vmax.xlane.f32.xlu0 %v3889
          %v4042 = vpop.xlane.xlu0 %4041
          %4043 = vmax.xlane.f32.xlu0 %v3890
          %v4044 = vpop.xlane.xlu0 %4043
          %4045 = vmax.xlane.f32.xlu0 %v3891
          %v4046 = vpop.xlane.xlu0 %4045
          %4047 = vmax.xlane.f32.xlu0 %v3892
          %v4048 = vpop.xlane.xlu0 %4047
          %4049 = vmax.xlane.f32.xlu0 %v3893
          %v4050 = vpop.xlane.xlu0 %4049
          %4051 = vmax.xlane.f32.xlu0 %v3894
          %v4052 = vpop.xlane.xlu0 %4051
          %4053 = vmax.xlane.f32.xlu0 %v3895
          %v4054 = vpop.xlane.xlu0 %4053
          %4055 = vmax.xlane.f32.xlu0 %v3896
          %v4056 = vpop.xlane.xlu0 %4055
          %4057 = vmax.xlane.f32.xlu0 %v3897
          %v4058 = vpop.xlane.xlu0 %4057
          %4059 = vmax.xlane.f32.xlu0 %v3898
          %v4060 = vpop.xlane.xlu0 %4059
          %4061 = vmax.xlane.f32.xlu0 %v3899
          %v4062 = vpop.xlane.xlu0 %4061
          %4063 = vmax.xlane.f32.xlu0 %v3900
          %v4064 = vpop.xlane.xlu0 %4063
          %4065 = vmax.xlane.f32.xlu0 %v3901
          %v4066 = vpop.xlane.xlu0 %4065
          %4067 = vmax.xlane.f32.xlu0 %v3902
          %v4068 = vpop.xlane.xlu0 %4067
          %4069 = vmax.xlane.f32.xlu0 %v3903
          %v4070 = vpop.xlane.xlu0 %4069
          %4071 = vmax.xlane.f32.xlu0 %v3904
          %v4072 = vpop.xlane.xlu0 %4071
          %4073 = vmax.xlane.f32.xlu0 %v3905
          %v4074 = vpop.xlane.xlu0 %4073
          %4075 = vmax.xlane.f32.xlu0 %v3906
          %v4076 = vpop.xlane.xlu0 %4075
          %4077 = vmax.xlane.f32.xlu0 %v3907
          %v4078 = vpop.xlane.xlu0 %4077
          %4079 = vmax.xlane.f32.xlu0 %v3908
          %v4080 = vpop.xlane.xlu0 %4079
          %4081 = vmax.xlane.f32.xlu0 %v3909
          %v4082 = vpop.xlane.xlu0 %4081
          %4083 = vmax.xlane.f32.xlu0 %v3910
          %v4084 = vpop.xlane.xlu0 %4083
          %4085 = vmax.xlane.f32.xlu0 %v3911
          %v4086 = vpop.xlane.xlu0 %4085
          %4087 = vmax.xlane.f32.xlu0 %v3912
          %v4088 = vpop.xlane.xlu0 %4087
          %4089 = vmax.xlane.f32.xlu0 %v3913
          %v4090 = vpop.xlane.xlu0 %4089
          %4091 = vmax.xlane.f32.xlu0 %v3914
          %v4092 = vpop.xlane.xlu0 %4091
          %4093 = vmax.xlane.f32.xlu0 %v3915
          %v4094 = vpop.xlane.xlu0 %4093
          %4095 = vmax.xlane.f32.xlu0 %v3916
          %v4096 = vpop.xlane.xlu0 %4095
          %4097 = vmax.xlane.f32.xlu0 %v3917
          %v4098 = vpop.xlane.xlu0 %4097
          %4099 = vmax.xlane.f32.xlu0 %v3918
          %v4100 = vpop.xlane.xlu0 %4099
          %4101 = vmax.xlane.f32.xlu0 %v3919
          %v4102 = vpop.xlane.xlu0 %4101
          %4103 = vmax.xlane.f32.xlu0 %v3920
          %v4104 = vpop.xlane.xlu0 %4103
          %4105 = vmax.xlane.f32.xlu0 %v3921
          %v4106 = vpop.xlane.xlu0 %4105
          %4107 = vmax.xlane.f32.xlu0 %v3922
          %v4108 = vpop.xlane.xlu0 %4107
          %4109 = vmax.xlane.f32.xlu0 %v3923
          %v4110 = vpop.xlane.xlu0 %4109
          %4111 = vmax.xlane.f32.xlu0 %v3924
          %v4112 = vpop.xlane.xlu0 %4111
          %4113 = vmax.xlane.f32.xlu0 %v3925
          %v4114 = vpop.xlane.xlu0 %4113
          %4115 = vmax.xlane.f32.xlu0 %v3926
          %v4116 = vpop.xlane.xlu0 %4115
          %4117 = vmax.xlane.f32.xlu0 %v3927
          %v4118 = vpop.xlane.xlu0 %4117
          %4119 = vmax.xlane.f32.xlu0 %v3928
          %v4120 = vpop.xlane.xlu0 %4119
          %v4121 = vmax.f32 %v3929, %v3994
          %v4122 = vmax.f32 %v3930, %v3996
          %v4123 = vmax.f32 %v3931, %v3998
          %v4124 = vmax.f32 %v3932, %v4000
          %v4125 = vmax.f32 %v3933, %v4002
          %v4126 = vmax.f32 %v3934, %v4004
          %v4127 = vmax.f32 %v3935, %v4006
          %v4128 = vmax.f32 %v3936, %v4008
          %v4129 = vmax.f32 %v3937, %v4010
          %v4130 = vmax.f32 %v3938, %v4012
          %v4131 = vmax.f32 %v3939, %v4014
          %v4132 = vmax.f32 %v3940, %v4016
          %v4133 = vmax.f32 %v3941, %v4018
          %v4134 = vmax.f32 %v3942, %v4020
          %v4135 = vmax.f32 %v3943, %v4022
          %v4136 = vmax.f32 %v3944, %v4024
          %v4137 = vmax.f32 %v3945, %v4026
          %v4138 = vmax.f32 %v3946, %v4028
          %v4139 = vmax.f32 %v3947, %v4030
          %v4140 = vmax.f32 %v3948, %v4032
          %v4141 = vmax.f32 %v3949, %v4034
          %v4142 = vmax.f32 %v3950, %v4036
          %v4143 = vmax.f32 %v3951, %v4038
          %v4144 = vmax.f32 %v3952, %v4040
          %v4145 = vmax.f32 %v3953, %v4042
          %v4146 = vmax.f32 %v3954, %v4044
          %v4147 = vmax.f32 %v3955, %v4046
          %v4148 = vmax.f32 %v3956, %v4048
          %v4149 = vmax.f32 %v3957, %v4050
          %v4150 = vmax.f32 %v3958, %v4052
          %v4151 = vmax.f32 %v3959, %v4054
          %v4152 = vmax.f32 %v3960, %v4056
          %v4153 = vmax.f32 %v3961, %v4058
          %v4154 = vmax.f32 %v3962, %v4060
          %v4155 = vmax.f32 %v3963, %v4062
          %v4156 = vmax.f32 %v3964, %v4064
          %v4157 = vmax.f32 %v3965, %v4066
          %v4158 = vmax.f32 %v3966, %v4068
          %v4159 = vmax.f32 %v3967, %v4070
          %v4160 = vmax.f32 %v3968, %v4072
          %v4161 = vmax.f32 %v3969, %v4074
          %v4162 = vmax.f32 %v3970, %v4076
          %v4163 = vmax.f32 %v3971, %v4078
          %v4164 = vmax.f32 %v3972, %v4080
          %v4165 = vmax.f32 %v3973, %v4082
          %v4166 = vmax.f32 %v3974, %v4084
          %v4167 = vmax.f32 %v3975, %v4086
          %v4168 = vmax.f32 %v3976, %v4088
          %v4169 = vmax.f32 %v3977, %v4090
          %v4170 = vmax.f32 %v3978, %v4092
          %v4171 = vmax.f32 %v3979, %v4094
          %v4172 = vmax.f32 %v3980, %v4096
          %v4173 = vmax.f32 %v3981, %v4098
          %v4174 = vmax.f32 %v3982, %v4100
          %v4175 = vmax.f32 %v3983, %v4102
          %v4176 = vmax.f32 %v3984, %v4104
          %v4177 = vmax.f32 %v3985, %v4106
          %v4178 = vmax.f32 %v3986, %v4108
          %v4179 = vmax.f32 %v3987, %v4110
          %v4180 = vmax.f32 %v3988, %v4112
          %v4181 = vmax.f32 %v3989, %v4114
          %v4182 = vmax.f32 %v3990, %v4116
          %v4183 = vmax.f32 %v3991, %v4118
          %v4184 = vmax.f32 %v3992, %v4120
          %v4185 = vsub.f32 %v3929, %v4121
          %v4186 = vsub.f32 %v3930, %v4122
          %v4187 = vsub.f32 %v3931, %v4123
          %v4188 = vsub.f32 %v3932, %v4124
          %v4189 = vsub.f32 %v3933, %v4125
          %v4190 = vsub.f32 %v3934, %v4126
          %v4191 = vsub.f32 %v3935, %v4127
          %v4192 = vsub.f32 %v3936, %v4128
          %v4193 = vsub.f32 %v3937, %v4129
          %v4194 = vsub.f32 %v3938, %v4130
          %v4195 = vsub.f32 %v3939, %v4131
          %v4196 = vsub.f32 %v3940, %v4132
          %v4197 = vsub.f32 %v3941, %v4133
          %v4198 = vsub.f32 %v3942, %v4134
          %v4199 = vsub.f32 %v3943, %v4135
          %v4200 = vsub.f32 %v3944, %v4136
          %v4201 = vsub.f32 %v3945, %v4137
          %v4202 = vsub.f32 %v3946, %v4138
          %v4203 = vsub.f32 %v3947, %v4139
          %v4204 = vsub.f32 %v3948, %v4140
          %v4205 = vsub.f32 %v3949, %v4141
          %v4206 = vsub.f32 %v3950, %v4142
          %v4207 = vsub.f32 %v3951, %v4143
          %v4208 = vsub.f32 %v3952, %v4144
          %v4209 = vsub.f32 %v3953, %v4145
          %v4210 = vsub.f32 %v3954, %v4146
          %v4211 = vsub.f32 %v3955, %v4147
          %v4212 = vsub.f32 %v3956, %v4148
          %v4213 = vsub.f32 %v3957, %v4149
          %v4214 = vsub.f32 %v3958, %v4150
          %v4215 = vsub.f32 %v3959, %v4151
          %v4216 = vsub.f32 %v3960, %v4152
          %v4217 = vsub.f32 %v3961, %v4153
          %v4218 = vsub.f32 %v3962, %v4154
          %v4219 = vsub.f32 %v3963, %v4155
          %v4220 = vsub.f32 %v3964, %v4156
          %v4221 = vsub.f32 %v3965, %v4157
          %v4222 = vsub.f32 %v3966, %v4158
          %v4223 = vsub.f32 %v3967, %v4159
          %v4224 = vsub.f32 %v3968, %v4160
          %v4225 = vsub.f32 %v3969, %v4161
          %v4226 = vsub.f32 %v3970, %v4162
          %v4227 = vsub.f32 %v3971, %v4163
          %v4228 = vsub.f32 %v3972, %v4164
          %v4229 = vsub.f32 %v3973, %v4165
          %v4230 = vsub.f32 %v3974, %v4166
          %v4231 = vsub.f32 %v3975, %v4167
          %v4232 = vsub.f32 %v3976, %v4168
          %v4233 = vsub.f32 %v3977, %v4169
          %v4234 = vsub.f32 %v3978, %v4170
          %v4235 = vsub.f32 %v3979, %v4171
          %v4236 = vsub.f32 %v3980, %v4172
          %v4237 = vsub.f32 %v3981, %v4173
          %v4238 = vsub.f32 %v3982, %v4174
          %v4239 = vsub.f32 %v3983, %v4175
          %v4240 = vsub.f32 %v3984, %v4176
          %v4241 = vsub.f32 %v3985, %v4177
          %v4242 = vsub.f32 %v3986, %v4178
          %v4243 = vsub.f32 %v3987, %v4179
          %v4244 = vsub.f32 %v3988, %v4180
          %v4245 = vsub.f32 %v3989, %v4181
          %v4246 = vsub.f32 %v3990, %v4182
          %v4247 = vsub.f32 %v3991, %v4183
          %v4248 = vsub.f32 %v3992, %v4184
          %v4249 = vmul.f32 %v4185, 1.442695
          %v4250 = vpow.pop %v4249
          %v4251 = vmul.f32 %v4186, 1.442695
          %v4252 = vpow.pop %v4251
          %v4253 = vmul.f32 %v4187, 1.442695
          %v4254 = vpow.pop %v4253
          %v4255 = vmul.f32 %v4188, 1.442695
          %v4256 = vpow.pop %v4255
          %v4257 = vmul.f32 %v4189, 1.442695
          %v4258 = vpow.pop %v4257
          %v4259 = vmul.f32 %v4190, 1.442695
          %v4260 = vpow.pop %v4259
          %v4261 = vmul.f32 %v4191, 1.442695
          %v4262 = vpow.pop %v4261
          %v4263 = vmul.f32 %v4192, 1.442695
          %v4264 = vpow.pop %v4263
          %v4265 = vmul.f32 %v4193, 1.442695
          %v4266 = vpow.pop %v4265
          %v4267 = vmul.f32 %v4194, 1.442695
          %v4268 = vpow.pop %v4267
          %v4269 = vmul.f32 %v4195, 1.442695
          %v4270 = vpow.pop %v4269
          %v4271 = vmul.f32 %v4196, 1.442695
          %v4272 = vpow.pop %v4271
          %v4273 = vmul.f32 %v4197, 1.442695
          %v4274 = vpow.pop %v4273
          %v4275 = vmul.f32 %v4198, 1.442695
          %v4276 = vpow.pop %v4275
          %v4277 = vmul.f32 %v4199, 1.442695
          %v4278 = vpow.pop %v4277
          %v4279 = vmul.f32 %v4200, 1.442695
          %v4280 = vpow.pop %v4279
          %v4281 = vmul.f32 %v4201, 1.442695
          %v4282 = vpow.pop %v4281
          %v4283 = vmul.f32 %v4202, 1.442695
          %v4284 = vpow.pop %v4283
          %v4285 = vmul.f32 %v4203, 1.442695
          %v4286 = vpow.pop %v4285
          %v4287 = vmul.f32 %v4204, 1.442695
          %v4288 = vpow.pop %v4287
          %v4289 = vmul.f32 %v4205, 1.442695
          %v4290 = vpow.pop %v4289
          %v4291 = vmul.f32 %v4206, 1.442695
          %v4292 = vpow.pop %v4291
          %v4293 = vmul.f32 %v4207, 1.442695
          %v4294 = vpow.pop %v4293
          %v4295 = vmul.f32 %v4208, 1.442695
          %v4296 = vpow.pop %v4295
          %v4297 = vmul.f32 %v4209, 1.442695
          %v4298 = vpow.pop %v4297
          %v4299 = vmul.f32 %v4210, 1.442695
          %v4300 = vpow.pop %v4299
          %v4301 = vmul.f32 %v4211, 1.442695
          %v4302 = vpow.pop %v4301
          %v4303 = vmul.f32 %v4212, 1.442695
          %v4304 = vpow.pop %v4303
          %v4305 = vmul.f32 %v4213, 1.442695
          %v4306 = vpow.pop %v4305
          %v4307 = vmul.f32 %v4214, 1.442695
          %v4308 = vpow.pop %v4307
          %v4309 = vmul.f32 %v4215, 1.442695
          %v4310 = vpow.pop %v4309
          %v4311 = vmul.f32 %v4216, 1.442695
          %v4312 = vpow.pop %v4311
          %v4313 = vmul.f32 %v4217, 1.442695
          %v4314 = vpow.pop %v4313
          %v4315 = vmul.f32 %v4218, 1.442695
          %v4316 = vpow.pop %v4315
          %v4317 = vmul.f32 %v4219, 1.442695
          %v4318 = vpow.pop %v4317
          %v4319 = vmul.f32 %v4220, 1.442695
          %v4320 = vpow.pop %v4319
          %v4321 = vmul.f32 %v4221, 1.442695
          %v4322 = vpow.pop %v4321
          %v4323 = vmul.f32 %v4222, 1.442695
          %v4324 = vpow.pop %v4323
          %v4325 = vmul.f32 %v4223, 1.442695
          %v4326 = vpow.pop %v4325
          %v4327 = vmul.f32 %v4224, 1.442695
          %v4328 = vpow.pop %v4327
          %v4329 = vmul.f32 %v4225, 1.442695
          %v4330 = vpow.pop %v4329
          %v4331 = vmul.f32 %v4226, 1.442695
          %v4332 = vpow.pop %v4331
          %v4333 = vmul.f32 %v4227, 1.442695
          %v4334 = vpow.pop %v4333
          %v4335 = vmul.f32 %v4228, 1.442695
          %v4336 = vpow.pop %v4335
          %v4337 = vmul.f32 %v4229, 1.442695
          %v4338 = vpow.pop %v4337
          %v4339 = vmul.f32 %v4230, 1.442695
          %v4340 = vpow.pop %v4339
          %v4341 = vmul.f32 %v4231, 1.442695
          %v4342 = vpow.pop %v4341
          %v4343 = vmul.f32 %v4232, 1.442695
          %v4344 = vpow.pop %v4343
          %v4345 = vmul.f32 %v4233, 1.442695
          %v4346 = vpow.pop %v4345
          %v4347 = vmul.f32 %v4234, 1.442695
          %v4348 = vpow.pop %v4347
          %v4349 = vmul.f32 %v4235, 1.442695
          %v4350 = vpow.pop %v4349
          %v4351 = vmul.f32 %v4236, 1.442695
          %v4352 = vpow.pop %v4351
          %v4353 = vmul.f32 %v4237, 1.442695
          %v4354 = vpow.pop %v4353
          %v4355 = vmul.f32 %v4238, 1.442695
          %v4356 = vpow.pop %v4355
          %v4357 = vmul.f32 %v4239, 1.442695
          %v4358 = vpow.pop %v4357
          %v4359 = vmul.f32 %v4240, 1.442695
          %v4360 = vpow.pop %v4359
          %v4361 = vmul.f32 %v4241, 1.442695
          %v4362 = vpow.pop %v4361
          %v4363 = vmul.f32 %v4242, 1.442695
          %v4364 = vpow.pop %v4363
          %v4365 = vmul.f32 %v4243, 1.442695
          %v4366 = vpow.pop %v4365
          %v4367 = vmul.f32 %v4244, 1.442695
          %v4368 = vpow.pop %v4367
          %v4369 = vmul.f32 %v4245, 1.442695
          %v4370 = vpow.pop %v4369
          %v4371 = vmul.f32 %v4246, 1.442695
          %v4372 = vpow.pop %v4371
          %v4373 = vmul.f32 %v4247, 1.442695
          %v4374 = vpow.pop %v4373
          %v4375 = vmul.f32 %v4248, 1.442695
          %v4376 = vpow.pop %v4375
          %4378 = vset.pattern.permute.xlu0 0
          %4379 = vperm.xlu0 %4378, %v4121
          %v4380 = vpop.permute.xlu0 %4379
          %4383 = vset.pattern.permute.xlu0 0
          %4384 = vperm.xlu0 %4383, %v4122
          %v4385 = vpop.permute.xlu0 %4384
          %4388 = vset.pattern.permute.xlu0 0
          %4389 = vperm.xlu0 %4388, %v4123
          %v4390 = vpop.permute.xlu0 %4389
          %4393 = vset.pattern.permute.xlu0 0
          %4394 = vperm.xlu0 %4393, %v4124
          %v4395 = vpop.permute.xlu0 %4394
          %4398 = vset.pattern.permute.xlu0 0
          %4399 = vperm.xlu0 %4398, %v4125
          %v4400 = vpop.permute.xlu0 %4399
          %4403 = vset.pattern.permute.xlu0 0
          %4404 = vperm.xlu0 %4403, %v4126
          %v4405 = vpop.permute.xlu0 %4404
          %4408 = vset.pattern.permute.xlu0 0
          %4409 = vperm.xlu0 %4408, %v4127
          %v4410 = vpop.permute.xlu0 %4409
          %4413 = vset.pattern.permute.xlu0 0
          %4414 = vperm.xlu0 %4413, %v4128
          %v4415 = vpop.permute.xlu0 %4414
          %4418 = vset.pattern.permute.xlu0 0
          %4419 = vperm.xlu0 %4418, %v4129
          %v4420 = vpop.permute.xlu0 %4419
          %4423 = vset.pattern.permute.xlu0 0
          %4424 = vperm.xlu0 %4423, %v4130
          %v4425 = vpop.permute.xlu0 %4424
          %4428 = vset.pattern.permute.xlu0 0
          %4429 = vperm.xlu0 %4428, %v4131
          %v4430 = vpop.permute.xlu0 %4429
          %4433 = vset.pattern.permute.xlu0 0
          %4434 = vperm.xlu0 %4433, %v4132
          %v4435 = vpop.permute.xlu0 %4434
          %4438 = vset.pattern.permute.xlu0 0
          %4439 = vperm.xlu0 %4438, %v4133
          %v4440 = vpop.permute.xlu0 %4439
          %4443 = vset.pattern.permute.xlu0 0
          %4444 = vperm.xlu0 %4443, %v4134
          %v4445 = vpop.permute.xlu0 %4444
          %4448 = vset.pattern.permute.xlu0 0
          %4449 = vperm.xlu0 %4448, %v4135
          %v4450 = vpop.permute.xlu0 %4449
          %4453 = vset.pattern.permute.xlu0 0
          %4454 = vperm.xlu0 %4453, %v4136
          %v4455 = vpop.permute.xlu0 %4454
          %4458 = vset.pattern.permute.xlu0 0
          %4459 = vperm.xlu0 %4458, %v4137
          %v4460 = vpop.permute.xlu0 %4459
          %4463 = vset.pattern.permute.xlu0 0
          %4464 = vperm.xlu0 %4463, %v4138
          %v4465 = vpop.permute.xlu0 %4464
          %4468 = vset.pattern.permute.xlu0 0
          %4469 = vperm.xlu0 %4468, %v4139
          %v4470 = vpop.permute.xlu0 %4469
          %4473 = vset.pattern.permute.xlu0 0
          %4474 = vperm.xlu0 %4473, %v4140
          %v4475 = vpop.permute.xlu0 %4474
          %4478 = vset.pattern.permute.xlu0 0
          %4479 = vperm.xlu0 %4478, %v4141
          %v4480 = vpop.permute.xlu0 %4479
          %4483 = vset.pattern.permute.xlu0 0
          %4484 = vperm.xlu0 %4483, %v4142
          %v4485 = vpop.permute.xlu0 %4484
          %4488 = vset.pattern.permute.xlu0 0
          %4489 = vperm.xlu0 %4488, %v4143
          %v4490 = vpop.permute.xlu0 %4489
          %4493 = vset.pattern.permute.xlu0 0
          %4494 = vperm.xlu0 %4493, %v4144
          %v4495 = vpop.permute.xlu0 %4494
          %4498 = vset.pattern.permute.xlu0 0
          %4499 = vperm.xlu0 %4498, %v4145
          %v4500 = vpop.permute.xlu0 %4499
          %4503 = vset.pattern.permute.xlu0 0
          %4504 = vperm.xlu0 %4503, %v4146
          %v4505 = vpop.permute.xlu0 %4504
          %4508 = vset.pattern.permute.xlu0 0
          %4509 = vperm.xlu0 %4508, %v4147
          %v4510 = vpop.permute.xlu0 %4509
          %4513 = vset.pattern.permute.xlu0 0
          %4514 = vperm.xlu0 %4513, %v4148
          %v4515 = vpop.permute.xlu0 %4514
          %4518 = vset.pattern.permute.xlu0 0
          %4519 = vperm.xlu0 %4518, %v4149
          %v4520 = vpop.permute.xlu0 %4519
          %4523 = vset.pattern.permute.xlu0 0
          %4524 = vperm.xlu0 %4523, %v4150
          %v4525 = vpop.permute.xlu0 %4524
          %4528 = vset.pattern.permute.xlu0 0
          %4529 = vperm.xlu0 %4528, %v4151
          %v4530 = vpop.permute.xlu0 %4529
          %4533 = vset.pattern.permute.xlu0 0
          %4534 = vperm.xlu0 %4533, %v4152
          %v4535 = vpop.permute.xlu0 %4534
          %4538 = vset.pattern.permute.xlu0 0
          %4539 = vperm.xlu0 %4538, %v4153
          %v4540 = vpop.permute.xlu0 %4539
          %4543 = vset.pattern.permute.xlu0 0
          %4544 = vperm.xlu0 %4543, %v4154
          %v4545 = vpop.permute.xlu0 %4544
          %4548 = vset.pattern.permute.xlu0 0
          %4549 = vperm.xlu0 %4548, %v4155
          %v4550 = vpop.permute.xlu0 %4549
          %4553 = vset.pattern.permute.xlu0 0
          %4554 = vperm.xlu0 %4553, %v4156
          %v4555 = vpop.permute.xlu0 %4554
          %4558 = vset.pattern.permute.xlu0 0
          %4559 = vperm.xlu0 %4558, %v4157
          %v4560 = vpop.permute.xlu0 %4559
          %4563 = vset.pattern.permute.xlu0 0
          %4564 = vperm.xlu0 %4563, %v4158
          %v4565 = vpop.permute.xlu0 %4564
          %4568 = vset.pattern.permute.xlu0 0
          %4569 = vperm.xlu0 %4568, %v4159
          %v4570 = vpop.permute.xlu0 %4569
          %4573 = vset.pattern.permute.xlu0 0
          %4574 = vperm.xlu0 %4573, %v4160
          %v4575 = vpop.permute.xlu0 %4574
          %4578 = vset.pattern.permute.xlu0 0
          %4579 = vperm.xlu0 %4578, %v4161
          %v4580 = vpop.permute.xlu0 %4579
          %4583 = vset.pattern.permute.xlu0 0
          %4584 = vperm.xlu0 %4583, %v4162
          %v4585 = vpop.permute.xlu0 %4584
          %4588 = vset.pattern.permute.xlu0 0
          %4589 = vperm.xlu0 %4588, %v4163
          %v4590 = vpop.permute.xlu0 %4589
          %4593 = vset.pattern.permute.xlu0 0
          %4594 = vperm.xlu0 %4593, %v4164
          %v4595 = vpop.permute.xlu0 %4594
          %4598 = vset.pattern.permute.xlu0 0
          %4599 = vperm.xlu0 %4598, %v4165
          %v4600 = vpop.permute.xlu0 %4599
          %4603 = vset.pattern.permute.xlu0 0
          %4604 = vperm.xlu0 %4603, %v4166
          %v4605 = vpop.permute.xlu0 %4604
          %4608 = vset.pattern.permute.xlu0 0
          %4609 = vperm.xlu0 %4608, %v4167
          %v4610 = vpop.permute.xlu0 %4609
          %4613 = vset.pattern.permute.xlu0 0
          %4614 = vperm.xlu0 %4613, %v4168
          %v4615 = vpop.permute.xlu0 %4614
          %4618 = vset.pattern.permute.xlu0 0
          %4619 = vperm.xlu0 %4618, %v4169
          %v4620 = vpop.permute.xlu0 %4619
          %4623 = vset.pattern.permute.xlu0 0
          %4624 = vperm.xlu0 %4623, %v4170
          %v4625 = vpop.permute.xlu0 %4624
          %4628 = vset.pattern.permute.xlu0 0
          %4629 = vperm.xlu0 %4628, %v4171
          %v4630 = vpop.permute.xlu0 %4629
          %4633 = vset.pattern.permute.xlu0 0
          %4634 = vperm.xlu0 %4633, %v4172
          %v4635 = vpop.permute.xlu0 %4634
          %4638 = vset.pattern.permute.xlu0 0
          %4639 = vperm.xlu0 %4638, %v4173
          %v4640 = vpop.permute.xlu0 %4639
          %4643 = vset.pattern.permute.xlu0 0
          %4644 = vperm.xlu0 %4643, %v4174
          %v4645 = vpop.permute.xlu0 %4644
          %4648 = vset.pattern.permute.xlu0 0
          %4649 = vperm.xlu0 %4648, %v4175
          %v4650 = vpop.permute.xlu0 %4649
          %4653 = vset.pattern.permute.xlu0 0
          %4654 = vperm.xlu0 %4653, %v4176
          %v4655 = vpop.permute.xlu0 %4654
          %4658 = vset.pattern.permute.xlu0 0
          %4659 = vperm.xlu0 %4658, %v4177
          %v4660 = vpop.permute.xlu0 %4659
          %4663 = vset.pattern.permute.xlu0 0
          %4664 = vperm.xlu0 %4663, %v4178
          %v4665 = vpop.permute.xlu0 %4664
          %4668 = vset.pattern.permute.xlu0 0
          %4669 = vperm.xlu0 %4668, %v4179
          %v4670 = vpop.permute.xlu0 %4669
          %4673 = vset.pattern.permute.xlu0 0
          %4674 = vperm.xlu0 %4673, %v4180
          %v4675 = vpop.permute.xlu0 %4674
          %4678 = vset.pattern.permute.xlu0 0
          %4679 = vperm.xlu0 %4678, %v4181
          %v4680 = vpop.permute.xlu0 %4679
          %4683 = vset.pattern.permute.xlu0 0
          %4684 = vperm.xlu0 %4683, %v4182
          %v4685 = vpop.permute.xlu0 %4684
          %4688 = vset.pattern.permute.xlu0 0
          %4689 = vperm.xlu0 %4688, %v4183
          %v4690 = vpop.permute.xlu0 %4689
          %4693 = vset.pattern.permute.xlu0 0
          %4694 = vperm.xlu0 %4693, %v4184
          %v4695 = vpop.permute.xlu0 %4694
          %v4697 = vsub.f32 %v3865, %v4380
          %v4698 = vsub.f32 %v3866, %v4385
          %v4699 = vsub.f32 %v3867, %v4390
          %v4700 = vsub.f32 %v3868, %v4395
          %v4701 = vsub.f32 %v3869, %v4400
          %v4702 = vsub.f32 %v3870, %v4405
          %v4703 = vsub.f32 %v3871, %v4410
          %v4704 = vsub.f32 %v3872, %v4415
          %v4705 = vsub.f32 %v3873, %v4420
          %v4706 = vsub.f32 %v3874, %v4425
          %v4707 = vsub.f32 %v3875, %v4430
          %v4708 = vsub.f32 %v3876, %v4435
          %v4709 = vsub.f32 %v3877, %v4440
          %v4710 = vsub.f32 %v3878, %v4445
          %v4711 = vsub.f32 %v3879, %v4450
          %v4712 = vsub.f32 %v3880, %v4455
          %v4713 = vsub.f32 %v3881, %v4460
          %v4714 = vsub.f32 %v3882, %v4465
          %v4715 = vsub.f32 %v3883, %v4470
          %v4716 = vsub.f32 %v3884, %v4475
          %v4717 = vsub.f32 %v3885, %v4480
          %v4718 = vsub.f32 %v3886, %v4485
          %v4719 = vsub.f32 %v3887, %v4490
          %v4720 = vsub.f32 %v3888, %v4495
          %v4721 = vsub.f32 %v3889, %v4500
          %v4722 = vsub.f32 %v3890, %v4505
          %v4723 = vsub.f32 %v3891, %v4510
          %v4724 = vsub.f32 %v3892, %v4515
          %v4725 = vsub.f32 %v3893, %v4520
          %v4726 = vsub.f32 %v3894, %v4525
          %v4727 = vsub.f32 %v3895, %v4530
          %v4728 = vsub.f32 %v3896, %v4535
          %v4729 = vsub.f32 %v3897, %v4540
          %v4730 = vsub.f32 %v3898, %v4545
          %v4731 = vsub.f32 %v3899, %v4550
          %v4732 = vsub.f32 %v3900, %v4555
          %v4733 = vsub.f32 %v3901, %v4560
          %v4734 = vsub.f32 %v3902, %v4565
          %v4735 = vsub.f32 %v3903, %v4570
          %v4736 = vsub.f32 %v3904, %v4575
          %v4737 = vsub.f32 %v3905, %v4580
          %v4738 = vsub.f32 %v3906, %v4585
          %v4739 = vsub.f32 %v3907, %v4590
          %v4740 = vsub.f32 %v3908, %v4595
          %v4741 = vsub.f32 %v3909, %v4600
          %v4742 = vsub.f32 %v3910, %v4605
          %v4743 = vsub.f32 %v3911, %v4610
          %v4744 = vsub.f32 %v3912, %v4615
          %v4745 = vsub.f32 %v3913, %v4620
          %v4746 = vsub.f32 %v3914, %v4625
          %v4747 = vsub.f32 %v3915, %v4630
          %v4748 = vsub.f32 %v3916, %v4635
          %v4749 = vsub.f32 %v3917, %v4640
          %v4750 = vsub.f32 %v3918, %v4645
          %v4751 = vsub.f32 %v3919, %v4650
          %v4752 = vsub.f32 %v3920, %v4655
          %v4753 = vsub.f32 %v3921, %v4660
          %v4754 = vsub.f32 %v3922, %v4665
          %v4755 = vsub.f32 %v3923, %v4670
          %v4756 = vsub.f32 %v3924, %v4675
          %v4757 = vsub.f32 %v3925, %v4680
          %v4758 = vsub.f32 %v3926, %v4685
          %v4759 = vsub.f32 %v3927, %v4690
          %v4760 = vsub.f32 %v3928, %v4695
          %v4761 = vmul.f32 %v4697, 1.442695
          %v4762 = vpow.pop %v4761
          %v4763 = vmul.f32 %v4698, 1.442695
          %v4764 = vpow.pop %v4763
          %v4765 = vmul.f32 %v4699, 1.442695
          %v4766 = vpow.pop %v4765
          %v4767 = vmul.f32 %v4700, 1.442695
          %v4768 = vpow.pop %v4767
          %v4769 = vmul.f32 %v4701, 1.442695
          %v4770 = vpow.pop %v4769
          %v4771 = vmul.f32 %v4702, 1.442695
          %v4772 = vpow.pop %v4771
          %v4773 = vmul.f32 %v4703, 1.442695
          %v4774 = vpow.pop %v4773
          %v4775 = vmul.f32 %v4704, 1.442695
          %v4776 = vpow.pop %v4775
          %v4777 = vmul.f32 %v4705, 1.442695
          %v4778 = vpow.pop %v4777
          %v4779 = vmul.f32 %v4706, 1.442695
          %v4780 = vpow.pop %v4779
          %v4781 = vmul.f32 %v4707, 1.442695
          %v4782 = vpow.pop %v4781
          %v4783 = vmul.f32 %v4708, 1.442695
          %v4784 = vpow.pop %v4783
          %v4785 = vmul.f32 %v4709, 1.442695
          %v4786 = vpow.pop %v4785
          %v4787 = vmul.f32 %v4710, 1.442695
          %v4788 = vpow.pop %v4787
          %v4789 = vmul.f32 %v4711, 1.442695
          %v4790 = vpow.pop %v4789
          %v4791 = vmul.f32 %v4712, 1.442695
          %v4792 = vpow.pop %v4791
          %v4793 = vmul.f32 %v4713, 1.442695
          %v4794 = vpow.pop %v4793
          %v4795 = vmul.f32 %v4714, 1.442695
          %v4796 = vpow.pop %v4795
          %v4797 = vmul.f32 %v4715, 1.442695
          %v4798 = vpow.pop %v4797
          %v4799 = vmul.f32 %v4716, 1.442695
          %v4800 = vpow.pop %v4799
          %v4801 = vmul.f32 %v4717, 1.442695
          %v4802 = vpow.pop %v4801
          %v4803 = vmul.f32 %v4718, 1.442695
          %v4804 = vpow.pop %v4803
          %v4805 = vmul.f32 %v4719, 1.442695
          %v4806 = vpow.pop %v4805
          %v4807 = vmul.f32 %v4720, 1.442695
          %v4808 = vpow.pop %v4807
          %v4809 = vmul.f32 %v4721, 1.442695
          %v4810 = vpow.pop %v4809
          %v4811 = vmul.f32 %v4722, 1.442695
          %v4812 = vpow.pop %v4811
          %v4813 = vmul.f32 %v4723, 1.442695
          %v4814 = vpow.pop %v4813
          %v4815 = vmul.f32 %v4724, 1.442695
          %v4816 = vpow.pop %v4815
          %v4817 = vmul.f32 %v4725, 1.442695
          %v4818 = vpow.pop %v4817
          %v4819 = vmul.f32 %v4726, 1.442695
          %v4820 = vpow.pop %v4819
          %v4821 = vmul.f32 %v4727, 1.442695
          %v4822 = vpow.pop %v4821
          %v4823 = vmul.f32 %v4728, 1.442695
          %v4824 = vpow.pop %v4823
          %v4825 = vmul.f32 %v4729, 1.442695
          %v4826 = vpow.pop %v4825
          %v4827 = vmul.f32 %v4730, 1.442695
          %v4828 = vpow.pop %v4827
          %v4829 = vmul.f32 %v4731, 1.442695
          %v4830 = vpow.pop %v4829
          %v4831 = vmul.f32 %v4732, 1.442695
          %v4832 = vpow.pop %v4831
          %v4833 = vmul.f32 %v4733, 1.442695
          %v4834 = vpow.pop %v4833
          %v4835 = vmul.f32 %v4734, 1.442695
          %v4836 = vpow.pop %v4835
          %v4837 = vmul.f32 %v4735, 1.442695
          %v4838 = vpow.pop %v4837
          %v4839 = vmul.f32 %v4736, 1.442695
          %v4840 = vpow.pop %v4839
          %v4841 = vmul.f32 %v4737, 1.442695
          %v4842 = vpow.pop %v4841
          %v4843 = vmul.f32 %v4738, 1.442695
          %v4844 = vpow.pop %v4843
          %v4845 = vmul.f32 %v4739, 1.442695
          %v4846 = vpow.pop %v4845
          %v4847 = vmul.f32 %v4740, 1.442695
          %v4848 = vpow.pop %v4847
          %v4849 = vmul.f32 %v4741, 1.442695
          %v4850 = vpow.pop %v4849
          %v4851 = vmul.f32 %v4742, 1.442695
          %v4852 = vpow.pop %v4851
          %v4853 = vmul.f32 %v4743, 1.442695
          %v4854 = vpow.pop %v4853
          %v4855 = vmul.f32 %v4744, 1.442695
          %v4856 = vpow.pop %v4855
          %v4857 = vmul.f32 %v4745, 1.442695
          %v4858 = vpow.pop %v4857
          %v4859 = vmul.f32 %v4746, 1.442695
          %v4860 = vpow.pop %v4859
          %v4861 = vmul.f32 %v4747, 1.442695
          %v4862 = vpow.pop %v4861
          %v4863 = vmul.f32 %v4748, 1.442695
          %v4864 = vpow.pop %v4863
          %v4865 = vmul.f32 %v4749, 1.442695
          %v4866 = vpow.pop %v4865
          %v4867 = vmul.f32 %v4750, 1.442695
          %v4868 = vpow.pop %v4867
          %v4869 = vmul.f32 %v4751, 1.442695
          %v4870 = vpow.pop %v4869
          %v4871 = vmul.f32 %v4752, 1.442695
          %v4872 = vpow.pop %v4871
          %v4873 = vmul.f32 %v4753, 1.442695
          %v4874 = vpow.pop %v4873
          %v4875 = vmul.f32 %v4754, 1.442695
          %v4876 = vpow.pop %v4875
          %v4877 = vmul.f32 %v4755, 1.442695
          %v4878 = vpow.pop %v4877
          %v4879 = vmul.f32 %v4756, 1.442695
          %v4880 = vpow.pop %v4879
          %v4881 = vmul.f32 %v4757, 1.442695
          %v4882 = vpow.pop %v4881
          %v4883 = vmul.f32 %v4758, 1.442695
          %v4884 = vpow.pop %v4883
          %v4885 = vmul.f32 %v4759, 1.442695
          %v4886 = vpow.pop %v4885
          %v4887 = vmul.f32 %v4760, 1.442695
          %v4888 = vpow.pop %v4887
          %v4889 = vld [vmem:[#allocation3] sm:$0xff]
          %v4890 = vld [vmem:[#allocation3 + $0x8] sm:$0xff]
          %v4891 = vld [vmem:[#allocation3 + $0x10] sm:$0xff]
          %v4892 = vld [vmem:[#allocation3 + $0x18] sm:$0xff]
          %v4893 = vld [vmem:[#allocation3 + $0x20] sm:$0xff]
          %v4894 = vld [vmem:[#allocation3 + $0x28] sm:$0xff]
          %v4895 = vld [vmem:[#allocation3 + $0x30] sm:$0xff]
          %v4896 = vld [vmem:[#allocation3 + $0x38] sm:$0xff]
          %v4897 = vld [vmem:[#allocation3 + $0x40] sm:$0xff]
          %v4898 = vld [vmem:[#allocation3 + $0x48] sm:$0xff]
          %v4899 = vld [vmem:[#allocation3 + $0x50] sm:$0xff]
          %v4900 = vld [vmem:[#allocation3 + $0x58] sm:$0xff]
          %v4901 = vld [vmem:[#allocation3 + $0x60] sm:$0xff]
          %v4902 = vld [vmem:[#allocation3 + $0x68] sm:$0xff]
          %v4903 = vld [vmem:[#allocation3 + $0x70] sm:$0xff]
          %v4904 = vld [vmem:[#allocation3 + $0x78] sm:$0xff]
          %v4905 = vld [vmem:[#allocation3 + $0x80] sm:$0xff]
          %v4906 = vld [vmem:[#allocation3 + $0x88] sm:$0xff]
          %v4907 = vld [vmem:[#allocation3 + $0x90] sm:$0xff]
          %v4908 = vld [vmem:[#allocation3 + $0x98] sm:$0xff]
          %v4909 = vld [vmem:[#allocation3 + $0xa0] sm:$0xff]
          %v4910 = vld [vmem:[#allocation3 + $0xa8] sm:$0xff]
          %v4911 = vld [vmem:[#allocation3 + $0xb0] sm:$0xff]
          %v4912 = vld [vmem:[#allocation3 + $0xb8] sm:$0xff]
          %v4913 = vld [vmem:[#allocation3 + $0xc0] sm:$0xff]
          %v4914 = vld [vmem:[#allocation3 + $0xc8] sm:$0xff]
          %v4915 = vld [vmem:[#allocation3 + $0xd0] sm:$0xff]
          %v4916 = vld [vmem:[#allocation3 + $0xd8] sm:$0xff]
          %v4917 = vld [vmem:[#allocation3 + $0xe0] sm:$0xff]
          %v4918 = vld [vmem:[#allocation3 + $0xe8] sm:$0xff]
          %v4919 = vld [vmem:[#allocation3 + $0xf0] sm:$0xff]
          %v4920 = vld [vmem:[#allocation3 + $0xf8] sm:$0xff]
          %v4921 = vld [vmem:[#allocation3 + $0x100] sm:$0xff]
          %v4922 = vld [vmem:[#allocation3 + $0x108] sm:$0xff]
          %v4923 = vld [vmem:[#allocation3 + $0x110] sm:$0xff]
          %v4924 = vld [vmem:[#allocation3 + $0x118] sm:$0xff]
          %v4925 = vld [vmem:[#allocation3 + $0x120] sm:$0xff]
          %v4926 = vld [vmem:[#allocation3 + $0x128] sm:$0xff]
          %v4927 = vld [vmem:[#allocation3 + $0x130] sm:$0xff]
          %v4928 = vld [vmem:[#allocation3 + $0x138] sm:$0xff]
          %v4929 = vld [vmem:[#allocation3 + $0x140] sm:$0xff]
          %v4930 = vld [vmem:[#allocation3 + $0x148] sm:$0xff]
          %v4931 = vld [vmem:[#allocation3 + $0x150] sm:$0xff]
          %v4932 = vld [vmem:[#allocation3 + $0x158] sm:$0xff]
          %v4933 = vld [vmem:[#allocation3 + $0x160] sm:$0xff]
          %v4934 = vld [vmem:[#allocation3 + $0x168] sm:$0xff]
          %v4935 = vld [vmem:[#allocation3 + $0x170] sm:$0xff]
          %v4936 = vld [vmem:[#allocation3 + $0x178] sm:$0xff]
          %v4937 = vld [vmem:[#allocation3 + $0x180] sm:$0xff]
          %v4938 = vld [vmem:[#allocation3 + $0x188] sm:$0xff]
          %v4939 = vld [vmem:[#allocation3 + $0x190] sm:$0xff]
          %v4940 = vld [vmem:[#allocation3 + $0x198] sm:$0xff]
          %v4941 = vld [vmem:[#allocation3 + $0x1a0] sm:$0xff]
          %v4942 = vld [vmem:[#allocation3 + $0x1a8] sm:$0xff]
          %v4943 = vld [vmem:[#allocation3 + $0x1b0] sm:$0xff]
          %v4944 = vld [vmem:[#allocation3 + $0x1b8] sm:$0xff]
          %v4945 = vld [vmem:[#allocation3 + $0x1c0] sm:$0xff]
          %v4946 = vld [vmem:[#allocation3 + $0x1c8] sm:$0xff]
          %v4947 = vld [vmem:[#allocation3 + $0x1d0] sm:$0xff]
          %v4948 = vld [vmem:[#allocation3 + $0x1d8] sm:$0xff]
          %v4949 = vld [vmem:[#allocation3 + $0x1e0] sm:$0xff]
          %v4950 = vld [vmem:[#allocation3 + $0x1e8] sm:$0xff]
          %v4951 = vld [vmem:[#allocation3 + $0x1f0] sm:$0xff]
          %v4952 = vld [vmem:[#allocation3 + $0x1f8] sm:$0xff]
          %v4953 = vmul.f32 %v4250, %v4889
          %v4954 = vmul.f32 %v4252, %v4890
          %v4955 = vmul.f32 %v4254, %v4891
          %v4956 = vmul.f32 %v4256, %v4892
          %v4957 = vmul.f32 %v4258, %v4893
          %v4958 = vmul.f32 %v4260, %v4894
          %v4959 = vmul.f32 %v4262, %v4895
          %v4960 = vmul.f32 %v4264, %v4896
          %v4961 = vmul.f32 %v4266, %v4897
          %v4962 = vmul.f32 %v4268, %v4898
          %v4963 = vmul.f32 %v4270, %v4899
          %v4964 = vmul.f32 %v4272, %v4900
          %v4965 = vmul.f32 %v4274, %v4901
          %v4966 = vmul.f32 %v4276, %v4902
          %v4967 = vmul.f32 %v4278, %v4903
          %v4968 = vmul.f32 %v4280, %v4904
          %v4969 = vmul.f32 %v4282, %v4905
          %v4970 = vmul.f32 %v4284, %v4906
          %v4971 = vmul.f32 %v4286, %v4907
          %v4972 = vmul.f32 %v4288, %v4908
          %v4973 = vmul.f32 %v4290, %v4909
          %v4974 = vmul.f32 %v4292, %v4910
          %v4975 = vmul.f32 %v4294, %v4911
          %v4976 = vmul.f32 %v4296, %v4912
          %v4977 = vmul.f32 %v4298, %v4913
          %v4978 = vmul.f32 %v4300, %v4914
          %v4979 = vmul.f32 %v4302, %v4915
          %v4980 = vmul.f32 %v4304, %v4916
          %v4981 = vmul.f32 %v4306, %v4917
          %v4982 = vmul.f32 %v4308, %v4918
          %v4983 = vmul.f32 %v4310, %v4919
          %v4984 = vmul.f32 %v4312, %v4920
          %v4985 = vmul.f32 %v4314, %v4921
          %v4986 = vmul.f32 %v4316, %v4922
          %v4987 = vmul.f32 %v4318, %v4923
          %v4988 = vmul.f32 %v4320, %v4924
          %v4989 = vmul.f32 %v4322, %v4925
          %v4990 = vmul.f32 %v4324, %v4926
          %v4991 = vmul.f32 %v4326, %v4927
          %v4992 = vmul.f32 %v4328, %v4928
          %v4993 = vmul.f32 %v4330, %v4929
          %v4994 = vmul.f32 %v4332, %v4930
          %v4995 = vmul.f32 %v4334, %v4931
          %v4996 = vmul.f32 %v4336, %v4932
          %v4997 = vmul.f32 %v4338, %v4933
          %v4998 = vmul.f32 %v4340, %v4934
          %v4999 = vmul.f32 %v4342, %v4935
          %v5000 = vmul.f32 %v4344, %v4936
          %v5001 = vmul.f32 %v4346, %v4937
          %v5002 = vmul.f32 %v4348, %v4938
          %v5003 = vmul.f32 %v4350, %v4939
          %v5004 = vmul.f32 %v4352, %v4940
          %v5005 = vmul.f32 %v4354, %v4941
          %v5006 = vmul.f32 %v4356, %v4942
          %v5007 = vmul.f32 %v4358, %v4943
          %v5008 = vmul.f32 %v4360, %v4944
          %v5009 = vmul.f32 %v4362, %v4945
          %v5010 = vmul.f32 %v4364, %v4946
          %v5011 = vmul.f32 %v4366, %v4947
          %v5012 = vmul.f32 %v4368, %v4948
          %v5013 = vmul.f32 %v4370, %v4949
          %v5014 = vmul.f32 %v4372, %v4950
          %v5015 = vmul.f32 %v4374, %v4951
          %v5016 = vmul.f32 %v4376, %v4952
          %5017 = vadd.xlane.f32.xlu0 %v4762
          %v5018 = vpop.xlane.xlu0 %5017
          %5019 = vadd.xlane.f32.xlu0 %v4764
          %v5020 = vpop.xlane.xlu0 %5019
          %5021 = vadd.xlane.f32.xlu0 %v4766
          %v5022 = vpop.xlane.xlu0 %5021
          %5023 = vadd.xlane.f32.xlu0 %v4768
          %v5024 = vpop.xlane.xlu0 %5023
          %5025 = vadd.xlane.f32.xlu0 %v4770
          %v5026 = vpop.xlane.xlu0 %5025
          %5027 = vadd.xlane.f32.xlu0 %v4772
          %v5028 = vpop.xlane.xlu0 %5027
          %5029 = vadd.xlane.f32.xlu0 %v4774
          %v5030 = vpop.xlane.xlu0 %5029
          %5031 = vadd.xlane.f32.xlu0 %v4776
          %v5032 = vpop.xlane.xlu0 %5031
          %5033 = vadd.xlane.f32.xlu0 %v4778
          %v5034 = vpop.xlane.xlu0 %5033
          %5035 = vadd.xlane.f32.xlu0 %v4780
          %v5036 = vpop.xlane.xlu0 %5035
          %5037 = vadd.xlane.f32.xlu0 %v4782
          %v5038 = vpop.xlane.xlu0 %5037
          %5039 = vadd.xlane.f32.xlu0 %v4784
          %v5040 = vpop.xlane.xlu0 %5039
          %5041 = vadd.xlane.f32.xlu0 %v4786
          %v5042 = vpop.xlane.xlu0 %5041
          %5043 = vadd.xlane.f32.xlu0 %v4788
          %v5044 = vpop.xlane.xlu0 %5043
          %5045 = vadd.xlane.f32.xlu0 %v4790
          %v5046 = vpop.xlane.xlu0 %5045
          %5047 = vadd.xlane.f32.xlu0 %v4792
          %v5048 = vpop.xlane.xlu0 %5047
          %5049 = vadd.xlane.f32.xlu0 %v4794
          %v5050 = vpop.xlane.xlu0 %5049
          %5051 = vadd.xlane.f32.xlu0 %v4796
          %v5052 = vpop.xlane.xlu0 %5051
          %5053 = vadd.xlane.f32.xlu0 %v4798
          %v5054 = vpop.xlane.xlu0 %5053
          %5055 = vadd.xlane.f32.xlu0 %v4800
          %v5056 = vpop.xlane.xlu0 %5055
          %5057 = vadd.xlane.f32.xlu0 %v4802
          %v5058 = vpop.xlane.xlu0 %5057
          %5059 = vadd.xlane.f32.xlu0 %v4804
          %v5060 = vpop.xlane.xlu0 %5059
          %5061 = vadd.xlane.f32.xlu0 %v4806
          %v5062 = vpop.xlane.xlu0 %5061
          %5063 = vadd.xlane.f32.xlu0 %v4808
          %v5064 = vpop.xlane.xlu0 %5063
          %5065 = vadd.xlane.f32.xlu0 %v4810
          %v5066 = vpop.xlane.xlu0 %5065
          %5067 = vadd.xlane.f32.xlu0 %v4812
          %v5068 = vpop.xlane.xlu0 %5067
          %5069 = vadd.xlane.f32.xlu0 %v4814
          %v5070 = vpop.xlane.xlu0 %5069
          %5071 = vadd.xlane.f32.xlu0 %v4816
          %v5072 = vpop.xlane.xlu0 %5071
          %5073 = vadd.xlane.f32.xlu0 %v4818
          %v5074 = vpop.xlane.xlu0 %5073
          %5075 = vadd.xlane.f32.xlu0 %v4820
          %v5076 = vpop.xlane.xlu0 %5075
          %5077 = vadd.xlane.f32.xlu0 %v4822
          %v5078 = vpop.xlane.xlu0 %5077
          %5079 = vadd.xlane.f32.xlu0 %v4824
          %v5080 = vpop.xlane.xlu0 %5079
          %5081 = vadd.xlane.f32.xlu0 %v4826
          %v5082 = vpop.xlane.xlu0 %5081
          %5083 = vadd.xlane.f32.xlu0 %v4828
          %v5084 = vpop.xlane.xlu0 %5083
          %5085 = vadd.xlane.f32.xlu0 %v4830
          %v5086 = vpop.xlane.xlu0 %5085
          %5087 = vadd.xlane.f32.xlu0 %v4832
          %v5088 = vpop.xlane.xlu0 %5087
          %5089 = vadd.xlane.f32.xlu0 %v4834
          %v5090 = vpop.xlane.xlu0 %5089
          %5091 = vadd.xlane.f32.xlu0 %v4836
          %v5092 = vpop.xlane.xlu0 %5091
          %5093 = vadd.xlane.f32.xlu0 %v4838
          %v5094 = vpop.xlane.xlu0 %5093
          %5095 = vadd.xlane.f32.xlu0 %v4840
          %v5096 = vpop.xlane.xlu0 %5095
          %5097 = vadd.xlane.f32.xlu0 %v4842
          %v5098 = vpop.xlane.xlu0 %5097
          %5099 = vadd.xlane.f32.xlu0 %v4844
          %v5100 = vpop.xlane.xlu0 %5099
          %5101 = vadd.xlane.f32.xlu0 %v4846
          %v5102 = vpop.xlane.xlu0 %5101
          %5103 = vadd.xlane.f32.xlu0 %v4848
          %v5104 = vpop.xlane.xlu0 %5103
          %5105 = vadd.xlane.f32.xlu0 %v4850
          %v5106 = vpop.xlane.xlu0 %5105
          %5107 = vadd.xlane.f32.xlu0 %v4852
          %v5108 = vpop.xlane.xlu0 %5107
          %5109 = vadd.xlane.f32.xlu0 %v4854
          %v5110 = vpop.xlane.xlu0 %5109
          %5111 = vadd.xlane.f32.xlu0 %v4856
          %v5112 = vpop.xlane.xlu0 %5111
          %5113 = vadd.xlane.f32.xlu0 %v4858
          %v5114 = vpop.xlane.xlu0 %5113
          %5115 = vadd.xlane.f32.xlu0 %v4860
          %v5116 = vpop.xlane.xlu0 %5115
          %5117 = vadd.xlane.f32.xlu0 %v4862
          %v5118 = vpop.xlane.xlu0 %5117
          %5119 = vadd.xlane.f32.xlu0 %v4864
          %v5120 = vpop.xlane.xlu0 %5119
          %5121 = vadd.xlane.f32.xlu0 %v4866
          %v5122 = vpop.xlane.xlu0 %5121
          %5123 = vadd.xlane.f32.xlu0 %v4868
          %v5124 = vpop.xlane.xlu0 %5123
          %5125 = vadd.xlane.f32.xlu0 %v4870
          %v5126 = vpop.xlane.xlu0 %5125
          %5127 = vadd.xlane.f32.xlu0 %v4872
          %v5128 = vpop.xlane.xlu0 %5127
          %5129 = vadd.xlane.f32.xlu0 %v4874
          %v5130 = vpop.xlane.xlu0 %5129
          %5131 = vadd.xlane.f32.xlu0 %v4876
          %v5132 = vpop.xlane.xlu0 %5131
          %5133 = vadd.xlane.f32.xlu0 %v4878
          %v5134 = vpop.xlane.xlu0 %5133
          %5135 = vadd.xlane.f32.xlu0 %v4880
          %v5136 = vpop.xlane.xlu0 %5135
          %5137 = vadd.xlane.f32.xlu0 %v4882
          %v5138 = vpop.xlane.xlu0 %5137
          %5139 = vadd.xlane.f32.xlu0 %v4884
          %v5140 = vpop.xlane.xlu0 %5139
          %5141 = vadd.xlane.f32.xlu0 %v4886
          %v5142 = vpop.xlane.xlu0 %5141
          %5143 = vadd.xlane.f32.xlu0 %v4888
          %v5144 = vpop.xlane.xlu0 %5143
          %v5145 = vadd.f32 %v4953, %v5018
          %v5146 = vadd.f32 %v4954, %v5020
          %v5147 = vadd.f32 %v4955, %v5022
          %v5148 = vadd.f32 %v4956, %v5024
          %v5149 = vadd.f32 %v4957, %v5026
          %v5150 = vadd.f32 %v4958, %v5028
          %v5151 = vadd.f32 %v4959, %v5030
          %v5152 = vadd.f32 %v4960, %v5032
          %v5153 = vadd.f32 %v4961, %v5034
          %v5154 = vadd.f32 %v4962, %v5036
          %v5155 = vadd.f32 %v4963, %v5038
          %v5156 = vadd.f32 %v4964, %v5040
          %v5157 = vadd.f32 %v4965, %v5042
          %v5158 = vadd.f32 %v4966, %v5044
          %v5159 = vadd.f32 %v4967, %v5046
          %v5160 = vadd.f32 %v4968, %v5048
          %v5161 = vadd.f32 %v4969, %v5050
          %v5162 = vadd.f32 %v4970, %v5052
          %v5163 = vadd.f32 %v4971, %v5054
          %v5164 = vadd.f32 %v4972, %v5056
          %v5165 = vadd.f32 %v4973, %v5058
          %v5166 = vadd.f32 %v4974, %v5060
          %v5167 = vadd.f32 %v4975, %v5062
          %v5168 = vadd.f32 %v4976, %v5064
          %v5169 = vadd.f32 %v4977, %v5066
          %v5170 = vadd.f32 %v4978, %v5068
          %v5171 = vadd.f32 %v4979, %v5070
          %v5172 = vadd.f32 %v4980, %v5072
          %v5173 = vadd.f32 %v4981, %v5074
          %v5174 = vadd.f32 %v4982, %v5076
          %v5175 = vadd.f32 %v4983, %v5078
          %v5176 = vadd.f32 %v4984, %v5080
          %v5177 = vadd.f32 %v4985, %v5082
          %v5178 = vadd.f32 %v4986, %v5084
          %v5179 = vadd.f32 %v4987, %v5086
          %v5180 = vadd.f32 %v4988, %v5088
          %v5181 = vadd.f32 %v4989, %v5090
          %v5182 = vadd.f32 %v4990, %v5092
          %v5183 = vadd.f32 %v4991, %v5094
          %v5184 = vadd.f32 %v4992, %v5096
          %v5185 = vadd.f32 %v4993, %v5098
          %v5186 = vadd.f32 %v4994, %v5100
          %v5187 = vadd.f32 %v4995, %v5102
          %v5188 = vadd.f32 %v4996, %v5104
          %v5189 = vadd.f32 %v4997, %v5106
          %v5190 = vadd.f32 %v4998, %v5108
          %v5191 = vadd.f32 %v4999, %v5110
          %v5192 = vadd.f32 %v5000, %v5112
          %v5193 = vadd.f32 %v5001, %v5114
          %v5194 = vadd.f32 %v5002, %v5116
          %v5195 = vadd.f32 %v5003, %v5118
          %v5196 = vadd.f32 %v5004, %v5120
          %v5197 = vadd.f32 %v5005, %v5122
          %v5198 = vadd.f32 %v5006, %v5124
          %v5199 = vadd.f32 %v5007, %v5126
          %v5200 = vadd.f32 %v5008, %v5128
          %v5201 = vadd.f32 %v5009, %v5130
          %v5202 = vadd.f32 %v5010, %v5132
          %v5203 = vadd.f32 %v5011, %v5134
          %v5204 = vadd.f32 %v5012, %v5136
          %v5205 = vadd.f32 %v5013, %v5138
          %v5206 = vadd.f32 %v5014, %v5140
          %v5207 = vadd.f32 %v5015, %v5142
          %v5208 = vadd.f32 %v5016, %v5144
          %5209 = vst.msk [vmem:[#allocation3] sm:$0xff] %vm1645, %v5145
          %5210 = vst.msk [vmem:[#allocation3 + $0x8] sm:$0xff] %vm1645, %v5146
          %5211 = vst.msk [vmem:[#allocation3 + $0x10] sm:$0xff] %vm1645, %v5147
          %5212 = vst.msk [vmem:[#allocation3 + $0x18] sm:$0xff] %vm1645, %v5148
          %5213 = vst.msk [vmem:[#allocation3 + $0x20] sm:$0xff] %vm1645, %v5149
          %5214 = vst.msk [vmem:[#allocation3 + $0x28] sm:$0xff] %vm1645, %v5150
          %5215 = vst.msk [vmem:[#allocation3 + $0x30] sm:$0xff] %vm1645, %v5151
          %5216 = vst.msk [vmem:[#allocation3 + $0x38] sm:$0xff] %vm1645, %v5152
          %5217 = vst.msk [vmem:[#allocation3 + $0x40] sm:$0xff] %vm1645, %v5153
          %5218 = vst.msk [vmem:[#allocation3 + $0x48] sm:$0xff] %vm1645, %v5154
          %5219 = vst.msk [vmem:[#allocation3 + $0x50] sm:$0xff] %vm1645, %v5155
          %5220 = vst.msk [vmem:[#allocation3 + $0x58] sm:$0xff] %vm1645, %v5156
          %5221 = vst.msk [vmem:[#allocation3 + $0x60] sm:$0xff] %vm1645, %v5157
          %5222 = vst.msk [vmem:[#allocation3 + $0x68] sm:$0xff] %vm1645, %v5158
          %5223 = vst.msk [vmem:[#allocation3 + $0x70] sm:$0xff] %vm1645, %v5159
          %5224 = vst.msk [vmem:[#allocation3 + $0x78] sm:$0xff] %vm1645, %v5160
          %5225 = vst.msk [vmem:[#allocation3 + $0x80] sm:$0xff] %vm1645, %v5161
          %5226 = vst.msk [vmem:[#allocation3 + $0x88] sm:$0xff] %vm1645, %v5162
          %5227 = vst.msk [vmem:[#allocation3 + $0x90] sm:$0xff] %vm1645, %v5163
          %5228 = vst.msk [vmem:[#allocation3 + $0x98] sm:$0xff] %vm1645, %v5164
          %5229 = vst.msk [vmem:[#allocation3 + $0xa0] sm:$0xff] %vm1645, %v5165
          %5230 = vst.msk [vmem:[#allocation3 + $0xa8] sm:$0xff] %vm1645, %v5166
          %5231 = vst.msk [vmem:[#allocation3 + $0xb0] sm:$0xff] %vm1645, %v5167
          %5232 = vst.msk [vmem:[#allocation3 + $0xb8] sm:$0xff] %vm1645, %v5168
          %5233 = vst.msk [vmem:[#allocation3 + $0xc0] sm:$0xff] %vm1645, %v5169
          %5234 = vst.msk [vmem:[#allocation3 + $0xc8] sm:$0xff] %vm1645, %v5170
          %5235 = vst.msk [vmem:[#allocation3 + $0xd0] sm:$0xff] %vm1645, %v5171
          %5236 = vst.msk [vmem:[#allocation3 + $0xd8] sm:$0xff] %vm1645, %v5172
          %5237 = vst.msk [vmem:[#allocation3 + $0xe0] sm:$0xff] %vm1645, %v5173
          %5238 = vst.msk [vmem:[#allocation3 + $0xe8] sm:$0xff] %vm1645, %v5174
          %5239 = vst.msk [vmem:[#allocation3 + $0xf0] sm:$0xff] %vm1645, %v5175
          %5240 = vst.msk [vmem:[#allocation3 + $0xf8] sm:$0xff] %vm1645, %v5176
          %5241 = vst.msk [vmem:[#allocation3 + $0x100] sm:$0xff] %vm1645, %v5177
          %5242 = vst.msk [vmem:[#allocation3 + $0x108] sm:$0xff] %vm1645, %v5178
          %5243 = vst.msk [vmem:[#allocation3 + $0x110] sm:$0xff] %vm1645, %v5179
          %5244 = vst.msk [vmem:[#allocation3 + $0x118] sm:$0xff] %vm1645, %v5180
          %5245 = vst.msk [vmem:[#allocation3 + $0x120] sm:$0xff] %vm1645, %v5181
          %5246 = vst.msk [vmem:[#allocation3 + $0x128] sm:$0xff] %vm1645, %v5182
          %5247 = vst.msk [vmem:[#allocation3 + $0x130] sm:$0xff] %vm1645, %v5183
          %5248 = vst.msk [vmem:[#allocation3 + $0x138] sm:$0xff] %vm1645, %v5184
          %5249 = vst.msk [vmem:[#allocation3 + $0x140] sm:$0xff] %vm1645, %v5185
          %5250 = vst.msk [vmem:[#allocation3 + $0x148] sm:$0xff] %vm1645, %v5186
          %5251 = vst.msk [vmem:[#allocation3 + $0x150] sm:$0xff] %vm1645, %v5187
          %5252 = vst.msk [vmem:[#allocation3 + $0x158] sm:$0xff] %vm1645, %v5188
          %5253 = vst.msk [vmem:[#allocation3 + $0x160] sm:$0xff] %vm1645, %v5189
          %5254 = vst.msk [vmem:[#allocation3 + $0x168] sm:$0xff] %vm1645, %v5190
          %5255 = vst.msk [vmem:[#allocation3 + $0x170] sm:$0xff] %vm1645, %v5191
          %5256 = vst.msk [vmem:[#allocation3 + $0x178] sm:$0xff] %vm1645, %v5192
          %5257 = vst.msk [vmem:[#allocation3 + $0x180] sm:$0xff] %vm1645, %v5193
          %5258 = vst.msk [vmem:[#allocation3 + $0x188] sm:$0xff] %vm1645, %v5194
          %5259 = vst.msk [vmem:[#allocation3 + $0x190] sm:$0xff] %vm1645, %v5195
          %5260 = vst.msk [vmem:[#allocation3 + $0x198] sm:$0xff] %vm1645, %v5196
          %5261 = vst.msk [vmem:[#allocation3 + $0x1a0] sm:$0xff] %vm1645, %v5197
          %5262 = vst.msk [vmem:[#allocation3 + $0x1a8] sm:$0xff] %vm1645, %v5198
          %5263 = vst.msk [vmem:[#allocation3 + $0x1b0] sm:$0xff] %vm1645, %v5199
          %5264 = vst.msk [vmem:[#allocation3 + $0x1b8] sm:$0xff] %vm1645, %v5200
          %5265 = vst.msk [vmem:[#allocation3 + $0x1c0] sm:$0xff] %vm1645, %v5201
          %5266 = vst.msk [vmem:[#allocation3 + $0x1c8] sm:$0xff] %vm1645, %v5202
          %5267 = vst.msk [vmem:[#allocation3 + $0x1d0] sm:$0xff] %vm1645, %v5203
          %5268 = vst.msk [vmem:[#allocation3 + $0x1d8] sm:$0xff] %vm1645, %v5204
          %5269 = vst.msk [vmem:[#allocation3 + $0x1e0] sm:$0xff] %vm1645, %v5205
          %5270 = vst.msk [vmem:[#allocation3 + $0x1e8] sm:$0xff] %vm1645, %v5206
          %5271 = vst.msk [vmem:[#allocation3 + $0x1f0] sm:$0xff] %vm1645, %v5207
          %5272 = vst.msk [vmem:[#allocation3 + $0x1f8] sm:$0xff] %vm1645, %v5208
          %v5273 = vld [vmem:[#allocation4] sm:$0xff]
          %v5274 = vld [vmem:[#allocation4 + $0x8] sm:$0xff]
          %v5275 = vld [vmem:[#allocation4 + $0x10] sm:$0xff]
          %v5276 = vld [vmem:[#allocation4 + $0x18] sm:$0xff]
          %v5277 = vld [vmem:[#allocation4 + $0x20] sm:$0xff]
          %v5278 = vld [vmem:[#allocation4 + $0x28] sm:$0xff]
          %v5279 = vld [vmem:[#allocation4 + $0x30] sm:$0xff]
          %v5280 = vld [vmem:[#allocation4 + $0x38] sm:$0xff]
          %v5281 = vld [vmem:[#allocation4 + $0x40] sm:$0xff]
          %v5282 = vld [vmem:[#allocation4 + $0x48] sm:$0xff]
          %v5283 = vld [vmem:[#allocation4 + $0x50] sm:$0xff]
          %v5284 = vld [vmem:[#allocation4 + $0x58] sm:$0xff]
          %v5285 = vld [vmem:[#allocation4 + $0x60] sm:$0xff]
          %v5286 = vld [vmem:[#allocation4 + $0x68] sm:$0xff]
          %v5287 = vld [vmem:[#allocation4 + $0x70] sm:$0xff]
          %v5288 = vld [vmem:[#allocation4 + $0x78] sm:$0xff]
          %v5289 = vld [vmem:[#allocation4 + $0x80] sm:$0xff]
          %v5290 = vld [vmem:[#allocation4 + $0x88] sm:$0xff]
          %v5291 = vld [vmem:[#allocation4 + $0x90] sm:$0xff]
          %v5292 = vld [vmem:[#allocation4 + $0x98] sm:$0xff]
          %v5293 = vld [vmem:[#allocation4 + $0xa0] sm:$0xff]
          %v5294 = vld [vmem:[#allocation4 + $0xa8] sm:$0xff]
          %v5295 = vld [vmem:[#allocation4 + $0xb0] sm:$0xff]
          %v5296 = vld [vmem:[#allocation4 + $0xb8] sm:$0xff]
          %v5297 = vld [vmem:[#allocation4 + $0xc0] sm:$0xff]
          %v5298 = vld [vmem:[#allocation4 + $0xc8] sm:$0xff]
          %v5299 = vld [vmem:[#allocation4 + $0xd0] sm:$0xff]
          %v5300 = vld [vmem:[#allocation4 + $0xd8] sm:$0xff]
          %v5301 = vld [vmem:[#allocation4 + $0xe0] sm:$0xff]
          %v5302 = vld [vmem:[#allocation4 + $0xe8] sm:$0xff]
          %v5303 = vld [vmem:[#allocation4 + $0xf0] sm:$0xff]
          %v5304 = vld [vmem:[#allocation4 + $0xf8] sm:$0xff]
          %v5305 = vld [vmem:[#allocation4 + $0x100] sm:$0xff]
          %v5306 = vld [vmem:[#allocation4 + $0x108] sm:$0xff]
          %v5307 = vld [vmem:[#allocation4 + $0x110] sm:$0xff]
          %v5308 = vld [vmem:[#allocation4 + $0x118] sm:$0xff]
          %v5309 = vld [vmem:[#allocation4 + $0x120] sm:$0xff]
          %v5310 = vld [vmem:[#allocation4 + $0x128] sm:$0xff]
          %v5311 = vld [vmem:[#allocation4 + $0x130] sm:$0xff]
          %v5312 = vld [vmem:[#allocation4 + $0x138] sm:$0xff]
          %v5313 = vld [vmem:[#allocation4 + $0x140] sm:$0xff]
          %v5314 = vld [vmem:[#allocation4 + $0x148] sm:$0xff]
          %v5315 = vld [vmem:[#allocation4 + $0x150] sm:$0xff]
          %v5316 = vld [vmem:[#allocation4 + $0x158] sm:$0xff]
          %v5317 = vld [vmem:[#allocation4 + $0x160] sm:$0xff]
          %v5318 = vld [vmem:[#allocation4 + $0x168] sm:$0xff]
          %v5319 = vld [vmem:[#allocation4 + $0x170] sm:$0xff]
          %v5320 = vld [vmem:[#allocation4 + $0x178] sm:$0xff]
          %v5321 = vld [vmem:[#allocation4 + $0x180] sm:$0xff]
          %v5322 = vld [vmem:[#allocation4 + $0x188] sm:$0xff]
          %v5323 = vld [vmem:[#allocation4 + $0x190] sm:$0xff]
          %v5324 = vld [vmem:[#allocation4 + $0x198] sm:$0xff]
          %v5325 = vld [vmem:[#allocation4 + $0x1a0] sm:$0xff]
          %v5326 = vld [vmem:[#allocation4 + $0x1a8] sm:$0xff]
          %v5327 = vld [vmem:[#allocation4 + $0x1b0] sm:$0xff]
          %v5328 = vld [vmem:[#allocation4 + $0x1b8] sm:$0xff]
          %v5329 = vld [vmem:[#allocation4 + $0x1c0] sm:$0xff]
          %v5330 = vld [vmem:[#allocation4 + $0x1c8] sm:$0xff]
          %v5331 = vld [vmem:[#allocation4 + $0x1d0] sm:$0xff]
          %v5332 = vld [vmem:[#allocation4 + $0x1d8] sm:$0xff]
          %v5333 = vld [vmem:[#allocation4 + $0x1e0] sm:$0xff]
          %v5334 = vld [vmem:[#allocation4 + $0x1e8] sm:$0xff]
          %v5335 = vld [vmem:[#allocation4 + $0x1f0] sm:$0xff]
          %v5336 = vld [vmem:[#allocation4 + $0x1f8] sm:$0xff]
          %5338 = vset.pattern.permute.xlu0 0
          %5339 = vperm.xlu0 %5338, %v4250
          %v5340 = vpop.permute.xlu0 %5339
          %5343 = vset.pattern.permute.xlu0 0
          %5344 = vperm.xlu0 %5343, %v4252
          %v5345 = vpop.permute.xlu0 %5344
          %5348 = vset.pattern.permute.xlu0 0
          %5349 = vperm.xlu0 %5348, %v4254
          %v5350 = vpop.permute.xlu0 %5349
          %5353 = vset.pattern.permute.xlu0 0
          %5354 = vperm.xlu0 %5353, %v4256
          %v5355 = vpop.permute.xlu0 %5354
          %5358 = vset.pattern.permute.xlu0 0
          %5359 = vperm.xlu0 %5358, %v4258
          %v5360 = vpop.permute.xlu0 %5359
          %5363 = vset.pattern.permute.xlu0 0
          %5364 = vperm.xlu0 %5363, %v4260
          %v5365 = vpop.permute.xlu0 %5364
          %5368 = vset.pattern.permute.xlu0 0
          %5369 = vperm.xlu0 %5368, %v4262
          %v5370 = vpop.permute.xlu0 %5369
          %5373 = vset.pattern.permute.xlu0 0
          %5374 = vperm.xlu0 %5373, %v4264
          %v5375 = vpop.permute.xlu0 %5374
          %5378 = vset.pattern.permute.xlu0 0
          %5379 = vperm.xlu0 %5378, %v4266
          %v5380 = vpop.permute.xlu0 %5379
          %5383 = vset.pattern.permute.xlu0 0
          %5384 = vperm.xlu0 %5383, %v4268
          %v5385 = vpop.permute.xlu0 %5384
          %5388 = vset.pattern.permute.xlu0 0
          %5389 = vperm.xlu0 %5388, %v4270
          %v5390 = vpop.permute.xlu0 %5389
          %5393 = vset.pattern.permute.xlu0 0
          %5394 = vperm.xlu0 %5393, %v4272
          %v5395 = vpop.permute.xlu0 %5394
          %5398 = vset.pattern.permute.xlu0 0
          %5399 = vperm.xlu0 %5398, %v4274
          %v5400 = vpop.permute.xlu0 %5399
          %5403 = vset.pattern.permute.xlu0 0
          %5404 = vperm.xlu0 %5403, %v4276
          %v5405 = vpop.permute.xlu0 %5404
          %5408 = vset.pattern.permute.xlu0 0
          %5409 = vperm.xlu0 %5408, %v4278
          %v5410 = vpop.permute.xlu0 %5409
          %5413 = vset.pattern.permute.xlu0 0
          %5414 = vperm.xlu0 %5413, %v4280
          %v5415 = vpop.permute.xlu0 %5414
          %5418 = vset.pattern.permute.xlu0 0
          %5419 = vperm.xlu0 %5418, %v4282
          %v5420 = vpop.permute.xlu0 %5419
          %5423 = vset.pattern.permute.xlu0 0
          %5424 = vperm.xlu0 %5423, %v4284
          %v5425 = vpop.permute.xlu0 %5424
          %5428 = vset.pattern.permute.xlu0 0
          %5429 = vperm.xlu0 %5428, %v4286
          %v5430 = vpop.permute.xlu0 %5429
          %5433 = vset.pattern.permute.xlu0 0
          %5434 = vperm.xlu0 %5433, %v4288
          %v5435 = vpop.permute.xlu0 %5434
          %5438 = vset.pattern.permute.xlu0 0
          %5439 = vperm.xlu0 %5438, %v4290
          %v5440 = vpop.permute.xlu0 %5439
          %5443 = vset.pattern.permute.xlu0 0
          %5444 = vperm.xlu0 %5443, %v4292
          %v5445 = vpop.permute.xlu0 %5444
          %5448 = vset.pattern.permute.xlu0 0
          %5449 = vperm.xlu0 %5448, %v4294
          %v5450 = vpop.permute.xlu0 %5449
          %5453 = vset.pattern.permute.xlu0 0
          %5454 = vperm.xlu0 %5453, %v4296
          %v5455 = vpop.permute.xlu0 %5454
          %5458 = vset.pattern.permute.xlu0 0
          %5459 = vperm.xlu0 %5458, %v4298
          %v5460 = vpop.permute.xlu0 %5459
          %5463 = vset.pattern.permute.xlu0 0
          %5464 = vperm.xlu0 %5463, %v4300
          %v5465 = vpop.permute.xlu0 %5464
          %5468 = vset.pattern.permute.xlu0 0
          %5469 = vperm.xlu0 %5468, %v4302
          %v5470 = vpop.permute.xlu0 %5469
          %5473 = vset.pattern.permute.xlu0 0
          %5474 = vperm.xlu0 %5473, %v4304
          %v5475 = vpop.permute.xlu0 %5474
          %5478 = vset.pattern.permute.xlu0 0
          %5479 = vperm.xlu0 %5478, %v4306
          %v5480 = vpop.permute.xlu0 %5479
          %5483 = vset.pattern.permute.xlu0 0
          %5484 = vperm.xlu0 %5483, %v4308
          %v5485 = vpop.permute.xlu0 %5484
          %5488 = vset.pattern.permute.xlu0 0
          %5489 = vperm.xlu0 %5488, %v4310
          %v5490 = vpop.permute.xlu0 %5489
          %5493 = vset.pattern.permute.xlu0 0
          %5494 = vperm.xlu0 %5493, %v4312
          %v5495 = vpop.permute.xlu0 %5494
          %5498 = vset.pattern.permute.xlu0 0
          %5499 = vperm.xlu0 %5498, %v4314
          %v5500 = vpop.permute.xlu0 %5499
          %5503 = vset.pattern.permute.xlu0 0
          %5504 = vperm.xlu0 %5503, %v4316
          %v5505 = vpop.permute.xlu0 %5504
          %5508 = vset.pattern.permute.xlu0 0
          %5509 = vperm.xlu0 %5508, %v4318
          %v5510 = vpop.permute.xlu0 %5509
          %5513 = vset.pattern.permute.xlu0 0
          %5514 = vperm.xlu0 %5513, %v4320
          %v5515 = vpop.permute.xlu0 %5514
          %5518 = vset.pattern.permute.xlu0 0
          %5519 = vperm.xlu0 %5518, %v4322
          %v5520 = vpop.permute.xlu0 %5519
          %5523 = vset.pattern.permute.xlu0 0
          %5524 = vperm.xlu0 %5523, %v4324
          %v5525 = vpop.permute.xlu0 %5524
          %5528 = vset.pattern.permute.xlu0 0
          %5529 = vperm.xlu0 %5528, %v4326
          %v5530 = vpop.permute.xlu0 %5529
          %5533 = vset.pattern.permute.xlu0 0
          %5534 = vperm.xlu0 %5533, %v4328
          %v5535 = vpop.permute.xlu0 %5534
          %5538 = vset.pattern.permute.xlu0 0
          %5539 = vperm.xlu0 %5538, %v4330
          %v5540 = vpop.permute.xlu0 %5539
          %5543 = vset.pattern.permute.xlu0 0
          %5544 = vperm.xlu0 %5543, %v4332
          %v5545 = vpop.permute.xlu0 %5544
          %5548 = vset.pattern.permute.xlu0 0
          %5549 = vperm.xlu0 %5548, %v4334
          %v5550 = vpop.permute.xlu0 %5549
          %5553 = vset.pattern.permute.xlu0 0
          %5554 = vperm.xlu0 %5553, %v4336
          %v5555 = vpop.permute.xlu0 %5554
          %5558 = vset.pattern.permute.xlu0 0
          %5559 = vperm.xlu0 %5558, %v4338
          %v5560 = vpop.permute.xlu0 %5559
          %5563 = vset.pattern.permute.xlu0 0
          %5564 = vperm.xlu0 %5563, %v4340
          %v5565 = vpop.permute.xlu0 %5564
          %5568 = vset.pattern.permute.xlu0 0
          %5569 = vperm.xlu0 %5568, %v4342
          %v5570 = vpop.permute.xlu0 %5569
          %5573 = vset.pattern.permute.xlu0 0
          %5574 = vperm.xlu0 %5573, %v4344
          %v5575 = vpop.permute.xlu0 %5574
          %5578 = vset.pattern.permute.xlu0 0
          %5579 = vperm.xlu0 %5578, %v4346
          %v5580 = vpop.permute.xlu0 %5579
          %5583 = vset.pattern.permute.xlu0 0
          %5584 = vperm.xlu0 %5583, %v4348
          %v5585 = vpop.permute.xlu0 %5584
          %5588 = vset.pattern.permute.xlu0 0
          %5589 = vperm.xlu0 %5588, %v4350
          %v5590 = vpop.permute.xlu0 %5589
          %5593 = vset.pattern.permute.xlu0 0
          %5594 = vperm.xlu0 %5593, %v4352
          %v5595 = vpop.permute.xlu0 %5594
          %5598 = vset.pattern.permute.xlu0 0
          %5599 = vperm.xlu0 %5598, %v4354
          %v5600 = vpop.permute.xlu0 %5599
          %5603 = vset.pattern.permute.xlu0 0
          %5604 = vperm.xlu0 %5603, %v4356
          %v5605 = vpop.permute.xlu0 %5604
          %5608 = vset.pattern.permute.xlu0 0
          %5609 = vperm.xlu0 %5608, %v4358
          %v5610 = vpop.permute.xlu0 %5609
          %5613 = vset.pattern.permute.xlu0 0
          %5614 = vperm.xlu0 %5613, %v4360
          %v5615 = vpop.permute.xlu0 %5614
          %5618 = vset.pattern.permute.xlu0 0
          %5619 = vperm.xlu0 %5618, %v4362
          %v5620 = vpop.permute.xlu0 %5619
          %5623 = vset.pattern.permute.xlu0 0
          %5624 = vperm.xlu0 %5623, %v4364
          %v5625 = vpop.permute.xlu0 %5624
          %5628 = vset.pattern.permute.xlu0 0
          %5629 = vperm.xlu0 %5628, %v4366
          %v5630 = vpop.permute.xlu0 %5629
          %5633 = vset.pattern.permute.xlu0 0
          %5634 = vperm.xlu0 %5633, %v4368
          %v5635 = vpop.permute.xlu0 %5634
          %5638 = vset.pattern.permute.xlu0 0
          %5639 = vperm.xlu0 %5638, %v4370
          %v5640 = vpop.permute.xlu0 %5639
          %5643 = vset.pattern.permute.xlu0 0
          %5644 = vperm.xlu0 %5643, %v4372
          %v5645 = vpop.permute.xlu0 %5644
          %5648 = vset.pattern.permute.xlu0 0
          %5649 = vperm.xlu0 %5648, %v4374
          %v5650 = vpop.permute.xlu0 %5649
          %5653 = vset.pattern.permute.xlu0 0
          %5654 = vperm.xlu0 %5653, %v4376
          %v5655 = vpop.permute.xlu0 %5654
          %v5657 = vmul.f32 %v5340, %v5273
          %v5658 = vmul.f32 %v5345, %v5274
          %v5659 = vmul.f32 %v5350, %v5275
          %v5660 = vmul.f32 %v5355, %v5276
          %v5661 = vmul.f32 %v5360, %v5277
          %v5662 = vmul.f32 %v5365, %v5278
          %v5663 = vmul.f32 %v5370, %v5279
          %v5664 = vmul.f32 %v5375, %v5280
          %v5665 = vmul.f32 %v5380, %v5281
          %v5666 = vmul.f32 %v5385, %v5282
          %v5667 = vmul.f32 %v5390, %v5283
          %v5668 = vmul.f32 %v5395, %v5284
          %v5669 = vmul.f32 %v5400, %v5285
          %v5670 = vmul.f32 %v5405, %v5286
          %v5671 = vmul.f32 %v5410, %v5287
          %v5672 = vmul.f32 %v5415, %v5288
          %v5673 = vmul.f32 %v5420, %v5289
          %v5674 = vmul.f32 %v5425, %v5290
          %v5675 = vmul.f32 %v5430, %v5291
          %v5676 = vmul.f32 %v5435, %v5292
          %v5677 = vmul.f32 %v5440, %v5293
          %v5678 = vmul.f32 %v5445, %v5294
          %v5679 = vmul.f32 %v5450, %v5295
          %v5680 = vmul.f32 %v5455, %v5296
          %v5681 = vmul.f32 %v5460, %v5297
          %v5682 = vmul.f32 %v5465, %v5298
          %v5683 = vmul.f32 %v5470, %v5299
          %v5684 = vmul.f32 %v5475, %v5300
          %v5685 = vmul.f32 %v5480, %v5301
          %v5686 = vmul.f32 %v5485, %v5302
          %v5687 = vmul.f32 %v5490, %v5303
          %v5688 = vmul.f32 %v5495, %v5304
          %v5689 = vmul.f32 %v5500, %v5305
          %v5690 = vmul.f32 %v5505, %v5306
          %v5691 = vmul.f32 %v5510, %v5307
          %v5692 = vmul.f32 %v5515, %v5308
          %v5693 = vmul.f32 %v5520, %v5309
          %v5694 = vmul.f32 %v5525, %v5310
          %v5695 = vmul.f32 %v5530, %v5311
          %v5696 = vmul.f32 %v5535, %v5312
          %v5697 = vmul.f32 %v5540, %v5313
          %v5698 = vmul.f32 %v5545, %v5314
          %v5699 = vmul.f32 %v5550, %v5315
          %v5700 = vmul.f32 %v5555, %v5316
          %v5701 = vmul.f32 %v5560, %v5317
          %v5702 = vmul.f32 %v5565, %v5318
          %v5703 = vmul.f32 %v5570, %v5319
          %v5704 = vmul.f32 %v5575, %v5320
          %v5705 = vmul.f32 %v5580, %v5321
          %v5706 = vmul.f32 %v5585, %v5322
          %v5707 = vmul.f32 %v5590, %v5323
          %v5708 = vmul.f32 %v5595, %v5324
          %v5709 = vmul.f32 %v5600, %v5325
          %v5710 = vmul.f32 %v5605, %v5326
          %v5711 = vmul.f32 %v5610, %v5327
          %v5712 = vmul.f32 %v5615, %v5328
          %v5713 = vmul.f32 %v5620, %v5329
          %v5714 = vmul.f32 %v5625, %v5330
          %v5715 = vmul.f32 %v5630, %v5331
          %v5716 = vmul.f32 %v5635, %v5332
          %v5717 = vmul.f32 %v5640, %v5333
          %v5718 = vmul.f32 %v5645, %v5334
          %v5719 = vmul.f32 %v5650, %v5335
          %v5720 = vmul.f32 %v5655, %v5336
          %v5721 = vpack.c.bf16 %v4764, %v4762
          %v5722 = vpack.c.bf16 %v4768, %v4766
          %v5723 = vpack.c.bf16 %v4772, %v4770
          %v5724 = vpack.c.bf16 %v4776, %v4774
          %v5725 = vpack.c.bf16 %v4780, %v4778
          %v5726 = vpack.c.bf16 %v4784, %v4782
          %v5727 = vpack.c.bf16 %v4788, %v4786
          %v5728 = vpack.c.bf16 %v4792, %v4790
          %v5729 = vpack.c.bf16 %v4796, %v4794
          %v5730 = vpack.c.bf16 %v4800, %v4798
          %v5731 = vpack.c.bf16 %v4804, %v4802
          %v5732 = vpack.c.bf16 %v4808, %v4806
          %v5733 = vpack.c.bf16 %v4812, %v4810
          %v5734 = vpack.c.bf16 %v4816, %v4814
          %v5735 = vpack.c.bf16 %v4820, %v4818
          %v5736 = vpack.c.bf16 %v4824, %v4822
          %v5737 = vpack.c.bf16 %v4828, %v4826
          %v5738 = vpack.c.bf16 %v4832, %v4830
          %v5739 = vpack.c.bf16 %v4836, %v4834
          %v5740 = vpack.c.bf16 %v4840, %v4838
          %v5741 = vpack.c.bf16 %v4844, %v4842
          %v5742 = vpack.c.bf16 %v4848, %v4846
          %v5743 = vpack.c.bf16 %v4852, %v4850
          %v5744 = vpack.c.bf16 %v4856, %v4854
          %v5745 = vpack.c.bf16 %v4860, %v4858
          %v5746 = vpack.c.bf16 %v4864, %v4862
          %v5747 = vpack.c.bf16 %v4868, %v4866
          %v5748 = vpack.c.bf16 %v4872, %v4870
          %v5749 = vpack.c.bf16 %v4876, %v4874
          %v5750 = vpack.c.bf16 %v4880, %v4878
          %v5751 = vpack.c.bf16 %v4884, %v4882
          %v5752 = vpack.c.bf16 %v4888, %v4886
          %5753 = vmatprep.subr.bf16.mxu0 0
          %5754 = vmatpush1.bf16.msra.mxu0 %v3166
          %5755 = vmatprep.subr.bf16.mxu0 0
          %5756 = vmatpush1.bf16.msra.mxu0 %v3167
          %5757 = vmatprep.subr.bf16.mxu0 0
          %5758 = vmatpush1.bf16.msra.mxu0 %v3168
          %5759 = vmatprep.subr.bf16.mxu0 0
          %5760 = vmatpush1.bf16.msra.mxu0 %v3169
          %5761 = vmatprep.subr.bf16.mxu0 0
          %5762 = vmatpush1.bf16.msra.mxu0 %v3170
          %5763 = vmatprep.subr.bf16.mxu0 0
          %5764 = vmatpush1.bf16.msra.mxu0 %v3171
          %5765 = vmatprep.subr.bf16.mxu0 0
          %5766 = vmatpush1.bf16.msra.mxu0 %v3172
          %5767 = vmatprep.subr.bf16.mxu0 0
          %5768 = vmatpush1.bf16.msra.mxu0 %v3173
          %5769 = vmatprep.subr.bf16.mxu0 0
          %5770 = vmatpush1.bf16.msra.mxu0 0
          %5771 = vmatprep.subr.bf16.mxu0 0
          %5772 = vmatpush1.bf16.msra.mxu0 0
          %5773 = vmatprep.subr.bf16.mxu0 0
          %5774 = vmatpush1.bf16.msra.mxu0 0
          %5775 = vmatprep.subr.bf16.mxu0 0
          %5776 = vmatpush1.bf16.msra.mxu0 0
          %5777 = vmatprep.subr.bf16.mxu0 0
          %5778 = vmatpush1.bf16.msra.mxu0 0
          %5779 = vmatprep.subr.bf16.mxu0 0
          %5780 = vmatpush1.bf16.msra.mxu0 0
          %5781 = vmatprep.subr.bf16.mxu0 0
          %5782 = vmatpush1.bf16.msra.mxu0 0
          %5783 = vmatprep.subr.bf16.mxu0 0
          %5784 = vmatpush1.bf16.msra.mxu0 0
          %5785 = vmatprep.mubr.bf16.mxu0 0
          %5786 = vmatmul.mubr.bf16.gmra.mrb[0].mxu0 %v5721
          %v5787 = vpop.f32.mrb[0].mxu0
          %v5788 = vadd.f32 0.0, %v5787
          %v5789 = vpop.f32.mrb[0].mxu0
          %v5790 = vpop.f32.mrb[0].mxu0
          %v5791 = vadd.f32 0.0, %v5790
          %v5792 = vpop.f32.mrb[0].mxu0
          %5793 = vmatprep.mubr.bf16.mxu0 0
          %5794 = vmatmul.mubr.bf16.gmra.mrb[0].mxu0 %v5722
          %v5795 = vpop.f32.mrb[0].mxu0
          %v5796 = vadd.f32 0.0, %v5795
          %v5797 = vpop.f32.mrb[0].mxu0
          %v5798 = vpop.f32.mrb[0].mxu0
          %v5799 = vadd.f32 0.0, %v5798
          %v5800 = vpop.f32.mrb[0].mxu0
          %5801 = vmatprep.mubr.bf16.mxu0 0
          %5802 = vmatmul.mubr.bf16.gmra.mrb[0].mxu0 %v5723
          %v5803 = vpop.f32.mrb[0].mxu0
          %v5804 = vadd.f32 0.0, %v5803
          %v5805 = vpop.f32.mrb[0].mxu0
          %v5806 = vpop.f32.mrb[0].mxu0
          %v5807 = vadd.f32 0.0, %v5806
          %v5808 = vpop.f32.mrb[0].mxu0
          %5809 = vmatprep.mubr.bf16.mxu0 0
          %5810 = vmatmul.mubr.bf16.gmra.mrb[0].mxu0 %v5724
          %v5811 = vpop.f32.mrb[0].mxu0
          %v5812 = vadd.f32 0.0, %v5811
          %v5813 = vpop.f32.mrb[0].mxu0
          %v5814 = vpop.f32.mrb[0].mxu0
          %v5815 = vadd.f32 0.0, %v5814
          %v5816 = vpop.f32.mrb[0].mxu0
          %5817 = vmatprep.mubr.bf16.mxu0 0
          %5818 = vmatmul.mubr.bf16.gmra.mrb[0].mxu0 %v5725
          %v5819 = vpop.f32.mrb[0].mxu0
          %v5820 = vadd.f32 0.0, %v5819
          %v5821 = vpop.f32.mrb[0].mxu0
          %v5822 = vpop.f32.mrb[0].mxu0
          %v5823 = vadd.f32 0.0, %v5822
          %v5824 = vpop.f32.mrb[0].mxu0
          %5825 = vmatprep.mubr.bf16.mxu0 0
          %5826 = vmatmul.mubr.bf16.gmra.mrb[0].mxu0 %v5726
          %v5827 = vpop.f32.mrb[0].mxu0
          %v5828 = vadd.f32 0.0, %v5827
          %v5829 = vpop.f32.mrb[0].mxu0
          %v5830 = vpop.f32.mrb[0].mxu0
          %v5831 = vadd.f32 0.0, %v5830
          %v5832 = vpop.f32.mrb[0].mxu0
          %5833 = vmatprep.mubr.bf16.mxu0 0
          %5834 = vmatmul.mubr.bf16.gmra.mrb[0].mxu0 %v5727
          %v5835 = vpop.f32.mrb[0].mxu0
          %v5836 = vadd.f32 0.0, %v5835
          %v5837 = vpop.f32.mrb[0].mxu0
          %v5838 = vpop.f32.mrb[0].mxu0
          %v5839 = vadd.f32 0.0, %v5838
          %v5840 = vpop.f32.mrb[0].mxu0
          %5841 = vmatprep.mubr.bf16.mxu0 0
          %5842 = vmatmul.mubr.bf16.gmra.mrb[0].mxu0 %v5728
          %v5843 = vpop.f32.mrb[0].mxu0
          %v5844 = vadd.f32 0.0, %v5843
          %v5845 = vpop.f32.mrb[0].mxu0
          %v5846 = vpop.f32.mrb[0].mxu0
          %v5847 = vadd.f32 0.0, %v5846
          %v5848 = vpop.f32.mrb[0].mxu0
          %5849 = vdwg.mxu0
          %5850 = vmatprep.subr.bf16.mxu0 0
          %5851 = vmatpush1.bf16.msra.mxu0 %v3174
          %5852 = vmatprep.subr.bf16.mxu0 0
          %5853 = vmatpush1.bf16.msra.mxu0 %v3175
          %5854 = vmatprep.subr.bf16.mxu0 0
          %5855 = vmatpush1.bf16.msra.mxu0 %v3176
          %5856 = vmatprep.subr.bf16.mxu0 0
          %5857 = vmatpush1.bf16.msra.mxu0 %v3177
          %5858 = vmatprep.subr.bf16.mxu0 0
          %5859 = vmatpush1.bf16.msra.mxu0 %v3178
          %5860 = vmatprep.subr.bf16.mxu0 0
          %5861 = vmatpush1.bf16.msra.mxu0 %v3179
          %5862 = vmatprep.subr.bf16.mxu0 0
          %5863 = vmatpush1.bf16.msra.mxu0 %v3180
          %5864 = vmatprep.subr.bf16.mxu0 0
          %5865 = vmatpush1.bf16.msra.mxu0 %v3181
          %5866 = vmatprep.subr.bf16.mxu0 0
          %5867 = vmatpush1.bf16.msra.mxu0 0
          %5868 = vmatprep.subr.bf16.mxu0 0
          %5869 = vmatpush1.bf16.msra.mxu0 0
          %5870 = vmatprep.subr.bf16.mxu0 0
          %5871 = vmatpush1.bf16.msra.mxu0 0
          %5872 = vmatprep.subr.bf16.mxu0 0
          %5873 = vmatpush1.bf16.msra.mxu0 0
          %5874 = vmatprep.subr.bf16.mxu0 0
          %5875 = vmatpush1.bf16.msra.mxu0 0
          %5876 = vmatprep.subr.bf16.mxu0 0
          %5877 = vmatpush1.bf16.msra.mxu0 0
          %5878 = vmatprep.subr.bf16.mxu0 0
          %5879 = vmatpush1.bf16.msra.mxu0 0
          %5880 = vmatprep.subr.bf16.mxu0 0
          %5881 = vmatpush1.bf16.msra.mxu0 0
          %5882 = vmatprep.mubr.bf16.mxu0 0
          %5883 = vmatmul.mubr.bf16.gmra.mrb[0].mxu0 %v5729
          %v5884 = vpop.f32.mrb[0].mxu0
          %v5885 = vadd.f32 0.0, %v5884
          %v5886 = vpop.f32.mrb[0].mxu0
          %v5887 = vpop.f32.mrb[0].mxu0
          %v5888 = vadd.f32 0.0, %v5887
          %v5889 = vpop.f32.mrb[0].mxu0
          %5890 = vmatprep.mubr.bf16.mxu0 0
          %5891 = vmatmul.mubr.bf16.gmra.mrb[0].mxu0 %v5730
          %v5892 = vpop.f32.mrb[0].mxu0
          %v5893 = vadd.f32 0.0, %v5892
          %v5894 = vpop.f32.mrb[0].mxu0
          %v5895 = vpop.f32.mrb[0].mxu0
          %v5896 = vadd.f32 0.0, %v5895
          %v5897 = vpop.f32.mrb[0].mxu0
          %5898 = vmatprep.mubr.bf16.mxu0 0
          %5899 = vmatmul.mubr.bf16.gmra.mrb[0].mxu0 %v5731
          %v5900 = vpop.f32.mrb[0].mxu0
          %v5901 = vadd.f32 0.0, %v5900
          %v5902 = vpop.f32.mrb[0].mxu0
          %v5903 = vpop.f32.mrb[0].mxu0
          %v5904 = vadd.f32 0.0, %v5903
          %v5905 = vpop.f32.mrb[0].mxu0
          %5906 = vmatprep.mubr.bf16.mxu0 0
          %5907 = vmatmul.mubr.bf16.gmra.mrb[0].mxu0 %v5732
          %v5908 = vpop.f32.mrb[0].mxu0
          %v5909 = vadd.f32 0.0, %v5908
          %v5910 = vpop.f32.mrb[0].mxu0
          %v5911 = vpop.f32.mrb[0].mxu0
          %v5912 = vadd.f32 0.0, %v5911
          %v5913 = vpop.f32.mrb[0].mxu0
          %5914 = vmatprep.mubr.bf16.mxu0 0
          %5915 = vmatmul.mubr.bf16.gmra.mrb[0].mxu0 %v5733
          %v5916 = vpop.f32.mrb[0].mxu0
          %v5917 = vadd.f32 0.0, %v5916
          %v5918 = vpop.f32.mrb[0].mxu0
          %v5919 = vpop.f32.mrb[0].mxu0
          %v5920 = vadd.f32 0.0, %v5919
          %v5921 = vpop.f32.mrb[0].mxu0
          %5922 = vmatprep.mubr.bf16.mxu0 0
          %5923 = vmatmul.mubr.bf16.gmra.mrb[0].mxu0 %v5734
          %v5924 = vpop.f32.mrb[0].mxu0
          %v5925 = vadd.f32 0.0, %v5924
          %v5926 = vpop.f32.mrb[0].mxu0
          %v5927 = vpop.f32.mrb[0].mxu0
          %v5928 = vadd.f32 0.0, %v5927
          %v5929 = vpop.f32.mrb[0].mxu0
          %5930 = vmatprep.mubr.bf16.mxu0 0
          %5931 = vmatmul.mubr.bf16.gmra.mrb[0].mxu0 %v5735
          %v5932 = vpop.f32.mrb[0].mxu0
          %v5933 = vadd.f32 0.0, %v5932
          %v5934 = vpop.f32.mrb[0].mxu0
          %v5935 = vpop.f32.mrb[0].mxu0
          %v5936 = vadd.f32 0.0, %v5935
          %v5937 = vpop.f32.mrb[0].mxu0
          %5938 = vmatprep.mubr.bf16.mxu0 0
          %5939 = vmatmul.mubr.bf16.gmra.mrb[0].mxu0 %v5736
          %v5940 = vpop.f32.mrb[0].mxu0
          %v5941 = vadd.f32 0.0, %v5940
          %v5942 = vpop.f32.mrb[0].mxu0
          %v5943 = vpop.f32.mrb[0].mxu0
          %v5944 = vadd.f32 0.0, %v5943
          %v5945 = vpop.f32.mrb[0].mxu0
          %5946 = vdwg.mxu0
          %5947 = vmatprep.subr.bf16.mxu0 0
          %5948 = vmatpush1.bf16.msra.mxu0 %v3182
          %5949 = vmatprep.subr.bf16.mxu0 0
          %5950 = vmatpush1.bf16.msra.mxu0 %v3183
          %5951 = vmatprep.subr.bf16.mxu0 0
          %5952 = vmatpush1.bf16.msra.mxu0 %v3184
          %5953 = vmatprep.subr.bf16.mxu0 0
          %5954 = vmatpush1.bf16.msra.mxu0 %v3185
          %5955 = vmatprep.subr.bf16.mxu0 0
          %5956 = vmatpush1.bf16.msra.mxu0 %v3186
          %5957 = vmatprep.subr.bf16.mxu0 0
          %5958 = vmatpush1.bf16.msra.mxu0 %v3187
          %5959 = vmatprep.subr.bf16.mxu0 0
          %5960 = vmatpush1.bf16.msra.mxu0 %v3188
          %5961 = vmatprep.subr.bf16.mxu0 0
          %5962 = vmatpush1.bf16.msra.mxu0 %v3189
          %5963 = vmatprep.subr.bf16.mxu0 0
          %5964 = vmatpush1.bf16.msra.mxu0 0
          %5965 = vmatprep.subr.bf16.mxu0 0
          %5966 = vmatpush1.bf16.msra.mxu0 0
          %5967 = vmatprep.subr.bf16.mxu0 0
          %5968 = vmatpush1.bf16.msra.mxu0 0
          %5969 = vmatprep.subr.bf16.mxu0 0
          %5970 = vmatpush1.bf16.msra.mxu0 0
          %5971 = vmatprep.subr.bf16.mxu0 0
          %5972 = vmatpush1.bf16.msra.mxu0 0
          %5973 = vmatprep.subr.bf16.mxu0 0
          %5974 = vmatpush1.bf16.msra.mxu0 0
          %5975 = vmatprep.subr.bf16.mxu0 0
          %5976 = vmatpush1.bf16.msra.mxu0 0
          %5977 = vmatprep.subr.bf16.mxu0 0
          %5978 = vmatpush1.bf16.msra.mxu0 0
          %5979 = vmatprep.mubr.bf16.mxu0 0
          %5980 = vmatmul.mubr.bf16.gmra.mrb[0].mxu0 %v5737
          %v5981 = vpop.f32.mrb[0].mxu0
          %v5982 = vadd.f32 0.0, %v5981
          %v5983 = vpop.f32.mrb[0].mxu0
          %v5984 = vpop.f32.mrb[0].mxu0
          %v5985 = vadd.f32 0.0, %v5984
          %v5986 = vpop.f32.mrb[0].mxu0
          %5987 = vmatprep.mubr.bf16.mxu0 0
          %5988 = vmatmul.mubr.bf16.gmra.mrb[0].mxu0 %v5738
          %v5989 = vpop.f32.mrb[0].mxu0
          %v5990 = vadd.f32 0.0, %v5989
          %v5991 = vpop.f32.mrb[0].mxu0
          %v5992 = vpop.f32.mrb[0].mxu0
          %v5993 = vadd.f32 0.0, %v5992
          %v5994 = vpop.f32.mrb[0].mxu0
          %5995 = vmatprep.mubr.bf16.mxu0 0
          %5996 = vmatmul.mubr.bf16.gmra.mrb[0].mxu0 %v5739
          %v5997 = vpop.f32.mrb[0].mxu0
          %v5998 = vadd.f32 0.0, %v5997
          %v5999 = vpop.f32.mrb[0].mxu0
          %v6000 = vpop.f32.mrb[0].mxu0
          %v6001 = vadd.f32 0.0, %v6000
          %v6002 = vpop.f32.mrb[0].mxu0
          %6003 = vmatprep.mubr.bf16.mxu0 0
          %6004 = vmatmul.mubr.bf16.gmra.mrb[0].mxu0 %v5740
          %v6005 = vpop.f32.mrb[0].mxu0
          %v6006 = vadd.f32 0.0, %v6005
          %v6007 = vpop.f32.mrb[0].mxu0
          %v6008 = vpop.f32.mrb[0].mxu0
          %v6009 = vadd.f32 0.0, %v6008
          %v6010 = vpop.f32.mrb[0].mxu0
          %6011 = vmatprep.mubr.bf16.mxu0 0
          %6012 = vmatmul.mubr.bf16.gmra.mrb[0].mxu0 %v5741
          %v6013 = vpop.f32.mrb[0].mxu0
          %v6014 = vadd.f32 0.0, %v6013
          %v6015 = vpop.f32.mrb[0].mxu0
          %v6016 = vpop.f32.mrb[0].mxu0
          %v6017 = vadd.f32 0.0, %v6016
          %v6018 = vpop.f32.mrb[0].mxu0
          %6019 = vmatprep.mubr.bf16.mxu0 0
          %6020 = vmatmul.mubr.bf16.gmra.mrb[0].mxu0 %v5742
          %v6021 = vpop.f32.mrb[0].mxu0
          %v6022 = vadd.f32 0.0, %v6021
          %v6023 = vpop.f32.mrb[0].mxu0
          %v6024 = vpop.f32.mrb[0].mxu0
          %v6025 = vadd.f32 0.0, %v6024
          %v6026 = vpop.f32.mrb[0].mxu0
          %6027 = vmatprep.mubr.bf16.mxu0 0
          %6028 = vmatmul.mubr.bf16.gmra.mrb[0].mxu0 %v5743
          %v6029 = vpop.f32.mrb[0].mxu0
          %v6030 = vadd.f32 0.0, %v6029
          %v6031 = vpop.f32.mrb[0].mxu0
          %v6032 = vpop.f32.mrb[0].mxu0
          %v6033 = vadd.f32 0.0, %v6032
          %v6034 = vpop.f32.mrb[0].mxu0
          %6035 = vmatprep.mubr.bf16.mxu0 0
          %6036 = vmatmul.mubr.bf16.gmra.mrb[0].mxu0 %v5744
          %v6037 = vpop.f32.mrb[0].mxu0
          %v6038 = vadd.f32 0.0, %v6037
          %v6039 = vpop.f32.mrb[0].mxu0
          %v6040 = vpop.f32.mrb[0].mxu0
          %v6041 = vadd.f32 0.0, %v6040
          %v6042 = vpop.f32.mrb[0].mxu0
          %6043 = vdwg.mxu0
          %6044 = vmatprep.subr.bf16.mxu0 0
          %6045 = vmatpush1.bf16.msra.mxu0 %v3190
          %6046 = vmatprep.subr.bf16.mxu0 0
          %6047 = vmatpush1.bf16.msra.mxu0 %v3191
          %6048 = vmatprep.subr.bf16.mxu0 0
          %6049 = vmatpush1.bf16.msra.mxu0 %v3192
          %6050 = vmatprep.subr.bf16.mxu0 0
          %6051 = vmatpush1.bf16.msra.mxu0 %v3193
          %6052 = vmatprep.subr.bf16.mxu0 0
          %6053 = vmatpush1.bf16.msra.mxu0 %v3194
          %6054 = vmatprep.subr.bf16.mxu0 0
          %6055 = vmatpush1.bf16.msra.mxu0 %v3195
          %6056 = vmatprep.subr.bf16.mxu0 0
          %6057 = vmatpush1.bf16.msra.mxu0 %v3196
          %6058 = vmatprep.subr.bf16.mxu0 0
          %6059 = vmatpush1.bf16.msra.mxu0 %v3197
          %6060 = vmatprep.subr.bf16.mxu0 0
          %6061 = vmatpush1.bf16.msra.mxu0 0
          %6062 = vmatprep.subr.bf16.mxu0 0
          %6063 = vmatpush1.bf16.msra.mxu0 0
          %6064 = vmatprep.subr.bf16.mxu0 0
          %6065 = vmatpush1.bf16.msra.mxu0 0
          %6066 = vmatprep.subr.bf16.mxu0 0
          %6067 = vmatpush1.bf16.msra.mxu0 0
          %6068 = vmatprep.subr.bf16.mxu0 0
          %6069 = vmatpush1.bf16.msra.mxu0 0
          %6070 = vmatprep.subr.bf16.mxu0 0
          %6071 = vmatpush1.bf16.msra.mxu0 0
          %6072 = vmatprep.subr.bf16.mxu0 0
          %6073 = vmatpush1.bf16.msra.mxu0 0
          %6074 = vmatprep.subr.bf16.mxu0 0
          %6075 = vmatpush1.bf16.msra.mxu0 0
          %6076 = vmatprep.mubr.bf16.mxu0 0
          %6077 = vmatmul.mubr.bf16.gmra.mrb[0].mxu0 %v5745
          %v6078 = vpop.f32.mrb[0].mxu0
          %v6079 = vadd.f32 0.0, %v6078
          %v6080 = vpop.f32.mrb[0].mxu0
          %v6081 = vpop.f32.mrb[0].mxu0
          %v6082 = vadd.f32 0.0, %v6081
          %v6083 = vpop.f32.mrb[0].mxu0
          %6084 = vmatprep.mubr.bf16.mxu0 0
          %6085 = vmatmul.mubr.bf16.gmra.mrb[0].mxu0 %v5746
          %v6086 = vpop.f32.mrb[0].mxu0
          %v6087 = vadd.f32 0.0, %v6086
          %v6088 = vpop.f32.mrb[0].mxu0
          %v6089 = vpop.f32.mrb[0].mxu0
          %v6090 = vadd.f32 0.0, %v6089
          %v6091 = vpop.f32.mrb[0].mxu0
          %6092 = vmatprep.mubr.bf16.mxu0 0
          %6093 = vmatmul.mubr.bf16.gmra.mrb[0].mxu0 %v5747
          %v6094 = vpop.f32.mrb[0].mxu0
          %v6095 = vadd.f32 0.0, %v6094
          %v6096 = vpop.f32.mrb[0].mxu0
          %v6097 = vpop.f32.mrb[0].mxu0
          %v6098 = vadd.f32 0.0, %v6097
          %v6099 = vpop.f32.mrb[0].mxu0
          %6100 = vmatprep.mubr.bf16.mxu0 0
          %6101 = vmatmul.mubr.bf16.gmra.mrb[0].mxu0 %v5748
          %v6102 = vpop.f32.mrb[0].mxu0
          %v6103 = vadd.f32 0.0, %v6102
          %v6104 = vpop.f32.mrb[0].mxu0
          %v6105 = vpop.f32.mrb[0].mxu0
          %v6106 = vadd.f32 0.0, %v6105
          %v6107 = vpop.f32.mrb[0].mxu0
          %6108 = vmatprep.mubr.bf16.mxu0 0
          %6109 = vmatmul.mubr.bf16.gmra.mrb[0].mxu0 %v5749
          %v6110 = vpop.f32.mrb[0].mxu0
          %v6111 = vadd.f32 0.0, %v6110
          %v6112 = vpop.f32.mrb[0].mxu0
          %v6113 = vpop.f32.mrb[0].mxu0
          %v6114 = vadd.f32 0.0, %v6113
          %v6115 = vpop.f32.mrb[0].mxu0
          %6116 = vmatprep.mubr.bf16.mxu0 0
          %6117 = vmatmul.mubr.bf16.gmra.mrb[0].mxu0 %v5750
          %v6118 = vpop.f32.mrb[0].mxu0
          %v6119 = vadd.f32 0.0, %v6118
          %v6120 = vpop.f32.mrb[0].mxu0
          %v6121 = vpop.f32.mrb[0].mxu0
          %v6122 = vadd.f32 0.0, %v6121
          %v6123 = vpop.f32.mrb[0].mxu0
          %6124 = vmatprep.mubr.bf16.mxu0 0
          %6125 = vmatmul.mubr.bf16.gmra.mrb[0].mxu0 %v5751
          %v6126 = vpop.f32.mrb[0].mxu0
          %v6127 = vadd.f32 0.0, %v6126
          %v6128 = vpop.f32.mrb[0].mxu0
          %v6129 = vpop.f32.mrb[0].mxu0
          %v6130 = vadd.f32 0.0, %v6129
          %v6131 = vpop.f32.mrb[0].mxu0
          %6132 = vmatprep.mubr.bf16.mxu0 0
          %6133 = vmatmul.mubr.bf16.gmra.mrb[0].mxu0 %v5752
          %v6134 = vpop.f32.mrb[0].mxu0
          %v6135 = vadd.f32 0.0, %v6134
          %v6136 = vpop.f32.mrb[0].mxu0
          %v6137 = vpop.f32.mrb[0].mxu0
          %v6138 = vadd.f32 0.0, %v6137
          %v6139 = vpop.f32.mrb[0].mxu0
          %6140 = vdwg.mxu0
          %v6141 = vadd.f32 %v5657, %v5788
          %v6142 = vadd.f32 %v5658, %v5791
          %v6143 = vadd.f32 %v5659, %v5796
          %v6144 = vadd.f32 %v5660, %v5799
          %v6145 = vadd.f32 %v5661, %v5804
          %v6146 = vadd.f32 %v5662, %v5807
          %v6147 = vadd.f32 %v5663, %v5812
          %v6148 = vadd.f32 %v5664, %v5815
          %v6149 = vadd.f32 %v5665, %v5820
          %v6150 = vadd.f32 %v5666, %v5823
          %v6151 = vadd.f32 %v5667, %v5828
          %v6152 = vadd.f32 %v5668, %v5831
          %v6153 = vadd.f32 %v5669, %v5836
          %v6154 = vadd.f32 %v5670, %v5839
          %v6155 = vadd.f32 %v5671, %v5844
          %v6156 = vadd.f32 %v5672, %v5847
          %v6157 = vadd.f32 %v5673, %v5885
          %v6158 = vadd.f32 %v5674, %v5888
          %v6159 = vadd.f32 %v5675, %v5893
          %v6160 = vadd.f32 %v5676, %v5896
          %v6161 = vadd.f32 %v5677, %v5901
          %v6162 = vadd.f32 %v5678, %v5904
          %v6163 = vadd.f32 %v5679, %v5909
          %v6164 = vadd.f32 %v5680, %v5912
          %v6165 = vadd.f32 %v5681, %v5917
          %v6166 = vadd.f32 %v5682, %v5920
          %v6167 = vadd.f32 %v5683, %v5925
          %v6168 = vadd.f32 %v5684, %v5928
          %v6169 = vadd.f32 %v5685, %v5933
          %v6170 = vadd.f32 %v5686, %v5936
          %v6171 = vadd.f32 %v5687, %v5941
          %v6172 = vadd.f32 %v5688, %v5944
          %v6173 = vadd.f32 %v5689, %v5982
          %v6174 = vadd.f32 %v5690, %v5985
          %v6175 = vadd.f32 %v5691, %v5990
          %v6176 = vadd.f32 %v5692, %v5993
          %v6177 = vadd.f32 %v5693, %v5998
          %v6178 = vadd.f32 %v5694, %v6001
          %v6179 = vadd.f32 %v5695, %v6006
          %v6180 = vadd.f32 %v5696, %v6009
          %v6181 = vadd.f32 %v5697, %v6014
          %v6182 = vadd.f32 %v5698, %v6017
          %v6183 = vadd.f32 %v5699, %v6022
          %v6184 = vadd.f32 %v5700, %v6025
          %v6185 = vadd.f32 %v5701, %v6030
          %v6186 = vadd.f32 %v5702, %v6033
          %v6187 = vadd.f32 %v5703, %v6038
          %v6188 = vadd.f32 %v5704, %v6041
          %v6189 = vadd.f32 %v5705, %v6079
          %v6190 = vadd.f32 %v5706, %v6082
          %v6191 = vadd.f32 %v5707, %v6087
          %v6192 = vadd.f32 %v5708, %v6090
          %v6193 = vadd.f32 %v5709, %v6095
          %v6194 = vadd.f32 %v5710, %v6098
          %v6195 = vadd.f32 %v5711, %v6103
          %v6196 = vadd.f32 %v5712, %v6106
          %v6197 = vadd.f32 %v5713, %v6111
          %v6198 = vadd.f32 %v5714, %v6114
          %v6199 = vadd.f32 %v5715, %v6119
          %v6200 = vadd.f32 %v5716, %v6122
          %v6201 = vadd.f32 %v5717, %v6127
          %v6202 = vadd.f32 %v5718, %v6130
          %v6203 = vadd.f32 %v5719, %v6135
          %v6204 = vadd.f32 %v5720, %v6138
          %6205 = vst.msk [vmem:[#allocation4] sm:$0xff] %vm1774, %v6141
          %6206 = vst.msk [vmem:[#allocation4 + $0x8] sm:$0xff] %vm1774, %v6142
          %6207 = vst.msk [vmem:[#allocation4 + $0x10] sm:$0xff] %vm1774, %v6143
          %6208 = vst.msk [vmem:[#allocation4 + $0x18] sm:$0xff] %vm1774, %v6144
          %6209 = vst.msk [vmem:[#allocation4 + $0x20] sm:$0xff] %vm1774, %v6145
          %6210 = vst.msk [vmem:[#allocation4 + $0x28] sm:$0xff] %vm1774, %v6146
          %6211 = vst.msk [vmem:[#allocation4 + $0x30] sm:$0xff] %vm1774, %v6147
          %6212 = vst.msk [vmem:[#allocation4 + $0x38] sm:$0xff] %vm1774, %v6148
          %6213 = vst.msk [vmem:[#allocation4 + $0x40] sm:$0xff] %vm1774, %v6149
          %6214 = vst.msk [vmem:[#allocation4 + $0x48] sm:$0xff] %vm1774, %v6150
          %6215 = vst.msk [vmem:[#allocation4 + $0x50] sm:$0xff] %vm1774, %v6151
          %6216 = vst.msk [vmem:[#allocation4 + $0x58] sm:$0xff] %vm1774, %v6152
          %6217 = vst.msk [vmem:[#allocation4 + $0x60] sm:$0xff] %vm1774, %v6153
          %6218 = vst.msk [vmem:[#allocation4 + $0x68] sm:$0xff] %vm1774, %v6154
          %6219 = vst.msk [vmem:[#allocation4 + $0x70] sm:$0xff] %vm1774, %v6155
          %6220 = vst.msk [vmem:[#allocation4 + $0x78] sm:$0xff] %vm1774, %v6156
          %6221 = vst.msk [vmem:[#allocation4 + $0x80] sm:$0xff] %vm1774, %v6157
          %6222 = vst.msk [vmem:[#allocation4 + $0x88] sm:$0xff] %vm1774, %v6158
          %6223 = vst.msk [vmem:[#allocation4 + $0x90] sm:$0xff] %vm1774, %v6159
          %6224 = vst.msk [vmem:[#allocation4 + $0x98] sm:$0xff] %vm1774, %v6160
          %6225 = vst.msk [vmem:[#allocation4 + $0xa0] sm:$0xff] %vm1774, %v6161
          %6226 = vst.msk [vmem:[#allocation4 + $0xa8] sm:$0xff] %vm1774, %v6162
          %6227 = vst.msk [vmem:[#allocation4 + $0xb0] sm:$0xff] %vm1774, %v6163
          %6228 = vst.msk [vmem:[#allocation4 + $0xb8] sm:$0xff] %vm1774, %v6164
          %6229 = vst.msk [vmem:[#allocation4 + $0xc0] sm:$0xff] %vm1774, %v6165
          %6230 = vst.msk [vmem:[#allocation4 + $0xc8] sm:$0xff] %vm1774, %v6166
          %6231 = vst.msk [vmem:[#allocation4 + $0xd0] sm:$0xff] %vm1774, %v6167
          %6232 = vst.msk [vmem:[#allocation4 + $0xd8] sm:$0xff] %vm1774, %v6168
          %6233 = vst.msk [vmem:[#allocation4 + $0xe0] sm:$0xff] %vm1774, %v6169
          %6234 = vst.msk [vmem:[#allocation4 + $0xe8] sm:$0xff] %vm1774, %v6170
          %6235 = vst.msk [vmem:[#allocation4 + $0xf0] sm:$0xff] %vm1774, %v6171
          %6236 = vst.msk [vmem:[#allocation4 + $0xf8] sm:$0xff] %vm1774, %v6172
          %6237 = vst.msk [vmem:[#allocation4 + $0x100] sm:$0xff] %vm1774, %v6173
          %6238 = vst.msk [vmem:[#allocation4 + $0x108] sm:$0xff] %vm1774, %v6174
          %6239 = vst.msk [vmem:[#allocation4 + $0x110] sm:$0xff] %vm1774, %v6175
          %6240 = vst.msk [vmem:[#allocation4 + $0x118] sm:$0xff] %vm1774, %v6176
          %6241 = vst.msk [vmem:[#allocation4 + $0x120] sm:$0xff] %vm1774, %v6177
          %6242 = vst.msk [vmem:[#allocation4 + $0x128] sm:$0xff] %vm1774, %v6178
          %6243 = vst.msk [vmem:[#allocation4 + $0x130] sm:$0xff] %vm1774, %v6179
          %6244 = vst.msk [vmem:[#allocation4 + $0x138] sm:$0xff] %vm1774, %v6180
          %6245 = vst.msk [vmem:[#allocation4 + $0x140] sm:$0xff] %vm1774, %v6181
          %6246 = vst.msk [vmem:[#allocation4 + $0x148] sm:$0xff] %vm1774, %v6182
          %6247 = vst.msk [vmem:[#allocation4 + $0x150] sm:$0xff] %vm1774, %v6183
          %6248 = vst.msk [vmem:[#allocation4 + $0x158] sm:$0xff] %vm1774, %v6184
          %6249 = vst.msk [vmem:[#allocation4 + $0x160] sm:$0xff] %vm1774, %v6185
          %6250 = vst.msk [vmem:[#allocation4 + $0x168] sm:$0xff] %vm1774, %v6186
          %6251 = vst.msk [vmem:[#allocation4 + $0x170] sm:$0xff] %vm1774, %v6187
          %6252 = vst.msk [vmem:[#allocation4 + $0x178] sm:$0xff] %vm1774, %v6188
          %6253 = vst.msk [vmem:[#allocation4 + $0x180] sm:$0xff] %vm1774, %v6189
          %6254 = vst.msk [vmem:[#allocation4 + $0x188] sm:$0xff] %vm1774, %v6190
          %6255 = vst.msk [vmem:[#allocation4 + $0x190] sm:$0xff] %vm1774, %v6191
          %6256 = vst.msk [vmem:[#allocation4 + $0x198] sm:$0xff] %vm1774, %v6192
          %6257 = vst.msk [vmem:[#allocation4 + $0x1a0] sm:$0xff] %vm1774, %v6193
          %6258 = vst.msk [vmem:[#allocation4 + $0x1a8] sm:$0xff] %vm1774, %v6194
          %6259 = vst.msk [vmem:[#allocation4 + $0x1b0] sm:$0xff] %vm1774, %v6195
          %6260 = vst.msk [vmem:[#allocation4 + $0x1b8] sm:$0xff] %vm1774, %v6196
          %6261 = vst.msk [vmem:[#allocation4 + $0x1c0] sm:$0xff] %vm1774, %v6197
          %6262 = vst.msk [vmem:[#allocation4 + $0x1c8] sm:$0xff] %vm1774, %v6198
          %6263 = vst.msk [vmem:[#allocation4 + $0x1d0] sm:$0xff] %vm1774, %v6199
          %6264 = vst.msk [vmem:[#allocation4 + $0x1d8] sm:$0xff] %vm1774, %v6200
          %6265 = vst.msk [vmem:[#allocation4 + $0x1e0] sm:$0xff] %vm1774, %v6201
          %6266 = vst.msk [vmem:[#allocation4 + $0x1e8] sm:$0xff] %vm1774, %v6202
          %6267 = vst.msk [vmem:[#allocation4 + $0x1f0] sm:$0xff] %vm1774, %v6203
          %6268 = vst.msk [vmem:[#allocation4 + $0x1f8] sm:$0xff] %vm1774, %v6204
          %6269 = vst.msk [vmem:[#allocation2] sm:$0xff] %vm1645, %v4121
          %6270 = vst.msk [vmem:[#allocation2 + $0x8] sm:$0xff] %vm1645, %v4122
          %6271 = vst.msk [vmem:[#allocation2 + $0x10] sm:$0xff] %vm1645, %v4123
          %6272 = vst.msk [vmem:[#allocation2 + $0x18] sm:$0xff] %vm1645, %v4124
          %6273 = vst.msk [vmem:[#allocation2 + $0x20] sm:$0xff] %vm1645, %v4125
          %6274 = vst.msk [vmem:[#allocation2 + $0x28] sm:$0xff] %vm1645, %v4126
          %6275 = vst.msk [vmem:[#allocation2 + $0x30] sm:$0xff] %vm1645, %v4127
          %6276 = vst.msk [vmem:[#allocation2 + $0x38] sm:$0xff] %vm1645, %v4128
          %6277 = vst.msk [vmem:[#allocation2 + $0x40] sm:$0xff] %vm1645, %v4129
          %6278 = vst.msk [vmem:[#allocation2 + $0x48] sm:$0xff] %vm1645, %v4130
          %6279 = vst.msk [vmem:[#allocation2 + $0x50] sm:$0xff] %vm1645, %v4131
          %6280 = vst.msk [vmem:[#allocation2 + $0x58] sm:$0xff] %vm1645, %v4132
          %6281 = vst.msk [vmem:[#allocation2 + $0x60] sm:$0xff] %vm1645, %v4133
          %6282 = vst.msk [vmem:[#allocation2 + $0x68] sm:$0xff] %vm1645, %v4134
          %6283 = vst.msk [vmem:[#allocation2 + $0x70] sm:$0xff] %vm1645, %v4135
          %6284 = vst.msk [vmem:[#allocation2 + $0x78] sm:$0xff] %vm1645, %v4136
          %6285 = vst.msk [vmem:[#allocation2 + $0x80] sm:$0xff] %vm1645, %v4137
          %6286 = vst.msk [vmem:[#allocation2 + $0x88] sm:$0xff] %vm1645, %v4138
          %6287 = vst.msk [vmem:[#allocation2 + $0x90] sm:$0xff] %vm1645, %v4139
          %6288 = vst.msk [vmem:[#allocation2 + $0x98] sm:$0xff] %vm1645, %v4140
          %6289 = vst.msk [vmem:[#allocation2 + $0xa0] sm:$0xff] %vm1645, %v4141
          %6290 = vst.msk [vmem:[#allocation2 + $0xa8] sm:$0xff] %vm1645, %v4142
          %6291 = vst.msk [vmem:[#allocation2 + $0xb0] sm:$0xff] %vm1645, %v4143
          %6292 = vst.msk [vmem:[#allocation2 + $0xb8] sm:$0xff] %vm1645, %v4144
          %6293 = vst.msk [vmem:[#allocation2 + $0xc0] sm:$0xff] %vm1645, %v4145
          %6294 = vst.msk [vmem:[#allocation2 + $0xc8] sm:$0xff] %vm1645, %v4146
          %6295 = vst.msk [vmem:[#allocation2 + $0xd0] sm:$0xff] %vm1645, %v4147
          %6296 = vst.msk [vmem:[#allocation2 + $0xd8] sm:$0xff] %vm1645, %v4148
          %6297 = vst.msk [vmem:[#allocation2 + $0xe0] sm:$0xff] %vm1645, %v4149
          %6298 = vst.msk [vmem:[#allocation2 + $0xe8] sm:$0xff] %vm1645, %v4150
          %6299 = vst.msk [vmem:[#allocation2 + $0xf0] sm:$0xff] %vm1645, %v4151
          %6300 = vst.msk [vmem:[#allocation2 + $0xf8] sm:$0xff] %vm1645, %v4152
          %6301 = vst.msk [vmem:[#allocation2 + $0x100] sm:$0xff] %vm1645, %v4153
          %6302 = vst.msk [vmem:[#allocation2 + $0x108] sm:$0xff] %vm1645, %v4154
          %6303 = vst.msk [vmem:[#allocation2 + $0x110] sm:$0xff] %vm1645, %v4155
          %6304 = vst.msk [vmem:[#allocation2 + $0x118] sm:$0xff] %vm1645, %v4156
          %6305 = vst.msk [vmem:[#allocation2 + $0x120] sm:$0xff] %vm1645, %v4157
          %6306 = vst.msk [vmem:[#allocation2 + $0x128] sm:$0xff] %vm1645, %v4158
          %6307 = vst.msk [vmem:[#allocation2 + $0x130] sm:$0xff] %vm1645, %v4159
          %6308 = vst.msk [vmem:[#allocation2 + $0x138] sm:$0xff] %vm1645, %v4160
          %6309 = vst.msk [vmem:[#allocation2 + $0x140] sm:$0xff] %vm1645, %v4161
          %6310 = vst.msk [vmem:[#allocation2 + $0x148] sm:$0xff] %vm1645, %v4162
          %6311 = vst.msk [vmem:[#allocation2 + $0x150] sm:$0xff] %vm1645, %v4163
          %6312 = vst.msk [vmem:[#allocation2 + $0x158] sm:$0xff] %vm1645, %v4164
          %6313 = vst.msk [vmem:[#allocation2 + $0x160] sm:$0xff] %vm1645, %v4165
          %6314 = vst.msk [vmem:[#allocation2 + $0x168] sm:$0xff] %vm1645, %v4166
          %6315 = vst.msk [vmem:[#allocation2 + $0x170] sm:$0xff] %vm1645, %v4167
          %6316 = vst.msk [vmem:[#allocation2 + $0x178] sm:$0xff] %vm1645, %v4168
          %6317 = vst.msk [vmem:[#allocation2 + $0x180] sm:$0xff] %vm1645, %v4169
          %6318 = vst.msk [vmem:[#allocation2 + $0x188] sm:$0xff] %vm1645, %v4170
          %6319 = vst.msk [vmem:[#allocation2 + $0x190] sm:$0xff] %vm1645, %v4171
          %6320 = vst.msk [vmem:[#allocation2 + $0x198] sm:$0xff] %vm1645, %v4172
          %6321 = vst.msk [vmem:[#allocation2 + $0x1a0] sm:$0xff] %vm1645, %v4173
          %6322 = vst.msk [vmem:[#allocation2 + $0x1a8] sm:$0xff] %vm1645, %v4174
          %6323 = vst.msk [vmem:[#allocation2 + $0x1b0] sm:$0xff] %vm1645, %v4175
          %6324 = vst.msk [vmem:[#allocation2 + $0x1b8] sm:$0xff] %vm1645, %v4176
          %6325 = vst.msk [vmem:[#allocation2 + $0x1c0] sm:$0xff] %vm1645, %v4177
          %6326 = vst.msk [vmem:[#allocation2 + $0x1c8] sm:$0xff] %vm1645, %v4178
          %6327 = vst.msk [vmem:[#allocation2 + $0x1d0] sm:$0xff] %vm1645, %v4179
          %6328 = vst.msk [vmem:[#allocation2 + $0x1d8] sm:$0xff] %vm1645, %v4180
          %6329 = vst.msk [vmem:[#allocation2 + $0x1e0] sm:$0xff] %vm1645, %v4181
          %6330 = vst.msk [vmem:[#allocation2 + $0x1e8] sm:$0xff] %vm1645, %v4182
          %6331 = vst.msk [vmem:[#allocation2 + $0x1f0] sm:$0xff] %vm1645, %v4183
          %6332 = vst.msk [vmem:[#allocation2 + $0x1f8] sm:$0xff] %vm1645, %v4184
        $region129: #{tpu_custom_call.1} parent=91 // loop_footer
          %s1843 = sadd.s32 %s1841, 1
        $region130: #{tpu_custom_call.1} parent=91 // loop_footer_branch
          %1840 = sbr.rel target = $region126
        $region131: #{tpu_custom_call.1} parent=91 // loop_exit
          _
        %v6333 = vld [vmem:[#allocation3] sm:$0xff]
        %v6334 = vld [vmem:[#allocation3 + $0x8] sm:$0xff]
        %v6335 = vld [vmem:[#allocation3 + $0x10] sm:$0xff]
        %v6336 = vld [vmem:[#allocation3 + $0x18] sm:$0xff]
        %v6337 = vld [vmem:[#allocation3 + $0x20] sm:$0xff]
        %v6338 = vld [vmem:[#allocation3 + $0x28] sm:$0xff]
        %v6339 = vld [vmem:[#allocation3 + $0x30] sm:$0xff]
        %v6340 = vld [vmem:[#allocation3 + $0x38] sm:$0xff]
        %v6341 = vld [vmem:[#allocation3 + $0x40] sm:$0xff]
        %v6342 = vld [vmem:[#allocation3 + $0x48] sm:$0xff]
        %v6343 = vld [vmem:[#allocation3 + $0x50] sm:$0xff]
        %v6344 = vld [vmem:[#allocation3 + $0x58] sm:$0xff]
        %v6345 = vld [vmem:[#allocation3 + $0x60] sm:$0xff]
        %v6346 = vld [vmem:[#allocation3 + $0x68] sm:$0xff]
        %v6347 = vld [vmem:[#allocation3 + $0x70] sm:$0xff]
        %v6348 = vld [vmem:[#allocation3 + $0x78] sm:$0xff]
        %v6349 = vld [vmem:[#allocation3 + $0x80] sm:$0xff]
        %v6350 = vld [vmem:[#allocation3 + $0x88] sm:$0xff]
        %v6351 = vld [vmem:[#allocation3 + $0x90] sm:$0xff]
        %v6352 = vld [vmem:[#allocation3 + $0x98] sm:$0xff]
        %v6353 = vld [vmem:[#allocation3 + $0xa0] sm:$0xff]
        %v6354 = vld [vmem:[#allocation3 + $0xa8] sm:$0xff]
        %v6355 = vld [vmem:[#allocation3 + $0xb0] sm:$0xff]
        %v6356 = vld [vmem:[#allocation3 + $0xb8] sm:$0xff]
        %v6357 = vld [vmem:[#allocation3 + $0xc0] sm:$0xff]
        %v6358 = vld [vmem:[#allocation3 + $0xc8] sm:$0xff]
        %v6359 = vld [vmem:[#allocation3 + $0xd0] sm:$0xff]
        %v6360 = vld [vmem:[#allocation3 + $0xd8] sm:$0xff]
        %v6361 = vld [vmem:[#allocation3 + $0xe0] sm:$0xff]
        %v6362 = vld [vmem:[#allocation3 + $0xe8] sm:$0xff]
        %v6363 = vld [vmem:[#allocation3 + $0xf0] sm:$0xff]
        %v6364 = vld [vmem:[#allocation3 + $0xf8] sm:$0xff]
        %v6365 = vld [vmem:[#allocation3 + $0x100] sm:$0xff]
        %v6366 = vld [vmem:[#allocation3 + $0x108] sm:$0xff]
        %v6367 = vld [vmem:[#allocation3 + $0x110] sm:$0xff]
        %v6368 = vld [vmem:[#allocation3 + $0x118] sm:$0xff]
        %v6369 = vld [vmem:[#allocation3 + $0x120] sm:$0xff]
        %v6370 = vld [vmem:[#allocation3 + $0x128] sm:$0xff]
        %v6371 = vld [vmem:[#allocation3 + $0x130] sm:$0xff]
        %v6372 = vld [vmem:[#allocation3 + $0x138] sm:$0xff]
        %v6373 = vld [vmem:[#allocation3 + $0x140] sm:$0xff]
        %v6374 = vld [vmem:[#allocation3 + $0x148] sm:$0xff]
        %v6375 = vld [vmem:[#allocation3 + $0x150] sm:$0xff]
        %v6376 = vld [vmem:[#allocation3 + $0x158] sm:$0xff]
        %v6377 = vld [vmem:[#allocation3 + $0x160] sm:$0xff]
        %v6378 = vld [vmem:[#allocation3 + $0x168] sm:$0xff]
        %v6379 = vld [vmem:[#allocation3 + $0x170] sm:$0xff]
        %v6380 = vld [vmem:[#allocation3 + $0x178] sm:$0xff]
        %v6381 = vld [vmem:[#allocation3 + $0x180] sm:$0xff]
        %v6382 = vld [vmem:[#allocation3 + $0x188] sm:$0xff]
        %v6383 = vld [vmem:[#allocation3 + $0x190] sm:$0xff]
        %v6384 = vld [vmem:[#allocation3 + $0x198] sm:$0xff]
        %v6385 = vld [vmem:[#allocation3 + $0x1a0] sm:$0xff]
        %v6386 = vld [vmem:[#allocation3 + $0x1a8] sm:$0xff]
        %v6387 = vld [vmem:[#allocation3 + $0x1b0] sm:$0xff]
        %v6388 = vld [vmem:[#allocation3 + $0x1b8] sm:$0xff]
        %v6389 = vld [vmem:[#allocation3 + $0x1c0] sm:$0xff]
        %v6390 = vld [vmem:[#allocation3 + $0x1c8] sm:$0xff]
        %v6391 = vld [vmem:[#allocation3 + $0x1d0] sm:$0xff]
        %v6392 = vld [vmem:[#allocation3 + $0x1d8] sm:$0xff]
        %v6393 = vld [vmem:[#allocation3 + $0x1e0] sm:$0xff]
        %v6394 = vld [vmem:[#allocation3 + $0x1e8] sm:$0xff]
        %v6395 = vld [vmem:[#allocation3 + $0x1f0] sm:$0xff]
        %v6396 = vld [vmem:[#allocation3 + $0x1f8] sm:$0xff]
        %v6397 = vrcp.pop %v6333
        %v6398 = vrcp.pop %v6334
        %v6399 = vrcp.pop %v6335
        %v6400 = vrcp.pop %v6336
        %v6401 = vrcp.pop %v6337
        %v6402 = vrcp.pop %v6338
        %v6403 = vrcp.pop %v6339
        %v6404 = vrcp.pop %v6340
        %v6405 = vrcp.pop %v6341
        %v6406 = vrcp.pop %v6342
        %v6407 = vrcp.pop %v6343
        %v6408 = vrcp.pop %v6344
        %v6409 = vrcp.pop %v6345
        %v6410 = vrcp.pop %v6346
        %v6411 = vrcp.pop %v6347
        %v6412 = vrcp.pop %v6348
        %v6413 = vrcp.pop %v6349
        %v6414 = vrcp.pop %v6350
        %v6415 = vrcp.pop %v6351
        %v6416 = vrcp.pop %v6352
        %v6417 = vrcp.pop %v6353
        %v6418 = vrcp.pop %v6354
        %v6419 = vrcp.pop %v6355
        %v6420 = vrcp.pop %v6356
        %v6421 = vrcp.pop %v6357
        %v6422 = vrcp.pop %v6358
        %v6423 = vrcp.pop %v6359
        %v6424 = vrcp.pop %v6360
        %v6425 = vrcp.pop %v6361
        %v6426 = vrcp.pop %v6362
        %v6427 = vrcp.pop %v6363
        %v6428 = vrcp.pop %v6364
        %v6429 = vrcp.pop %v6365
        %v6430 = vrcp.pop %v6366
        %v6431 = vrcp.pop %v6367
        %v6432 = vrcp.pop %v6368
        %v6433 = vrcp.pop %v6369
        %v6434 = vrcp.pop %v6370
        %v6435 = vrcp.pop %v6371
        %v6436 = vrcp.pop %v6372
        %v6437 = vrcp.pop %v6373
        %v6438 = vrcp.pop %v6374
        %v6439 = vrcp.pop %v6375
        %v6440 = vrcp.pop %v6376
        %v6441 = vrcp.pop %v6377
        %v6442 = vrcp.pop %v6378
        %v6443 = vrcp.pop %v6379
        %v6444 = vrcp.pop %v6380
        %v6445 = vrcp.pop %v6381
        %v6446 = vrcp.pop %v6382
        %v6447 = vrcp.pop %v6383
        %v6448 = vrcp.pop %v6384
        %v6449 = vrcp.pop %v6385
        %v6450 = vrcp.pop %v6386
        %v6451 = vrcp.pop %v6387
        %v6452 = vrcp.pop %v6388
        %v6453 = vrcp.pop %v6389
        %v6454 = vrcp.pop %v6390
        %v6455 = vrcp.pop %v6391
        %v6456 = vrcp.pop %v6392
        %v6457 = vrcp.pop %v6393
        %v6458 = vrcp.pop %v6394
        %v6459 = vrcp.pop %v6395
        %v6460 = vrcp.pop %v6396
        %v6461 = vld [vmem:[#allocation4] sm:$0xff]
        %v6462 = vld [vmem:[#allocation4 + $0x8] sm:$0xff]
        %v6463 = vld [vmem:[#allocation4 + $0x10] sm:$0xff]
        %v6464 = vld [vmem:[#allocation4 + $0x18] sm:$0xff]
        %v6465 = vld [vmem:[#allocation4 + $0x20] sm:$0xff]
        %v6466 = vld [vmem:[#allocation4 + $0x28] sm:$0xff]
        %v6467 = vld [vmem:[#allocation4 + $0x30] sm:$0xff]
        %v6468 = vld [vmem:[#allocation4 + $0x38] sm:$0xff]
        %v6469 = vld [vmem:[#allocation4 + $0x40] sm:$0xff]
        %v6470 = vld [vmem:[#allocation4 + $0x48] sm:$0xff]
        %v6471 = vld [vmem:[#allocation4 + $0x50] sm:$0xff]
        %v6472 = vld [vmem:[#allocation4 + $0x58] sm:$0xff]
        %v6473 = vld [vmem:[#allocation4 + $0x60] sm:$0xff]
        %v6474 = vld [vmem:[#allocation4 + $0x68] sm:$0xff]
        %v6475 = vld [vmem:[#allocation4 + $0x70] sm:$0xff]
        %v6476 = vld [vmem:[#allocation4 + $0x78] sm:$0xff]
        %v6477 = vld [vmem:[#allocation4 + $0x80] sm:$0xff]
        %v6478 = vld [vmem:[#allocation4 + $0x88] sm:$0xff]
        %v6479 = vld [vmem:[#allocation4 + $0x90] sm:$0xff]
        %v6480 = vld [vmem:[#allocation4 + $0x98] sm:$0xff]
        %v6481 = vld [vmem:[#allocation4 + $0xa0] sm:$0xff]
        %v6482 = vld [vmem:[#allocation4 + $0xa8] sm:$0xff]
        %v6483 = vld [vmem:[#allocation4 + $0xb0] sm:$0xff]
        %v6484 = vld [vmem:[#allocation4 + $0xb8] sm:$0xff]
        %v6485 = vld [vmem:[#allocation4 + $0xc0] sm:$0xff]
        %v6486 = vld [vmem:[#allocation4 + $0xc8] sm:$0xff]
        %v6487 = vld [vmem:[#allocation4 + $0xd0] sm:$0xff]
        %v6488 = vld [vmem:[#allocation4 + $0xd8] sm:$0xff]
        %v6489 = vld [vmem:[#allocation4 + $0xe0] sm:$0xff]
        %v6490 = vld [vmem:[#allocation4 + $0xe8] sm:$0xff]
        %v6491 = vld [vmem:[#allocation4 + $0xf0] sm:$0xff]
        %v6492 = vld [vmem:[#allocation4 + $0xf8] sm:$0xff]
        %v6493 = vld [vmem:[#allocation4 + $0x100] sm:$0xff]
        %v6494 = vld [vmem:[#allocation4 + $0x108] sm:$0xff]
        %v6495 = vld [vmem:[#allocation4 + $0x110] sm:$0xff]
        %v6496 = vld [vmem:[#allocation4 + $0x118] sm:$0xff]
        %v6497 = vld [vmem:[#allocation4 + $0x120] sm:$0xff]
        %v6498 = vld [vmem:[#allocation4 + $0x128] sm:$0xff]
        %v6499 = vld [vmem:[#allocation4 + $0x130] sm:$0xff]
        %v6500 = vld [vmem:[#allocation4 + $0x138] sm:$0xff]
        %v6501 = vld [vmem:[#allocation4 + $0x140] sm:$0xff]
        %v6502 = vld [vmem:[#allocation4 + $0x148] sm:$0xff]
        %v6503 = vld [vmem:[#allocation4 + $0x150] sm:$0xff]
        %v6504 = vld [vmem:[#allocation4 + $0x158] sm:$0xff]
        %v6505 = vld [vmem:[#allocation4 + $0x160] sm:$0xff]
        %v6506 = vld [vmem:[#allocation4 + $0x168] sm:$0xff]
        %v6507 = vld [vmem:[#allocation4 + $0x170] sm:$0xff]
        %v6508 = vld [vmem:[#allocation4 + $0x178] sm:$0xff]
        %v6509 = vld [vmem:[#allocation4 + $0x180] sm:$0xff]
        %v6510 = vld [vmem:[#allocation4 + $0x188] sm:$0xff]
        %v6511 = vld [vmem:[#allocation4 + $0x190] sm:$0xff]
        %v6512 = vld [vmem:[#allocation4 + $0x198] sm:$0xff]
        %v6513 = vld [vmem:[#allocation4 + $0x1a0] sm:$0xff]
        %v6514 = vld [vmem:[#allocation4 + $0x1a8] sm:$0xff]
        %v6515 = vld [vmem:[#allocation4 + $0x1b0] sm:$0xff]
        %v6516 = vld [vmem:[#allocation4 + $0x1b8] sm:$0xff]
        %v6517 = vld [vmem:[#allocation4 + $0x1c0] sm:$0xff]
        %v6518 = vld [vmem:[#allocation4 + $0x1c8] sm:$0xff]
        %v6519 = vld [vmem:[#allocation4 + $0x1d0] sm:$0xff]
        %v6520 = vld [vmem:[#allocation4 + $0x1d8] sm:$0xff]
        %v6521 = vld [vmem:[#allocation4 + $0x1e0] sm:$0xff]
        %v6522 = vld [vmem:[#allocation4 + $0x1e8] sm:$0xff]
        %v6523 = vld [vmem:[#allocation4 + $0x1f0] sm:$0xff]
        %v6524 = vld [vmem:[#allocation4 + $0x1f8] sm:$0xff]
        %6526 = vset.pattern.permute.xlu0 0
        %6527 = vperm.xlu0 %6526, %v6397
        %v6528 = vpop.permute.xlu0 %6527
        %6531 = vset.pattern.permute.xlu0 0
        %6532 = vperm.xlu0 %6531, %v6398
        %v6533 = vpop.permute.xlu0 %6532
        %6536 = vset.pattern.permute.xlu0 0
        %6537 = vperm.xlu0 %6536, %v6399
        %v6538 = vpop.permute.xlu0 %6537
        %6541 = vset.pattern.permute.xlu0 0
        %6542 = vperm.xlu0 %6541, %v6400
        %v6543 = vpop.permute.xlu0 %6542
        %6546 = vset.pattern.permute.xlu0 0
        %6547 = vperm.xlu0 %6546, %v6401
        %v6548 = vpop.permute.xlu0 %6547
        %6551 = vset.pattern.permute.xlu0 0
        %6552 = vperm.xlu0 %6551, %v6402
        %v6553 = vpop.permute.xlu0 %6552
        %6556 = vset.pattern.permute.xlu0 0
        %6557 = vperm.xlu0 %6556, %v6403
        %v6558 = vpop.permute.xlu0 %6557
        %6561 = vset.pattern.permute.xlu0 0
        %6562 = vperm.xlu0 %6561, %v6404
        %v6563 = vpop.permute.xlu0 %6562
        %6566 = vset.pattern.permute.xlu0 0
        %6567 = vperm.xlu0 %6566, %v6405
        %v6568 = vpop.permute.xlu0 %6567
        %6571 = vset.pattern.permute.xlu0 0
        %6572 = vperm.xlu0 %6571, %v6406
        %v6573 = vpop.permute.xlu0 %6572
        %6576 = vset.pattern.permute.xlu0 0
        %6577 = vperm.xlu0 %6576, %v6407
        %v6578 = vpop.permute.xlu0 %6577
        %6581 = vset.pattern.permute.xlu0 0
        %6582 = vperm.xlu0 %6581, %v6408
        %v6583 = vpop.permute.xlu0 %6582
        %6586 = vset.pattern.permute.xlu0 0
        %6587 = vperm.xlu0 %6586, %v6409
        %v6588 = vpop.permute.xlu0 %6587
        %6591 = vset.pattern.permute.xlu0 0
        %6592 = vperm.xlu0 %6591, %v6410
        %v6593 = vpop.permute.xlu0 %6592
        %6596 = vset.pattern.permute.xlu0 0
        %6597 = vperm.xlu0 %6596, %v6411
        %v6598 = vpop.permute.xlu0 %6597
        %6601 = vset.pattern.permute.xlu0 0
        %6602 = vperm.xlu0 %6601, %v6412
        %v6603 = vpop.permute.xlu0 %6602
        %6606 = vset.pattern.permute.xlu0 0
        %6607 = vperm.xlu0 %6606, %v6413
        %v6608 = vpop.permute.xlu0 %6607
        %6611 = vset.pattern.permute.xlu0 0
        %6612 = vperm.xlu0 %6611, %v6414
        %v6613 = vpop.permute.xlu0 %6612
        %6616 = vset.pattern.permute.xlu0 0
        %6617 = vperm.xlu0 %6616, %v6415
        %v6618 = vpop.permute.xlu0 %6617
        %6621 = vset.pattern.permute.xlu0 0
        %6622 = vperm.xlu0 %6621, %v6416
        %v6623 = vpop.permute.xlu0 %6622
        %6626 = vset.pattern.permute.xlu0 0
        %6627 = vperm.xlu0 %6626, %v6417
        %v6628 = vpop.permute.xlu0 %6627
        %6631 = vset.pattern.permute.xlu0 0
        %6632 = vperm.xlu0 %6631, %v6418
        %v6633 = vpop.permute.xlu0 %6632
        %6636 = vset.pattern.permute.xlu0 0
        %6637 = vperm.xlu0 %6636, %v6419
        %v6638 = vpop.permute.xlu0 %6637
        %6641 = vset.pattern.permute.xlu0 0
        %6642 = vperm.xlu0 %6641, %v6420
        %v6643 = vpop.permute.xlu0 %6642
        %6646 = vset.pattern.permute.xlu0 0
        %6647 = vperm.xlu0 %6646, %v6421
        %v6648 = vpop.permute.xlu0 %6647
        %6651 = vset.pattern.permute.xlu0 0
        %6652 = vperm.xlu0 %6651, %v6422
        %v6653 = vpop.permute.xlu0 %6652
        %6656 = vset.pattern.permute.xlu0 0
        %6657 = vperm.xlu0 %6656, %v6423
        %v6658 = vpop.permute.xlu0 %6657
        %6661 = vset.pattern.permute.xlu0 0
        %6662 = vperm.xlu0 %6661, %v6424
        %v6663 = vpop.permute.xlu0 %6662
        %6666 = vset.pattern.permute.xlu0 0
        %6667 = vperm.xlu0 %6666, %v6425
        %v6668 = vpop.permute.xlu0 %6667
        %6671 = vset.pattern.permute.xlu0 0
        %6672 = vperm.xlu0 %6671, %v6426
        %v6673 = vpop.permute.xlu0 %6672
        %6676 = vset.pattern.permute.xlu0 0
        %6677 = vperm.xlu0 %6676, %v6427
        %v6678 = vpop.permute.xlu0 %6677
        %6681 = vset.pattern.permute.xlu0 0
        %6682 = vperm.xlu0 %6681, %v6428
        %v6683 = vpop.permute.xlu0 %6682
        %6686 = vset.pattern.permute.xlu0 0
        %6687 = vperm.xlu0 %6686, %v6429
        %v6688 = vpop.permute.xlu0 %6687
        %6691 = vset.pattern.permute.xlu0 0
        %6692 = vperm.xlu0 %6691, %v6430
        %v6693 = vpop.permute.xlu0 %6692
        %6696 = vset.pattern.permute.xlu0 0
        %6697 = vperm.xlu0 %6696, %v6431
        %v6698 = vpop.permute.xlu0 %6697
        %6701 = vset.pattern.permute.xlu0 0
        %6702 = vperm.xlu0 %6701, %v6432
        %v6703 = vpop.permute.xlu0 %6702
        %6706 = vset.pattern.permute.xlu0 0
        %6707 = vperm.xlu0 %6706, %v6433
        %v6708 = vpop.permute.xlu0 %6707
        %6711 = vset.pattern.permute.xlu0 0
        %6712 = vperm.xlu0 %6711, %v6434
        %v6713 = vpop.permute.xlu0 %6712
        %6716 = vset.pattern.permute.xlu0 0
        %6717 = vperm.xlu0 %6716, %v6435
        %v6718 = vpop.permute.xlu0 %6717
        %6721 = vset.pattern.permute.xlu0 0
        %6722 = vperm.xlu0 %6721, %v6436
        %v6723 = vpop.permute.xlu0 %6722
        %6726 = vset.pattern.permute.xlu0 0
        %6727 = vperm.xlu0 %6726, %v6437
        %v6728 = vpop.permute.xlu0 %6727
        %6731 = vset.pattern.permute.xlu0 0
        %6732 = vperm.xlu0 %6731, %v6438
        %v6733 = vpop.permute.xlu0 %6732
        %6736 = vset.pattern.permute.xlu0 0
        %6737 = vperm.xlu0 %6736, %v6439
        %v6738 = vpop.permute.xlu0 %6737
        %6741 = vset.pattern.permute.xlu0 0
        %6742 = vperm.xlu0 %6741, %v6440
        %v6743 = vpop.permute.xlu0 %6742
        %6746 = vset.pattern.permute.xlu0 0
        %6747 = vperm.xlu0 %6746, %v6441
        %v6748 = vpop.permute.xlu0 %6747
        %6751 = vset.pattern.permute.xlu0 0
        %6752 = vperm.xlu0 %6751, %v6442
        %v6753 = vpop.permute.xlu0 %6752
        %6756 = vset.pattern.permute.xlu0 0
        %6757 = vperm.xlu0 %6756, %v6443
        %v6758 = vpop.permute.xlu0 %6757
        %6761 = vset.pattern.permute.xlu0 0
        %6762 = vperm.xlu0 %6761, %v6444
        %v6763 = vpop.permute.xlu0 %6762
        %6766 = vset.pattern.permute.xlu0 0
        %6767 = vperm.xlu0 %6766, %v6445
        %v6768 = vpop.permute.xlu0 %6767
        %6771 = vset.pattern.permute.xlu0 0
        %6772 = vperm.xlu0 %6771, %v6446
        %v6773 = vpop.permute.xlu0 %6772
        %6776 = vset.pattern.permute.xlu0 0
        %6777 = vperm.xlu0 %6776, %v6447
        %v6778 = vpop.permute.xlu0 %6777
        %6781 = vset.pattern.permute.xlu0 0
        %6782 = vperm.xlu0 %6781, %v6448
        %v6783 = vpop.permute.xlu0 %6782
        %6786 = vset.pattern.permute.xlu0 0
        %6787 = vperm.xlu0 %6786, %v6449
        %v6788 = vpop.permute.xlu0 %6787
        %6791 = vset.pattern.permute.xlu0 0
        %6792 = vperm.xlu0 %6791, %v6450
        %v6793 = vpop.permute.xlu0 %6792
        %6796 = vset.pattern.permute.xlu0 0
        %6797 = vperm.xlu0 %6796, %v6451
        %v6798 = vpop.permute.xlu0 %6797
        %6801 = vset.pattern.permute.xlu0 0
        %6802 = vperm.xlu0 %6801, %v6452
        %v6803 = vpop.permute.xlu0 %6802
        %6806 = vset.pattern.permute.xlu0 0
        %6807 = vperm.xlu0 %6806, %v6453
        %v6808 = vpop.permute.xlu0 %6807
        %6811 = vset.pattern.permute.xlu0 0
        %6812 = vperm.xlu0 %6811, %v6454
        %v6813 = vpop.permute.xlu0 %6812
        %6816 = vset.pattern.permute.xlu0 0
        %6817 = vperm.xlu0 %6816, %v6455
        %v6818 = vpop.permute.xlu0 %6817
        %6821 = vset.pattern.permute.xlu0 0
        %6822 = vperm.xlu0 %6821, %v6456
        %v6823 = vpop.permute.xlu0 %6822
        %6826 = vset.pattern.permute.xlu0 0
        %6827 = vperm.xlu0 %6826, %v6457
        %v6828 = vpop.permute.xlu0 %6827
        %6831 = vset.pattern.permute.xlu0 0
        %6832 = vperm.xlu0 %6831, %v6458
        %v6833 = vpop.permute.xlu0 %6832
        %6836 = vset.pattern.permute.xlu0 0
        %6837 = vperm.xlu0 %6836, %v6459
        %v6838 = vpop.permute.xlu0 %6837
        %6841 = vset.pattern.permute.xlu0 0
        %6842 = vperm.xlu0 %6841, %v6460
        %v6843 = vpop.permute.xlu0 %6842
        %v6845 = vmul.f32 %v6461, %v6528
        %v6846 = vmul.f32 %v6462, %v6533
        %v6847 = vmul.f32 %v6463, %v6538
        %v6848 = vmul.f32 %v6464, %v6543
        %v6849 = vmul.f32 %v6465, %v6548
        %v6850 = vmul.f32 %v6466, %v6553
        %v6851 = vmul.f32 %v6467, %v6558
        %v6852 = vmul.f32 %v6468, %v6563
        %v6853 = vmul.f32 %v6469, %v6568
        %v6854 = vmul.f32 %v6470, %v6573
        %v6855 = vmul.f32 %v6471, %v6578
        %v6856 = vmul.f32 %v6472, %v6583
        %v6857 = vmul.f32 %v6473, %v6588
        %v6858 = vmul.f32 %v6474, %v6593
        %v6859 = vmul.f32 %v6475, %v6598
        %v6860 = vmul.f32 %v6476, %v6603
        %v6861 = vmul.f32 %v6477, %v6608
        %v6862 = vmul.f32 %v6478, %v6613
        %v6863 = vmul.f32 %v6479, %v6618
        %v6864 = vmul.f32 %v6480, %v6623
        %v6865 = vmul.f32 %v6481, %v6628
        %v6866 = vmul.f32 %v6482, %v6633
        %v6867 = vmul.f32 %v6483, %v6638
        %v6868 = vmul.f32 %v6484, %v6643
        %v6869 = vmul.f32 %v6485, %v6648
        %v6870 = vmul.f32 %v6486, %v6653
        %v6871 = vmul.f32 %v6487, %v6658
        %v6872 = vmul.f32 %v6488, %v6663
        %v6873 = vmul.f32 %v6489, %v6668
        %v6874 = vmul.f32 %v6490, %v6673
        %v6875 = vmul.f32 %v6491, %v6678
        %v6876 = vmul.f32 %v6492, %v6683
        %v6877 = vmul.f32 %v6493, %v6688
        %v6878 = vmul.f32 %v6494, %v6693
        %v6879 = vmul.f32 %v6495, %v6698
        %v6880 = vmul.f32 %v6496, %v6703
        %v6881 = vmul.f32 %v6497, %v6708
        %v6882 = vmul.f32 %v6498, %v6713
        %v6883 = vmul.f32 %v6499, %v6718
        %v6884 = vmul.f32 %v6500, %v6723
        %v6885 = vmul.f32 %v6501, %v6728
        %v6886 = vmul.f32 %v6502, %v6733
        %v6887 = vmul.f32 %v6503, %v6738
        %v6888 = vmul.f32 %v6504, %v6743
        %v6889 = vmul.f32 %v6505, %v6748
        %v6890 = vmul.f32 %v6506, %v6753
        %v6891 = vmul.f32 %v6507, %v6758
        %v6892 = vmul.f32 %v6508, %v6763
        %v6893 = vmul.f32 %v6509, %v6768
        %v6894 = vmul.f32 %v6510, %v6773
        %v6895 = vmul.f32 %v6511, %v6778
        %v6896 = vmul.f32 %v6512, %v6783
        %v6897 = vmul.f32 %v6513, %v6788
        %v6898 = vmul.f32 %v6514, %v6793
        %v6899 = vmul.f32 %v6515, %v6798
        %v6900 = vmul.f32 %v6516, %v6803
        %v6901 = vmul.f32 %v6517, %v6808
        %v6902 = vmul.f32 %v6518, %v6813
        %v6903 = vmul.f32 %v6519, %v6818
        %v6904 = vmul.f32 %v6520, %v6823
        %v6905 = vmul.f32 %v6521, %v6828
        %v6906 = vmul.f32 %v6522, %v6833
        %v6907 = vmul.f32 %v6523, %v6838
        %v6908 = vmul.f32 %v6524, %v6843
        %6925 = vrot.lane.b32.xlu0 %v6861, 64
        %v6926 = vpop.permute.xlu0 %6925
        %6927 = vrot.lane.b32.xlu0 %v6862, 64
        %v6928 = vpop.permute.xlu0 %6927
        %6929 = vrot.lane.b32.xlu0 %v6863, 64
        %v6930 = vpop.permute.xlu0 %6929
        %6931 = vrot.lane.b32.xlu0 %v6864, 64
        %v6932 = vpop.permute.xlu0 %6931
        %6933 = vrot.lane.b32.xlu0 %v6865, 64
        %v6934 = vpop.permute.xlu0 %6933
        %6935 = vrot.lane.b32.xlu0 %v6866, 64
        %v6936 = vpop.permute.xlu0 %6935
        %6937 = vrot.lane.b32.xlu0 %v6867, 64
        %v6938 = vpop.permute.xlu0 %6937
        %6939 = vrot.lane.b32.xlu0 %v6868, 64
        %v6940 = vpop.permute.xlu0 %6939
        %6941 = vrot.lane.b32.xlu0 %v6869, 64
        %v6942 = vpop.permute.xlu0 %6941
        %6943 = vrot.lane.b32.xlu0 %v6870, 64
        %v6944 = vpop.permute.xlu0 %6943
        %6945 = vrot.lane.b32.xlu0 %v6871, 64
        %v6946 = vpop.permute.xlu0 %6945
        %6947 = vrot.lane.b32.xlu0 %v6872, 64
        %v6948 = vpop.permute.xlu0 %6947
        %6949 = vrot.lane.b32.xlu0 %v6873, 64
        %v6950 = vpop.permute.xlu0 %6949
        %6951 = vrot.lane.b32.xlu0 %v6874, 64
        %v6952 = vpop.permute.xlu0 %6951
        %6953 = vrot.lane.b32.xlu0 %v6875, 64
        %v6954 = vpop.permute.xlu0 %6953
        %6955 = vrot.lane.b32.xlu0 %v6876, 64
        %v6956 = vpop.permute.xlu0 %6955
        %6989 = vrot.lane.b32.xlu0 %v6893, 64
        %v6990 = vpop.permute.xlu0 %6989
        %6991 = vrot.lane.b32.xlu0 %v6894, 64
        %v6992 = vpop.permute.xlu0 %6991
        %6993 = vrot.lane.b32.xlu0 %v6895, 64
        %v6994 = vpop.permute.xlu0 %6993
        %6995 = vrot.lane.b32.xlu0 %v6896, 64
        %v6996 = vpop.permute.xlu0 %6995
        %6997 = vrot.lane.b32.xlu0 %v6897, 64
        %v6998 = vpop.permute.xlu0 %6997
        %6999 = vrot.lane.b32.xlu0 %v6898, 64
        %v7000 = vpop.permute.xlu0 %6999
        %7001 = vrot.lane.b32.xlu0 %v6899, 64
        %v7002 = vpop.permute.xlu0 %7001
        %7003 = vrot.lane.b32.xlu0 %v6900, 64
        %v7004 = vpop.permute.xlu0 %7003
        %7005 = vrot.lane.b32.xlu0 %v6901, 64
        %v7006 = vpop.permute.xlu0 %7005
        %7007 = vrot.lane.b32.xlu0 %v6902, 64
        %v7008 = vpop.permute.xlu0 %7007
        %7009 = vrot.lane.b32.xlu0 %v6903, 64
        %v7010 = vpop.permute.xlu0 %7009
        %7011 = vrot.lane.b32.xlu0 %v6904, 64
        %v7012 = vpop.permute.xlu0 %7011
        %7013 = vrot.lane.b32.xlu0 %v6905, 64
        %v7014 = vpop.permute.xlu0 %7013
        %7015 = vrot.lane.b32.xlu0 %v6906, 64
        %v7016 = vpop.permute.xlu0 %7015
        %7017 = vrot.lane.b32.xlu0 %v6907, 64
        %v7018 = vpop.permute.xlu0 %7017
        %7019 = vrot.lane.b32.xlu0 %v6908, 64
        %v7020 = vpop.permute.xlu0 %7019
        %v7037 = vsel %vm1774, %v6845, %v6926
        %v7038 = vsel %vm1774, %v6846, %v6928
        %v7039 = vsel %vm1774, %v6847, %v6930
        %v7040 = vsel %vm1774, %v6848, %v6932
        %v7041 = vsel %vm1774, %v6849, %v6934
        %v7042 = vsel %vm1774, %v6850, %v6936
        %v7043 = vsel %vm1774, %v6851, %v6938
        %v7044 = vsel %vm1774, %v6852, %v6940
        %v7045 = vsel %vm1774, %v6853, %v6942
        %v7046 = vsel %vm1774, %v6854, %v6944
        %v7047 = vsel %vm1774, %v6855, %v6946
        %v7048 = vsel %vm1774, %v6856, %v6948
        %v7049 = vsel %vm1774, %v6857, %v6950
        %v7050 = vsel %vm1774, %v6858, %v6952
        %v7051 = vsel %vm1774, %v6859, %v6954
        %v7052 = vsel %vm1774, %v6860, %v6956
        %v7053 = vsel %vm1774, %v6877, %v6990
        %v7054 = vsel %vm1774, %v6878, %v6992
        %v7055 = vsel %vm1774, %v6879, %v6994
        %v7056 = vsel %vm1774, %v6880, %v6996
        %v7057 = vsel %vm1774, %v6881, %v6998
        %v7058 = vsel %vm1774, %v6882, %v7000
        %v7059 = vsel %vm1774, %v6883, %v7002
        %v7060 = vsel %vm1774, %v6884, %v7004
        %v7061 = vsel %vm1774, %v6885, %v7006
        %v7062 = vsel %vm1774, %v6886, %v7008
        %v7063 = vsel %vm1774, %v6887, %v7010
        %v7064 = vsel %vm1774, %v6888, %v7012
        %v7065 = vsel %vm1774, %v6889, %v7014
        %v7066 = vsel %vm1774, %v6890, %v7016
        %v7067 = vsel %vm1774, %v6891, %v7018
        %v7068 = vsel %vm1774, %v6892, %v7020
        %v7069 = vpack.c.bf16 %v7038, %v7037
        %v7070 = vpack.c.bf16 %v7054, %v7053
        %v7071 = vpack.c.bf16 %v7040, %v7039
        %v7072 = vpack.c.bf16 %v7056, %v7055
        %v7073 = vpack.c.bf16 %v7042, %v7041
        %v7074 = vpack.c.bf16 %v7058, %v7057
        %v7075 = vpack.c.bf16 %v7044, %v7043
        %v7076 = vpack.c.bf16 %v7060, %v7059
        %v7077 = vpack.c.bf16 %v7046, %v7045
        %v7078 = vpack.c.bf16 %v7062, %v7061
        %v7079 = vpack.c.bf16 %v7048, %v7047
        %v7080 = vpack.c.bf16 %v7064, %v7063
        %v7081 = vpack.c.bf16 %v7050, %v7049
        %v7082 = vpack.c.bf16 %v7066, %v7065
        %v7083 = vpack.c.bf16 %v7052, %v7051
        %v7084 = vpack.c.bf16 %v7068, %v7067
        %v7085 = vld [vmem:[#allocation14] sm:$0xff]
        %v7086 = vld [vmem:[#allocation14 + $0x8] sm:$0xff]
        %v7087 = vld [vmem:[#allocation14 + $0x10] sm:$0xff]
        %v7088 = vld [vmem:[#allocation14 + $0x18] sm:$0xff]
        %v7089 = vld [vmem:[#allocation14 + $0x20] sm:$0xff]
        %v7090 = vld [vmem:[#allocation14 + $0x28] sm:$0xff]
        %v7091 = vld [vmem:[#allocation14 + $0x30] sm:$0xff]
        %v7092 = vld [vmem:[#allocation14 + $0x38] sm:$0xff]
        %v7093 = vld [vmem:[#allocation14 + $0x40] sm:$0xff]
        %v7094 = vld [vmem:[#allocation14 + $0x48] sm:$0xff]
        %v7095 = vld [vmem:[#allocation14 + $0x50] sm:$0xff]
        %v7096 = vld [vmem:[#allocation14 + $0x58] sm:$0xff]
        %v7097 = vld [vmem:[#allocation14 + $0x60] sm:$0xff]
        %v7098 = vld [vmem:[#allocation14 + $0x68] sm:$0xff]
        %v7099 = vld [vmem:[#allocation14 + $0x70] sm:$0xff]
        %v7100 = vld [vmem:[#allocation14 + $0x78] sm:$0xff]
        %v7101 = vld [vmem:[#allocation14 + $0x80] sm:$0xff]
        %v7102 = vld [vmem:[#allocation14 + $0x88] sm:$0xff]
        %v7103 = vld [vmem:[#allocation14 + $0x90] sm:$0xff]
        %v7104 = vld [vmem:[#allocation14 + $0x98] sm:$0xff]
        %v7105 = vld [vmem:[#allocation14 + $0xa0] sm:$0xff]
        %v7106 = vld [vmem:[#allocation14 + $0xa8] sm:$0xff]
        %v7107 = vld [vmem:[#allocation14 + $0xb0] sm:$0xff]
        %v7108 = vld [vmem:[#allocation14 + $0xb8] sm:$0xff]
        %v7109 = vld [vmem:[#allocation14 + $0xc0] sm:$0xff]
        %v7110 = vld [vmem:[#allocation14 + $0xc8] sm:$0xff]
        %v7111 = vld [vmem:[#allocation14 + $0xd0] sm:$0xff]
        %v7112 = vld [vmem:[#allocation14 + $0xd8] sm:$0xff]
        %v7113 = vld [vmem:[#allocation14 + $0xe0] sm:$0xff]
        %v7114 = vld [vmem:[#allocation14 + $0xe8] sm:$0xff]
        %v7115 = vld [vmem:[#allocation14 + $0xf0] sm:$0xff]
        %v7116 = vld [vmem:[#allocation14 + $0xf8] sm:$0xff]
        %v7117 = vld [vmem:[%s11] sm:$0x3]
        %v7119 = vlaneseq
        %v7120 = vshrl.u32 %v7119, 7
        %v7121 = vsub.s32 0, %v7120
        %v7122 = vrot.slane %v7117, %v7121
        %v7123 = vlaneseq
        %v7124 = vshrl.u32 %v7123, 7
        %v7125 = vsub.s32 1, %v7124
        %v7126 = vrot.slane %v7117, %v7125
        %v7161 = vunpack.c.l.b16 %v7085
        %v7162 = vunpack.c.h.b16 %v7085
        %v7163 = vunpack.c.l.b16 %v7086
        %v7164 = vunpack.c.h.b16 %v7086
        %v7165 = vunpack.c.l.b16 %v7087
        %v7166 = vunpack.c.h.b16 %v7087
        %v7167 = vunpack.c.l.b16 %v7088
        %v7168 = vunpack.c.h.b16 %v7088
        %v7169 = vunpack.c.l.b16 %v7089
        %v7170 = vunpack.c.h.b16 %v7089
        %v7171 = vunpack.c.l.b16 %v7090
        %v7172 = vunpack.c.h.b16 %v7090
        %v7173 = vunpack.c.l.b16 %v7091
        %v7174 = vunpack.c.h.b16 %v7091
        %v7175 = vunpack.c.l.b16 %v7092
        %v7176 = vunpack.c.h.b16 %v7092
        %v7177 = vunpack.c.l.b16 %v7093
        %v7178 = vunpack.c.h.b16 %v7093
        %v7179 = vunpack.c.l.b16 %v7094
        %v7180 = vunpack.c.h.b16 %v7094
        %v7181 = vunpack.c.l.b16 %v7095
        %v7182 = vunpack.c.h.b16 %v7095
        %v7183 = vunpack.c.l.b16 %v7096
        %v7184 = vunpack.c.h.b16 %v7096
        %v7185 = vunpack.c.l.b16 %v7097
        %v7186 = vunpack.c.h.b16 %v7097
        %v7187 = vunpack.c.l.b16 %v7098
        %v7188 = vunpack.c.h.b16 %v7098
        %v7189 = vunpack.c.l.b16 %v7099
        %v7190 = vunpack.c.h.b16 %v7099
        %v7191 = vunpack.c.l.b16 %v7100
        %v7192 = vunpack.c.h.b16 %v7100
        %v7193 = vunpack.c.l.b16 %v7101
        %v7194 = vunpack.c.h.b16 %v7101
        %v7195 = vunpack.c.l.b16 %v7102
        %v7196 = vunpack.c.h.b16 %v7102
        %v7197 = vunpack.c.l.b16 %v7103
        %v7198 = vunpack.c.h.b16 %v7103
        %v7199 = vunpack.c.l.b16 %v7104
        %v7200 = vunpack.c.h.b16 %v7104
        %v7201 = vunpack.c.l.b16 %v7105
        %v7202 = vunpack.c.h.b16 %v7105
        %v7203 = vunpack.c.l.b16 %v7106
        %v7204 = vunpack.c.h.b16 %v7106
        %v7205 = vunpack.c.l.b16 %v7107
        %v7206 = vunpack.c.h.b16 %v7107
        %v7207 = vunpack.c.l.b16 %v7108
        %v7208 = vunpack.c.h.b16 %v7108
        %v7209 = vunpack.c.l.b16 %v7109
        %v7210 = vunpack.c.h.b16 %v7109
        %v7211 = vunpack.c.l.b16 %v7110
        %v7212 = vunpack.c.h.b16 %v7110
        %v7213 = vunpack.c.l.b16 %v7111
        %v7214 = vunpack.c.h.b16 %v7111
        %v7215 = vunpack.c.l.b16 %v7112
        %v7216 = vunpack.c.h.b16 %v7112
        %v7217 = vunpack.c.l.b16 %v7113
        %v7218 = vunpack.c.h.b16 %v7113
        %v7219 = vunpack.c.l.b16 %v7114
        %v7220 = vunpack.c.h.b16 %v7114
        %v7221 = vunpack.c.l.b16 %v7115
        %v7222 = vunpack.c.h.b16 %v7115
        %v7223 = vunpack.c.l.b16 %v7116
        %v7224 = vunpack.c.h.b16 %v7116
        %v7225 = vpack.c.b16 %v7163, %v7161
        %v7226 = vpack.c.b16 %v7164, %v7162
        %v7227 = vpack.c.b16 %v7167, %v7165
        %v7228 = vpack.c.b16 %v7168, %v7166
        %v7229 = vpack.c.b16 %v7171, %v7169
        %v7230 = vpack.c.b16 %v7172, %v7170
        %v7231 = vpack.c.b16 %v7175, %v7173
        %v7232 = vpack.c.b16 %v7176, %v7174
        %v7233 = vpack.c.b16 %v7179, %v7177
        %v7234 = vpack.c.b16 %v7180, %v7178
        %v7235 = vpack.c.b16 %v7183, %v7181
        %v7236 = vpack.c.b16 %v7184, %v7182
        %v7237 = vpack.c.b16 %v7187, %v7185
        %v7238 = vpack.c.b16 %v7188, %v7186
        %v7239 = vpack.c.b16 %v7191, %v7189
        %v7240 = vpack.c.b16 %v7192, %v7190
        %v7241 = vpack.c.b16 %v7195, %v7193
        %v7242 = vpack.c.b16 %v7196, %v7194
        %v7243 = vpack.c.b16 %v7199, %v7197
        %v7244 = vpack.c.b16 %v7200, %v7198
        %v7245 = vpack.c.b16 %v7203, %v7201
        %v7246 = vpack.c.b16 %v7204, %v7202
        %v7247 = vpack.c.b16 %v7207, %v7205
        %v7248 = vpack.c.b16 %v7208, %v7206
        %v7249 = vpack.c.b16 %v7211, %v7209
        %v7250 = vpack.c.b16 %v7212, %v7210
        %v7251 = vpack.c.b16 %v7215, %v7213
        %v7252 = vpack.c.b16 %v7216, %v7214
        %v7253 = vpack.c.b16 %v7219, %v7217
        %v7254 = vpack.c.b16 %v7220, %v7218
        %v7255 = vpack.c.b16 %v7223, %v7221
        %v7256 = vpack.c.b16 %v7224, %v7222
        %7289 = vmatprep.subr.bf16.mxu0 %v7226
        %7290 = vmatpush1.bf16.msra.mxu0 %v7225
        %7291 = vmatprep.subr.bf16.mxu0 %v7228
        %7292 = vmatpush1.bf16.msra.mxu0 %v7227
        %7293 = vmatprep.subr.bf16.mxu0 %v7230
        %7294 = vmatpush1.bf16.msra.mxu0 %v7229
        %7295 = vmatprep.subr.bf16.mxu0 %v7232
        %7296 = vmatpush1.bf16.msra.mxu0 %v7231
        %7297 = vmatprep.subr.bf16.mxu0 %v7234
        %7298 = vmatpush1.bf16.msra.mxu0 %v7233
        %7299 = vmatprep.subr.bf16.mxu0 %v7236
        %7300 = vmatpush1.bf16.msra.mxu0 %v7235
        %7301 = vmatprep.subr.bf16.mxu0 %v7238
        %7302 = vmatpush1.bf16.msra.mxu0 %v7237
        %7303 = vmatprep.subr.bf16.mxu0 %v7240
        %7304 = vmatpush1.bf16.msra.mxu0 %v7239
        %7305 = vmatprep.subr.bf16.mxu0 %v7242
        %7306 = vmatpush1.bf16.msra.mxu0 %v7241
        %7307 = vmatprep.subr.bf16.mxu0 %v7244
        %7308 = vmatpush1.bf16.msra.mxu0 %v7243
        %7309 = vmatprep.subr.bf16.mxu0 %v7246
        %7310 = vmatpush1.bf16.msra.mxu0 %v7245
        %7311 = vmatprep.subr.bf16.mxu0 %v7248
        %7312 = vmatpush1.bf16.msra.mxu0 %v7247
        %7313 = vmatprep.subr.bf16.mxu0 %v7250
        %7314 = vmatpush1.bf16.msra.mxu0 %v7249
        %7315 = vmatprep.subr.bf16.mxu0 %v7252
        %7316 = vmatpush1.bf16.msra.mxu0 %v7251
        %7317 = vmatprep.subr.bf16.mxu0 %v7254
        %7318 = vmatpush1.bf16.msra.mxu0 %v7253
        %7319 = vmatprep.subr.bf16.mxu0 %v7256
        %7320 = vmatpush1.bf16.msra.mxu0 %v7255
        %7321 = vmatprep.mubr.bf16.mxu0 %v7070
        %7322 = vmatmul.mubr.bf16.gmra.mrb[0].mxu0 %v7069
        %v7323 = vpop.f32.mrb[0].mxu0
        %v7324 = vadd.f32 %v7122, %v7323
        %v7325 = vpop.f32.mrb[0].mxu0
        %v7326 = vadd.f32 %v7126, %v7325
        %v7327 = vpop.f32.mrb[0].mxu0
        %v7328 = vadd.f32 %v7122, %v7327
        %v7329 = vpop.f32.mrb[0].mxu0
        %v7330 = vadd.f32 %v7126, %v7329
        %7331 = vmatprep.mubr.bf16.mxu0 %v7072
        %7332 = vmatmul.mubr.bf16.gmra.mrb[0].mxu0 %v7071
        %v7333 = vpop.f32.mrb[0].mxu0
        %v7334 = vadd.f32 %v7122, %v7333
        %v7335 = vpop.f32.mrb[0].mxu0
        %v7336 = vadd.f32 %v7126, %v7335
        %v7337 = vpop.f32.mrb[0].mxu0
        %v7338 = vadd.f32 %v7122, %v7337
        %v7339 = vpop.f32.mrb[0].mxu0
        %v7340 = vadd.f32 %v7126, %v7339
        %7341 = vmatprep.mubr.bf16.mxu0 %v7074
        %7342 = vmatmul.mubr.bf16.gmra.mrb[0].mxu0 %v7073
        %v7343 = vpop.f32.mrb[0].mxu0
        %v7344 = vadd.f32 %v7122, %v7343
        %v7345 = vpop.f32.mrb[0].mxu0
        %v7346 = vadd.f32 %v7126, %v7345
        %v7347 = vpop.f32.mrb[0].mxu0
        %v7348 = vadd.f32 %v7122, %v7347
        %v7349 = vpop.f32.mrb[0].mxu0
        %v7350 = vadd.f32 %v7126, %v7349
        %7351 = vmatprep.mubr.bf16.mxu0 %v7076
        %7352 = vmatmul.mubr.bf16.gmra.mrb[0].mxu0 %v7075
        %v7353 = vpop.f32.mrb[0].mxu0
        %v7354 = vadd.f32 %v7122, %v7353
        %v7355 = vpop.f32.mrb[0].mxu0
        %v7356 = vadd.f32 %v7126, %v7355
        %v7357 = vpop.f32.mrb[0].mxu0
        %v7358 = vadd.f32 %v7122, %v7357
        %v7359 = vpop.f32.mrb[0].mxu0
        %v7360 = vadd.f32 %v7126, %v7359
        %7361 = vmatprep.mubr.bf16.mxu0 %v7078
        %7362 = vmatmul.mubr.bf16.gmra.mrb[0].mxu0 %v7077
        %v7363 = vpop.f32.mrb[0].mxu0
        %v7364 = vadd.f32 %v7122, %v7363
        %v7365 = vpop.f32.mrb[0].mxu0
        %v7366 = vadd.f32 %v7126, %v7365
        %v7367 = vpop.f32.mrb[0].mxu0
        %v7368 = vadd.f32 %v7122, %v7367
        %v7369 = vpop.f32.mrb[0].mxu0
        %v7370 = vadd.f32 %v7126, %v7369
        %7371 = vmatprep.mubr.bf16.mxu0 %v7080
        %7372 = vmatmul.mubr.bf16.gmra.mrb[0].mxu0 %v7079
        %v7373 = vpop.f32.mrb[0].mxu0
        %v7374 = vadd.f32 %v7122, %v7373
        %v7375 = vpop.f32.mrb[0].mxu0
        %v7376 = vadd.f32 %v7126, %v7375
        %v7377 = vpop.f32.mrb[0].mxu0
        %v7378 = vadd.f32 %v7122, %v7377
        %v7379 = vpop.f32.mrb[0].mxu0
        %v7380 = vadd.f32 %v7126, %v7379
        %7381 = vmatprep.mubr.bf16.mxu0 %v7082
        %7382 = vmatmul.mubr.bf16.gmra.mrb[0].mxu0 %v7081
        %v7383 = vpop.f32.mrb[0].mxu0
        %v7384 = vadd.f32 %v7122, %v7383
        %v7385 = vpop.f32.mrb[0].mxu0
        %v7386 = vadd.f32 %v7126, %v7385
        %v7387 = vpop.f32.mrb[0].mxu0
        %v7388 = vadd.f32 %v7122, %v7387
        %v7389 = vpop.f32.mrb[0].mxu0
        %v7390 = vadd.f32 %v7126, %v7389
        %7391 = vmatprep.mubr.bf16.mxu0 %v7084
        %7392 = vmatmul.mubr.bf16.gmra.mrb[0].mxu0 %v7083
        %v7393 = vpop.f32.mrb[0].mxu0
        %v7394 = vadd.f32 %v7122, %v7393
        %v7395 = vpop.f32.mrb[0].mxu0
        %v7396 = vadd.f32 %v7126, %v7395
        %v7397 = vpop.f32.mrb[0].mxu0
        %v7398 = vadd.f32 %v7122, %v7397
        %v7399 = vpop.f32.mrb[0].mxu0
        %v7400 = vadd.f32 %v7126, %v7399
        %7401 = vdwg.mxu0
        %v7402 = vadd.f32 %v743, %v7324
        %v7403 = vadd.f32 %v744, %v7326
        %v7404 = vadd.f32 %v745, %v7328
        %v7405 = vadd.f32 %v746, %v7330
        %v7406 = vadd.f32 %v747, %v7334
        %v7407 = vadd.f32 %v748, %v7336
        %v7408 = vadd.f32 %v749, %v7338
        %v7409 = vadd.f32 %v750, %v7340
        %v7410 = vadd.f32 %v751, %v7344
        %v7411 = vadd.f32 %v752, %v7346
        %v7412 = vadd.f32 %v753, %v7348
        %v7413 = vadd.f32 %v754, %v7350
        %v7414 = vadd.f32 %v755, %v7354
        %v7415 = vadd.f32 %v756, %v7356
        %v7416 = vadd.f32 %v757, %v7358
        %v7417 = vadd.f32 %v758, %v7360
        %v7418 = vadd.f32 %v759, %v7364
        %v7419 = vadd.f32 %v760, %v7366
        %v7420 = vadd.f32 %v761, %v7368
        %v7421 = vadd.f32 %v762, %v7370
        %v7422 = vadd.f32 %v763, %v7374
        %v7423 = vadd.f32 %v764, %v7376
        %v7424 = vadd.f32 %v765, %v7378
        %v7425 = vadd.f32 %v766, %v7380
        %v7426 = vadd.f32 %v767, %v7384
        %v7427 = vadd.f32 %v768, %v7386
        %v7428 = vadd.f32 %v769, %v7388
        %v7429 = vadd.f32 %v770, %v7390
        %v7430 = vadd.f32 %v771, %v7394
        %v7431 = vadd.f32 %v772, %v7396
        %v7432 = vadd.f32 %v773, %v7398
        %v7433 = vadd.f32 %v774, %v7400
        %v7434 = vld [vmem:[%s12] sm:$0x3]
        %v7435 = vld [vmem:[%s13] sm:$0x3]
        %v7436 = vadd.f32 %v7402, %v7403
        %7437 = vadd.xlane.f32.xlu0 %v7436
        %v7438 = vpop.xlane.xlu0 %7437
        %v7439 = vadd.f32 %v7404, %v7405
        %7440 = vadd.xlane.f32.xlu0 %v7439
        %v7441 = vpop.xlane.xlu0 %7440
        %v7442 = vadd.f32 %v7406, %v7407
        %7443 = vadd.xlane.f32.xlu0 %v7442
        %v7444 = vpop.xlane.xlu0 %7443
        %v7445 = vadd.f32 %v7408, %v7409
        %7446 = vadd.xlane.f32.xlu0 %v7445
        %v7447 = vpop.xlane.xlu0 %7446
        %v7448 = vadd.f32 %v7410, %v7411
        %7449 = vadd.xlane.f32.xlu0 %v7448
        %v7450 = vpop.xlane.xlu0 %7449
        %v7451 = vadd.f32 %v7412, %v7413
        %7452 = vadd.xlane.f32.xlu0 %v7451
        %v7453 = vpop.xlane.xlu0 %7452
        %v7454 = vadd.f32 %v7414, %v7415
        %7455 = vadd.xlane.f32.xlu0 %v7454
        %v7456 = vpop.xlane.xlu0 %7455
        %v7457 = vadd.f32 %v7416, %v7417
        %7458 = vadd.xlane.f32.xlu0 %v7457
        %v7459 = vpop.xlane.xlu0 %7458
        %v7460 = vadd.f32 %v7418, %v7419
        %7461 = vadd.xlane.f32.xlu0 %v7460
        %v7462 = vpop.xlane.xlu0 %7461
        %v7463 = vadd.f32 %v7420, %v7421
        %7464 = vadd.xlane.f32.xlu0 %v7463
        %v7465 = vpop.xlane.xlu0 %7464
        %v7466 = vadd.f32 %v7422, %v7423
        %7467 = vadd.xlane.f32.xlu0 %v7466
        %v7468 = vpop.xlane.xlu0 %7467
        %v7469 = vadd.f32 %v7424, %v7425
        %7470 = vadd.xlane.f32.xlu0 %v7469
        %v7471 = vpop.xlane.xlu0 %7470
        %v7472 = vadd.f32 %v7426, %v7427
        %7473 = vadd.xlane.f32.xlu0 %v7472
        %v7474 = vpop.xlane.xlu0 %7473
        %v7475 = vadd.f32 %v7428, %v7429
        %7476 = vadd.xlane.f32.xlu0 %v7475
        %v7477 = vpop.xlane.xlu0 %7476
        %v7478 = vadd.f32 %v7430, %v7431
        %7479 = vadd.xlane.f32.xlu0 %v7478
        %v7480 = vpop.xlane.xlu0 %7479
        %v7481 = vadd.f32 %v7432, %v7433
        %7482 = vadd.xlane.f32.xlu0 %v7481
        %v7483 = vpop.xlane.xlu0 %7482
        %v7484 = vmul.f32 %v7438, %v825
        %v7485 = vmul.f32 %v7441, %v825
        %v7486 = vmul.f32 %v7444, %v825
        %v7487 = vmul.f32 %v7447, %v825
        %v7488 = vmul.f32 %v7450, %v825
        %v7489 = vmul.f32 %v7453, %v825
        %v7490 = vmul.f32 %v7456, %v825
        %v7491 = vmul.f32 %v7459, %v825
        %v7492 = vmul.f32 %v7462, %v825
        %v7493 = vmul.f32 %v7465, %v825
        %v7494 = vmul.f32 %v7468, %v825
        %v7495 = vmul.f32 %v7471, %v825
        %v7496 = vmul.f32 %v7474, %v825
        %v7497 = vmul.f32 %v7477, %v825
        %v7498 = vmul.f32 %v7480, %v825
        %v7499 = vmul.f32 %v7483, %v825
        %v7500 = vsub.f32 %v7402, %v7484
        %v7501 = vsub.f32 %v7403, %v7484
        %v7502 = vsub.f32 %v7404, %v7485
        %v7503 = vsub.f32 %v7405, %v7485
        %v7504 = vsub.f32 %v7406, %v7486
        %v7505 = vsub.f32 %v7407, %v7486
        %v7506 = vsub.f32 %v7408, %v7487
        %v7507 = vsub.f32 %v7409, %v7487
        %v7508 = vsub.f32 %v7410, %v7488
        %v7509 = vsub.f32 %v7411, %v7488
        %v7510 = vsub.f32 %v7412, %v7489
        %v7511 = vsub.f32 %v7413, %v7489
        %v7512 = vsub.f32 %v7414, %v7490
        %v7513 = vsub.f32 %v7415, %v7490
        %v7514 = vsub.f32 %v7416, %v7491
        %v7515 = vsub.f32 %v7417, %v7491
        %v7516 = vsub.f32 %v7418, %v7492
        %v7517 = vsub.f32 %v7419, %v7492
        %v7518 = vsub.f32 %v7420, %v7493
        %v7519 = vsub.f32 %v7421, %v7493
        %v7520 = vsub.f32 %v7422, %v7494
        %v7521 = vsub.f32 %v7423, %v7494
        %v7522 = vsub.f32 %v7424, %v7495
        %v7523 = vsub.f32 %v7425, %v7495
        %v7524 = vsub.f32 %v7426, %v7496
        %v7525 = vsub.f32 %v7427, %v7496
        %v7526 = vsub.f32 %v7428, %v7497
        %v7527 = vsub.f32 %v7429, %v7497
        %v7528 = vsub.f32 %v7430, %v7498
        %v7529 = vsub.f32 %v7431, %v7498
        %v7530 = vsub.f32 %v7432, %v7499
        %v7531 = vsub.f32 %v7433, %v7499
        %v7532 = vmul.f32 %v7500, %v7500
        %v7533 = vmul.f32 %v7501, %v7501
        %v7534 = vmul.f32 %v7502, %v7502
        %v7535 = vmul.f32 %v7503, %v7503
        %v7536 = vmul.f32 %v7504, %v7504
        %v7537 = vmul.f32 %v7505, %v7505
        %v7538 = vmul.f32 %v7506, %v7506
        %v7539 = vmul.f32 %v7507, %v7507
        %v7540 = vmul.f32 %v7508, %v7508
        %v7541 = vmul.f32 %v7509, %v7509
        %v7542 = vmul.f32 %v7510, %v7510
        %v7543 = vmul.f32 %v7511, %v7511
        %v7544 = vmul.f32 %v7512, %v7512
        %v7545 = vmul.f32 %v7513, %v7513
        %v7546 = vmul.f32 %v7514, %v7514
        %v7547 = vmul.f32 %v7515, %v7515
        %v7548 = vmul.f32 %v7516, %v7516
        %v7549 = vmul.f32 %v7517, %v7517
        %v7550 = vmul.f32 %v7518, %v7518
        %v7551 = vmul.f32 %v7519, %v7519
        %v7552 = vmul.f32 %v7520, %v7520
        %v7553 = vmul.f32 %v7521, %v7521
        %v7554 = vmul.f32 %v7522, %v7522
        %v7555 = vmul.f32 %v7523, %v7523
        %v7556 = vmul.f32 %v7524, %v7524
        %v7557 = vmul.f32 %v7525, %v7525
        %v7558 = vmul.f32 %v7526, %v7526
        %v7559 = vmul.f32 %v7527, %v7527
        %v7560 = vmul.f32 %v7528, %v7528
        %v7561 = vmul.f32 %v7529, %v7529
        %v7562 = vmul.f32 %v7530, %v7530
        %v7563 = vmul.f32 %v7531, %v7531
        %v7564 = vadd.f32 %v7532, %v7533
        %7565 = vadd.xlane.f32.xlu0 %v7564
        %v7566 = vpop.xlane.xlu0 %7565
        %v7567 = vadd.f32 %v7534, %v7535
        %7568 = vadd.xlane.f32.xlu0 %v7567
        %v7569 = vpop.xlane.xlu0 %7568
        %v7570 = vadd.f32 %v7536, %v7537
        %7571 = vadd.xlane.f32.xlu0 %v7570
        %v7572 = vpop.xlane.xlu0 %7571
        %v7573 = vadd.f32 %v7538, %v7539
        %7574 = vadd.xlane.f32.xlu0 %v7573
        %v7575 = vpop.xlane.xlu0 %7574
        %v7576 = vadd.f32 %v7540, %v7541
        %7577 = vadd.xlane.f32.xlu0 %v7576
        %v7578 = vpop.xlane.xlu0 %7577
        %v7579 = vadd.f32 %v7542, %v7543
        %7580 = vadd.xlane.f32.xlu0 %v7579
        %v7581 = vpop.xlane.xlu0 %7580
        %v7582 = vadd.f32 %v7544, %v7545
        %7583 = vadd.xlane.f32.xlu0 %v7582
        %v7584 = vpop.xlane.xlu0 %7583
        %v7585 = vadd.f32 %v7546, %v7547
        %7586 = vadd.xlane.f32.xlu0 %v7585
        %v7587 = vpop.xlane.xlu0 %7586
        %v7588 = vadd.f32 %v7548, %v7549
        %7589 = vadd.xlane.f32.xlu0 %v7588
        %v7590 = vpop.xlane.xlu0 %7589
        %v7591 = vadd.f32 %v7550, %v7551
        %7592 = vadd.xlane.f32.xlu0 %v7591
        %v7593 = vpop.xlane.xlu0 %7592
        %v7594 = vadd.f32 %v7552, %v7553
        %7595 = vadd.xlane.f32.xlu0 %v7594
        %v7596 = vpop.xlane.xlu0 %7595
        %v7597 = vadd.f32 %v7554, %v7555
        %7598 = vadd.xlane.f32.xlu0 %v7597
        %v7599 = vpop.xlane.xlu0 %7598
        %v7600 = vadd.f32 %v7556, %v7557
        %7601 = vadd.xlane.f32.xlu0 %v7600
        %v7602 = vpop.xlane.xlu0 %7601
        %v7603 = vadd.f32 %v7558, %v7559
        %7604 = vadd.xlane.f32.xlu0 %v7603
        %v7605 = vpop.xlane.xlu0 %7604
        %v7606 = vadd.f32 %v7560, %v7561
        %7607 = vadd.xlane.f32.xlu0 %v7606
        %v7608 = vpop.xlane.xlu0 %7607
        %v7609 = vadd.f32 %v7562, %v7563
        %7610 = vadd.xlane.f32.xlu0 %v7609
        %v7611 = vpop.xlane.xlu0 %7610
        %v7612 = vmul.f32 %v7566, %v825
        %v7613 = vmul.f32 %v7569, %v825
        %v7614 = vmul.f32 %v7572, %v825
        %v7615 = vmul.f32 %v7575, %v825
        %v7616 = vmul.f32 %v7578, %v825
        %v7617 = vmul.f32 %v7581, %v825
        %v7618 = vmul.f32 %v7584, %v825
        %v7619 = vmul.f32 %v7587, %v825
        %v7620 = vmul.f32 %v7590, %v825
        %v7621 = vmul.f32 %v7593, %v825
        %v7622 = vmul.f32 %v7596, %v825
        %v7623 = vmul.f32 %v7599, %v825
        %v7624 = vmul.f32 %v7602, %v825
        %v7625 = vmul.f32 %v7605, %v825
        %v7626 = vmul.f32 %v7608, %v825
        %v7627 = vmul.f32 %v7611, %v825
        %v7628 = vadd.f32 %v7612, 1e-05
        %v7629 = vadd.f32 %v7613, 1e-05
        %v7630 = vadd.f32 %v7614, 1e-05
        %v7631 = vadd.f32 %v7615, 1e-05
        %v7632 = vadd.f32 %v7616, 1e-05
        %v7633 = vadd.f32 %v7617, 1e-05
        %v7634 = vadd.f32 %v7618, 1e-05
        %v7635 = vadd.f32 %v7619, 1e-05
        %v7636 = vadd.f32 %v7620, 1e-05
        %v7637 = vadd.f32 %v7621, 1e-05
        %v7638 = vadd.f32 %v7622, 1e-05
        %v7639 = vadd.f32 %v7623, 1e-05
        %v7640 = vadd.f32 %v7624, 1e-05
        %v7641 = vadd.f32 %v7625, 1e-05
        %v7642 = vadd.f32 %v7626, 1e-05
        %v7643 = vadd.f32 %v7627, 1e-05
        %v7644 = vrsqrt.pop %v7628
        %v7645 = vrsqrt.pop %v7629
        %v7646 = vrsqrt.pop %v7630
        %v7647 = vrsqrt.pop %v7631
        %v7648 = vrsqrt.pop %v7632
        %v7649 = vrsqrt.pop %v7633
        %v7650 = vrsqrt.pop %v7634
        %v7651 = vrsqrt.pop %v7635
        %v7652 = vrsqrt.pop %v7636
        %v7653 = vrsqrt.pop %v7637
        %v7654 = vrsqrt.pop %v7638
        %v7655 = vrsqrt.pop %v7639
        %v7656 = vrsqrt.pop %v7640
        %v7657 = vrsqrt.pop %v7641
        %v7658 = vrsqrt.pop %v7642
        %v7659 = vrsqrt.pop %v7643
        %v7660 = vmul.f32 %v7500, %v7644
        %v7661 = vmul.f32 %v7501, %v7644
        %v7662 = vmul.f32 %v7502, %v7645
        %v7663 = vmul.f32 %v7503, %v7645
        %v7664 = vmul.f32 %v7504, %v7646
        %v7665 = vmul.f32 %v7505, %v7646
        %v7666 = vmul.f32 %v7506, %v7647
        %v7667 = vmul.f32 %v7507, %v7647
        %v7668 = vmul.f32 %v7508, %v7648
        %v7669 = vmul.f32 %v7509, %v7648
        %v7670 = vmul.f32 %v7510, %v7649
        %v7671 = vmul.f32 %v7511, %v7649
        %v7672 = vmul.f32 %v7512, %v7650
        %v7673 = vmul.f32 %v7513, %v7650
        %v7674 = vmul.f32 %v7514, %v7651
        %v7675 = vmul.f32 %v7515, %v7651
        %v7676 = vmul.f32 %v7516, %v7652
        %v7677 = vmul.f32 %v7517, %v7652
        %v7678 = vmul.f32 %v7518, %v7653
        %v7679 = vmul.f32 %v7519, %v7653
        %v7680 = vmul.f32 %v7520, %v7654
        %v7681 = vmul.f32 %v7521, %v7654
        %v7682 = vmul.f32 %v7522, %v7655
        %v7683 = vmul.f32 %v7523, %v7655
        %v7684 = vmul.f32 %v7524, %v7656
        %v7685 = vmul.f32 %v7525, %v7656
        %v7686 = vmul.f32 %v7526, %v7657
        %v7687 = vmul.f32 %v7527, %v7657
        %v7688 = vmul.f32 %v7528, %v7658
        %v7689 = vmul.f32 %v7529, %v7658
        %v7690 = vmul.f32 %v7530, %v7659
        %v7691 = vmul.f32 %v7531, %v7659
        %v7693 = vlaneseq
        %v7694 = vshrl.u32 %v7693, 7
        %v7695 = vsub.s32 0, %v7694
        %v7696 = vrot.slane %v7434, %v7695
        %v7697 = vlaneseq
        %v7698 = vshrl.u32 %v7697, 7
        %v7699 = vsub.s32 1, %v7698
        %v7700 = vrot.slane %v7434, %v7699
        %v7703 = vmul.f32 %v7660, %v7696
        %v7704 = vmul.f32 %v7661, %v7700
        %v7705 = vmul.f32 %v7662, %v7696
        %v7706 = vmul.f32 %v7663, %v7700
        %v7707 = vmul.f32 %v7664, %v7696
        %v7708 = vmul.f32 %v7665, %v7700
        %v7709 = vmul.f32 %v7666, %v7696
        %v7710 = vmul.f32 %v7667, %v7700
        %v7711 = vmul.f32 %v7668, %v7696
        %v7712 = vmul.f32 %v7669, %v7700
        %v7713 = vmul.f32 %v7670, %v7696
        %v7714 = vmul.f32 %v7671, %v7700
        %v7715 = vmul.f32 %v7672, %v7696
        %v7716 = vmul.f32 %v7673, %v7700
        %v7717 = vmul.f32 %v7674, %v7696
        %v7718 = vmul.f32 %v7675, %v7700
        %v7719 = vmul.f32 %v7676, %v7696
        %v7720 = vmul.f32 %v7677, %v7700
        %v7721 = vmul.f32 %v7678, %v7696
        %v7722 = vmul.f32 %v7679, %v7700
        %v7723 = vmul.f32 %v7680, %v7696
        %v7724 = vmul.f32 %v7681, %v7700
        %v7725 = vmul.f32 %v7682, %v7696
        %v7726 = vmul.f32 %v7683, %v7700
        %v7727 = vmul.f32 %v7684, %v7696
        %v7728 = vmul.f32 %v7685, %v7700
        %v7729 = vmul.f32 %v7686, %v7696
        %v7730 = vmul.f32 %v7687, %v7700
        %v7731 = vmul.f32 %v7688, %v7696
        %v7732 = vmul.f32 %v7689, %v7700
        %v7733 = vmul.f32 %v7690, %v7696
        %v7734 = vmul.f32 %v7691, %v7700
        %v7736 = vlaneseq
        %v7737 = vshrl.u32 %v7736, 7
        %v7738 = vsub.s32 0, %v7737
        %v7739 = vrot.slane %v7435, %v7738
        %v7740 = vlaneseq
        %v7741 = vshrl.u32 %v7740, 7
        %v7742 = vsub.s32 1, %v7741
        %v7743 = vrot.slane %v7435, %v7742
        %v7746 = vadd.f32 %v7703, %v7739
        %v7747 = vadd.f32 %v7704, %v7743
        %v7748 = vadd.f32 %v7705, %v7739
        %v7749 = vadd.f32 %v7706, %v7743
        %v7750 = vadd.f32 %v7707, %v7739
        %v7751 = vadd.f32 %v7708, %v7743
        %v7752 = vadd.f32 %v7709, %v7739
        %v7753 = vadd.f32 %v7710, %v7743
        %v7754 = vadd.f32 %v7711, %v7739
        %v7755 = vadd.f32 %v7712, %v7743
        %v7756 = vadd.f32 %v7713, %v7739
        %v7757 = vadd.f32 %v7714, %v7743
        %v7758 = vadd.f32 %v7715, %v7739
        %v7759 = vadd.f32 %v7716, %v7743
        %v7760 = vadd.f32 %v7717, %v7739
        %v7761 = vadd.f32 %v7718, %v7743
        %v7762 = vadd.f32 %v7719, %v7739
        %v7763 = vadd.f32 %v7720, %v7743
        %v7764 = vadd.f32 %v7721, %v7739
        %v7765 = vadd.f32 %v7722, %v7743
        %v7766 = vadd.f32 %v7723, %v7739
        %v7767 = vadd.f32 %v7724, %v7743
        %v7768 = vadd.f32 %v7725, %v7739
        %v7769 = vadd.f32 %v7726, %v7743
        %v7770 = vadd.f32 %v7727, %v7739
        %v7771 = vadd.f32 %v7728, %v7743
        %v7772 = vadd.f32 %v7729, %v7739
        %v7773 = vadd.f32 %v7730, %v7743
        %v7774 = vadd.f32 %v7731, %v7739
        %v7775 = vadd.f32 %v7732, %v7743
        %v7776 = vadd.f32 %v7733, %v7739
        %v7777 = vadd.f32 %v7734, %v7743
        %v7778 = vpack.c.bf16 %v7748, %v7746
        %v7779 = vpack.c.bf16 %v7749, %v7747
        %v7780 = vpack.c.bf16 %v7752, %v7750
        %v7781 = vpack.c.bf16 %v7753, %v7751
        %v7782 = vpack.c.bf16 %v7756, %v7754
        %v7783 = vpack.c.bf16 %v7757, %v7755
        %v7784 = vpack.c.bf16 %v7760, %v7758
        %v7785 = vpack.c.bf16 %v7761, %v7759
        %v7786 = vpack.c.bf16 %v7764, %v7762
        %v7787 = vpack.c.bf16 %v7765, %v7763
        %v7788 = vpack.c.bf16 %v7768, %v7766
        %v7789 = vpack.c.bf16 %v7769, %v7767
        %v7790 = vpack.c.bf16 %v7772, %v7770
        %v7791 = vpack.c.bf16 %v7773, %v7771
        %v7792 = vpack.c.bf16 %v7776, %v7774
        %v7793 = vpack.c.bf16 %v7777, %v7775
        %v7794 = vld [vmem:[#allocation16] sm:$0xff]
        %v7795 = vld [vmem:[#allocation16 + $0x8] sm:$0xff]
        %v7796 = vld [vmem:[#allocation16 + $0x10] sm:$0xff]
        %v7797 = vld [vmem:[#allocation16 + $0x18] sm:$0xff]
        %v7798 = vld [vmem:[#allocation16 + $0x20] sm:$0xff]
        %v7799 = vld [vmem:[#allocation16 + $0x28] sm:$0xff]
        %v7800 = vld [vmem:[#allocation16 + $0x30] sm:$0xff]
        %v7801 = vld [vmem:[#allocation16 + $0x38] sm:$0xff]
        %v7802 = vld [vmem:[#allocation16 + $0x40] sm:$0xff]
        %v7803 = vld [vmem:[#allocation16 + $0x48] sm:$0xff]
        %v7804 = vld [vmem:[#allocation16 + $0x50] sm:$0xff]
        %v7805 = vld [vmem:[#allocation16 + $0x58] sm:$0xff]
        %v7806 = vld [vmem:[#allocation16 + $0x60] sm:$0xff]
        %v7807 = vld [vmem:[#allocation16 + $0x68] sm:$0xff]
        %v7808 = vld [vmem:[#allocation16 + $0x70] sm:$0xff]
        %v7809 = vld [vmem:[#allocation16 + $0x78] sm:$0xff]
        %v7810 = vld [vmem:[#allocation16 + $0x80] sm:$0xff]
        %v7811 = vld [vmem:[#allocation16 + $0x88] sm:$0xff]
        %v7812 = vld [vmem:[#allocation16 + $0x90] sm:$0xff]
        %v7813 = vld [vmem:[#allocation16 + $0x98] sm:$0xff]
        %v7814 = vld [vmem:[#allocation16 + $0xa0] sm:$0xff]
        %v7815 = vld [vmem:[#allocation16 + $0xa8] sm:$0xff]
        %v7816 = vld [vmem:[#allocation16 + $0xb0] sm:$0xff]
        %v7817 = vld [vmem:[#allocation16 + $0xb8] sm:$0xff]
        %v7818 = vld [vmem:[#allocation16 + $0xc0] sm:$0xff]
        %v7819 = vld [vmem:[#allocation16 + $0xc8] sm:$0xff]
        %v7820 = vld [vmem:[#allocation16 + $0xd0] sm:$0xff]
        %v7821 = vld [vmem:[#allocation16 + $0xd8] sm:$0xff]
        %v7822 = vld [vmem:[#allocation16 + $0xe0] sm:$0xff]
        %v7823 = vld [vmem:[#allocation16 + $0xe8] sm:$0xff]
        %v7824 = vld [vmem:[#allocation16 + $0xf0] sm:$0xff]
        %v7825 = vld [vmem:[#allocation16 + $0xf8] sm:$0xff]
        %v7826 = vld [vmem:[#allocation16 + $0x100] sm:$0xff]
        %v7827 = vld [vmem:[#allocation16 + $0x108] sm:$0xff]
        %v7828 = vld [vmem:[#allocation16 + $0x110] sm:$0xff]
        %v7829 = vld [vmem:[#allocation16 + $0x118] sm:$0xff]
        %v7830 = vld [vmem:[#allocation16 + $0x120] sm:$0xff]
        %v7831 = vld [vmem:[#allocation16 + $0x128] sm:$0xff]
        %v7832 = vld [vmem:[#allocation16 + $0x130] sm:$0xff]
        %v7833 = vld [vmem:[#allocation16 + $0x138] sm:$0xff]
        %v7834 = vld [vmem:[#allocation16 + $0x140] sm:$0xff]
        %v7835 = vld [vmem:[#allocation16 + $0x148] sm:$0xff]
        %v7836 = vld [vmem:[#allocation16 + $0x150] sm:$0xff]
        %v7837 = vld [vmem:[#allocation16 + $0x158] sm:$0xff]
        %v7838 = vld [vmem:[#allocation16 + $0x160] sm:$0xff]
        %v7839 = vld [vmem:[#allocation16 + $0x168] sm:$0xff]
        %v7840 = vld [vmem:[#allocation16 + $0x170] sm:$0xff]
        %v7841 = vld [vmem:[#allocation16 + $0x178] sm:$0xff]
        %v7842 = vld [vmem:[#allocation16 + $0x180] sm:$0xff]
        %v7843 = vld [vmem:[#allocation16 + $0x188] sm:$0xff]
        %v7844 = vld [vmem:[#allocation16 + $0x190] sm:$0xff]
        %v7845 = vld [vmem:[#allocation16 + $0x198] sm:$0xff]
        %v7846 = vld [vmem:[#allocation16 + $0x1a0] sm:$0xff]
        %v7847 = vld [vmem:[#allocation16 + $0x1a8] sm:$0xff]
        %v7848 = vld [vmem:[#allocation16 + $0x1b0] sm:$0xff]
        %v7849 = vld [vmem:[#allocation16 + $0x1b8] sm:$0xff]
        %v7850 = vld [vmem:[#allocation16 + $0x1c0] sm:$0xff]
        %v7851 = vld [vmem:[#allocation16 + $0x1c8] sm:$0xff]
        %v7852 = vld [vmem:[#allocation16 + $0x1d0] sm:$0xff]
        %v7853 = vld [vmem:[#allocation16 + $0x1d8] sm:$0xff]
        %v7854 = vld [vmem:[#allocation16 + $0x1e0] sm:$0xff]
        %v7855 = vld [vmem:[#allocation16 + $0x1e8] sm:$0xff]
        %v7856 = vld [vmem:[#allocation16 + $0x1f0] sm:$0xff]
        %v7857 = vld [vmem:[#allocation16 + $0x1f8] sm:$0xff]
        %v7858 = vld [vmem:[%s15] sm:$0xf]
        %v7860 = vlaneseq
        %v7861 = vshrl.u32 %v7860, 7
        %v7862 = vsub.s32 0, %v7861
        %v7863 = vrot.slane %v7858, %v7862
        %v7864 = vlaneseq
        %v7865 = vshrl.u32 %v7864, 7
        %v7866 = vsub.s32 1, %v7865
        %v7867 = vrot.slane %v7858, %v7866
        %v7868 = vlaneseq
        %v7869 = vshrl.u32 %v7868, 7
        %v7870 = vsub.s32 2, %v7869
        %v7871 = vrot.slane %v7858, %v7870
        %v7872 = vlaneseq
        %v7873 = vshrl.u32 %v7872, 7
        %v7874 = vsub.s32 3, %v7873
        %v7875 = vrot.slane %v7858, %v7874
        %v7944 = vunpack.c.l.b16 %v7794
        %v7945 = vunpack.c.h.b16 %v7794
        %v7946 = vunpack.c.l.b16 %v7795
        %v7947 = vunpack.c.h.b16 %v7795
        %v7948 = vunpack.c.l.b16 %v7796
        %v7949 = vunpack.c.h.b16 %v7796
        %v7950 = vunpack.c.l.b16 %v7797
        %v7951 = vunpack.c.h.b16 %v7797
        %v7952 = vunpack.c.l.b16 %v7798
        %v7953 = vunpack.c.h.b16 %v7798
        %v7954 = vunpack.c.l.b16 %v7799
        %v7955 = vunpack.c.h.b16 %v7799
        %v7956 = vunpack.c.l.b16 %v7800
        %v7957 = vunpack.c.h.b16 %v7800
        %v7958 = vunpack.c.l.b16 %v7801
        %v7959 = vunpack.c.h.b16 %v7801
        %v7960 = vunpack.c.l.b16 %v7802
        %v7961 = vunpack.c.h.b16 %v7802
        %v7962 = vunpack.c.l.b16 %v7803
        %v7963 = vunpack.c.h.b16 %v7803
        %v7964 = vunpack.c.l.b16 %v7804
        %v7965 = vunpack.c.h.b16 %v7804
        %v7966 = vunpack.c.l.b16 %v7805
        %v7967 = vunpack.c.h.b16 %v7805
        %v7968 = vunpack.c.l.b16 %v7806
        %v7969 = vunpack.c.h.b16 %v7806
        %v7970 = vunpack.c.l.b16 %v7807
        %v7971 = vunpack.c.h.b16 %v7807
        %v7972 = vunpack.c.l.b16 %v7808
        %v7973 = vunpack.c.h.b16 %v7808
        %v7974 = vunpack.c.l.b16 %v7809
        %v7975 = vunpack.c.h.b16 %v7809
        %v7976 = vunpack.c.l.b16 %v7810
        %v7977 = vunpack.c.h.b16 %v7810
        %v7978 = vunpack.c.l.b16 %v7811
        %v7979 = vunpack.c.h.b16 %v7811
        %v7980 = vunpack.c.l.b16 %v7812
        %v7981 = vunpack.c.h.b16 %v7812
        %v7982 = vunpack.c.l.b16 %v7813
        %v7983 = vunpack.c.h.b16 %v7813
        %v7984 = vunpack.c.l.b16 %v7814
        %v7985 = vunpack.c.h.b16 %v7814
        %v7986 = vunpack.c.l.b16 %v7815
        %v7987 = vunpack.c.h.b16 %v7815
        %v7988 = vunpack.c.l.b16 %v7816
        %v7989 = vunpack.c.h.b16 %v7816
        %v7990 = vunpack.c.l.b16 %v7817
        %v7991 = vunpack.c.h.b16 %v7817
        %v7992 = vunpack.c.l.b16 %v7818
        %v7993 = vunpack.c.h.b16 %v7818
        %v7994 = vunpack.c.l.b16 %v7819
        %v7995 = vunpack.c.h.b16 %v7819
        %v7996 = vunpack.c.l.b16 %v7820
        %v7997 = vunpack.c.h.b16 %v7820
        %v7998 = vunpack.c.l.b16 %v7821
        %v7999 = vunpack.c.h.b16 %v7821
        %v8000 = vunpack.c.l.b16 %v7822
        %v8001 = vunpack.c.h.b16 %v7822
        %v8002 = vunpack.c.l.b16 %v7823
        %v8003 = vunpack.c.h.b16 %v7823
        %v8004 = vunpack.c.l.b16 %v7824
        %v8005 = vunpack.c.h.b16 %v7824
        %v8006 = vunpack.c.l.b16 %v7825
        %v8007 = vunpack.c.h.b16 %v7825
        %v8008 = vunpack.c.l.b16 %v7826
        %v8009 = vunpack.c.h.b16 %v7826
        %v8010 = vunpack.c.l.b16 %v7827
        %v8011 = vunpack.c.h.b16 %v7827
        %v8012 = vunpack.c.l.b16 %v7828
        %v8013 = vunpack.c.h.b16 %v7828
        %v8014 = vunpack.c.l.b16 %v7829
        %v8015 = vunpack.c.h.b16 %v7829
        %v8016 = vunpack.c.l.b16 %v7830
        %v8017 = vunpack.c.h.b16 %v7830
        %v8018 = vunpack.c.l.b16 %v7831
        %v8019 = vunpack.c.h.b16 %v7831
        %v8020 = vunpack.c.l.b16 %v7832
        %v8021 = vunpack.c.h.b16 %v7832
        %v8022 = vunpack.c.l.b16 %v7833
        %v8023 = vunpack.c.h.b16 %v7833
        %v8024 = vunpack.c.l.b16 %v7834
        %v8025 = vunpack.c.h.b16 %v7834
        %v8026 = vunpack.c.l.b16 %v7835
        %v8027 = vunpack.c.h.b16 %v7835
        %v8028 = vunpack.c.l.b16 %v7836
        %v8029 = vunpack.c.h.b16 %v7836
        %v8030 = vunpack.c.l.b16 %v7837
        %v8031 = vunpack.c.h.b16 %v7837
        %v8032 = vunpack.c.l.b16 %v7838
        %v8033 = vunpack.c.h.b16 %v7838
        %v8034 = vunpack.c.l.b16 %v7839
        %v8035 = vunpack.c.h.b16 %v7839
        %v8036 = vunpack.c.l.b16 %v7840
        %v8037 = vunpack.c.h.b16 %v7840
        %v8038 = vunpack.c.l.b16 %v7841
        %v8039 = vunpack.c.h.b16 %v7841
        %v8040 = vunpack.c.l.b16 %v7842
        %v8041 = vunpack.c.h.b16 %v7842
        %v8042 = vunpack.c.l.b16 %v7843
        %v8043 = vunpack.c.h.b16 %v7843
        %v8044 = vunpack.c.l.b16 %v7844
        %v8045 = vunpack.c.h.b16 %v7844
        %v8046 = vunpack.c.l.b16 %v7845
        %v8047 = vunpack.c.h.b16 %v7845
        %v8048 = vunpack.c.l.b16 %v7846
        %v8049 = vunpack.c.h.b16 %v7846
        %v8050 = vunpack.c.l.b16 %v7847
        %v8051 = vunpack.c.h.b16 %v7847
        %v8052 = vunpack.c.l.b16 %v7848
        %v8053 = vunpack.c.h.b16 %v7848
        %v8054 = vunpack.c.l.b16 %v7849
        %v8055 = vunpack.c.h.b16 %v7849
        %v8056 = vunpack.c.l.b16 %v7850
        %v8057 = vunpack.c.h.b16 %v7850
        %v8058 = vunpack.c.l.b16 %v7851
        %v8059 = vunpack.c.h.b16 %v7851
        %v8060 = vunpack.c.l.b16 %v7852
        %v8061 = vunpack.c.h.b16 %v7852
        %v8062 = vunpack.c.l.b16 %v7853
        %v8063 = vunpack.c.h.b16 %v7853
        %v8064 = vunpack.c.l.b16 %v7854
        %v8065 = vunpack.c.h.b16 %v7854
        %v8066 = vunpack.c.l.b16 %v7855
        %v8067 = vunpack.c.h.b16 %v7855
        %v8068 = vunpack.c.l.b16 %v7856
        %v8069 = vunpack.c.h.b16 %v7856
        %v8070 = vunpack.c.l.b16 %v7857
        %v8071 = vunpack.c.h.b16 %v7857
        %v8072 = vpack.c.b16 %v7948, %v7944
        %v8073 = vpack.c.b16 %v7949, %v7945
        %v8074 = vpack.c.b16 %v7950, %v7946
        %v8075 = vpack.c.b16 %v7951, %v7947
        %v8076 = vpack.c.b16 %v7956, %v7952
        %v8077 = vpack.c.b16 %v7957, %v7953
        %v8078 = vpack.c.b16 %v7958, %v7954
        %v8079 = vpack.c.b16 %v7959, %v7955
        %v8080 = vpack.c.b16 %v7964, %v7960
        %v8081 = vpack.c.b16 %v7965, %v7961
        %v8082 = vpack.c.b16 %v7966, %v7962
        %v8083 = vpack.c.b16 %v7967, %v7963
        %v8084 = vpack.c.b16 %v7972, %v7968
        %v8085 = vpack.c.b16 %v7973, %v7969
        %v8086 = vpack.c.b16 %v7974, %v7970
        %v8087 = vpack.c.b16 %v7975, %v7971
        %v8088 = vpack.c.b16 %v7980, %v7976
        %v8089 = vpack.c.b16 %v7981, %v7977
        %v8090 = vpack.c.b16 %v7982, %v7978
        %v8091 = vpack.c.b16 %v7983, %v7979
        %v8092 = vpack.c.b16 %v7988, %v7984
        %v8093 = vpack.c.b16 %v7989, %v7985
        %v8094 = vpack.c.b16 %v7990, %v7986
        %v8095 = vpack.c.b16 %v7991, %v7987
        %v8096 = vpack.c.b16 %v7996, %v7992
        %v8097 = vpack.c.b16 %v7997, %v7993
        %v8098 = vpack.c.b16 %v7998, %v7994
        %v8099 = vpack.c.b16 %v7999, %v7995
        %v8100 = vpack.c.b16 %v8004, %v8000
        %v8101 = vpack.c.b16 %v8005, %v8001
        %v8102 = vpack.c.b16 %v8006, %v8002
        %v8103 = vpack.c.b16 %v8007, %v8003
        %v8104 = vpack.c.b16 %v8012, %v8008
        %v8105 = vpack.c.b16 %v8013, %v8009
        %v8106 = vpack.c.b16 %v8014, %v8010
        %v8107 = vpack.c.b16 %v8015, %v8011
        %v8108 = vpack.c.b16 %v8020, %v8016
        %v8109 = vpack.c.b16 %v8021, %v8017
        %v8110 = vpack.c.b16 %v8022, %v8018
        %v8111 = vpack.c.b16 %v8023, %v8019
        %v8112 = vpack.c.b16 %v8028, %v8024
        %v8113 = vpack.c.b16 %v8029, %v8025
        %v8114 = vpack.c.b16 %v8030, %v8026
        %v8115 = vpack.c.b16 %v8031, %v8027
        %v8116 = vpack.c.b16 %v8036, %v8032
        %v8117 = vpack.c.b16 %v8037, %v8033
        %v8118 = vpack.c.b16 %v8038, %v8034
        %v8119 = vpack.c.b16 %v8039, %v8035
        %v8120 = vpack.c.b16 %v8044, %v8040
        %v8121 = vpack.c.b16 %v8045, %v8041
        %v8122 = vpack.c.b16 %v8046, %v8042
        %v8123 = vpack.c.b16 %v8047, %v8043
        %v8124 = vpack.c.b16 %v8052, %v8048
        %v8125 = vpack.c.b16 %v8053, %v8049
        %v8126 = vpack.c.b16 %v8054, %v8050
        %v8127 = vpack.c.b16 %v8055, %v8051
        %v8128 = vpack.c.b16 %v8060, %v8056
        %v8129 = vpack.c.b16 %v8061, %v8057
        %v8130 = vpack.c.b16 %v8062, %v8058
        %v8131 = vpack.c.b16 %v8063, %v8059
        %v8132 = vpack.c.b16 %v8068, %v8064
        %v8133 = vpack.c.b16 %v8069, %v8065
        %v8134 = vpack.c.b16 %v8070, %v8066
        %v8135 = vpack.c.b16 %v8071, %v8067
        %8200 = vmatprep.subr.bf16.mxu0 %v8073
        %8201 = vmatpush1.bf16.msra.mxu0 %v8072
        %8202 = vmatprep.subr.bf16.mxu0 %v8077
        %8203 = vmatpush1.bf16.msra.mxu0 %v8076
        %8204 = vmatprep.subr.bf16.mxu0 %v8081
        %8205 = vmatpush1.bf16.msra.mxu0 %v8080
        %8206 = vmatprep.subr.bf16.mxu0 %v8085
        %8207 = vmatpush1.bf16.msra.mxu0 %v8084
        %8208 = vmatprep.subr.bf16.mxu0 %v8089
        %8209 = vmatpush1.bf16.msra.mxu0 %v8088
        %8210 = vmatprep.subr.bf16.mxu0 %v8093
        %8211 = vmatpush1.bf16.msra.mxu0 %v8092
        %8212 = vmatprep.subr.bf16.mxu0 %v8097
        %8213 = vmatpush1.bf16.msra.mxu0 %v8096
        %8214 = vmatprep.subr.bf16.mxu0 %v8101
        %8215 = vmatpush1.bf16.msra.mxu0 %v8100
        %8216 = vmatprep.subr.bf16.mxu0 %v8105
        %8217 = vmatpush1.bf16.msra.mxu0 %v8104
        %8218 = vmatprep.subr.bf16.mxu0 %v8109
        %8219 = vmatpush1.bf16.msra.mxu0 %v8108
        %8220 = vmatprep.subr.bf16.mxu0 %v8113
        %8221 = vmatpush1.bf16.msra.mxu0 %v8112
        %8222 = vmatprep.subr.bf16.mxu0 %v8117
        %8223 = vmatpush1.bf16.msra.mxu0 %v8116
        %8224 = vmatprep.subr.bf16.mxu0 %v8121
        %8225 = vmatpush1.bf16.msra.mxu0 %v8120
        %8226 = vmatprep.subr.bf16.mxu0 %v8125
        %8227 = vmatpush1.bf16.msra.mxu0 %v8124
        %8228 = vmatprep.subr.bf16.mxu0 %v8129
        %8229 = vmatpush1.bf16.msra.mxu0 %v8128
        %8230 = vmatprep.subr.bf16.mxu0 %v8133
        %8231 = vmatpush1.bf16.msra.mxu0 %v8132
        %8232 = vmatprep.mubr.bf16.mxu0 %v7779
        %8233 = vmatmul.mubr.bf16.gmra.mrb[0].mxu0 %v7778
        %v8234 = vpop.f32.mrb[0].mxu0
        %v8235 = vadd.f32 %v7863, %v8234
        %v8236 = vpop.f32.mrb[0].mxu0
        %v8237 = vadd.f32 %v7867, %v8236
        %v8238 = vpop.f32.mrb[0].mxu0
        %v8239 = vadd.f32 %v7863, %v8238
        %v8240 = vpop.f32.mrb[0].mxu0
        %v8241 = vadd.f32 %v7867, %v8240
        %8242 = vmatprep.mubr.bf16.mxu0 %v7781
        %8243 = vmatmul.mubr.bf16.gmra.mrb[0].mxu0 %v7780
        %v8244 = vpop.f32.mrb[0].mxu0
        %v8245 = vadd.f32 %v7863, %v8244
        %v8246 = vpop.f32.mrb[0].mxu0
        %v8247 = vadd.f32 %v7867, %v8246
        %v8248 = vpop.f32.mrb[0].mxu0
        %v8249 = vadd.f32 %v7863, %v8248
        %v8250 = vpop.f32.mrb[0].mxu0
        %v8251 = vadd.f32 %v7867, %v8250
        %8252 = vmatprep.mubr.bf16.mxu0 %v7783
        %8253 = vmatmul.mubr.bf16.gmra.mrb[0].mxu0 %v7782
        %v8254 = vpop.f32.mrb[0].mxu0
        %v8255 = vadd.f32 %v7863, %v8254
        %v8256 = vpop.f32.mrb[0].mxu0
        %v8257 = vadd.f32 %v7867, %v8256
        %v8258 = vpop.f32.mrb[0].mxu0
        %v8259 = vadd.f32 %v7863, %v8258
        %v8260 = vpop.f32.mrb[0].mxu0
        %v8261 = vadd.f32 %v7867, %v8260
        %8262 = vmatprep.mubr.bf16.mxu0 %v7785
        %8263 = vmatmul.mubr.bf16.gmra.mrb[0].mxu0 %v7784
        %v8264 = vpop.f32.mrb[0].mxu0
        %v8265 = vadd.f32 %v7863, %v8264
        %v8266 = vpop.f32.mrb[0].mxu0
        %v8267 = vadd.f32 %v7867, %v8266
        %v8268 = vpop.f32.mrb[0].mxu0
        %v8269 = vadd.f32 %v7863, %v8268
        %v8270 = vpop.f32.mrb[0].mxu0
        %v8271 = vadd.f32 %v7867, %v8270
        %8272 = vmatprep.mubr.bf16.mxu0 %v7787
        %8273 = vmatmul.mubr.bf16.gmra.mrb[0].mxu0 %v7786
        %v8274 = vpop.f32.mrb[0].mxu0
        %v8275 = vadd.f32 %v7863, %v8274
        %v8276 = vpop.f32.mrb[0].mxu0
        %v8277 = vadd.f32 %v7867, %v8276
        %v8278 = vpop.f32.mrb[0].mxu0
        %v8279 = vadd.f32 %v7863, %v8278
        %v8280 = vpop.f32.mrb[0].mxu0
        %v8281 = vadd.f32 %v7867, %v8280
        %8282 = vmatprep.mubr.bf16.mxu0 %v7789
        %8283 = vmatmul.mubr.bf16.gmra.mrb[0].mxu0 %v7788
        %v8284 = vpop.f32.mrb[0].mxu0
        %v8285 = vadd.f32 %v7863, %v8284
        %v8286 = vpop.f32.mrb[0].mxu0
        %v8287 = vadd.f32 %v7867, %v8286
        %v8288 = vpop.f32.mrb[0].mxu0
        %v8289 = vadd.f32 %v7863, %v8288
        %v8290 = vpop.f32.mrb[0].mxu0
        %v8291 = vadd.f32 %v7867, %v8290
        %8292 = vmatprep.mubr.bf16.mxu0 %v7791
        %8293 = vmatmul.mubr.bf16.gmra.mrb[0].mxu0 %v7790
        %v8294 = vpop.f32.mrb[0].mxu0
        %v8295 = vadd.f32 %v7863, %v8294
        %v8296 = vpop.f32.mrb[0].mxu0
        %v8297 = vadd.f32 %v7867, %v8296
        %v8298 = vpop.f32.mrb[0].mxu0
        %v8299 = vadd.f32 %v7863, %v8298
        %v8300 = vpop.f32.mrb[0].mxu0
        %v8301 = vadd.f32 %v7867, %v8300
        %8302 = vmatprep.mubr.bf16.mxu0 %v7793
        %8303 = vmatmul.mubr.bf16.gmra.mrb[0].mxu0 %v7792
        %v8304 = vpop.f32.mrb[0].mxu0
        %v8305 = vadd.f32 %v7863, %v8304
        %v8306 = vpop.f32.mrb[0].mxu0
        %v8307 = vadd.f32 %v7867, %v8306
        %v8308 = vpop.f32.mrb[0].mxu0
        %v8309 = vadd.f32 %v7863, %v8308
        %v8310 = vpop.f32.mrb[0].mxu0
        %v8311 = vadd.f32 %v7867, %v8310
        %8312 = vdwg.mxu0
        %8313 = vmatprep.subr.bf16.mxu0 %v8075
        %8314 = vmatpush1.bf16.msra.mxu0 %v8074
        %8315 = vmatprep.subr.bf16.mxu0 %v8079
        %8316 = vmatpush1.bf16.msra.mxu0 %v8078
        %8317 = vmatprep.subr.bf16.mxu0 %v8083
        %8318 = vmatpush1.bf16.msra.mxu0 %v8082
        %8319 = vmatprep.subr.bf16.mxu0 %v8087
        %8320 = vmatpush1.bf16.msra.mxu0 %v8086
        %8321 = vmatprep.subr.bf16.mxu0 %v8091
        %8322 = vmatpush1.bf16.msra.mxu0 %v8090
        %8323 = vmatprep.subr.bf16.mxu0 %v8095
        %8324 = vmatpush1.bf16.msra.mxu0 %v8094
        %8325 = vmatprep.subr.bf16.mxu0 %v8099
        %8326 = vmatpush1.bf16.msra.mxu0 %v8098
        %8327 = vmatprep.subr.bf16.mxu0 %v8103
        %8328 = vmatpush1.bf16.msra.mxu0 %v8102
        %8329 = vmatprep.subr.bf16.mxu0 %v8107
        %8330 = vmatpush1.bf16.msra.mxu0 %v8106
        %8331 = vmatprep.subr.bf16.mxu0 %v8111
        %8332 = vmatpush1.bf16.msra.mxu0 %v8110
        %8333 = vmatprep.subr.bf16.mxu0 %v8115
        %8334 = vmatpush1.bf16.msra.mxu0 %v8114
        %8335 = vmatprep.subr.bf16.mxu0 %v8119
        %8336 = vmatpush1.bf16.msra.mxu0 %v8118
        %8337 = vmatprep.subr.bf16.mxu0 %v8123
        %8338 = vmatpush1.bf16.msra.mxu0 %v8122
        %8339 = vmatprep.subr.bf16.mxu0 %v8127
        %8340 = vmatpush1.bf16.msra.mxu0 %v8126
        %8341 = vmatprep.subr.bf16.mxu0 %v8131
        %8342 = vmatpush1.bf16.msra.mxu0 %v8130
        %8343 = vmatprep.subr.bf16.mxu0 %v8135
        %8344 = vmatpush1.bf16.msra.mxu0 %v8134
        %8345 = vmatprep.mubr.bf16.mxu0 %v7779
        %8346 = vmatmul.mubr.bf16.gmra.mrb[0].mxu0 %v7778
        %v8347 = vpop.f32.mrb[0].mxu0
        %v8348 = vadd.f32 %v7871, %v8347
        %v8349 = vpop.f32.mrb[0].mxu0
        %v8350 = vadd.f32 %v7875, %v8349
        %v8351 = vpop.f32.mrb[0].mxu0
        %v8352 = vadd.f32 %v7871, %v8351
        %v8353 = vpop.f32.mrb[0].mxu0
        %v8354 = vadd.f32 %v7875, %v8353
        %8355 = vmatprep.mubr.bf16.mxu0 %v7781
        %8356 = vmatmul.mubr.bf16.gmra.mrb[0].mxu0 %v7780
        %v8357 = vpop.f32.mrb[0].mxu0
        %v8358 = vadd.f32 %v7871, %v8357
        %v8359 = vpop.f32.mrb[0].mxu0
        %v8360 = vadd.f32 %v7875, %v8359
        %v8361 = vpop.f32.mrb[0].mxu0
        %v8362 = vadd.f32 %v7871, %v8361
        %v8363 = vpop.f32.mrb[0].mxu0
        %v8364 = vadd.f32 %v7875, %v8363
        %8365 = vmatprep.mubr.bf16.mxu0 %v7783
        %8366 = vmatmul.mubr.bf16.gmra.mrb[0].mxu0 %v7782
        %v8367 = vpop.f32.mrb[0].mxu0
        %v8368 = vadd.f32 %v7871, %v8367
        %v8369 = vpop.f32.mrb[0].mxu0
        %v8370 = vadd.f32 %v7875, %v8369
        %v8371 = vpop.f32.mrb[0].mxu0
        %v8372 = vadd.f32 %v7871, %v8371
        %v8373 = vpop.f32.mrb[0].mxu0
        %v8374 = vadd.f32 %v7875, %v8373
        %8375 = vmatprep.mubr.bf16.mxu0 %v7785
        %8376 = vmatmul.mubr.bf16.gmra.mrb[0].mxu0 %v7784
        %v8377 = vpop.f32.mrb[0].mxu0
        %v8378 = vadd.f32 %v7871, %v8377
        %v8379 = vpop.f32.mrb[0].mxu0
        %v8380 = vadd.f32 %v7875, %v8379
        %v8381 = vpop.f32.mrb[0].mxu0
        %v8382 = vadd.f32 %v7871, %v8381
        %v8383 = vpop.f32.mrb[0].mxu0
        %v8384 = vadd.f32 %v7875, %v8383
        %8385 = vmatprep.mubr.bf16.mxu0 %v7787
        %8386 = vmatmul.mubr.bf16.gmra.mrb[0].mxu0 %v7786
        %v8387 = vpop.f32.mrb[0].mxu0
        %v8388 = vadd.f32 %v7871, %v8387
        %v8389 = vpop.f32.mrb[0].mxu0
        %v8390 = vadd.f32 %v7875, %v8389
        %v8391 = vpop.f32.mrb[0].mxu0
        %v8392 = vadd.f32 %v7871, %v8391
        %v8393 = vpop.f32.mrb[0].mxu0
        %v8394 = vadd.f32 %v7875, %v8393
        %8395 = vmatprep.mubr.bf16.mxu0 %v7789
        %8396 = vmatmul.mubr.bf16.gmra.mrb[0].mxu0 %v7788
        %v8397 = vpop.f32.mrb[0].mxu0
        %v8398 = vadd.f32 %v7871, %v8397
        %v8399 = vpop.f32.mrb[0].mxu0
        %v8400 = vadd.f32 %v7875, %v8399
        %v8401 = vpop.f32.mrb[0].mxu0
        %v8402 = vadd.f32 %v7871, %v8401
        %v8403 = vpop.f32.mrb[0].mxu0
        %v8404 = vadd.f32 %v7875, %v8403
        %8405 = vmatprep.mubr.bf16.mxu0 %v7791
        %8406 = vmatmul.mubr.bf16.gmra.mrb[0].mxu0 %v7790
        %v8407 = vpop.f32.mrb[0].mxu0
        %v8408 = vadd.f32 %v7871, %v8407
        %v8409 = vpop.f32.mrb[0].mxu0
        %v8410 = vadd.f32 %v7875, %v8409
        %v8411 = vpop.f32.mrb[0].mxu0
        %v8412 = vadd.f32 %v7871, %v8411
        %v8413 = vpop.f32.mrb[0].mxu0
        %v8414 = vadd.f32 %v7875, %v8413
        %8415 = vmatprep.mubr.bf16.mxu0 %v7793
        %8416 = vmatmul.mubr.bf16.gmra.mrb[0].mxu0 %v7792
        %v8417 = vpop.f32.mrb[0].mxu0
        %v8418 = vadd.f32 %v7871, %v8417
        %v8419 = vpop.f32.mrb[0].mxu0
        %v8420 = vadd.f32 %v7875, %v8419
        %v8421 = vpop.f32.mrb[0].mxu0
        %v8422 = vadd.f32 %v7871, %v8421
        %v8423 = vpop.f32.mrb[0].mxu0
        %v8424 = vadd.f32 %v7875, %v8423
        %8425 = vdwg.mxu0
        %v8426 = vmul.f32 %v8235, 0.5
        %v8427 = vmul.f32 %v8237, 0.5
        %v8428 = vmul.f32 %v8348, 0.5
        %v8429 = vmul.f32 %v8350, 0.5
        %v8430 = vmul.f32 %v8239, 0.5
        %v8431 = vmul.f32 %v8241, 0.5
        %v8432 = vmul.f32 %v8352, 0.5
        %v8433 = vmul.f32 %v8354, 0.5
        %v8434 = vmul.f32 %v8245, 0.5
        %v8435 = vmul.f32 %v8247, 0.5
        %v8436 = vmul.f32 %v8358, 0.5
        %v8437 = vmul.f32 %v8360, 0.5
        %v8438 = vmul.f32 %v8249, 0.5
        %v8439 = vmul.f32 %v8251, 0.5
        %v8440 = vmul.f32 %v8362, 0.5
        %v8441 = vmul.f32 %v8364, 0.5
        %v8442 = vmul.f32 %v8255, 0.5
        %v8443 = vmul.f32 %v8257, 0.5
        %v8444 = vmul.f32 %v8368, 0.5
        %v8445 = vmul.f32 %v8370, 0.5
        %v8446 = vmul.f32 %v8259, 0.5
        %v8447 = vmul.f32 %v8261, 0.5
        %v8448 = vmul.f32 %v8372, 0.5
        %v8449 = vmul.f32 %v8374, 0.5
        %v8450 = vmul.f32 %v8265, 0.5
        %v8451 = vmul.f32 %v8267, 0.5
        %v8452 = vmul.f32 %v8378, 0.5
        %v8453 = vmul.f32 %v8380, 0.5
        %v8454 = vmul.f32 %v8269, 0.5
        %v8455 = vmul.f32 %v8271, 0.5
        %v8456 = vmul.f32 %v8382, 0.5
        %v8457 = vmul.f32 %v8384, 0.5
        %v8458 = vmul.f32 %v8275, 0.5
        %v8459 = vmul.f32 %v8277, 0.5
        %v8460 = vmul.f32 %v8388, 0.5
        %v8461 = vmul.f32 %v8390, 0.5
        %v8462 = vmul.f32 %v8279, 0.5
        %v8463 = vmul.f32 %v8281, 0.5
        %v8464 = vmul.f32 %v8392, 0.5
        %v8465 = vmul.f32 %v8394, 0.5
        %v8466 = vmul.f32 %v8285, 0.5
        %v8467 = vmul.f32 %v8287, 0.5
        %v8468 = vmul.f32 %v8398, 0.5
        %v8469 = vmul.f32 %v8400, 0.5
        %v8470 = vmul.f32 %v8289, 0.5
        %v8471 = vmul.f32 %v8291, 0.5
        %v8472 = vmul.f32 %v8402, 0.5
        %v8473 = vmul.f32 %v8404, 0.5
        %v8474 = vmul.f32 %v8295, 0.5
        %v8475 = vmul.f32 %v8297, 0.5
        %v8476 = vmul.f32 %v8408, 0.5
        %v8477 = vmul.f32 %v8410, 0.5
        %v8478 = vmul.f32 %v8299, 0.5
        %v8479 = vmul.f32 %v8301, 0.5
        %v8480 = vmul.f32 %v8412, 0.5
        %v8481 = vmul.f32 %v8414, 0.5
        %v8482 = vmul.f32 %v8305, 0.5
        %v8483 = vmul.f32 %v8307, 0.5
        %v8484 = vmul.f32 %v8418, 0.5
        %v8485 = vmul.f32 %v8420, 0.5
        %v8486 = vmul.f32 %v8309, 0.5
        %v8487 = vmul.f32 %v8311, 0.5
        %v8488 = vmul.f32 %v8422, 0.5
        %v8489 = vmul.f32 %v8424, 0.5
        %v8490 = vmul.f32 %v8235, 0.70710677
        %v8491 = vmul.f32 %v8237, 0.70710677
        %v8492 = vmul.f32 %v8348, 0.70710677
        %v8493 = vmul.f32 %v8350, 0.70710677
        %v8494 = vmul.f32 %v8239, 0.70710677
        %v8495 = vmul.f32 %v8241, 0.70710677
        %v8496 = vmul.f32 %v8352, 0.70710677
        %v8497 = vmul.f32 %v8354, 0.70710677
        %v8498 = vmul.f32 %v8245, 0.70710677
        %v8499 = vmul.f32 %v8247, 0.70710677
        %v8500 = vmul.f32 %v8358, 0.70710677
        %v8501 = vmul.f32 %v8360, 0.70710677
        %v8502 = vmul.f32 %v8249, 0.70710677
        %v8503 = vmul.f32 %v8251, 0.70710677
        %v8504 = vmul.f32 %v8362, 0.70710677
        %v8505 = vmul.f32 %v8364, 0.70710677
        %v8506 = vmul.f32 %v8255, 0.70710677
        %v8507 = vmul.f32 %v8257, 0.70710677
        %v8508 = vmul.f32 %v8368, 0.70710677
        %v8509 = vmul.f32 %v8370, 0.70710677
        %v8510 = vmul.f32 %v8259, 0.70710677
        %v8511 = vmul.f32 %v8261, 0.70710677
        %v8512 = vmul.f32 %v8372, 0.70710677
        %v8513 = vmul.f32 %v8374, 0.70710677
        %v8514 = vmul.f32 %v8265, 0.70710677
        %v8515 = vmul.f32 %v8267, 0.70710677
        %v8516 = vmul.f32 %v8378, 0.70710677
        %v8517 = vmul.f32 %v8380, 0.70710677
        %v8518 = vmul.f32 %v8269, 0.70710677
        %v8519 = vmul.f32 %v8271, 0.70710677
        %v8520 = vmul.f32 %v8382, 0.70710677
        %v8521 = vmul.f32 %v8384, 0.70710677
        %v8522 = vmul.f32 %v8275, 0.70710677
        %v8523 = vmul.f32 %v8277, 0.70710677
        %v8524 = vmul.f32 %v8388, 0.70710677
        %v8525 = vmul.f32 %v8390, 0.70710677
        %v8526 = vmul.f32 %v8279, 0.70710677
        %v8527 = vmul.f32 %v8281, 0.70710677
        %v8528 = vmul.f32 %v8392, 0.70710677
        %v8529 = vmul.f32 %v8394, 0.70710677
        %v8530 = vmul.f32 %v8285, 0.70710677
        %v8531 = vmul.f32 %v8287, 0.70710677
        %v8532 = vmul.f32 %v8398, 0.70710677
        %v8533 = vmul.f32 %v8400, 0.70710677
        %v8534 = vmul.f32 %v8289, 0.70710677
        %v8535 = vmul.f32 %v8291, 0.70710677
        %v8536 = vmul.f32 %v8402, 0.70710677
        %v8537 = vmul.f32 %v8404, 0.70710677
        %v8538 = vmul.f32 %v8295, 0.70710677
        %v8539 = vmul.f32 %v8297, 0.70710677
        %v8540 = vmul.f32 %v8408, 0.70710677
        %v8541 = vmul.f32 %v8410, 0.70710677
        %v8542 = vmul.f32 %v8299, 0.70710677
        %v8543 = vmul.f32 %v8301, 0.70710677
        %v8544 = vmul.f32 %v8412, 0.70710677
        %v8545 = vmul.f32 %v8414, 0.70710677
        %v8546 = vmul.f32 %v8305, 0.70710677
        %v8547 = vmul.f32 %v8307, 0.70710677
        %v8548 = vmul.f32 %v8418, 0.70710677
        %v8549 = vmul.f32 %v8420, 0.70710677
        %v8550 = vmul.f32 %v8309, 0.70710677
        %v8551 = vmul.f32 %v8311, 0.70710677
        %v8552 = vmul.f32 %v8422, 0.70710677
        %v8553 = vmul.f32 %v8424, 0.70710677
        %v8554 = verf.f32.pop %v8490
        %v8555 = verf.f32.pop %v8491
        %v8556 = verf.f32.pop %v8492
        %v8557 = verf.f32.pop %v8493
        %v8558 = verf.f32.pop %v8494
        %v8559 = verf.f32.pop %v8495
        %v8560 = verf.f32.pop %v8496
        %v8561 = verf.f32.pop %v8497
        %v8562 = verf.f32.pop %v8498
        %v8563 = verf.f32.pop %v8499
        %v8564 = verf.f32.pop %v8500
        %v8565 = verf.f32.pop %v8501
        %v8566 = verf.f32.pop %v8502
        %v8567 = verf.f32.pop %v8503
        %v8568 = verf.f32.pop %v8504
        %v8569 = verf.f32.pop %v8505
        %v8570 = verf.f32.pop %v8506
        %v8571 = verf.f32.pop %v8507
        %v8572 = verf.f32.pop %v8508
        %v8573 = verf.f32.pop %v8509
        %v8574 = verf.f32.pop %v8510
        %v8575 = verf.f32.pop %v8511
        %v8576 = verf.f32.pop %v8512
        %v8577 = verf.f32.pop %v8513
        %v8578 = verf.f32.pop %v8514
        %v8579 = verf.f32.pop %v8515
        %v8580 = verf.f32.pop %v8516
        %v8581 = verf.f32.pop %v8517
        %v8582 = verf.f32.pop %v8518
        %v8583 = verf.f32.pop %v8519
        %v8584 = verf.f32.pop %v8520
        %v8585 = verf.f32.pop %v8521
        %v8586 = verf.f32.pop %v8522
        %v8587 = verf.f32.pop %v8523
        %v8588 = verf.f32.pop %v8524
        %v8589 = verf.f32.pop %v8525
        %v8590 = verf.f32.pop %v8526
        %v8591 = verf.f32.pop %v8527
        %v8592 = verf.f32.pop %v8528
        %v8593 = verf.f32.pop %v8529
        %v8594 = verf.f32.pop %v8530
        %v8595 = verf.f32.pop %v8531
        %v8596 = verf.f32.pop %v8532
        %v8597 = verf.f32.pop %v8533
        %v8598 = verf.f32.pop %v8534
        %v8599 = verf.f32.pop %v8535
        %v8600 = verf.f32.pop %v8536
        %v8601 = verf.f32.pop %v8537
        %v8602 = verf.f32.pop %v8538
        %v8603 = verf.f32.pop %v8539
        %v8604 = verf.f32.pop %v8540
        %v8605 = verf.f32.pop %v8541
        %v8606 = verf.f32.pop %v8542
        %v8607 = verf.f32.pop %v8543
        %v8608 = verf.f32.pop %v8544
        %v8609 = verf.f32.pop %v8545
        %v8610 = verf.f32.pop %v8546
        %v8611 = verf.f32.pop %v8547
        %v8612 = verf.f32.pop %v8548
        %v8613 = verf.f32.pop %v8549
        %v8614 = verf.f32.pop %v8550
        %v8615 = verf.f32.pop %v8551
        %v8616 = verf.f32.pop %v8552
        %v8617 = verf.f32.pop %v8553
        %v8618 = vadd.f32 %v8554, 1.0
        %v8619 = vadd.f32 %v8555, 1.0
        %v8620 = vadd.f32 %v8556, 1.0
        %v8621 = vadd.f32 %v8557, 1.0
        %v8622 = vadd.f32 %v8558, 1.0
        %v8623 = vadd.f32 %v8559, 1.0
        %v8624 = vadd.f32 %v8560, 1.0
        %v8625 = vadd.f32 %v8561, 1.0
        %v8626 = vadd.f32 %v8562, 1.0
        %v8627 = vadd.f32 %v8563, 1.0
        %v8628 = vadd.f32 %v8564, 1.0
        %v8629 = vadd.f32 %v8565, 1.0
        %v8630 = vadd.f32 %v8566, 1.0
        %v8631 = vadd.f32 %v8567, 1.0
        %v8632 = vadd.f32 %v8568, 1.0
        %v8633 = vadd.f32 %v8569, 1.0
        %v8634 = vadd.f32 %v8570, 1.0
        %v8635 = vadd.f32 %v8571, 1.0
        %v8636 = vadd.f32 %v8572, 1.0
        %v8637 = vadd.f32 %v8573, 1.0
        %v8638 = vadd.f32 %v8574, 1.0
        %v8639 = vadd.f32 %v8575, 1.0
        %v8640 = vadd.f32 %v8576, 1.0
        %v8641 = vadd.f32 %v8577, 1.0
        %v8642 = vadd.f32 %v8578, 1.0
        %v8643 = vadd.f32 %v8579, 1.0
        %v8644 = vadd.f32 %v8580, 1.0
        %v8645 = vadd.f32 %v8581, 1.0
        %v8646 = vadd.f32 %v8582, 1.0
        %v8647 = vadd.f32 %v8583, 1.0
        %v8648 = vadd.f32 %v8584, 1.0
        %v8649 = vadd.f32 %v8585, 1.0
        %v8650 = vadd.f32 %v8586, 1.0
        %v8651 = vadd.f32 %v8587, 1.0
        %v8652 = vadd.f32 %v8588, 1.0
        %v8653 = vadd.f32 %v8589, 1.0
        %v8654 = vadd.f32 %v8590, 1.0
        %v8655 = vadd.f32 %v8591, 1.0
        %v8656 = vadd.f32 %v8592, 1.0
        %v8657 = vadd.f32 %v8593, 1.0
        %v8658 = vadd.f32 %v8594, 1.0
        %v8659 = vadd.f32 %v8595, 1.0
        %v8660 = vadd.f32 %v8596, 1.0
        %v8661 = vadd.f32 %v8597, 1.0
        %v8662 = vadd.f32 %v8598, 1.0
        %v8663 = vadd.f32 %v8599, 1.0
        %v8664 = vadd.f32 %v8600, 1.0
        %v8665 = vadd.f32 %v8601, 1.0
        %v8666 = vadd.f32 %v8602, 1.0
        %v8667 = vadd.f32 %v8603, 1.0
        %v8668 = vadd.f32 %v8604, 1.0
        %v8669 = vadd.f32 %v8605, 1.0
        %v8670 = vadd.f32 %v8606, 1.0
        %v8671 = vadd.f32 %v8607, 1.0
        %v8672 = vadd.f32 %v8608, 1.0
        %v8673 = vadd.f32 %v8609, 1.0
        %v8674 = vadd.f32 %v8610, 1.0
        %v8675 = vadd.f32 %v8611, 1.0
        %v8676 = vadd.f32 %v8612, 1.0
        %v8677 = vadd.f32 %v8613, 1.0
        %v8678 = vadd.f32 %v8614, 1.0
        %v8679 = vadd.f32 %v8615, 1.0
        %v8680 = vadd.f32 %v8616, 1.0
        %v8681 = vadd.f32 %v8617, 1.0
        %v8682 = vmul.f32 %v8426, %v8618
        %v8683 = vmul.f32 %v8427, %v8619
        %v8684 = vmul.f32 %v8428, %v8620
        %v8685 = vmul.f32 %v8429, %v8621
        %v8686 = vmul.f32 %v8430, %v8622
        %v8687 = vmul.f32 %v8431, %v8623
        %v8688 = vmul.f32 %v8432, %v8624
        %v8689 = vmul.f32 %v8433, %v8625
        %v8690 = vmul.f32 %v8434, %v8626
        %v8691 = vmul.f32 %v8435, %v8627
        %v8692 = vmul.f32 %v8436, %v8628
        %v8693 = vmul.f32 %v8437, %v8629
        %v8694 = vmul.f32 %v8438, %v8630
        %v8695 = vmul.f32 %v8439, %v8631
        %v8696 = vmul.f32 %v8440, %v8632
        %v8697 = vmul.f32 %v8441, %v8633
        %v8698 = vmul.f32 %v8442, %v8634
        %v8699 = vmul.f32 %v8443, %v8635
        %v8700 = vmul.f32 %v8444, %v8636
        %v8701 = vmul.f32 %v8445, %v8637
        %v8702 = vmul.f32 %v8446, %v8638
        %v8703 = vmul.f32 %v8447, %v8639
        %v8704 = vmul.f32 %v8448, %v8640
        %v8705 = vmul.f32 %v8449, %v8641
        %v8706 = vmul.f32 %v8450, %v8642
        %v8707 = vmul.f32 %v8451, %v8643
        %v8708 = vmul.f32 %v8452, %v8644
        %v8709 = vmul.f32 %v8453, %v8645
        %v8710 = vmul.f32 %v8454, %v8646
        %v8711 = vmul.f32 %v8455, %v8647
        %v8712 = vmul.f32 %v8456, %v8648
        %v8713 = vmul.f32 %v8457, %v8649
        %v8714 = vmul.f32 %v8458, %v8650
        %v8715 = vmul.f32 %v8459, %v8651
        %v8716 = vmul.f32 %v8460, %v8652
        %v8717 = vmul.f32 %v8461, %v8653
        %v8718 = vmul.f32 %v8462, %v8654
        %v8719 = vmul.f32 %v8463, %v8655
        %v8720 = vmul.f32 %v8464, %v8656
        %v8721 = vmul.f32 %v8465, %v8657
        %v8722 = vmul.f32 %v8466, %v8658
        %v8723 = vmul.f32 %v8467, %v8659
        %v8724 = vmul.f32 %v8468, %v8660
        %v8725 = vmul.f32 %v8469, %v8661
        %v8726 = vmul.f32 %v8470, %v8662
        %v8727 = vmul.f32 %v8471, %v8663
        %v8728 = vmul.f32 %v8472, %v8664
        %v8729 = vmul.f32 %v8473, %v8665
        %v8730 = vmul.f32 %v8474, %v8666
        %v8731 = vmul.f32 %v8475, %v8667
        %v8732 = vmul.f32 %v8476, %v8668
        %v8733 = vmul.f32 %v8477, %v8669
        %v8734 = vmul.f32 %v8478, %v8670
        %v8735 = vmul.f32 %v8479, %v8671
        %v8736 = vmul.f32 %v8480, %v8672
        %v8737 = vmul.f32 %v8481, %v8673
        %v8738 = vmul.f32 %v8482, %v8674
        %v8739 = vmul.f32 %v8483, %v8675
        %v8740 = vmul.f32 %v8484, %v8676
        %v8741 = vmul.f32 %v8485, %v8677
        %v8742 = vmul.f32 %v8486, %v8678
        %v8743 = vmul.f32 %v8487, %v8679
        %v8744 = vmul.f32 %v8488, %v8680
        %v8745 = vmul.f32 %v8489, %v8681
        %v8746 = vpack.c.bf16 %v8686, %v8682
        %v8747 = vpack.c.bf16 %v8687, %v8683
        %v8748 = vpack.c.bf16 %v8688, %v8684
        %v8749 = vpack.c.bf16 %v8689, %v8685
        %v8750 = vpack.c.bf16 %v8694, %v8690
        %v8751 = vpack.c.bf16 %v8695, %v8691
        %v8752 = vpack.c.bf16 %v8696, %v8692
        %v8753 = vpack.c.bf16 %v8697, %v8693
        %v8754 = vpack.c.bf16 %v8702, %v8698
        %v8755 = vpack.c.bf16 %v8703, %v8699
        %v8756 = vpack.c.bf16 %v8704, %v8700
        %v8757 = vpack.c.bf16 %v8705, %v8701
        %v8758 = vpack.c.bf16 %v8710, %v8706
        %v8759 = vpack.c.bf16 %v8711, %v8707
        %v8760 = vpack.c.bf16 %v8712, %v8708
        %v8761 = vpack.c.bf16 %v8713, %v8709
        %v8762 = vpack.c.bf16 %v8718, %v8714
        %v8763 = vpack.c.bf16 %v8719, %v8715
        %v8764 = vpack.c.bf16 %v8720, %v8716
        %v8765 = vpack.c.bf16 %v8721, %v8717
        %v8766 = vpack.c.bf16 %v8726, %v8722
        %v8767 = vpack.c.bf16 %v8727, %v8723
        %v8768 = vpack.c.bf16 %v8728, %v8724
        %v8769 = vpack.c.bf16 %v8729, %v8725
        %v8770 = vpack.c.bf16 %v8734, %v8730
        %v8771 = vpack.c.bf16 %v8735, %v8731
        %v8772 = vpack.c.bf16 %v8736, %v8732
        %v8773 = vpack.c.bf16 %v8737, %v8733
        %v8774 = vpack.c.bf16 %v8742, %v8738
        %v8775 = vpack.c.bf16 %v8743, %v8739
        %v8776 = vpack.c.bf16 %v8744, %v8740
        %v8777 = vpack.c.bf16 %v8745, %v8741
        %v8778 = vld [vmem:[#allocation17] sm:$0xff]
        %v8779 = vld [vmem:[#allocation17 + $0x8] sm:$0xff]
        %v8780 = vld [vmem:[#allocation17 + $0x10] sm:$0xff]
        %v8781 = vld [vmem:[#allocation17 + $0x18] sm:$0xff]
        %v8782 = vld [vmem:[#allocation17 + $0x20] sm:$0xff]
        %v8783 = vld [vmem:[#allocation17 + $0x28] sm:$0xff]
        %v8784 = vld [vmem:[#allocation17 + $0x30] sm:$0xff]
        %v8785 = vld [vmem:[#allocation17 + $0x38] sm:$0xff]
        %v8786 = vld [vmem:[#allocation17 + $0x40] sm:$0xff]
        %v8787 = vld [vmem:[#allocation17 + $0x48] sm:$0xff]
        %v8788 = vld [vmem:[#allocation17 + $0x50] sm:$0xff]
        %v8789 = vld [vmem:[#allocation17 + $0x58] sm:$0xff]
        %v8790 = vld [vmem:[#allocation17 + $0x60] sm:$0xff]
        %v8791 = vld [vmem:[#allocation17 + $0x68] sm:$0xff]
        %v8792 = vld [vmem:[#allocation17 + $0x70] sm:$0xff]
        %v8793 = vld [vmem:[#allocation17 + $0x78] sm:$0xff]
        %v8794 = vld [vmem:[#allocation17 + $0x80] sm:$0xff]
        %v8795 = vld [vmem:[#allocation17 + $0x88] sm:$0xff]
        %v8796 = vld [vmem:[#allocation17 + $0x90] sm:$0xff]
        %v8797 = vld [vmem:[#allocation17 + $0x98] sm:$0xff]
        %v8798 = vld [vmem:[#allocation17 + $0xa0] sm:$0xff]
        %v8799 = vld [vmem:[#allocation17 + $0xa8] sm:$0xff]
        %v8800 = vld [vmem:[#allocation17 + $0xb0] sm:$0xff]
        %v8801 = vld [vmem:[#allocation17 + $0xb8] sm:$0xff]
        %v8802 = vld [vmem:[#allocation17 + $0xc0] sm:$0xff]
        %v8803 = vld [vmem:[#allocation17 + $0xc8] sm:$0xff]
        %v8804 = vld [vmem:[#allocation17 + $0xd0] sm:$0xff]
        %v8805 = vld [vmem:[#allocation17 + $0xd8] sm:$0xff]
        %v8806 = vld [vmem:[#allocation17 + $0xe0] sm:$0xff]
        %v8807 = vld [vmem:[#allocation17 + $0xe8] sm:$0xff]
        %v8808 = vld [vmem:[#allocation17 + $0xf0] sm:$0xff]
        %v8809 = vld [vmem:[#allocation17 + $0xf8] sm:$0xff]
        %v8810 = vld [vmem:[#allocation17 + $0x100] sm:$0xff]
        %v8811 = vld [vmem:[#allocation17 + $0x108] sm:$0xff]
        %v8812 = vld [vmem:[#allocation17 + $0x110] sm:$0xff]
        %v8813 = vld [vmem:[#allocation17 + $0x118] sm:$0xff]
        %v8814 = vld [vmem:[#allocation17 + $0x120] sm:$0xff]
        %v8815 = vld [vmem:[#allocation17 + $0x128] sm:$0xff]
        %v8816 = vld [vmem:[#allocation17 + $0x130] sm:$0xff]
        %v8817 = vld [vmem:[#allocation17 + $0x138] sm:$0xff]
        %v8818 = vld [vmem:[#allocation17 + $0x140] sm:$0xff]
        %v8819 = vld [vmem:[#allocation17 + $0x148] sm:$0xff]
        %v8820 = vld [vmem:[#allocation17 + $0x150] sm:$0xff]
        %v8821 = vld [vmem:[#allocation17 + $0x158] sm:$0xff]
        %v8822 = vld [vmem:[#allocation17 + $0x160] sm:$0xff]
        %v8823 = vld [vmem:[#allocation17 + $0x168] sm:$0xff]
        %v8824 = vld [vmem:[#allocation17 + $0x170] sm:$0xff]
        %v8825 = vld [vmem:[#allocation17 + $0x178] sm:$0xff]
        %v8826 = vld [vmem:[#allocation17 + $0x180] sm:$0xff]
        %v8827 = vld [vmem:[#allocation17 + $0x188] sm:$0xff]
        %v8828 = vld [vmem:[#allocation17 + $0x190] sm:$0xff]
        %v8829 = vld [vmem:[#allocation17 + $0x198] sm:$0xff]
        %v8830 = vld [vmem:[#allocation17 + $0x1a0] sm:$0xff]
        %v8831 = vld [vmem:[#allocation17 + $0x1a8] sm:$0xff]
        %v8832 = vld [vmem:[#allocation17 + $0x1b0] sm:$0xff]
        %v8833 = vld [vmem:[#allocation17 + $0x1b8] sm:$0xff]
        %v8834 = vld [vmem:[#allocation17 + $0x1c0] sm:$0xff]
        %v8835 = vld [vmem:[#allocation17 + $0x1c8] sm:$0xff]
        %v8836 = vld [vmem:[#allocation17 + $0x1d0] sm:$0xff]
        %v8837 = vld [vmem:[#allocation17 + $0x1d8] sm:$0xff]
        %v8838 = vld [vmem:[#allocation17 + $0x1e0] sm:$0xff]
        %v8839 = vld [vmem:[#allocation17 + $0x1e8] sm:$0xff]
        %v8840 = vld [vmem:[#allocation17 + $0x1f0] sm:$0xff]
        %v8841 = vld [vmem:[#allocation17 + $0x1f8] sm:$0xff]
        %s8842 = scalar_lea.vmem [#allocation16], 512
        %v8843 = vld [vmem:[%s8842] sm:$0xff]
        %v8844 = vld [vmem:[%s8842 + $0x8] sm:$0xff]
        %v8845 = vld [vmem:[%s8842 + $0x10] sm:$0xff]
        %v8846 = vld [vmem:[%s8842 + $0x18] sm:$0xff]
        %v8847 = vld [vmem:[%s8842 + $0x20] sm:$0xff]
        %v8848 = vld [vmem:[%s8842 + $0x28] sm:$0xff]
        %v8849 = vld [vmem:[%s8842 + $0x30] sm:$0xff]
        %v8850 = vld [vmem:[%s8842 + $0x38] sm:$0xff]
        %v8851 = vld [vmem:[%s8842 + $0x40] sm:$0xff]
        %v8852 = vld [vmem:[%s8842 + $0x48] sm:$0xff]
        %v8853 = vld [vmem:[%s8842 + $0x50] sm:$0xff]
        %v8854 = vld [vmem:[%s8842 + $0x58] sm:$0xff]
        %v8855 = vld [vmem:[%s8842 + $0x60] sm:$0xff]
        %v8856 = vld [vmem:[%s8842 + $0x68] sm:$0xff]
        %v8857 = vld [vmem:[%s8842 + $0x70] sm:$0xff]
        %v8858 = vld [vmem:[%s8842 + $0x78] sm:$0xff]
        %v8859 = vld [vmem:[%s8842 + $0x80] sm:$0xff]
        %v8860 = vld [vmem:[%s8842 + $0x88] sm:$0xff]
        %v8861 = vld [vmem:[%s8842 + $0x90] sm:$0xff]
        %v8862 = vld [vmem:[%s8842 + $0x98] sm:$0xff]
        %v8863 = vld [vmem:[%s8842 + $0xa0] sm:$0xff]
        %v8864 = vld [vmem:[%s8842 + $0xa8] sm:$0xff]
        %v8865 = vld [vmem:[%s8842 + $0xb0] sm:$0xff]
        %v8866 = vld [vmem:[%s8842 + $0xb8] sm:$0xff]
        %v8867 = vld [vmem:[%s8842 + $0xc0] sm:$0xff]
        %v8868 = vld [vmem:[%s8842 + $0xc8] sm:$0xff]
        %v8869 = vld [vmem:[%s8842 + $0xd0] sm:$0xff]
        %v8870 = vld [vmem:[%s8842 + $0xd8] sm:$0xff]
        %v8871 = vld [vmem:[%s8842 + $0xe0] sm:$0xff]
        %v8872 = vld [vmem:[%s8842 + $0xe8] sm:$0xff]
        %v8873 = vld [vmem:[%s8842 + $0xf0] sm:$0xff]
        %v8874 = vld [vmem:[%s8842 + $0xf8] sm:$0xff]
        %v8875 = vld [vmem:[%s8842 + $0x100] sm:$0xff]
        %v8876 = vld [vmem:[%s8842 + $0x108] sm:$0xff]
        %v8877 = vld [vmem:[%s8842 + $0x110] sm:$0xff]
        %v8878 = vld [vmem:[%s8842 + $0x118] sm:$0xff]
        %v8879 = vld [vmem:[%s8842 + $0x120] sm:$0xff]
        %v8880 = vld [vmem:[%s8842 + $0x128] sm:$0xff]
        %v8881 = vld [vmem:[%s8842 + $0x130] sm:$0xff]
        %v8882 = vld [vmem:[%s8842 + $0x138] sm:$0xff]
        %v8883 = vld [vmem:[%s8842 + $0x140] sm:$0xff]
        %v8884 = vld [vmem:[%s8842 + $0x148] sm:$0xff]
        %v8885 = vld [vmem:[%s8842 + $0x150] sm:$0xff]
        %v8886 = vld [vmem:[%s8842 + $0x158] sm:$0xff]
        %v8887 = vld [vmem:[%s8842 + $0x160] sm:$0xff]
        %v8888 = vld [vmem:[%s8842 + $0x168] sm:$0xff]
        %v8889 = vld [vmem:[%s8842 + $0x170] sm:$0xff]
        %v8890 = vld [vmem:[%s8842 + $0x178] sm:$0xff]
        %v8891 = vld [vmem:[%s8842 + $0x180] sm:$0xff]
        %v8892 = vld [vmem:[%s8842 + $0x188] sm:$0xff]
        %v8893 = vld [vmem:[%s8842 + $0x190] sm:$0xff]
        %v8894 = vld [vmem:[%s8842 + $0x198] sm:$0xff]
        %v8895 = vld [vmem:[%s8842 + $0x1a0] sm:$0xff]
        %v8896 = vld [vmem:[%s8842 + $0x1a8] sm:$0xff]
        %v8897 = vld [vmem:[%s8842 + $0x1b0] sm:$0xff]
        %v8898 = vld [vmem:[%s8842 + $0x1b8] sm:$0xff]
        %v8899 = vld [vmem:[%s8842 + $0x1c0] sm:$0xff]
        %v8900 = vld [vmem:[%s8842 + $0x1c8] sm:$0xff]
        %v8901 = vld [vmem:[%s8842 + $0x1d0] sm:$0xff]
        %v8902 = vld [vmem:[%s8842 + $0x1d8] sm:$0xff]
        %v8903 = vld [vmem:[%s8842 + $0x1e0] sm:$0xff]
        %v8904 = vld [vmem:[%s8842 + $0x1e8] sm:$0xff]
        %v8905 = vld [vmem:[%s8842 + $0x1f0] sm:$0xff]
        %v8906 = vld [vmem:[%s8842 + $0x1f8] sm:$0xff]
        %s8907 = scalar_lea.vmem %s15, 4
        %v8908 = vld [vmem:[%s8907] sm:$0xf]
        %v8910 = vlaneseq
        %v8911 = vshrl.u32 %v8910, 7
        %v8912 = vsub.s32 0, %v8911
        %v8913 = vrot.slane %v8908, %v8912
        %v8914 = vlaneseq
        %v8915 = vshrl.u32 %v8914, 7
        %v8916 = vsub.s32 1, %v8915
        %v8917 = vrot.slane %v8908, %v8916
        %v8918 = vlaneseq
        %v8919 = vshrl.u32 %v8918, 7
        %v8920 = vsub.s32 2, %v8919
        %v8921 = vrot.slane %v8908, %v8920
        %v8922 = vlaneseq
        %v8923 = vshrl.u32 %v8922, 7
        %v8924 = vsub.s32 3, %v8923
        %v8925 = vrot.slane %v8908, %v8924
        %v8994 = vunpack.c.l.b16 %v8843
        %v8995 = vunpack.c.h.b16 %v8843
        %v8996 = vunpack.c.l.b16 %v8844
        %v8997 = vunpack.c.h.b16 %v8844
        %v8998 = vunpack.c.l.b16 %v8845
        %v8999 = vunpack.c.h.b16 %v8845
        %v9000 = vunpack.c.l.b16 %v8846
        %v9001 = vunpack.c.h.b16 %v8846
        %v9002 = vunpack.c.l.b16 %v8847
        %v9003 = vunpack.c.h.b16 %v8847
        %v9004 = vunpack.c.l.b16 %v8848
        %v9005 = vunpack.c.h.b16 %v8848
        %v9006 = vunpack.c.l.b16 %v8849
        %v9007 = vunpack.c.h.b16 %v8849
        %v9008 = vunpack.c.l.b16 %v8850
        %v9009 = vunpack.c.h.b16 %v8850
        %v9010 = vunpack.c.l.b16 %v8851
        %v9011 = vunpack.c.h.b16 %v8851
        %v9012 = vunpack.c.l.b16 %v8852
        %v9013 = vunpack.c.h.b16 %v8852
        %v9014 = vunpack.c.l.b16 %v8853
        %v9015 = vunpack.c.h.b16 %v8853
        %v9016 = vunpack.c.l.b16 %v8854
        %v9017 = vunpack.c.h.b16 %v8854
        %v9018 = vunpack.c.l.b16 %v8855
        %v9019 = vunpack.c.h.b16 %v8855
        %v9020 = vunpack.c.l.b16 %v8856
        %v9021 = vunpack.c.h.b16 %v8856
        %v9022 = vunpack.c.l.b16 %v8857
        %v9023 = vunpack.c.h.b16 %v8857
        %v9024 = vunpack.c.l.b16 %v8858
        %v9025 = vunpack.c.h.b16 %v8858
        %v9026 = vunpack.c.l.b16 %v8859
        %v9027 = vunpack.c.h.b16 %v8859
        %v9028 = vunpack.c.l.b16 %v8860
        %v9029 = vunpack.c.h.b16 %v8860
        %v9030 = vunpack.c.l.b16 %v8861
        %v9031 = vunpack.c.h.b16 %v8861
        %v9032 = vunpack.c.l.b16 %v8862
        %v9033 = vunpack.c.h.b16 %v8862
        %v9034 = vunpack.c.l.b16 %v8863
        %v9035 = vunpack.c.h.b16 %v8863
        %v9036 = vunpack.c.l.b16 %v8864
        %v9037 = vunpack.c.h.b16 %v8864
        %v9038 = vunpack.c.l.b16 %v8865
        %v9039 = vunpack.c.h.b16 %v8865
        %v9040 = vunpack.c.l.b16 %v8866
        %v9041 = vunpack.c.h.b16 %v8866
        %v9042 = vunpack.c.l.b16 %v8867
        %v9043 = vunpack.c.h.b16 %v8867
        %v9044 = vunpack.c.l.b16 %v8868
        %v9045 = vunpack.c.h.b16 %v8868
        %v9046 = vunpack.c.l.b16 %v8869
        %v9047 = vunpack.c.h.b16 %v8869
        %v9048 = vunpack.c.l.b16 %v8870
        %v9049 = vunpack.c.h.b16 %v8870
        %v9050 = vunpack.c.l.b16 %v8871
        %v9051 = vunpack.c.h.b16 %v8871
        %v9052 = vunpack.c.l.b16 %v8872
        %v9053 = vunpack.c.h.b16 %v8872
        %v9054 = vunpack.c.l.b16 %v8873
        %v9055 = vunpack.c.h.b16 %v8873
        %v9056 = vunpack.c.l.b16 %v8874
        %v9057 = vunpack.c.h.b16 %v8874
        %v9058 = vunpack.c.l.b16 %v8875
        %v9059 = vunpack.c.h.b16 %v8875
        %v9060 = vunpack.c.l.b16 %v8876
        %v9061 = vunpack.c.h.b16 %v8876
        %v9062 = vunpack.c.l.b16 %v8877
        %v9063 = vunpack.c.h.b16 %v8877
        %v9064 = vunpack.c.l.b16 %v8878
        %v9065 = vunpack.c.h.b16 %v8878
        %v9066 = vunpack.c.l.b16 %v8879
        %v9067 = vunpack.c.h.b16 %v8879
        %v9068 = vunpack.c.l.b16 %v8880
        %v9069 = vunpack.c.h.b16 %v8880
        %v9070 = vunpack.c.l.b16 %v8881
        %v9071 = vunpack.c.h.b16 %v8881
        %v9072 = vunpack.c.l.b16 %v8882
        %v9073 = vunpack.c.h.b16 %v8882
        %v9074 = vunpack.c.l.b16 %v8883
        %v9075 = vunpack.c.h.b16 %v8883
        %v9076 = vunpack.c.l.b16 %v8884
        %v9077 = vunpack.c.h.b16 %v8884
        %v9078 = vunpack.c.l.b16 %v8885
        %v9079 = vunpack.c.h.b16 %v8885
        %v9080 = vunpack.c.l.b16 %v8886
        %v9081 = vunpack.c.h.b16 %v8886
        %v9082 = vunpack.c.l.b16 %v8887
        %v9083 = vunpack.c.h.b16 %v8887
        %v9084 = vunpack.c.l.b16 %v8888
        %v9085 = vunpack.c.h.b16 %v8888
        %v9086 = vunpack.c.l.b16 %v8889
        %v9087 = vunpack.c.h.b16 %v8889
        %v9088 = vunpack.c.l.b16 %v8890
        %v9089 = vunpack.c.h.b16 %v8890
        %v9090 = vunpack.c.l.b16 %v8891
        %v9091 = vunpack.c.h.b16 %v8891
        %v9092 = vunpack.c.l.b16 %v8892
        %v9093 = vunpack.c.h.b16 %v8892
        %v9094 = vunpack.c.l.b16 %v8893
        %v9095 = vunpack.c.h.b16 %v8893
        %v9096 = vunpack.c.l.b16 %v8894
        %v9097 = vunpack.c.h.b16 %v8894
        %v9098 = vunpack.c.l.b16 %v8895
        %v9099 = vunpack.c.h.b16 %v8895
        %v9100 = vunpack.c.l.b16 %v8896
        %v9101 = vunpack.c.h.b16 %v8896
        %v9102 = vunpack.c.l.b16 %v8897
        %v9103 = vunpack.c.h.b16 %v8897
        %v9104 = vunpack.c.l.b16 %v8898
        %v9105 = vunpack.c.h.b16 %v8898
        %v9106 = vunpack.c.l.b16 %v8899
        %v9107 = vunpack.c.h.b16 %v8899
        %v9108 = vunpack.c.l.b16 %v8900
        %v9109 = vunpack.c.h.b16 %v8900
        %v9110 = vunpack.c.l.b16 %v8901
        %v9111 = vunpack.c.h.b16 %v8901
        %v9112 = vunpack.c.l.b16 %v8902
        %v9113 = vunpack.c.h.b16 %v8902
        %v9114 = vunpack.c.l.b16 %v8903
        %v9115 = vunpack.c.h.b16 %v8903
        %v9116 = vunpack.c.l.b16 %v8904
        %v9117 = vunpack.c.h.b16 %v8904
        %v9118 = vunpack.c.l.b16 %v8905
        %v9119 = vunpack.c.h.b16 %v8905
        %v9120 = vunpack.c.l.b16 %v8906
        %v9121 = vunpack.c.h.b16 %v8906
        %v9122 = vpack.c.b16 %v8998, %v8994
        %v9123 = vpack.c.b16 %v8999, %v8995
        %v9124 = vpack.c.b16 %v9000, %v8996
        %v9125 = vpack.c.b16 %v9001, %v8997
        %v9126 = vpack.c.b16 %v9006, %v9002
        %v9127 = vpack.c.b16 %v9007, %v9003
        %v9128 = vpack.c.b16 %v9008, %v9004
        %v9129 = vpack.c.b16 %v9009, %v9005
        %v9130 = vpack.c.b16 %v9014, %v9010
        %v9131 = vpack.c.b16 %v9015, %v9011
        %v9132 = vpack.c.b16 %v9016, %v9012
        %v9133 = vpack.c.b16 %v9017, %v9013
        %v9134 = vpack.c.b16 %v9022, %v9018
        %v9135 = vpack.c.b16 %v9023, %v9019
        %v9136 = vpack.c.b16 %v9024, %v9020
        %v9137 = vpack.c.b16 %v9025, %v9021
        %v9138 = vpack.c.b16 %v9030, %v9026
        %v9139 = vpack.c.b16 %v9031, %v9027
        %v9140 = vpack.c.b16 %v9032, %v9028
        %v9141 = vpack.c.b16 %v9033, %v9029
        %v9142 = vpack.c.b16 %v9038, %v9034
        %v9143 = vpack.c.b16 %v9039, %v9035
        %v9144 = vpack.c.b16 %v9040, %v9036
        %v9145 = vpack.c.b16 %v9041, %v9037
        %v9146 = vpack.c.b16 %v9046, %v9042
        %v9147 = vpack.c.b16 %v9047, %v9043
        %v9148 = vpack.c.b16 %v9048, %v9044
        %v9149 = vpack.c.b16 %v9049, %v9045
        %v9150 = vpack.c.b16 %v9054, %v9050
        %v9151 = vpack.c.b16 %v9055, %v9051
        %v9152 = vpack.c.b16 %v9056, %v9052
        %v9153 = vpack.c.b16 %v9057, %v9053
        %v9154 = vpack.c.b16 %v9062, %v9058
        %v9155 = vpack.c.b16 %v9063, %v9059
        %v9156 = vpack.c.b16 %v9064, %v9060
        %v9157 = vpack.c.b16 %v9065, %v9061
        %v9158 = vpack.c.b16 %v9070, %v9066
        %v9159 = vpack.c.b16 %v9071, %v9067
        %v9160 = vpack.c.b16 %v9072, %v9068
        %v9161 = vpack.c.b16 %v9073, %v9069
        %v9162 = vpack.c.b16 %v9078, %v9074
        %v9163 = vpack.c.b16 %v9079, %v9075
        %v9164 = vpack.c.b16 %v9080, %v9076
        %v9165 = vpack.c.b16 %v9081, %v9077
        %v9166 = vpack.c.b16 %v9086, %v9082
        %v9167 = vpack.c.b16 %v9087, %v9083
        %v9168 = vpack.c.b16 %v9088, %v9084
        %v9169 = vpack.c.b16 %v9089, %v9085
        %v9170 = vpack.c.b16 %v9094, %v9090
        %v9171 = vpack.c.b16 %v9095, %v9091
        %v9172 = vpack.c.b16 %v9096, %v9092
        %v9173 = vpack.c.b16 %v9097, %v9093
        %v9174 = vpack.c.b16 %v9102, %v9098
        %v9175 = vpack.c.b16 %v9103, %v9099
        %v9176 = vpack.c.b16 %v9104, %v9100
        %v9177 = vpack.c.b16 %v9105, %v9101
        %v9178 = vpack.c.b16 %v9110, %v9106
        %v9179 = vpack.c.b16 %v9111, %v9107
        %v9180 = vpack.c.b16 %v9112, %v9108
        %v9181 = vpack.c.b16 %v9113, %v9109
        %v9182 = vpack.c.b16 %v9118, %v9114
        %v9183 = vpack.c.b16 %v9119, %v9115
        %v9184 = vpack.c.b16 %v9120, %v9116
        %v9185 = vpack.c.b16 %v9121, %v9117
        %9250 = vmatprep.subr.bf16.mxu0 %v9123
        %9251 = vmatpush1.bf16.msra.mxu0 %v9122
        %9252 = vmatprep.subr.bf16.mxu0 %v9127
        %9253 = vmatpush1.bf16.msra.mxu0 %v9126
        %9254 = vmatprep.subr.bf16.mxu0 %v9131
        %9255 = vmatpush1.bf16.msra.mxu0 %v9130
        %9256 = vmatprep.subr.bf16.mxu0 %v9135
        %9257 = vmatpush1.bf16.msra.mxu0 %v9134
        %9258 = vmatprep.subr.bf16.mxu0 %v9139
        %9259 = vmatpush1.bf16.msra.mxu0 %v9138
        %9260 = vmatprep.subr.bf16.mxu0 %v9143
        %9261 = vmatpush1.bf16.msra.mxu0 %v9142
        %9262 = vmatprep.subr.bf16.mxu0 %v9147
        %9263 = vmatpush1.bf16.msra.mxu0 %v9146
        %9264 = vmatprep.subr.bf16.mxu0 %v9151
        %9265 = vmatpush1.bf16.msra.mxu0 %v9150
        %9266 = vmatprep.subr.bf16.mxu0 %v9155
        %9267 = vmatpush1.bf16.msra.mxu0 %v9154
        %9268 = vmatprep.subr.bf16.mxu0 %v9159
        %9269 = vmatpush1.bf16.msra.mxu0 %v9158
        %9270 = vmatprep.subr.bf16.mxu0 %v9163
        %9271 = vmatpush1.bf16.msra.mxu0 %v9162
        %9272 = vmatprep.subr.bf16.mxu0 %v9167
        %9273 = vmatpush1.bf16.msra.mxu0 %v9166
        %9274 = vmatprep.subr.bf16.mxu0 %v9171
        %9275 = vmatpush1.bf16.msra.mxu0 %v9170
        %9276 = vmatprep.subr.bf16.mxu0 %v9175
        %9277 = vmatpush1.bf16.msra.mxu0 %v9174
        %9278 = vmatprep.subr.bf16.mxu0 %v9179
        %9279 = vmatpush1.bf16.msra.mxu0 %v9178
        %9280 = vmatprep.subr.bf16.mxu0 %v9183
        %9281 = vmatpush1.bf16.msra.mxu0 %v9182
        %9282 = vmatprep.mubr.bf16.mxu0 %v7779
        %9283 = vmatmul.mubr.bf16.gmra.mrb[0].mxu0 %v7778
        %v9284 = vpop.f32.mrb[0].mxu0
        %v9285 = vadd.f32 %v8913, %v9284
        %v9286 = vpop.f32.mrb[0].mxu0
        %v9287 = vadd.f32 %v8917, %v9286
        %v9288 = vpop.f32.mrb[0].mxu0
        %v9289 = vadd.f32 %v8913, %v9288
        %v9290 = vpop.f32.mrb[0].mxu0
        %v9291 = vadd.f32 %v8917, %v9290
        %9292 = vmatprep.mubr.bf16.mxu0 %v7781
        %9293 = vmatmul.mubr.bf16.gmra.mrb[0].mxu0 %v7780
        %v9294 = vpop.f32.mrb[0].mxu0
        %v9295 = vadd.f32 %v8913, %v9294
        %v9296 = vpop.f32.mrb[0].mxu0
        %v9297 = vadd.f32 %v8917, %v9296
        %v9298 = vpop.f32.mrb[0].mxu0
        %v9299 = vadd.f32 %v8913, %v9298
        %v9300 = vpop.f32.mrb[0].mxu0
        %v9301 = vadd.f32 %v8917, %v9300
        %9302 = vmatprep.mubr.bf16.mxu0 %v7783
        %9303 = vmatmul.mubr.bf16.gmra.mrb[0].mxu0 %v7782
        %v9304 = vpop.f32.mrb[0].mxu0
        %v9305 = vadd.f32 %v8913, %v9304
        %v9306 = vpop.f32.mrb[0].mxu0
        %v9307 = vadd.f32 %v8917, %v9306
        %v9308 = vpop.f32.mrb[0].mxu0
        %v9309 = vadd.f32 %v8913, %v9308
        %v9310 = vpop.f32.mrb[0].mxu0
        %v9311 = vadd.f32 %v8917, %v9310
        %9312 = vmatprep.mubr.bf16.mxu0 %v7785
        %9313 = vmatmul.mubr.bf16.gmra.mrb[0].mxu0 %v7784
        %v9314 = vpop.f32.mrb[0].mxu0
        %v9315 = vadd.f32 %v8913, %v9314
        %v9316 = vpop.f32.mrb[0].mxu0
        %v9317 = vadd.f32 %v8917, %v9316
        %v9318 = vpop.f32.mrb[0].mxu0
        %v9319 = vadd.f32 %v8913, %v9318
        %v9320 = vpop.f32.mrb[0].mxu0
        %v9321 = vadd.f32 %v8917, %v9320
        %9322 = vmatprep.mubr.bf16.mxu0 %v7787
        %9323 = vmatmul.mubr.bf16.gmra.mrb[0].mxu0 %v7786
        %v9324 = vpop.f32.mrb[0].mxu0
        %v9325 = vadd.f32 %v8913, %v9324
        %v9326 = vpop.f32.mrb[0].mxu0
        %v9327 = vadd.f32 %v8917, %v9326
        %v9328 = vpop.f32.mrb[0].mxu0
        %v9329 = vadd.f32 %v8913, %v9328
        %v9330 = vpop.f32.mrb[0].mxu0
        %v9331 = vadd.f32 %v8917, %v9330
        %9332 = vmatprep.mubr.bf16.mxu0 %v7789
        %9333 = vmatmul.mubr.bf16.gmra.mrb[0].mxu0 %v7788
        %v9334 = vpop.f32.mrb[0].mxu0
        %v9335 = vadd.f32 %v8913, %v9334
        %v9336 = vpop.f32.mrb[0].mxu0
        %v9337 = vadd.f32 %v8917, %v9336
        %v9338 = vpop.f32.mrb[0].mxu0
        %v9339 = vadd.f32 %v8913, %v9338
        %v9340 = vpop.f32.mrb[0].mxu0
        %v9341 = vadd.f32 %v8917, %v9340
        %9342 = vmatprep.mubr.bf16.mxu0 %v7791
        %9343 = vmatmul.mubr.bf16.gmra.mrb[0].mxu0 %v7790
        %v9344 = vpop.f32.mrb[0].mxu0
        %v9345 = vadd.f32 %v8913, %v9344
        %v9346 = vpop.f32.mrb[0].mxu0
        %v9347 = vadd.f32 %v8917, %v9346
        %v9348 = vpop.f32.mrb[0].mxu0
        %v9349 = vadd.f32 %v8913, %v9348
        %v9350 = vpop.f32.mrb[0].mxu0
        %v9351 = vadd.f32 %v8917, %v9350
        %9352 = vmatprep.mubr.bf16.mxu0 %v7793
        %9353 = vmatmul.mubr.bf16.gmra.mrb[0].mxu0 %v7792
        %v9354 = vpop.f32.mrb[0].mxu0
        %v9355 = vadd.f32 %v8913, %v9354
        %v9356 = vpop.f32.mrb[0].mxu0
        %v9357 = vadd.f32 %v8917, %v9356
        %v9358 = vpop.f32.mrb[0].mxu0
        %v9359 = vadd.f32 %v8913, %v9358
        %v9360 = vpop.f32.mrb[0].mxu0
        %v9361 = vadd.f32 %v8917, %v9360
        %9362 = vdwg.mxu0
        %9363 = vmatprep.subr.bf16.mxu0 %v9125
        %9364 = vmatpush1.bf16.msra.mxu0 %v9124
        %9365 = vmatprep.subr.bf16.mxu0 %v9129
        %9366 = vmatpush1.bf16.msra.mxu0 %v9128
        %9367 = vmatprep.subr.bf16.mxu0 %v9133
        %9368 = vmatpush1.bf16.msra.mxu0 %v9132
        %9369 = vmatprep.subr.bf16.mxu0 %v9137
        %9370 = vmatpush1.bf16.msra.mxu0 %v9136
        %9371 = vmatprep.subr.bf16.mxu0 %v9141
        %9372 = vmatpush1.bf16.msra.mxu0 %v9140
        %9373 = vmatprep.subr.bf16.mxu0 %v9145
        %9374 = vmatpush1.bf16.msra.mxu0 %v9144
        %9375 = vmatprep.subr.bf16.mxu0 %v9149
        %9376 = vmatpush1.bf16.msra.mxu0 %v9148
        %9377 = vmatprep.subr.bf16.mxu0 %v9153
        %9378 = vmatpush1.bf16.msra.mxu0 %v9152
        %9379 = vmatprep.subr.bf16.mxu0 %v9157
        %9380 = vmatpush1.bf16.msra.mxu0 %v9156
        %9381 = vmatprep.subr.bf16.mxu0 %v9161
        %9382 = vmatpush1.bf16.msra.mxu0 %v9160
        %9383 = vmatprep.subr.bf16.mxu0 %v9165
        %9384 = vmatpush1.bf16.msra.mxu0 %v9164
        %9385 = vmatprep.subr.bf16.mxu0 %v9169
        %9386 = vmatpush1.bf16.msra.mxu0 %v9168
        %9387 = vmatprep.subr.bf16.mxu0 %v9173
        %9388 = vmatpush1.bf16.msra.mxu0 %v9172
        %9389 = vmatprep.subr.bf16.mxu0 %v9177
        %9390 = vmatpush1.bf16.msra.mxu0 %v9176
        %9391 = vmatprep.subr.bf16.mxu0 %v9181
        %9392 = vmatpush1.bf16.msra.mxu0 %v9180
        %9393 = vmatprep.subr.bf16.mxu0 %v9185
        %9394 = vmatpush1.bf16.msra.mxu0 %v9184
        %9395 = vmatprep.mubr.bf16.mxu0 %v7779
        %9396 = vmatmul.mubr.bf16.gmra.mrb[0].mxu0 %v7778
        %v9397 = vpop.f32.mrb[0].mxu0
        %v9398 = vadd.f32 %v8921, %v9397
        %v9399 = vpop.f32.mrb[0].mxu0
        %v9400 = vadd.f32 %v8925, %v9399
        %v9401 = vpop.f32.mrb[0].mxu0
        %v9402 = vadd.f32 %v8921, %v9401
        %v9403 = vpop.f32.mrb[0].mxu0
        %v9404 = vadd.f32 %v8925, %v9403
        %9405 = vmatprep.mubr.bf16.mxu0 %v7781
        %9406 = vmatmul.mubr.bf16.gmra.mrb[0].mxu0 %v7780
        %v9407 = vpop.f32.mrb[0].mxu0
        %v9408 = vadd.f32 %v8921, %v9407
        %v9409 = vpop.f32.mrb[0].mxu0
        %v9410 = vadd.f32 %v8925, %v9409
        %v9411 = vpop.f32.mrb[0].mxu0
        %v9412 = vadd.f32 %v8921, %v9411
        %v9413 = vpop.f32.mrb[0].mxu0
        %v9414 = vadd.f32 %v8925, %v9413
        %9415 = vmatprep.mubr.bf16.mxu0 %v7783
        %9416 = vmatmul.mubr.bf16.gmra.mrb[0].mxu0 %v7782
        %v9417 = vpop.f32.mrb[0].mxu0
        %v9418 = vadd.f32 %v8921, %v9417
        %v9419 = vpop.f32.mrb[0].mxu0
        %v9420 = vadd.f32 %v8925, %v9419
        %v9421 = vpop.f32.mrb[0].mxu0
        %v9422 = vadd.f32 %v8921, %v9421
        %v9423 = vpop.f32.mrb[0].mxu0
        %v9424 = vadd.f32 %v8925, %v9423
        %9425 = vmatprep.mubr.bf16.mxu0 %v7785
        %9426 = vmatmul.mubr.bf16.gmra.mrb[0].mxu0 %v7784
        %v9427 = vpop.f32.mrb[0].mxu0
        %v9428 = vadd.f32 %v8921, %v9427
        %v9429 = vpop.f32.mrb[0].mxu0
        %v9430 = vadd.f32 %v8925, %v9429
        %v9431 = vpop.f32.mrb[0].mxu0
        %v9432 = vadd.f32 %v8921, %v9431
        %v9433 = vpop.f32.mrb[0].mxu0
        %v9434 = vadd.f32 %v8925, %v9433
        %9435 = vmatprep.mubr.bf16.mxu0 %v7787
        %9436 = vmatmul.mubr.bf16.gmra.mrb[0].mxu0 %v7786
        %v9437 = vpop.f32.mrb[0].mxu0
        %v9438 = vadd.f32 %v8921, %v9437
        %v9439 = vpop.f32.mrb[0].mxu0
        %v9440 = vadd.f32 %v8925, %v9439
        %v9441 = vpop.f32.mrb[0].mxu0
        %v9442 = vadd.f32 %v8921, %v9441
        %v9443 = vpop.f32.mrb[0].mxu0
        %v9444 = vadd.f32 %v8925, %v9443
        %9445 = vmatprep.mubr.bf16.mxu0 %v7789
        %9446 = vmatmul.mubr.bf16.gmra.mrb[0].mxu0 %v7788
        %v9447 = vpop.f32.mrb[0].mxu0
        %v9448 = vadd.f32 %v8921, %v9447
        %v9449 = vpop.f32.mrb[0].mxu0
        %v9450 = vadd.f32 %v8925, %v9449
        %v9451 = vpop.f32.mrb[0].mxu0
        %v9452 = vadd.f32 %v8921, %v9451
        %v9453 = vpop.f32.mrb[0].mxu0
        %v9454 = vadd.f32 %v8925, %v9453
        %9455 = vmatprep.mubr.bf16.mxu0 %v7791
        %9456 = vmatmul.mubr.bf16.gmra.mrb[0].mxu0 %v7790
        %v9457 = vpop.f32.mrb[0].mxu0
        %v9458 = vadd.f32 %v8921, %v9457
        %v9459 = vpop.f32.mrb[0].mxu0
        %v9460 = vadd.f32 %v8925, %v9459
        %v9461 = vpop.f32.mrb[0].mxu0
        %v9462 = vadd.f32 %v8921, %v9461
        %v9463 = vpop.f32.mrb[0].mxu0
        %v9464 = vadd.f32 %v8925, %v9463
        %9465 = vmatprep.mubr.bf16.mxu0 %v7793
        %9466 = vmatmul.mubr.bf16.gmra.mrb[0].mxu0 %v7792
        %v9467 = vpop.f32.mrb[0].mxu0
        %v9468 = vadd.f32 %v8921, %v9467
        %v9469 = vpop.f32.mrb[0].mxu0
        %v9470 = vadd.f32 %v8925, %v9469
        %v9471 = vpop.f32.mrb[0].mxu0
        %v9472 = vadd.f32 %v8921, %v9471
        %v9473 = vpop.f32.mrb[0].mxu0
        %v9474 = vadd.f32 %v8925, %v9473
        %9475 = vdwg.mxu0
        %v9476 = vmul.f32 %v9285, 0.5
        %v9477 = vmul.f32 %v9287, 0.5
        %v9478 = vmul.f32 %v9398, 0.5
        %v9479 = vmul.f32 %v9400, 0.5
        %v9480 = vmul.f32 %v9289, 0.5
        %v9481 = vmul.f32 %v9291, 0.5
        %v9482 = vmul.f32 %v9402, 0.5
        %v9483 = vmul.f32 %v9404, 0.5
        %v9484 = vmul.f32 %v9295, 0.5
        %v9485 = vmul.f32 %v9297, 0.5
        %v9486 = vmul.f32 %v9408, 0.5
        %v9487 = vmul.f32 %v9410, 0.5
        %v9488 = vmul.f32 %v9299, 0.5
        %v9489 = vmul.f32 %v9301, 0.5
        %v9490 = vmul.f32 %v9412, 0.5
        %v9491 = vmul.f32 %v9414, 0.5
        %v9492 = vmul.f32 %v9305, 0.5
        %v9493 = vmul.f32 %v9307, 0.5
        %v9494 = vmul.f32 %v9418, 0.5
        %v9495 = vmul.f32 %v9420, 0.5
        %v9496 = vmul.f32 %v9309, 0.5
        %v9497 = vmul.f32 %v9311, 0.5
        %v9498 = vmul.f32 %v9422, 0.5
        %v9499 = vmul.f32 %v9424, 0.5
        %v9500 = vmul.f32 %v9315, 0.5
        %v9501 = vmul.f32 %v9317, 0.5
        %v9502 = vmul.f32 %v9428, 0.5
        %v9503 = vmul.f32 %v9430, 0.5
        %v9504 = vmul.f32 %v9319, 0.5
        %v9505 = vmul.f32 %v9321, 0.5
        %v9506 = vmul.f32 %v9432, 0.5
        %v9507 = vmul.f32 %v9434, 0.5
        %v9508 = vmul.f32 %v9325, 0.5
        %v9509 = vmul.f32 %v9327, 0.5
        %v9510 = vmul.f32 %v9438, 0.5
        %v9511 = vmul.f32 %v9440, 0.5
        %v9512 = vmul.f32 %v9329, 0.5
        %v9513 = vmul.f32 %v9331, 0.5
        %v9514 = vmul.f32 %v9442, 0.5
        %v9515 = vmul.f32 %v9444, 0.5
        %v9516 = vmul.f32 %v9335, 0.5
        %v9517 = vmul.f32 %v9337, 0.5
        %v9518 = vmul.f32 %v9448, 0.5
        %v9519 = vmul.f32 %v9450, 0.5
        %v9520 = vmul.f32 %v9339, 0.5
        %v9521 = vmul.f32 %v9341, 0.5
        %v9522 = vmul.f32 %v9452, 0.5
        %v9523 = vmul.f32 %v9454, 0.5
        %v9524 = vmul.f32 %v9345, 0.5
        %v9525 = vmul.f32 %v9347, 0.5
        %v9526 = vmul.f32 %v9458, 0.5
        %v9527 = vmul.f32 %v9460, 0.5
        %v9528 = vmul.f32 %v9349, 0.5
        %v9529 = vmul.f32 %v9351, 0.5
        %v9530 = vmul.f32 %v9462, 0.5
        %v9531 = vmul.f32 %v9464, 0.5
        %v9532 = vmul.f32 %v9355, 0.5
        %v9533 = vmul.f32 %v9357, 0.5
        %v9534 = vmul.f32 %v9468, 0.5
        %v9535 = vmul.f32 %v9470, 0.5
        %v9536 = vmul.f32 %v9359, 0.5
        %v9537 = vmul.f32 %v9361, 0.5
        %v9538 = vmul.f32 %v9472, 0.5
        %v9539 = vmul.f32 %v9474, 0.5
        %v9540 = vmul.f32 %v9285, 0.70710677
        %v9541 = vmul.f32 %v9287, 0.70710677
        %v9542 = vmul.f32 %v9398, 0.70710677
        %v9543 = vmul.f32 %v9400, 0.70710677
        %v9544 = vmul.f32 %v9289, 0.70710677
        %v9545 = vmul.f32 %v9291, 0.70710677
        %v9546 = vmul.f32 %v9402, 0.70710677
        %v9547 = vmul.f32 %v9404, 0.70710677
        %v9548 = vmul.f32 %v9295, 0.70710677
        %v9549 = vmul.f32 %v9297, 0.70710677
        %v9550 = vmul.f32 %v9408, 0.70710677
        %v9551 = vmul.f32 %v9410, 0.70710677
        %v9552 = vmul.f32 %v9299, 0.70710677
        %v9553 = vmul.f32 %v9301, 0.70710677
        %v9554 = vmul.f32 %v9412, 0.70710677
        %v9555 = vmul.f32 %v9414, 0.70710677
        %v9556 = vmul.f32 %v9305, 0.70710677
        %v9557 = vmul.f32 %v9307, 0.70710677
        %v9558 = vmul.f32 %v9418, 0.70710677
        %v9559 = vmul.f32 %v9420, 0.70710677
        %v9560 = vmul.f32 %v9309, 0.70710677
        %v9561 = vmul.f32 %v9311, 0.70710677
        %v9562 = vmul.f32 %v9422, 0.70710677
        %v9563 = vmul.f32 %v9424, 0.70710677
        %v9564 = vmul.f32 %v9315, 0.70710677
        %v9565 = vmul.f32 %v9317, 0.70710677
        %v9566 = vmul.f32 %v9428, 0.70710677
        %v9567 = vmul.f32 %v9430, 0.70710677
        %v9568 = vmul.f32 %v9319, 0.70710677
        %v9569 = vmul.f32 %v9321, 0.70710677
        %v9570 = vmul.f32 %v9432, 0.70710677
        %v9571 = vmul.f32 %v9434, 0.70710677
        %v9572 = vmul.f32 %v9325, 0.70710677
        %v9573 = vmul.f32 %v9327, 0.70710677
        %v9574 = vmul.f32 %v9438, 0.70710677
        %v9575 = vmul.f32 %v9440, 0.70710677
        %v9576 = vmul.f32 %v9329, 0.70710677
        %v9577 = vmul.f32 %v9331, 0.70710677
        %v9578 = vmul.f32 %v9442, 0.70710677
        %v9579 = vmul.f32 %v9444, 0.70710677
        %v9580 = vmul.f32 %v9335, 0.70710677
        %v9581 = vmul.f32 %v9337, 0.70710677
        %v9582 = vmul.f32 %v9448, 0.70710677
        %v9583 = vmul.f32 %v9450, 0.70710677
        %v9584 = vmul.f32 %v9339, 0.70710677
        %v9585 = vmul.f32 %v9341, 0.70710677
        %v9586 = vmul.f32 %v9452, 0.70710677
        %v9587 = vmul.f32 %v9454, 0.70710677
        %v9588 = vmul.f32 %v9345, 0.70710677
        %v9589 = vmul.f32 %v9347, 0.70710677
        %v9590 = vmul.f32 %v9458, 0.70710677
        %v9591 = vmul.f32 %v9460, 0.70710677
        %v9592 = vmul.f32 %v9349, 0.70710677
        %v9593 = vmul.f32 %v9351, 0.70710677
        %v9594 = vmul.f32 %v9462, 0.70710677
        %v9595 = vmul.f32 %v9464, 0.70710677
        %v9596 = vmul.f32 %v9355, 0.70710677
        %v9597 = vmul.f32 %v9357, 0.70710677
        %v9598 = vmul.f32 %v9468, 0.70710677
        %v9599 = vmul.f32 %v9470, 0.70710677
        %v9600 = vmul.f32 %v9359, 0.70710677
        %v9601 = vmul.f32 %v9361, 0.70710677
        %v9602 = vmul.f32 %v9472, 0.70710677
        %v9603 = vmul.f32 %v9474, 0.70710677
        %v9604 = verf.f32.pop %v9540
        %v9605 = verf.f32.pop %v9541
        %v9606 = verf.f32.pop %v9542
        %v9607 = verf.f32.pop %v9543
        %v9608 = verf.f32.pop %v9544
        %v9609 = verf.f32.pop %v9545
        %v9610 = verf.f32.pop %v9546
        %v9611 = verf.f32.pop %v9547
        %v9612 = verf.f32.pop %v9548
        %v9613 = verf.f32.pop %v9549
        %v9614 = verf.f32.pop %v9550
        %v9615 = verf.f32.pop %v9551
        %v9616 = verf.f32.pop %v9552
        %v9617 = verf.f32.pop %v9553
        %v9618 = verf.f32.pop %v9554
        %v9619 = verf.f32.pop %v9555
        %v9620 = verf.f32.pop %v9556
        %v9621 = verf.f32.pop %v9557
        %v9622 = verf.f32.pop %v9558
        %v9623 = verf.f32.pop %v9559
        %v9624 = verf.f32.pop %v9560
        %v9625 = verf.f32.pop %v9561
        %v9626 = verf.f32.pop %v9562
        %v9627 = verf.f32.pop %v9563
        %v9628 = verf.f32.pop %v9564
        %v9629 = verf.f32.pop %v9565
        %v9630 = verf.f32.pop %v9566
        %v9631 = verf.f32.pop %v9567
        %v9632 = verf.f32.pop %v9568
        %v9633 = verf.f32.pop %v9569
        %v9634 = verf.f32.pop %v9570
        %v9635 = verf.f32.pop %v9571
        %v9636 = verf.f32.pop %v9572
        %v9637 = verf.f32.pop %v9573
        %v9638 = verf.f32.pop %v9574
        %v9639 = verf.f32.pop %v9575
        %v9640 = verf.f32.pop %v9576
        %v9641 = verf.f32.pop %v9577
        %v9642 = verf.f32.pop %v9578
        %v9643 = verf.f32.pop %v9579
        %v9644 = verf.f32.pop %v9580
        %v9645 = verf.f32.pop %v9581
        %v9646 = verf.f32.pop %v9582
        %v9647 = verf.f32.pop %v9583
        %v9648 = verf.f32.pop %v9584
        %v9649 = verf.f32.pop %v9585
        %v9650 = verf.f32.pop %v9586
        %v9651 = verf.f32.pop %v9587
        %v9652 = verf.f32.pop %v9588
        %v9653 = verf.f32.pop %v9589
        %v9654 = verf.f32.pop %v9590
        %v9655 = verf.f32.pop %v9591
        %v9656 = verf.f32.pop %v9592
        %v9657 = verf.f32.pop %v9593
        %v9658 = verf.f32.pop %v9594
        %v9659 = verf.f32.pop %v9595
        %v9660 = verf.f32.pop %v9596
        %v9661 = verf.f32.pop %v9597
        %v9662 = verf.f32.pop %v9598
        %v9663 = verf.f32.pop %v9599
        %v9664 = verf.f32.pop %v9600
        %v9665 = verf.f32.pop %v9601
        %v9666 = verf.f32.pop %v9602
        %v9667 = verf.f32.pop %v9603
        %v9668 = vadd.f32 %v9604, 1.0
        %v9669 = vadd.f32 %v9605, 1.0
        %v9670 = vadd.f32 %v9606, 1.0
        %v9671 = vadd.f32 %v9607, 1.0
        %v9672 = vadd.f32 %v9608, 1.0
        %v9673 = vadd.f32 %v9609, 1.0
        %v9674 = vadd.f32 %v9610, 1.0
        %v9675 = vadd.f32 %v9611, 1.0
        %v9676 = vadd.f32 %v9612, 1.0
        %v9677 = vadd.f32 %v9613, 1.0
        %v9678 = vadd.f32 %v9614, 1.0
        %v9679 = vadd.f32 %v9615, 1.0
        %v9680 = vadd.f32 %v9616, 1.0
        %v9681 = vadd.f32 %v9617, 1.0
        %v9682 = vadd.f32 %v9618, 1.0
        %v9683 = vadd.f32 %v9619, 1.0
        %v9684 = vadd.f32 %v9620, 1.0
        %v9685 = vadd.f32 %v9621, 1.0
        %v9686 = vadd.f32 %v9622, 1.0
        %v9687 = vadd.f32 %v9623, 1.0
        %v9688 = vadd.f32 %v9624, 1.0
        %v9689 = vadd.f32 %v9625, 1.0
        %v9690 = vadd.f32 %v9626, 1.0
        %v9691 = vadd.f32 %v9627, 1.0
        %v9692 = vadd.f32 %v9628, 1.0
        %v9693 = vadd.f32 %v9629, 1.0
        %v9694 = vadd.f32 %v9630, 1.0
        %v9695 = vadd.f32 %v9631, 1.0
        %v9696 = vadd.f32 %v9632, 1.0
        %v9697 = vadd.f32 %v9633, 1.0
        %v9698 = vadd.f32 %v9634, 1.0
        %v9699 = vadd.f32 %v9635, 1.0
        %v9700 = vadd.f32 %v9636, 1.0
        %v9701 = vadd.f32 %v9637, 1.0
        %v9702 = vadd.f32 %v9638, 1.0
        %v9703 = vadd.f32 %v9639, 1.0
        %v9704 = vadd.f32 %v9640, 1.0
        %v9705 = vadd.f32 %v9641, 1.0
        %v9706 = vadd.f32 %v9642, 1.0
        %v9707 = vadd.f32 %v9643, 1.0
        %v9708 = vadd.f32 %v9644, 1.0
        %v9709 = vadd.f32 %v9645, 1.0
        %v9710 = vadd.f32 %v9646, 1.0
        %v9711 = vadd.f32 %v9647, 1.0
        %v9712 = vadd.f32 %v9648, 1.0
        %v9713 = vadd.f32 %v9649, 1.0
        %v9714 = vadd.f32 %v9650, 1.0
        %v9715 = vadd.f32 %v9651, 1.0
        %v9716 = vadd.f32 %v9652, 1.0
        %v9717 = vadd.f32 %v9653, 1.0
        %v9718 = vadd.f32 %v9654, 1.0
        %v9719 = vadd.f32 %v9655, 1.0
        %v9720 = vadd.f32 %v9656, 1.0
        %v9721 = vadd.f32 %v9657, 1.0
        %v9722 = vadd.f32 %v9658, 1.0
        %v9723 = vadd.f32 %v9659, 1.0
        %v9724 = vadd.f32 %v9660, 1.0
        %v9725 = vadd.f32 %v9661, 1.0
        %v9726 = vadd.f32 %v9662, 1.0
        %v9727 = vadd.f32 %v9663, 1.0
        %v9728 = vadd.f32 %v9664, 1.0
        %v9729 = vadd.f32 %v9665, 1.0
        %v9730 = vadd.f32 %v9666, 1.0
        %v9731 = vadd.f32 %v9667, 1.0
        %v9732 = vmul.f32 %v9476, %v9668
        %v9733 = vmul.f32 %v9477, %v9669
        %v9734 = vmul.f32 %v9478, %v9670
        %v9735 = vmul.f32 %v9479, %v9671
        %v9736 = vmul.f32 %v9480, %v9672
        %v9737 = vmul.f32 %v9481, %v9673
        %v9738 = vmul.f32 %v9482, %v9674
        %v9739 = vmul.f32 %v9483, %v9675
        %v9740 = vmul.f32 %v9484, %v9676
        %v9741 = vmul.f32 %v9485, %v9677
        %v9742 = vmul.f32 %v9486, %v9678
        %v9743 = vmul.f32 %v9487, %v9679
        %v9744 = vmul.f32 %v9488, %v9680
        %v9745 = vmul.f32 %v9489, %v9681
        %v9746 = vmul.f32 %v9490, %v9682
        %v9747 = vmul.f32 %v9491, %v9683
        %v9748 = vmul.f32 %v9492, %v9684
        %v9749 = vmul.f32 %v9493, %v9685
        %v9750 = vmul.f32 %v9494, %v9686
        %v9751 = vmul.f32 %v9495, %v9687
        %v9752 = vmul.f32 %v9496, %v9688
        %v9753 = vmul.f32 %v9497, %v9689
        %v9754 = vmul.f32 %v9498, %v9690
        %v9755 = vmul.f32 %v9499, %v9691
        %v9756 = vmul.f32 %v9500, %v9692
        %v9757 = vmul.f32 %v9501, %v9693
        %v9758 = vmul.f32 %v9502, %v9694
        %v9759 = vmul.f32 %v9503, %v9695
        %v9760 = vmul.f32 %v9504, %v9696
        %v9761 = vmul.f32 %v9505, %v9697
        %v9762 = vmul.f32 %v9506, %v9698
        %v9763 = vmul.f32 %v9507, %v9699
        %v9764 = vmul.f32 %v9508, %v9700
        %v9765 = vmul.f32 %v9509, %v9701
        %v9766 = vmul.f32 %v9510, %v9702
        %v9767 = vmul.f32 %v9511, %v9703
        %v9768 = vmul.f32 %v9512, %v9704
        %v9769 = vmul.f32 %v9513, %v9705
        %v9770 = vmul.f32 %v9514, %v9706
        %v9771 = vmul.f32 %v9515, %v9707
        %v9772 = vmul.f32 %v9516, %v9708
        %v9773 = vmul.f32 %v9517, %v9709
        %v9774 = vmul.f32 %v9518, %v9710
        %v9775 = vmul.f32 %v9519, %v9711
        %v9776 = vmul.f32 %v9520, %v9712
        %v9777 = vmul.f32 %v9521, %v9713
        %v9778 = vmul.f32 %v9522, %v9714
        %v9779 = vmul.f32 %v9523, %v9715
        %v9780 = vmul.f32 %v9524, %v9716
        %v9781 = vmul.f32 %v9525, %v9717
        %v9782 = vmul.f32 %v9526, %v9718
        %v9783 = vmul.f32 %v9527, %v9719
        %v9784 = vmul.f32 %v9528, %v9720
        %v9785 = vmul.f32 %v9529, %v9721
        %v9786 = vmul.f32 %v9530, %v9722
        %v9787 = vmul.f32 %v9531, %v9723
        %v9788 = vmul.f32 %v9532, %v9724
        %v9789 = vmul.f32 %v9533, %v9725
        %v9790 = vmul.f32 %v9534, %v9726
        %v9791 = vmul.f32 %v9535, %v9727
        %v9792 = vmul.f32 %v9536, %v9728
        %v9793 = vmul.f32 %v9537, %v9729
        %v9794 = vmul.f32 %v9538, %v9730
        %v9795 = vmul.f32 %v9539, %v9731
        %v9796 = vpack.c.bf16 %v9736, %v9732
        %v9797 = vpack.c.bf16 %v9737, %v9733
        %v9798 = vpack.c.bf16 %v9738, %v9734
        %v9799 = vpack.c.bf16 %v9739, %v9735
        %v9800 = vpack.c.bf16 %v9744, %v9740
        %v9801 = vpack.c.bf16 %v9745, %v9741
        %v9802 = vpack.c.bf16 %v9746, %v9742
        %v9803 = vpack.c.bf16 %v9747, %v9743
        %v9804 = vpack.c.bf16 %v9752, %v9748
        %v9805 = vpack.c.bf16 %v9753, %v9749
        %v9806 = vpack.c.bf16 %v9754, %v9750
        %v9807 = vpack.c.bf16 %v9755, %v9751
        %v9808 = vpack.c.bf16 %v9760, %v9756
        %v9809 = vpack.c.bf16 %v9761, %v9757
        %v9810 = vpack.c.bf16 %v9762, %v9758
        %v9811 = vpack.c.bf16 %v9763, %v9759
        %v9812 = vpack.c.bf16 %v9768, %v9764
        %v9813 = vpack.c.bf16 %v9769, %v9765
        %v9814 = vpack.c.bf16 %v9770, %v9766
        %v9815 = vpack.c.bf16 %v9771, %v9767
        %v9816 = vpack.c.bf16 %v9776, %v9772
        %v9817 = vpack.c.bf16 %v9777, %v9773
        %v9818 = vpack.c.bf16 %v9778, %v9774
        %v9819 = vpack.c.bf16 %v9779, %v9775
        %v9820 = vpack.c.bf16 %v9784, %v9780
        %v9821 = vpack.c.bf16 %v9785, %v9781
        %v9822 = vpack.c.bf16 %v9786, %v9782
        %v9823 = vpack.c.bf16 %v9787, %v9783
        %v9824 = vpack.c.bf16 %v9792, %v9788
        %v9825 = vpack.c.bf16 %v9793, %v9789
        %v9826 = vpack.c.bf16 %v9794, %v9790
        %v9827 = vpack.c.bf16 %v9795, %v9791
        %s9828 = scalar_lea.vmem [#allocation17], 512
        %v9829 = vld [vmem:[%s9828] sm:$0xff]
        %v9830 = vld [vmem:[%s9828 + $0x8] sm:$0xff]
        %v9831 = vld [vmem:[%s9828 + $0x10] sm:$0xff]
        %v9832 = vld [vmem:[%s9828 + $0x18] sm:$0xff]
        %v9833 = vld [vmem:[%s9828 + $0x20] sm:$0xff]
        %v9834 = vld [vmem:[%s9828 + $0x28] sm:$0xff]
        %v9835 = vld [vmem:[%s9828 + $0x30] sm:$0xff]
        %v9836 = vld [vmem:[%s9828 + $0x38] sm:$0xff]
        %v9837 = vld [vmem:[%s9828 + $0x40] sm:$0xff]
        %v9838 = vld [vmem:[%s9828 + $0x48] sm:$0xff]
        %v9839 = vld [vmem:[%s9828 + $0x50] sm:$0xff]
        %v9840 = vld [vmem:[%s9828 + $0x58] sm:$0xff]
        %v9841 = vld [vmem:[%s9828 + $0x60] sm:$0xff]
        %v9842 = vld [vmem:[%s9828 + $0x68] sm:$0xff]
        %v9843 = vld [vmem:[%s9828 + $0x70] sm:$0xff]
        %v9844 = vld [vmem:[%s9828 + $0x78] sm:$0xff]
        %v9845 = vld [vmem:[%s9828 + $0x80] sm:$0xff]
        %v9846 = vld [vmem:[%s9828 + $0x88] sm:$0xff]
        %v9847 = vld [vmem:[%s9828 + $0x90] sm:$0xff]
        %v9848 = vld [vmem:[%s9828 + $0x98] sm:$0xff]
        %v9849 = vld [vmem:[%s9828 + $0xa0] sm:$0xff]
        %v9850 = vld [vmem:[%s9828 + $0xa8] sm:$0xff]
        %v9851 = vld [vmem:[%s9828 + $0xb0] sm:$0xff]
        %v9852 = vld [vmem:[%s9828 + $0xb8] sm:$0xff]
        %v9853 = vld [vmem:[%s9828 + $0xc0] sm:$0xff]
        %v9854 = vld [vmem:[%s9828 + $0xc8] sm:$0xff]
        %v9855 = vld [vmem:[%s9828 + $0xd0] sm:$0xff]
        %v9856 = vld [vmem:[%s9828 + $0xd8] sm:$0xff]
        %v9857 = vld [vmem:[%s9828 + $0xe0] sm:$0xff]
        %v9858 = vld [vmem:[%s9828 + $0xe8] sm:$0xff]
        %v9859 = vld [vmem:[%s9828 + $0xf0] sm:$0xff]
        %v9860 = vld [vmem:[%s9828 + $0xf8] sm:$0xff]
        %v9861 = vld [vmem:[%s9828 + $0x100] sm:$0xff]
        %v9862 = vld [vmem:[%s9828 + $0x108] sm:$0xff]
        %v9863 = vld [vmem:[%s9828 + $0x110] sm:$0xff]
        %v9864 = vld [vmem:[%s9828 + $0x118] sm:$0xff]
        %v9865 = vld [vmem:[%s9828 + $0x120] sm:$0xff]
        %v9866 = vld [vmem:[%s9828 + $0x128] sm:$0xff]
        %v9867 = vld [vmem:[%s9828 + $0x130] sm:$0xff]
        %v9868 = vld [vmem:[%s9828 + $0x138] sm:$0xff]
        %v9869 = vld [vmem:[%s9828 + $0x140] sm:$0xff]
        %v9870 = vld [vmem:[%s9828 + $0x148] sm:$0xff]
        %v9871 = vld [vmem:[%s9828 + $0x150] sm:$0xff]
        %v9872 = vld [vmem:[%s9828 + $0x158] sm:$0xff]
        %v9873 = vld [vmem:[%s9828 + $0x160] sm:$0xff]
        %v9874 = vld [vmem:[%s9828 + $0x168] sm:$0xff]
        %v9875 = vld [vmem:[%s9828 + $0x170] sm:$0xff]
        %v9876 = vld [vmem:[%s9828 + $0x178] sm:$0xff]
        %v9877 = vld [vmem:[%s9828 + $0x180] sm:$0xff]
        %v9878 = vld [vmem:[%s9828 + $0x188] sm:$0xff]
        %v9879 = vld [vmem:[%s9828 + $0x190] sm:$0xff]
        %v9880 = vld [vmem:[%s9828 + $0x198] sm:$0xff]
        %v9881 = vld [vmem:[%s9828 + $0x1a0] sm:$0xff]
        %v9882 = vld [vmem:[%s9828 + $0x1a8] sm:$0xff]
        %v9883 = vld [vmem:[%s9828 + $0x1b0] sm:$0xff]
        %v9884 = vld [vmem:[%s9828 + $0x1b8] sm:$0xff]
        %v9885 = vld [vmem:[%s9828 + $0x1c0] sm:$0xff]
        %v9886 = vld [vmem:[%s9828 + $0x1c8] sm:$0xff]
        %v9887 = vld [vmem:[%s9828 + $0x1d0] sm:$0xff]
        %v9888 = vld [vmem:[%s9828 + $0x1d8] sm:$0xff]
        %v9889 = vld [vmem:[%s9828 + $0x1e0] sm:$0xff]
        %v9890 = vld [vmem:[%s9828 + $0x1e8] sm:$0xff]
        %v9891 = vld [vmem:[%s9828 + $0x1f0] sm:$0xff]
        %v9892 = vld [vmem:[%s9828 + $0x1f8] sm:$0xff]
        %v9957 = vunpack.c.l.b16 %v9829
        %v9958 = vunpack.c.h.b16 %v9829
        %v9959 = vunpack.c.l.b16 %v9830
        %v9960 = vunpack.c.h.b16 %v9830
        %v9961 = vunpack.c.l.b16 %v9831
        %v9962 = vunpack.c.h.b16 %v9831
        %v9963 = vunpack.c.l.b16 %v9832
        %v9964 = vunpack.c.h.b16 %v9832
        %v9965 = vunpack.c.l.b16 %v9833
        %v9966 = vunpack.c.h.b16 %v9833
        %v9967 = vunpack.c.l.b16 %v9834
        %v9968 = vunpack.c.h.b16 %v9834
        %v9969 = vunpack.c.l.b16 %v9835
        %v9970 = vunpack.c.h.b16 %v9835
        %v9971 = vunpack.c.l.b16 %v9836
        %v9972 = vunpack.c.h.b16 %v9836
        %v9973 = vunpack.c.l.b16 %v9837
        %v9974 = vunpack.c.h.b16 %v9837
        %v9975 = vunpack.c.l.b16 %v9838
        %v9976 = vunpack.c.h.b16 %v9838
        %v9977 = vunpack.c.l.b16 %v9839
        %v9978 = vunpack.c.h.b16 %v9839
        %v9979 = vunpack.c.l.b16 %v9840
        %v9980 = vunpack.c.h.b16 %v9840
        %v9981 = vunpack.c.l.b16 %v9841
        %v9982 = vunpack.c.h.b16 %v9841
        %v9983 = vunpack.c.l.b16 %v9842
        %v9984 = vunpack.c.h.b16 %v9842
        %v9985 = vunpack.c.l.b16 %v9843
        %v9986 = vunpack.c.h.b16 %v9843
        %v9987 = vunpack.c.l.b16 %v9844
        %v9988 = vunpack.c.h.b16 %v9844
        %v9989 = vunpack.c.l.b16 %v9845
        %v9990 = vunpack.c.h.b16 %v9845
        %v9991 = vunpack.c.l.b16 %v9846
        %v9992 = vunpack.c.h.b16 %v9846
        %v9993 = vunpack.c.l.b16 %v9847
        %v9994 = vunpack.c.h.b16 %v9847
        %v9995 = vunpack.c.l.b16 %v9848
        %v9996 = vunpack.c.h.b16 %v9848
        %v9997 = vunpack.c.l.b16 %v9849
        %v9998 = vunpack.c.h.b16 %v9849
        %v9999 = vunpack.c.l.b16 %v9850
        %v10000 = vunpack.c.h.b16 %v9850
        %v10001 = vunpack.c.l.b16 %v9851
        %v10002 = vunpack.c.h.b16 %v9851
        %v10003 = vunpack.c.l.b16 %v9852
        %v10004 = vunpack.c.h.b16 %v9852
        %v10005 = vunpack.c.l.b16 %v9853
        %v10006 = vunpack.c.h.b16 %v9853
        %v10007 = vunpack.c.l.b16 %v9854
        %v10008 = vunpack.c.h.b16 %v9854
        %v10009 = vunpack.c.l.b16 %v9855
        %v10010 = vunpack.c.h.b16 %v9855
        %v10011 = vunpack.c.l.b16 %v9856
        %v10012 = vunpack.c.h.b16 %v9856
        %v10013 = vunpack.c.l.b16 %v9857
        %v10014 = vunpack.c.h.b16 %v9857
        %v10015 = vunpack.c.l.b16 %v9858
        %v10016 = vunpack.c.h.b16 %v9858
        %v10017 = vunpack.c.l.b16 %v9859
        %v10018 = vunpack.c.h.b16 %v9859
        %v10019 = vunpack.c.l.b16 %v9860
        %v10020 = vunpack.c.h.b16 %v9860
        %v10021 = vunpack.c.l.b16 %v9861
        %v10022 = vunpack.c.h.b16 %v9861
        %v10023 = vunpack.c.l.b16 %v9862
        %v10024 = vunpack.c.h.b16 %v9862
        %v10025 = vunpack.c.l.b16 %v9863
        %v10026 = vunpack.c.h.b16 %v9863
        %v10027 = vunpack.c.l.b16 %v9864
        %v10028 = vunpack.c.h.b16 %v9864
        %v10029 = vunpack.c.l.b16 %v9865
        %v10030 = vunpack.c.h.b16 %v9865
        %v10031 = vunpack.c.l.b16 %v9866
        %v10032 = vunpack.c.h.b16 %v9866
        %v10033 = vunpack.c.l.b16 %v9867
        %v10034 = vunpack.c.h.b16 %v9867
        %v10035 = vunpack.c.l.b16 %v9868
        %v10036 = vunpack.c.h.b16 %v9868
        %v10037 = vunpack.c.l.b16 %v9869
        %v10038 = vunpack.c.h.b16 %v9869
        %v10039 = vunpack.c.l.b16 %v9870
        %v10040 = vunpack.c.h.b16 %v9870
        %v10041 = vunpack.c.l.b16 %v9871
        %v10042 = vunpack.c.h.b16 %v9871
        %v10043 = vunpack.c.l.b16 %v9872
        %v10044 = vunpack.c.h.b16 %v9872
        %v10045 = vunpack.c.l.b16 %v9873
        %v10046 = vunpack.c.h.b16 %v9873
        %v10047 = vunpack.c.l.b16 %v9874
        %v10048 = vunpack.c.h.b16 %v9874
        %v10049 = vunpack.c.l.b16 %v9875
        %v10050 = vunpack.c.h.b16 %v9875
        %v10051 = vunpack.c.l.b16 %v9876
        %v10052 = vunpack.c.h.b16 %v9876
        %v10053 = vunpack.c.l.b16 %v9877
        %v10054 = vunpack.c.h.b16 %v9877
        %v10055 = vunpack.c.l.b16 %v9878
        %v10056 = vunpack.c.h.b16 %v9878
        %v10057 = vunpack.c.l.b16 %v9879
        %v10058 = vunpack.c.h.b16 %v9879
        %v10059 = vunpack.c.l.b16 %v9880
        %v10060 = vunpack.c.h.b16 %v9880
        %v10061 = vunpack.c.l.b16 %v9881
        %v10062 = vunpack.c.h.b16 %v9881
        %v10063 = vunpack.c.l.b16 %v9882
        %v10064 = vunpack.c.h.b16 %v9882
        %v10065 = vunpack.c.l.b16 %v9883
        %v10066 = vunpack.c.h.b16 %v9883
        %v10067 = vunpack.c.l.b16 %v9884
        %v10068 = vunpack.c.h.b16 %v9884
        %v10069 = vunpack.c.l.b16 %v9885
        %v10070 = vunpack.c.h.b16 %v9885
        %v10071 = vunpack.c.l.b16 %v9886
        %v10072 = vunpack.c.h.b16 %v9886
        %v10073 = vunpack.c.l.b16 %v9887
        %v10074 = vunpack.c.h.b16 %v9887
        %v10075 = vunpack.c.l.b16 %v9888
        %v10076 = vunpack.c.h.b16 %v9888
        %v10077 = vunpack.c.l.b16 %v9889
        %v10078 = vunpack.c.h.b16 %v9889
        %v10079 = vunpack.c.l.b16 %v9890
        %v10080 = vunpack.c.h.b16 %v9890
        %v10081 = vunpack.c.l.b16 %v9891
        %v10082 = vunpack.c.h.b16 %v9891
        %v10083 = vunpack.c.l.b16 %v9892
        %v10084 = vunpack.c.h.b16 %v9892
        %v10085 = vpack.c.b16 %v9959, %v9957
        %v10086 = vpack.c.b16 %v9960, %v9958
        %v10087 = vpack.c.b16 %v9963, %v9961
        %v10088 = vpack.c.b16 %v9964, %v9962
        %v10089 = vpack.c.b16 %v9967, %v9965
        %v10090 = vpack.c.b16 %v9968, %v9966
        %v10091 = vpack.c.b16 %v9971, %v9969
        %v10092 = vpack.c.b16 %v9972, %v9970
        %v10093 = vpack.c.b16 %v9975, %v9973
        %v10094 = vpack.c.b16 %v9976, %v9974
        %v10095 = vpack.c.b16 %v9979, %v9977
        %v10096 = vpack.c.b16 %v9980, %v9978
        %v10097 = vpack.c.b16 %v9983, %v9981
        %v10098 = vpack.c.b16 %v9984, %v9982
        %v10099 = vpack.c.b16 %v9987, %v9985
        %v10100 = vpack.c.b16 %v9988, %v9986
        %v10101 = vpack.c.b16 %v9991, %v9989
        %v10102 = vpack.c.b16 %v9992, %v9990
        %v10103 = vpack.c.b16 %v9995, %v9993
        %v10104 = vpack.c.b16 %v9996, %v9994
        %v10105 = vpack.c.b16 %v9999, %v9997
        %v10106 = vpack.c.b16 %v10000, %v9998
        %v10107 = vpack.c.b16 %v10003, %v10001
        %v10108 = vpack.c.b16 %v10004, %v10002
        %v10109 = vpack.c.b16 %v10007, %v10005
        %v10110 = vpack.c.b16 %v10008, %v10006
        %v10111 = vpack.c.b16 %v10011, %v10009
        %v10112 = vpack.c.b16 %v10012, %v10010
        %v10113 = vpack.c.b16 %v10015, %v10013
        %v10114 = vpack.c.b16 %v10016, %v10014
        %v10115 = vpack.c.b16 %v10019, %v10017
        %v10116 = vpack.c.b16 %v10020, %v10018
        %v10117 = vpack.c.b16 %v10023, %v10021
        %v10118 = vpack.c.b16 %v10024, %v10022
        %v10119 = vpack.c.b16 %v10027, %v10025
        %v10120 = vpack.c.b16 %v10028, %v10026
        %v10121 = vpack.c.b16 %v10031, %v10029
        %v10122 = vpack.c.b16 %v10032, %v10030
        %v10123 = vpack.c.b16 %v10035, %v10033
        %v10124 = vpack.c.b16 %v10036, %v10034
        %v10125 = vpack.c.b16 %v10039, %v10037
        %v10126 = vpack.c.b16 %v10040, %v10038
        %v10127 = vpack.c.b16 %v10043, %v10041
        %v10128 = vpack.c.b16 %v10044, %v10042
        %v10129 = vpack.c.b16 %v10047, %v10045
        %v10130 = vpack.c.b16 %v10048, %v10046
        %v10131 = vpack.c.b16 %v10051, %v10049
        %v10132 = vpack.c.b16 %v10052, %v10050
        %v10133 = vpack.c.b16 %v10055, %v10053
        %v10134 = vpack.c.b16 %v10056, %v10054
        %v10135 = vpack.c.b16 %v10059, %v10057
        %v10136 = vpack.c.b16 %v10060, %v10058
        %v10137 = vpack.c.b16 %v10063, %v10061
        %v10138 = vpack.c.b16 %v10064, %v10062
        %v10139 = vpack.c.b16 %v10067, %v10065
        %v10140 = vpack.c.b16 %v10068, %v10066
        %v10141 = vpack.c.b16 %v10071, %v10069
        %v10142 = vpack.c.b16 %v10072, %v10070
        %v10143 = vpack.c.b16 %v10075, %v10073
        %v10144 = vpack.c.b16 %v10076, %v10074
        %v10145 = vpack.c.b16 %v10079, %v10077
        %v10146 = vpack.c.b16 %v10080, %v10078
        %v10147 = vpack.c.b16 %v10083, %v10081
        %v10148 = vpack.c.b16 %v10084, %v10082
        %10213 = vmatprep.subr.bf16.mxu0 %v10086
        %10214 = vmatpush1.bf16.msra.mxu0 %v10085
        %10215 = vmatprep.subr.bf16.mxu0 %v10088
        %10216 = vmatpush1.bf16.msra.mxu0 %v10087
        %10217 = vmatprep.subr.bf16.mxu0 %v10090
        %10218 = vmatpush1.bf16.msra.mxu0 %v10089
        %10219 = vmatprep.subr.bf16.mxu0 %v10092
        %10220 = vmatpush1.bf16.msra.mxu0 %v10091
        %10221 = vmatprep.subr.bf16.mxu0 %v10094
        %10222 = vmatpush1.bf16.msra.mxu0 %v10093
        %10223 = vmatprep.subr.bf16.mxu0 %v10096
        %10224 = vmatpush1.bf16.msra.mxu0 %v10095
        %10225 = vmatprep.subr.bf16.mxu0 %v10098
        %10226 = vmatpush1.bf16.msra.mxu0 %v10097
        %10227 = vmatprep.subr.bf16.mxu0 %v10100
        %10228 = vmatpush1.bf16.msra.mxu0 %v10099
        %10229 = vmatprep.subr.bf16.mxu0 %v10102
        %10230 = vmatpush1.bf16.msra.mxu0 %v10101
        %10231 = vmatprep.subr.bf16.mxu0 %v10104
        %10232 = vmatpush1.bf16.msra.mxu0 %v10103
        %10233 = vmatprep.subr.bf16.mxu0 %v10106
        %10234 = vmatpush1.bf16.msra.mxu0 %v10105
        %10235 = vmatprep.subr.bf16.mxu0 %v10108
        %10236 = vmatpush1.bf16.msra.mxu0 %v10107
        %10237 = vmatprep.subr.bf16.mxu0 %v10110
        %10238 = vmatpush1.bf16.msra.mxu0 %v10109
        %10239 = vmatprep.subr.bf16.mxu0 %v10112
        %10240 = vmatpush1.bf16.msra.mxu0 %v10111
        %10241 = vmatprep.subr.bf16.mxu0 %v10114
        %10242 = vmatpush1.bf16.msra.mxu0 %v10113
        %10243 = vmatprep.subr.bf16.mxu0 %v10116
        %10244 = vmatpush1.bf16.msra.mxu0 %v10115
        %10245 = vmatprep.mubr.bf16.mxu0 %v9797
        %10246 = vmatmul.mubr.bf16.gmra.mrb[0].mxu0 %v9796
        %v10247 = vpop.f32.mrb[0].mxu0
        %v10248 = vadd.f32 0.0, %v10247
        %v10249 = vpop.f32.mrb[0].mxu0
        %v10250 = vadd.f32 0.0, %v10249
        %v10251 = vpop.f32.mrb[0].mxu0
        %v10252 = vadd.f32 0.0, %v10251
        %v10253 = vpop.f32.mrb[0].mxu0
        %v10254 = vadd.f32 0.0, %v10253
        %10255 = vmatprep.mubr.bf16.mxu0 %v9801
        %10256 = vmatmul.mubr.bf16.gmra.mrb[0].mxu0 %v9800
        %v10257 = vpop.f32.mrb[0].mxu0
        %v10258 = vadd.f32 0.0, %v10257
        %v10259 = vpop.f32.mrb[0].mxu0
        %v10260 = vadd.f32 0.0, %v10259
        %v10261 = vpop.f32.mrb[0].mxu0
        %v10262 = vadd.f32 0.0, %v10261
        %v10263 = vpop.f32.mrb[0].mxu0
        %v10264 = vadd.f32 0.0, %v10263
        %10265 = vmatprep.mubr.bf16.mxu0 %v9805
        %10266 = vmatmul.mubr.bf16.gmra.mrb[0].mxu0 %v9804
        %v10267 = vpop.f32.mrb[0].mxu0
        %v10268 = vadd.f32 0.0, %v10267
        %v10269 = vpop.f32.mrb[0].mxu0
        %v10270 = vadd.f32 0.0, %v10269
        %v10271 = vpop.f32.mrb[0].mxu0
        %v10272 = vadd.f32 0.0, %v10271
        %v10273 = vpop.f32.mrb[0].mxu0
        %v10274 = vadd.f32 0.0, %v10273
        %10275 = vmatprep.mubr.bf16.mxu0 %v9809
        %10276 = vmatmul.mubr.bf16.gmra.mrb[0].mxu0 %v9808
        %v10277 = vpop.f32.mrb[0].mxu0
        %v10278 = vadd.f32 0.0, %v10277
        %v10279 = vpop.f32.mrb[0].mxu0
        %v10280 = vadd.f32 0.0, %v10279
        %v10281 = vpop.f32.mrb[0].mxu0
        %v10282 = vadd.f32 0.0, %v10281
        %v10283 = vpop.f32.mrb[0].mxu0
        %v10284 = vadd.f32 0.0, %v10283
        %10285 = vmatprep.mubr.bf16.mxu0 %v9813
        %10286 = vmatmul.mubr.bf16.gmra.mrb[0].mxu0 %v9812
        %v10287 = vpop.f32.mrb[0].mxu0
        %v10288 = vadd.f32 0.0, %v10287
        %v10289 = vpop.f32.mrb[0].mxu0
        %v10290 = vadd.f32 0.0, %v10289
        %v10291 = vpop.f32.mrb[0].mxu0
        %v10292 = vadd.f32 0.0, %v10291
        %v10293 = vpop.f32.mrb[0].mxu0
        %v10294 = vadd.f32 0.0, %v10293
        %10295 = vmatprep.mubr.bf16.mxu0 %v9817
        %10296 = vmatmul.mubr.bf16.gmra.mrb[0].mxu0 %v9816
        %v10297 = vpop.f32.mrb[0].mxu0
        %v10298 = vadd.f32 0.0, %v10297
        %v10299 = vpop.f32.mrb[0].mxu0
        %v10300 = vadd.f32 0.0, %v10299
        %v10301 = vpop.f32.mrb[0].mxu0
        %v10302 = vadd.f32 0.0, %v10301
        %v10303 = vpop.f32.mrb[0].mxu0
        %v10304 = vadd.f32 0.0, %v10303
        %10305 = vmatprep.mubr.bf16.mxu0 %v9821
        %10306 = vmatmul.mubr.bf16.gmra.mrb[0].mxu0 %v9820
        %v10307 = vpop.f32.mrb[0].mxu0
        %v10308 = vadd.f32 0.0, %v10307
        %v10309 = vpop.f32.mrb[0].mxu0
        %v10310 = vadd.f32 0.0, %v10309
        %v10311 = vpop.f32.mrb[0].mxu0
        %v10312 = vadd.f32 0.0, %v10311
        %v10313 = vpop.f32.mrb[0].mxu0
        %v10314 = vadd.f32 0.0, %v10313
        %10315 = vmatprep.mubr.bf16.mxu0 %v9825
        %10316 = vmatmul.mubr.bf16.gmra.mrb[0].mxu0 %v9824
        %v10317 = vpop.f32.mrb[0].mxu0
        %v10318 = vadd.f32 0.0, %v10317
        %v10319 = vpop.f32.mrb[0].mxu0
        %v10320 = vadd.f32 0.0, %v10319
        %v10321 = vpop.f32.mrb[0].mxu0
        %v10322 = vadd.f32 0.0, %v10321
        %v10323 = vpop.f32.mrb[0].mxu0
        %v10324 = vadd.f32 0.0, %v10323
        %10325 = vdwg.mxu0
        %10326 = vmatprep.subr.bf16.mxu0 %v10118
        %10327 = vmatpush1.bf16.msra.mxu0 %v10117
        %10328 = vmatprep.subr.bf16.mxu0 %v10120
        %10329 = vmatpush1.bf16.msra.mxu0 %v10119
        %10330 = vmatprep.subr.bf16.mxu0 %v10122
        %10331 = vmatpush1.bf16.msra.mxu0 %v10121
        %10332 = vmatprep.subr.bf16.mxu0 %v10124
        %10333 = vmatpush1.bf16.msra.mxu0 %v10123
        %10334 = vmatprep.subr.bf16.mxu0 %v10126
        %10335 = vmatpush1.bf16.msra.mxu0 %v10125
        %10336 = vmatprep.subr.bf16.mxu0 %v10128
        %10337 = vmatpush1.bf16.msra.mxu0 %v10127
        %10338 = vmatprep.subr.bf16.mxu0 %v10130
        %10339 = vmatpush1.bf16.msra.mxu0 %v10129
        %10340 = vmatprep.subr.bf16.mxu0 %v10132
        %10341 = vmatpush1.bf16.msra.mxu0 %v10131
        %10342 = vmatprep.subr.bf16.mxu0 %v10134
        %10343 = vmatpush1.bf16.msra.mxu0 %v10133
        %10344 = vmatprep.subr.bf16.mxu0 %v10136
        %10345 = vmatpush1.bf16.msra.mxu0 %v10135
        %10346 = vmatprep.subr.bf16.mxu0 %v10138
        %10347 = vmatpush1.bf16.msra.mxu0 %v10137
        %10348 = vmatprep.subr.bf16.mxu0 %v10140
        %10349 = vmatpush1.bf16.msra.mxu0 %v10139
        %10350 = vmatprep.subr.bf16.mxu0 %v10142
        %10351 = vmatpush1.bf16.msra.mxu0 %v10141
        %10352 = vmatprep.subr.bf16.mxu0 %v10144
        %10353 = vmatpush1.bf16.msra.mxu0 %v10143
        %10354 = vmatprep.subr.bf16.mxu0 %v10146
        %10355 = vmatpush1.bf16.msra.mxu0 %v10145
        %10356 = vmatprep.subr.bf16.mxu0 %v10148
        %10357 = vmatpush1.bf16.msra.mxu0 %v10147
        %10358 = vmatprep.mubr.bf16.mxu0 %v9799
        %10359 = vmatmul.mubr.bf16.gmra.mrb[0].mxu0 %v9798
        %v10360 = vpop.f32.mrb[0].mxu0
        %v10361 = vadd.f32 %v10248, %v10360
        %v10362 = vpop.f32.mrb[0].mxu0
        %v10363 = vadd.f32 %v10250, %v10362
        %v10364 = vpop.f32.mrb[0].mxu0
        %v10365 = vadd.f32 %v10252, %v10364
        %v10366 = vpop.f32.mrb[0].mxu0
        %v10367 = vadd.f32 %v10254, %v10366
        %10368 = vmatprep.mubr.bf16.mxu0 %v9803
        %10369 = vmatmul.mubr.bf16.gmra.mrb[0].mxu0 %v9802
        %v10370 = vpop.f32.mrb[0].mxu0
        %v10371 = vadd.f32 %v10258, %v10370
        %v10372 = vpop.f32.mrb[0].mxu0
        %v10373 = vadd.f32 %v10260, %v10372
        %v10374 = vpop.f32.mrb[0].mxu0
        %v10375 = vadd.f32 %v10262, %v10374
        %v10376 = vpop.f32.mrb[0].mxu0
        %v10377 = vadd.f32 %v10264, %v10376
        %10378 = vmatprep.mubr.bf16.mxu0 %v9807
        %10379 = vmatmul.mubr.bf16.gmra.mrb[0].mxu0 %v9806
        %v10380 = vpop.f32.mrb[0].mxu0
        %v10381 = vadd.f32 %v10268, %v10380
        %v10382 = vpop.f32.mrb[0].mxu0
        %v10383 = vadd.f32 %v10270, %v10382
        %v10384 = vpop.f32.mrb[0].mxu0
        %v10385 = vadd.f32 %v10272, %v10384
        %v10386 = vpop.f32.mrb[0].mxu0
        %v10387 = vadd.f32 %v10274, %v10386
        %10388 = vmatprep.mubr.bf16.mxu0 %v9811
        %10389 = vmatmul.mubr.bf16.gmra.mrb[0].mxu0 %v9810
        %v10390 = vpop.f32.mrb[0].mxu0
        %v10391 = vadd.f32 %v10278, %v10390
        %v10392 = vpop.f32.mrb[0].mxu0
        %v10393 = vadd.f32 %v10280, %v10392
        %v10394 = vpop.f32.mrb[0].mxu0
        %v10395 = vadd.f32 %v10282, %v10394
        %v10396 = vpop.f32.mrb[0].mxu0
        %v10397 = vadd.f32 %v10284, %v10396
        %10398 = vmatprep.mubr.bf16.mxu0 %v9815
        %10399 = vmatmul.mubr.bf16.gmra.mrb[0].mxu0 %v9814
        %v10400 = vpop.f32.mrb[0].mxu0
        %v10401 = vadd.f32 %v10288, %v10400
        %v10402 = vpop.f32.mrb[0].mxu0
        %v10403 = vadd.f32 %v10290, %v10402
        %v10404 = vpop.f32.mrb[0].mxu0
        %v10405 = vadd.f32 %v10292, %v10404
        %v10406 = vpop.f32.mrb[0].mxu0
        %v10407 = vadd.f32 %v10294, %v10406
        %10408 = vmatprep.mubr.bf16.mxu0 %v9819
        %10409 = vmatmul.mubr.bf16.gmra.mrb[0].mxu0 %v9818
        %v10410 = vpop.f32.mrb[0].mxu0
        %v10411 = vadd.f32 %v10298, %v10410
        %v10412 = vpop.f32.mrb[0].mxu0
        %v10413 = vadd.f32 %v10300, %v10412
        %v10414 = vpop.f32.mrb[0].mxu0
        %v10415 = vadd.f32 %v10302, %v10414
        %v10416 = vpop.f32.mrb[0].mxu0
        %v10417 = vadd.f32 %v10304, %v10416
        %10418 = vmatprep.mubr.bf16.mxu0 %v9823
        %10419 = vmatmul.mubr.bf16.gmra.mrb[0].mxu0 %v9822
        %v10420 = vpop.f32.mrb[0].mxu0
        %v10421 = vadd.f32 %v10308, %v10420
        %v10422 = vpop.f32.mrb[0].mxu0
        %v10423 = vadd.f32 %v10310, %v10422
        %v10424 = vpop.f32.mrb[0].mxu0
        %v10425 = vadd.f32 %v10312, %v10424
        %v10426 = vpop.f32.mrb[0].mxu0
        %v10427 = vadd.f32 %v10314, %v10426
        %10428 = vmatprep.mubr.bf16.mxu0 %v9827
        %10429 = vmatmul.mubr.bf16.gmra.mrb[0].mxu0 %v9826
        %v10430 = vpop.f32.mrb[0].mxu0
        %v10431 = vadd.f32 %v10318, %v10430
        %v10432 = vpop.f32.mrb[0].mxu0
        %v10433 = vadd.f32 %v10320, %v10432
        %v10434 = vpop.f32.mrb[0].mxu0
        %v10435 = vadd.f32 %v10322, %v10434
        %v10436 = vpop.f32.mrb[0].mxu0
        %v10437 = vadd.f32 %v10324, %v10436
        %10438 = vdwg.mxu0
        %v10503 = vunpack.c.l.b16 %v8778
        %v10504 = vunpack.c.h.b16 %v8778
        %v10505 = vunpack.c.l.b16 %v8779
        %v10506 = vunpack.c.h.b16 %v8779
        %v10507 = vunpack.c.l.b16 %v8780
        %v10508 = vunpack.c.h.b16 %v8780
        %v10509 = vunpack.c.l.b16 %v8781
        %v10510 = vunpack.c.h.b16 %v8781
        %v10511 = vunpack.c.l.b16 %v8782
        %v10512 = vunpack.c.h.b16 %v8782
        %v10513 = vunpack.c.l.b16 %v8783
        %v10514 = vunpack.c.h.b16 %v8783
        %v10515 = vunpack.c.l.b16 %v8784
        %v10516 = vunpack.c.h.b16 %v8784
        %v10517 = vunpack.c.l.b16 %v8785
        %v10518 = vunpack.c.h.b16 %v8785
        %v10519 = vunpack.c.l.b16 %v8786
        %v10520 = vunpack.c.h.b16 %v8786
        %v10521 = vunpack.c.l.b16 %v8787
        %v10522 = vunpack.c.h.b16 %v8787
        %v10523 = vunpack.c.l.b16 %v8788
        %v10524 = vunpack.c.h.b16 %v8788
        %v10525 = vunpack.c.l.b16 %v8789
        %v10526 = vunpack.c.h.b16 %v8789
        %v10527 = vunpack.c.l.b16 %v8790
        %v10528 = vunpack.c.h.b16 %v8790
        %v10529 = vunpack.c.l.b16 %v8791
        %v10530 = vunpack.c.h.b16 %v8791
        %v10531 = vunpack.c.l.b16 %v8792
        %v10532 = vunpack.c.h.b16 %v8792
        %v10533 = vunpack.c.l.b16 %v8793
        %v10534 = vunpack.c.h.b16 %v8793
        %v10535 = vunpack.c.l.b16 %v8794
        %v10536 = vunpack.c.h.b16 %v8794
        %v10537 = vunpack.c.l.b16 %v8795
        %v10538 = vunpack.c.h.b16 %v8795
        %v10539 = vunpack.c.l.b16 %v8796
        %v10540 = vunpack.c.h.b16 %v8796
        %v10541 = vunpack.c.l.b16 %v8797
        %v10542 = vunpack.c.h.b16 %v8797
        %v10543 = vunpack.c.l.b16 %v8798
        %v10544 = vunpack.c.h.b16 %v8798
        %v10545 = vunpack.c.l.b16 %v8799
        %v10546 = vunpack.c.h.b16 %v8799
        %v10547 = vunpack.c.l.b16 %v8800
        %v10548 = vunpack.c.h.b16 %v8800
        %v10549 = vunpack.c.l.b16 %v8801
        %v10550 = vunpack.c.h.b16 %v8801
        %v10551 = vunpack.c.l.b16 %v8802
        %v10552 = vunpack.c.h.b16 %v8802
        %v10553 = vunpack.c.l.b16 %v8803
        %v10554 = vunpack.c.h.b16 %v8803
        %v10555 = vunpack.c.l.b16 %v8804
        %v10556 = vunpack.c.h.b16 %v8804
        %v10557 = vunpack.c.l.b16 %v8805
        %v10558 = vunpack.c.h.b16 %v8805
        %v10559 = vunpack.c.l.b16 %v8806
        %v10560 = vunpack.c.h.b16 %v8806
        %v10561 = vunpack.c.l.b16 %v8807
        %v10562 = vunpack.c.h.b16 %v8807
        %v10563 = vunpack.c.l.b16 %v8808
        %v10564 = vunpack.c.h.b16 %v8808
        %v10565 = vunpack.c.l.b16 %v8809
        %v10566 = vunpack.c.h.b16 %v8809
        %v10567 = vunpack.c.l.b16 %v8810
        %v10568 = vunpack.c.h.b16 %v8810
        %v10569 = vunpack.c.l.b16 %v8811
        %v10570 = vunpack.c.h.b16 %v8811
        %v10571 = vunpack.c.l.b16 %v8812
        %v10572 = vunpack.c.h.b16 %v8812
        %v10573 = vunpack.c.l.b16 %v8813
        %v10574 = vunpack.c.h.b16 %v8813
        %v10575 = vunpack.c.l.b16 %v8814
        %v10576 = vunpack.c.h.b16 %v8814
        %v10577 = vunpack.c.l.b16 %v8815
        %v10578 = vunpack.c.h.b16 %v8815
        %v10579 = vunpack.c.l.b16 %v8816
        %v10580 = vunpack.c.h.b16 %v8816
        %v10581 = vunpack.c.l.b16 %v8817
        %v10582 = vunpack.c.h.b16 %v8817
        %v10583 = vunpack.c.l.b16 %v8818
        %v10584 = vunpack.c.h.b16 %v8818
        %v10585 = vunpack.c.l.b16 %v8819
        %v10586 = vunpack.c.h.b16 %v8819
        %v10587 = vunpack.c.l.b16 %v8820
        %v10588 = vunpack.c.h.b16 %v8820
        %v10589 = vunpack.c.l.b16 %v8821
        %v10590 = vunpack.c.h.b16 %v8821
        %v10591 = vunpack.c.l.b16 %v8822
        %v10592 = vunpack.c.h.b16 %v8822
        %v10593 = vunpack.c.l.b16 %v8823
        %v10594 = vunpack.c.h.b16 %v8823
        %v10595 = vunpack.c.l.b16 %v8824
        %v10596 = vunpack.c.h.b16 %v8824
        %v10597 = vunpack.c.l.b16 %v8825
        %v10598 = vunpack.c.h.b16 %v8825
        %v10599 = vunpack.c.l.b16 %v8826
        %v10600 = vunpack.c.h.b16 %v8826
        %v10601 = vunpack.c.l.b16 %v8827
        %v10602 = vunpack.c.h.b16 %v8827
        %v10603 = vunpack.c.l.b16 %v8828
        %v10604 = vunpack.c.h.b16 %v8828
        %v10605 = vunpack.c.l.b16 %v8829
        %v10606 = vunpack.c.h.b16 %v8829
        %v10607 = vunpack.c.l.b16 %v8830
        %v10608 = vunpack.c.h.b16 %v8830
        %v10609 = vunpack.c.l.b16 %v8831
        %v10610 = vunpack.c.h.b16 %v8831
        %v10611 = vunpack.c.l.b16 %v8832
        %v10612 = vunpack.c.h.b16 %v8832
        %v10613 = vunpack.c.l.b16 %v8833
        %v10614 = vunpack.c.h.b16 %v8833
        %v10615 = vunpack.c.l.b16 %v8834
        %v10616 = vunpack.c.h.b16 %v8834
        %v10617 = vunpack.c.l.b16 %v8835
        %v10618 = vunpack.c.h.b16 %v8835
        %v10619 = vunpack.c.l.b16 %v8836
        %v10620 = vunpack.c.h.b16 %v8836
        %v10621 = vunpack.c.l.b16 %v8837
        %v10622 = vunpack.c.h.b16 %v8837
        %v10623 = vunpack.c.l.b16 %v8838
        %v10624 = vunpack.c.h.b16 %v8838
        %v10625 = vunpack.c.l.b16 %v8839
        %v10626 = vunpack.c.h.b16 %v8839
        %v10627 = vunpack.c.l.b16 %v8840
        %v10628 = vunpack.c.h.b16 %v8840
        %v10629 = vunpack.c.l.b16 %v8841
        %v10630 = vunpack.c.h.b16 %v8841
        %v10631 = vpack.c.b16 %v10505, %v10503
        %v10632 = vpack.c.b16 %v10506, %v10504
        %v10633 = vpack.c.b16 %v10509, %v10507
        %v10634 = vpack.c.b16 %v10510, %v10508
        %v10635 = vpack.c.b16 %v10513, %v10511
        %v10636 = vpack.c.b16 %v10514, %v10512
        %v10637 = vpack.c.b16 %v10517, %v10515
        %v10638 = vpack.c.b16 %v10518, %v10516
        %v10639 = vpack.c.b16 %v10521, %v10519
        %v10640 = vpack.c.b16 %v10522, %v10520
        %v10641 = vpack.c.b16 %v10525, %v10523
        %v10642 = vpack.c.b16 %v10526, %v10524
        %v10643 = vpack.c.b16 %v10529, %v10527
        %v10644 = vpack.c.b16 %v10530, %v10528
        %v10645 = vpack.c.b16 %v10533, %v10531
        %v10646 = vpack.c.b16 %v10534, %v10532
        %v10647 = vpack.c.b16 %v10537, %v10535
        %v10648 = vpack.c.b16 %v10538, %v10536
        %v10649 = vpack.c.b16 %v10541, %v10539
        %v10650 = vpack.c.b16 %v10542, %v10540
        %v10651 = vpack.c.b16 %v10545, %v10543
        %v10652 = vpack.c.b16 %v10546, %v10544
        %v10653 = vpack.c.b16 %v10549, %v10547
        %v10654 = vpack.c.b16 %v10550, %v10548
        %v10655 = vpack.c.b16 %v10553, %v10551
        %v10656 = vpack.c.b16 %v10554, %v10552
        %v10657 = vpack.c.b16 %v10557, %v10555
        %v10658 = vpack.c.b16 %v10558, %v10556
        %v10659 = vpack.c.b16 %v10561, %v10559
        %v10660 = vpack.c.b16 %v10562, %v10560
        %v10661 = vpack.c.b16 %v10565, %v10563
        %v10662 = vpack.c.b16 %v10566, %v10564
        %v10663 = vpack.c.b16 %v10569, %v10567
        %v10664 = vpack.c.b16 %v10570, %v10568
        %v10665 = vpack.c.b16 %v10573, %v10571
        %v10666 = vpack.c.b16 %v10574, %v10572
        %v10667 = vpack.c.b16 %v10577, %v10575
        %v10668 = vpack.c.b16 %v10578, %v10576
        %v10669 = vpack.c.b16 %v10581, %v10579
        %v10670 = vpack.c.b16 %v10582, %v10580
        %v10671 = vpack.c.b16 %v10585, %v10583
        %v10672 = vpack.c.b16 %v10586, %v10584
        %v10673 = vpack.c.b16 %v10589, %v10587
        %v10674 = vpack.c.b16 %v10590, %v10588
        %v10675 = vpack.c.b16 %v10593, %v10591
        %v10676 = vpack.c.b16 %v10594, %v10592
        %v10677 = vpack.c.b16 %v10597, %v10595
        %v10678 = vpack.c.b16 %v10598, %v10596
        %v10679 = vpack.c.b16 %v10601, %v10599
        %v10680 = vpack.c.b16 %v10602, %v10600
        %v10681 = vpack.c.b16 %v10605, %v10603
        %v10682 = vpack.c.b16 %v10606, %v10604
        %v10683 = vpack.c.b16 %v10609, %v10607
        %v10684 = vpack.c.b16 %v10610, %v10608
        %v10685 = vpack.c.b16 %v10613, %v10611
        %v10686 = vpack.c.b16 %v10614, %v10612
        %v10687 = vpack.c.b16 %v10617, %v10615
        %v10688 = vpack.c.b16 %v10618, %v10616
        %v10689 = vpack.c.b16 %v10621, %v10619
        %v10690 = vpack.c.b16 %v10622, %v10620
        %v10691 = vpack.c.b16 %v10625, %v10623
        %v10692 = vpack.c.b16 %v10626, %v10624
        %v10693 = vpack.c.b16 %v10629, %v10627
        %v10694 = vpack.c.b16 %v10630, %v10628
        %10759 = vmatprep.subr.bf16.mxu0 %v10632
        %10760 = vmatpush1.bf16.msra.mxu0 %v10631
        %10761 = vmatprep.subr.bf16.mxu0 %v10634
        %10762 = vmatpush1.bf16.msra.mxu0 %v10633
        %10763 = vmatprep.subr.bf16.mxu0 %v10636
        %10764 = vmatpush1.bf16.msra.mxu0 %v10635
        %10765 = vmatprep.subr.bf16.mxu0 %v10638
        %10766 = vmatpush1.bf16.msra.mxu0 %v10637
        %10767 = vmatprep.subr.bf16.mxu0 %v10640
        %10768 = vmatpush1.bf16.msra.mxu0 %v10639
        %10769 = vmatprep.subr.bf16.mxu0 %v10642
        %10770 = vmatpush1.bf16.msra.mxu0 %v10641
        %10771 = vmatprep.subr.bf16.mxu0 %v10644
        %10772 = vmatpush1.bf16.msra.mxu0 %v10643
        %10773 = vmatprep.subr.bf16.mxu0 %v10646
        %10774 = vmatpush1.bf16.msra.mxu0 %v10645
        %10775 = vmatprep.subr.bf16.mxu0 %v10648
        %10776 = vmatpush1.bf16.msra.mxu0 %v10647
        %10777 = vmatprep.subr.bf16.mxu0 %v10650
        %10778 = vmatpush1.bf16.msra.mxu0 %v10649
        %10779 = vmatprep.subr.bf16.mxu0 %v10652
        %10780 = vmatpush1.bf16.msra.mxu0 %v10651
        %10781 = vmatprep.subr.bf16.mxu0 %v10654
        %10782 = vmatpush1.bf16.msra.mxu0 %v10653
        %10783 = vmatprep.subr.bf16.mxu0 %v10656
        %10784 = vmatpush1.bf16.msra.mxu0 %v10655
        %10785 = vmatprep.subr.bf16.mxu0 %v10658
        %10786 = vmatpush1.bf16.msra.mxu0 %v10657
        %10787 = vmatprep.subr.bf16.mxu0 %v10660
        %10788 = vmatpush1.bf16.msra.mxu0 %v10659
        %10789 = vmatprep.subr.bf16.mxu0 %v10662
        %10790 = vmatpush1.bf16.msra.mxu0 %v10661
        %10791 = vmatprep.mubr.bf16.mxu0 %v8747
        %10792 = vmatmul.mubr.bf16.gmra.mrb[0].mxu0 %v8746
        %v10793 = vpop.f32.mrb[0].mxu0
        %v10794 = vadd.f32 %v10361, %v10793
        %v10795 = vpop.f32.mrb[0].mxu0
        %v10796 = vadd.f32 %v10363, %v10795
        %v10797 = vpop.f32.mrb[0].mxu0
        %v10798 = vadd.f32 %v10365, %v10797
        %v10799 = vpop.f32.mrb[0].mxu0
        %v10800 = vadd.f32 %v10367, %v10799
        %10801 = vmatprep.mubr.bf16.mxu0 %v8751
        %10802 = vmatmul.mubr.bf16.gmra.mrb[0].mxu0 %v8750
        %v10803 = vpop.f32.mrb[0].mxu0
        %v10804 = vadd.f32 %v10371, %v10803
        %v10805 = vpop.f32.mrb[0].mxu0
        %v10806 = vadd.f32 %v10373, %v10805
        %v10807 = vpop.f32.mrb[0].mxu0
        %v10808 = vadd.f32 %v10375, %v10807
        %v10809 = vpop.f32.mrb[0].mxu0
        %v10810 = vadd.f32 %v10377, %v10809
        %10811 = vmatprep.mubr.bf16.mxu0 %v8755
        %10812 = vmatmul.mubr.bf16.gmra.mrb[0].mxu0 %v8754
        %v10813 = vpop.f32.mrb[0].mxu0
        %v10814 = vadd.f32 %v10381, %v10813
        %v10815 = vpop.f32.mrb[0].mxu0
        %v10816 = vadd.f32 %v10383, %v10815
        %v10817 = vpop.f32.mrb[0].mxu0
        %v10818 = vadd.f32 %v10385, %v10817
        %v10819 = vpop.f32.mrb[0].mxu0
        %v10820 = vadd.f32 %v10387, %v10819
        %10821 = vmatprep.mubr.bf16.mxu0 %v8759
        %10822 = vmatmul.mubr.bf16.gmra.mrb[0].mxu0 %v8758
        %v10823 = vpop.f32.mrb[0].mxu0
        %v10824 = vadd.f32 %v10391, %v10823
        %v10825 = vpop.f32.mrb[0].mxu0
        %v10826 = vadd.f32 %v10393, %v10825
        %v10827 = vpop.f32.mrb[0].mxu0
        %v10828 = vadd.f32 %v10395, %v10827
        %v10829 = vpop.f32.mrb[0].mxu0
        %v10830 = vadd.f32 %v10397, %v10829
        %10831 = vmatprep.mubr.bf16.mxu0 %v8763
        %10832 = vmatmul.mubr.bf16.gmra.mrb[0].mxu0 %v8762
        %v10833 = vpop.f32.mrb[0].mxu0
        %v10834 = vadd.f32 %v10401, %v10833
        %v10835 = vpop.f32.mrb[0].mxu0
        %v10836 = vadd.f32 %v10403, %v10835
        %v10837 = vpop.f32.mrb[0].mxu0
        %v10838 = vadd.f32 %v10405, %v10837
        %v10839 = vpop.f32.mrb[0].mxu0
        %v10840 = vadd.f32 %v10407, %v10839
        %10841 = vmatprep.mubr.bf16.mxu0 %v8767
        %10842 = vmatmul.mubr.bf16.gmra.mrb[0].mxu0 %v8766
        %v10843 = vpop.f32.mrb[0].mxu0
        %v10844 = vadd.f32 %v10411, %v10843
        %v10845 = vpop.f32.mrb[0].mxu0
        %v10846 = vadd.f32 %v10413, %v10845
        %v10847 = vpop.f32.mrb[0].mxu0
        %v10848 = vadd.f32 %v10415, %v10847
        %v10849 = vpop.f32.mrb[0].mxu0
        %v10850 = vadd.f32 %v10417, %v10849
        %10851 = vmatprep.mubr.bf16.mxu0 %v8771
        %10852 = vmatmul.mubr.bf16.gmra.mrb[0].mxu0 %v8770
        %v10853 = vpop.f32.mrb[0].mxu0
        %v10854 = vadd.f32 %v10421, %v10853
        %v10855 = vpop.f32.mrb[0].mxu0
        %v10856 = vadd.f32 %v10423, %v10855
        %v10857 = vpop.f32.mrb[0].mxu0
        %v10858 = vadd.f32 %v10425, %v10857
        %v10859 = vpop.f32.mrb[0].mxu0
        %v10860 = vadd.f32 %v10427, %v10859
        %10861 = vmatprep.mubr.bf16.mxu0 %v8775
        %10862 = vmatmul.mubr.bf16.gmra.mrb[0].mxu0 %v8774
        %v10863 = vpop.f32.mrb[0].mxu0
        %v10864 = vadd.f32 %v10431, %v10863
        %v10865 = vpop.f32.mrb[0].mxu0
        %v10866 = vadd.f32 %v10433, %v10865
        %v10867 = vpop.f32.mrb[0].mxu0
        %v10868 = vadd.f32 %v10435, %v10867
        %v10869 = vpop.f32.mrb[0].mxu0
        %v10870 = vadd.f32 %v10437, %v10869
        %10871 = vdwg.mxu0
        %10872 = vmatprep.subr.bf16.mxu0 %v10664
        %10873 = vmatpush1.bf16.msra.mxu0 %v10663
        %10874 = vmatprep.subr.bf16.mxu0 %v10666
        %10875 = vmatpush1.bf16.msra.mxu0 %v10665
        %10876 = vmatprep.subr.bf16.mxu0 %v10668
        %10877 = vmatpush1.bf16.msra.mxu0 %v10667
        %10878 = vmatprep.subr.bf16.mxu0 %v10670
        %10879 = vmatpush1.bf16.msra.mxu0 %v10669
        %10880 = vmatprep.subr.bf16.mxu0 %v10672
        %10881 = vmatpush1.bf16.msra.mxu0 %v10671
        %10882 = vmatprep.subr.bf16.mxu0 %v10674
        %10883 = vmatpush1.bf16.msra.mxu0 %v10673
        %10884 = vmatprep.subr.bf16.mxu0 %v10676
        %10885 = vmatpush1.bf16.msra.mxu0 %v10675
        %10886 = vmatprep.subr.bf16.mxu0 %v10678
        %10887 = vmatpush1.bf16.msra.mxu0 %v10677
        %10888 = vmatprep.subr.bf16.mxu0 %v10680
        %10889 = vmatpush1.bf16.msra.mxu0 %v10679
        %10890 = vmatprep.subr.bf16.mxu0 %v10682
        %10891 = vmatpush1.bf16.msra.mxu0 %v10681
        %10892 = vmatprep.subr.bf16.mxu0 %v10684
        %10893 = vmatpush1.bf16.msra.mxu0 %v10683
        %10894 = vmatprep.subr.bf16.mxu0 %v10686
        %10895 = vmatpush1.bf16.msra.mxu0 %v10685
        %10896 = vmatprep.subr.bf16.mxu0 %v10688
        %10897 = vmatpush1.bf16.msra.mxu0 %v10687
        %10898 = vmatprep.subr.bf16.mxu0 %v10690
        %10899 = vmatpush1.bf16.msra.mxu0 %v10689
        %10900 = vmatprep.subr.bf16.mxu0 %v10692
        %10901 = vmatpush1.bf16.msra.mxu0 %v10691
        %10902 = vmatprep.subr.bf16.mxu0 %v10694
        %10903 = vmatpush1.bf16.msra.mxu0 %v10693
        %10904 = vmatprep.mubr.bf16.mxu0 %v8749
        %10905 = vmatmul.mubr.bf16.gmra.mrb[0].mxu0 %v8748
        %v10906 = vpop.f32.mrb[0].mxu0
        %v10907 = vadd.f32 %v10794, %v10906
        %v10908 = vpop.f32.mrb[0].mxu0
        %v10909 = vadd.f32 %v10796, %v10908
        %v10910 = vpop.f32.mrb[0].mxu0
        %v10911 = vadd.f32 %v10798, %v10910
        %v10912 = vpop.f32.mrb[0].mxu0
        %v10913 = vadd.f32 %v10800, %v10912
        %10914 = vmatprep.mubr.bf16.mxu0 %v8753
        %10915 = vmatmul.mubr.bf16.gmra.mrb[0].mxu0 %v8752
        %v10916 = vpop.f32.mrb[0].mxu0
        %v10917 = vadd.f32 %v10804, %v10916
        %v10918 = vpop.f32.mrb[0].mxu0
        %v10919 = vadd.f32 %v10806, %v10918
        %v10920 = vpop.f32.mrb[0].mxu0
        %v10921 = vadd.f32 %v10808, %v10920
        %v10922 = vpop.f32.mrb[0].mxu0
        %v10923 = vadd.f32 %v10810, %v10922
        %10924 = vmatprep.mubr.bf16.mxu0 %v8757
        %10925 = vmatmul.mubr.bf16.gmra.mrb[0].mxu0 %v8756
        %v10926 = vpop.f32.mrb[0].mxu0
        %v10927 = vadd.f32 %v10814, %v10926
        %v10928 = vpop.f32.mrb[0].mxu0
        %v10929 = vadd.f32 %v10816, %v10928
        %v10930 = vpop.f32.mrb[0].mxu0
        %v10931 = vadd.f32 %v10818, %v10930
        %v10932 = vpop.f32.mrb[0].mxu0
        %v10933 = vadd.f32 %v10820, %v10932
        %10934 = vmatprep.mubr.bf16.mxu0 %v8761
        %10935 = vmatmul.mubr.bf16.gmra.mrb[0].mxu0 %v8760
        %v10936 = vpop.f32.mrb[0].mxu0
        %v10937 = vadd.f32 %v10824, %v10936
        %v10938 = vpop.f32.mrb[0].mxu0
        %v10939 = vadd.f32 %v10826, %v10938
        %v10940 = vpop.f32.mrb[0].mxu0
        %v10941 = vadd.f32 %v10828, %v10940
        %v10942 = vpop.f32.mrb[0].mxu0
        %v10943 = vadd.f32 %v10830, %v10942
        %10944 = vmatprep.mubr.bf16.mxu0 %v8765
        %10945 = vmatmul.mubr.bf16.gmra.mrb[0].mxu0 %v8764
        %v10946 = vpop.f32.mrb[0].mxu0
        %v10947 = vadd.f32 %v10834, %v10946
        %v10948 = vpop.f32.mrb[0].mxu0
        %v10949 = vadd.f32 %v10836, %v10948
        %v10950 = vpop.f32.mrb[0].mxu0
        %v10951 = vadd.f32 %v10838, %v10950
        %v10952 = vpop.f32.mrb[0].mxu0
        %v10953 = vadd.f32 %v10840, %v10952
        %10954 = vmatprep.mubr.bf16.mxu0 %v8769
        %10955 = vmatmul.mubr.bf16.gmra.mrb[0].mxu0 %v8768
        %v10956 = vpop.f32.mrb[0].mxu0
        %v10957 = vadd.f32 %v10844, %v10956
        %v10958 = vpop.f32.mrb[0].mxu0
        %v10959 = vadd.f32 %v10846, %v10958
        %v10960 = vpop.f32.mrb[0].mxu0
        %v10961 = vadd.f32 %v10848, %v10960
        %v10962 = vpop.f32.mrb[0].mxu0
        %v10963 = vadd.f32 %v10850, %v10962
        %10964 = vmatprep.mubr.bf16.mxu0 %v8773
        %10965 = vmatmul.mubr.bf16.gmra.mrb[0].mxu0 %v8772
        %v10966 = vpop.f32.mrb[0].mxu0
        %v10967 = vadd.f32 %v10854, %v10966
        %v10968 = vpop.f32.mrb[0].mxu0
        %v10969 = vadd.f32 %v10856, %v10968
        %v10970 = vpop.f32.mrb[0].mxu0
        %v10971 = vadd.f32 %v10858, %v10970
        %v10972 = vpop.f32.mrb[0].mxu0
        %v10973 = vadd.f32 %v10860, %v10972
        %10974 = vmatprep.mubr.bf16.mxu0 %v8777
        %10975 = vmatmul.mubr.bf16.gmra.mrb[0].mxu0 %v8776
        %v10976 = vpop.f32.mrb[0].mxu0
        %v10977 = vadd.f32 %v10864, %v10976
        %v10978 = vpop.f32.mrb[0].mxu0
        %v10979 = vadd.f32 %v10866, %v10978
        %v10980 = vpop.f32.mrb[0].mxu0
        %v10981 = vadd.f32 %v10868, %v10980
        %v10982 = vpop.f32.mrb[0].mxu0
        %v10983 = vadd.f32 %v10870, %v10982
        %10984 = vdwg.mxu0
        %v10985 = vld [vmem:[%s17] sm:$0x3]
        %v10987 = vlaneseq
        %v10988 = vshrl.u32 %v10987, 7
        %v10989 = vsub.s32 0, %v10988
        %v10990 = vrot.slane %v10985, %v10989
        %v10991 = vlaneseq
        %v10992 = vshrl.u32 %v10991, 7
        %v10993 = vsub.s32 1, %v10992
        %v10994 = vrot.slane %v10985, %v10993
        %v10997 = vadd.f32 %v10907, %v10990
        %v10998 = vadd.f32 %v10909, %v10994
        %v10999 = vadd.f32 %v10911, %v10990
        %v11000 = vadd.f32 %v10913, %v10994
        %v11001 = vadd.f32 %v10917, %v10990
        %v11002 = vadd.f32 %v10919, %v10994
        %v11003 = vadd.f32 %v10921, %v10990
        %v11004 = vadd.f32 %v10923, %v10994
        %v11005 = vadd.f32 %v10927, %v10990
        %v11006 = vadd.f32 %v10929, %v10994
        %v11007 = vadd.f32 %v10931, %v10990
        %v11008 = vadd.f32 %v10933, %v10994
        %v11009 = vadd.f32 %v10937, %v10990
        %v11010 = vadd.f32 %v10939, %v10994
        %v11011 = vadd.f32 %v10941, %v10990
        %v11012 = vadd.f32 %v10943, %v10994
        %v11013 = vadd.f32 %v10947, %v10990
        %v11014 = vadd.f32 %v10949, %v10994
        %v11015 = vadd.f32 %v10951, %v10990
        %v11016 = vadd.f32 %v10953, %v10994
        %v11017 = vadd.f32 %v10957, %v10990
        %v11018 = vadd.f32 %v10959, %v10994
        %v11019 = vadd.f32 %v10961, %v10990
        %v11020 = vadd.f32 %v10963, %v10994
        %v11021 = vadd.f32 %v10967, %v10990
        %v11022 = vadd.f32 %v10969, %v10994
        %v11023 = vadd.f32 %v10971, %v10990
        %v11024 = vadd.f32 %v10973, %v10994
        %v11025 = vadd.f32 %v10977, %v10990
        %v11026 = vadd.f32 %v10979, %v10994
        %v11027 = vadd.f32 %v10981, %v10990
        %v11028 = vadd.f32 %v10983, %v10994
        %v11029 = vadd.f32 %v7402, %v10997
        %v11030 = vadd.f32 %v7403, %v10998
        %v11031 = vadd.f32 %v7404, %v10999
        %v11032 = vadd.f32 %v7405, %v11000
        %v11033 = vadd.f32 %v7406, %v11001
        %v11034 = vadd.f32 %v7407, %v11002
        %v11035 = vadd.f32 %v7408, %v11003
        %v11036 = vadd.f32 %v7409, %v11004
        %v11037 = vadd.f32 %v7410, %v11005
        %v11038 = vadd.f32 %v7411, %v11006
        %v11039 = vadd.f32 %v7412, %v11007
        %v11040 = vadd.f32 %v7413, %v11008
        %v11041 = vadd.f32 %v7414, %v11009
        %v11042 = vadd.f32 %v7415, %v11010
        %v11043 = vadd.f32 %v7416, %v11011
        %v11044 = vadd.f32 %v7417, %v11012
        %v11045 = vadd.f32 %v7418, %v11013
        %v11046 = vadd.f32 %v7419, %v11014
        %v11047 = vadd.f32 %v7420, %v11015
        %v11048 = vadd.f32 %v7421, %v11016
        %v11049 = vadd.f32 %v7422, %v11017
        %v11050 = vadd.f32 %v7423, %v11018
        %v11051 = vadd.f32 %v7424, %v11019
        %v11052 = vadd.f32 %v7425, %v11020
        %v11053 = vadd.f32 %v7426, %v11021
        %v11054 = vadd.f32 %v7427, %v11022
        %v11055 = vadd.f32 %v7428, %v11023
        %v11056 = vadd.f32 %v7429, %v11024
        %v11057 = vadd.f32 %v7430, %v11025
        %v11058 = vadd.f32 %v7431, %v11026
        %v11059 = vadd.f32 %v7432, %v11027
        %v11060 = vadd.f32 %v7433, %v11028
        %11061 = vst [vmem:[%s739] sm:$0xff] %v11029
        %11062 = vst [vmem:[%s739 + $0x8] sm:$0xff] %v11030
        %11063 = vst [vmem:[%s739 + $0x10] sm:$0xff] %v11031
        %11064 = vst [vmem:[%s739 + $0x18] sm:$0xff] %v11032
        %11065 = vst [vmem:[%s739 + $0x20] sm:$0xff] %v11033
        %11066 = vst [vmem:[%s739 + $0x28] sm:$0xff] %v11034
        %11067 = vst [vmem:[%s739 + $0x30] sm:$0xff] %v11035
        %11068 = vst [vmem:[%s739 + $0x38] sm:$0xff] %v11036
        %11069 = vst [vmem:[%s739 + $0x40] sm:$0xff] %v11037
        %11070 = vst [vmem:[%s739 + $0x48] sm:$0xff] %v11038
        %11071 = vst [vmem:[%s739 + $0x50] sm:$0xff] %v11039
        %11072 = vst [vmem:[%s739 + $0x58] sm:$0xff] %v11040
        %11073 = vst [vmem:[%s739 + $0x60] sm:$0xff] %v11041
        %11074 = vst [vmem:[%s739 + $0x68] sm:$0xff] %v11042
        %11075 = vst [vmem:[%s739 + $0x70] sm:$0xff] %v11043
        %11076 = vst [vmem:[%s739 + $0x78] sm:$0xff] %v11044
        %11077 = vst [vmem:[%s739 + $0x80] sm:$0xff] %v11045
        %11078 = vst [vmem:[%s739 + $0x88] sm:$0xff] %v11046
        %11079 = vst [vmem:[%s739 + $0x90] sm:$0xff] %v11047
        %11080 = vst [vmem:[%s739 + $0x98] sm:$0xff] %v11048
        %11081 = vst [vmem:[%s739 + $0xa0] sm:$0xff] %v11049
        %11082 = vst [vmem:[%s739 + $0xa8] sm:$0xff] %v11050
        %11083 = vst [vmem:[%s739 + $0xb0] sm:$0xff] %v11051
        %11084 = vst [vmem:[%s739 + $0xb8] sm:$0xff] %v11052
        %11085 = vst [vmem:[%s739 + $0xc0] sm:$0xff] %v11053
        %11086 = vst [vmem:[%s739 + $0xc8] sm:$0xff] %v11054
        %11087 = vst [vmem:[%s739 + $0xd0] sm:$0xff] %v11055
        %11088 = vst [vmem:[%s739 + $0xd8] sm:$0xff] %v11056
        %11089 = vst [vmem:[%s739 + $0xe0] sm:$0xff] %v11057
        %11090 = vst [vmem:[%s739 + $0xe8] sm:$0xff] %v11058
        %11091 = vst [vmem:[%s739 + $0xf0] sm:$0xff] %v11059
        %11092 = vst [vmem:[%s739 + $0xf8] sm:$0xff] %v11060
        %s11093 = sand.u32 %s453, 1
        %s11094 = scalar_lea.sflag [#allocation7], %s11093
        %s11095 = sand.u32 %s453, 1
        %s11096 = smul.addr %s11095, 256
        %s11097 = scalar_lea.vmem [#allocation19], %s11096
        // Predicated region
        $region132: #{tpu_custom_call.1} parent=91 // pred_check
          %p11098 = pneg %p463
        $region133: #{tpu_custom_call.1} parent=91 // pred_check_branch
          %11100 = sbr.rel (%p11098) target = $region135
        $region134: #{tpu_custom_call.1} parent=91 // pred_region
          %s11101 = smul.u32 16, %s46
          %s11103 = ssub.s32 4096, 4096
          %11104 = vsyncadd %s11094, %s11103
          %s11105 = smul.addr %s11101, 2
          %s11106 = smul.addr %s45, 64
          %s11107 = sadd.s32 %s11105, %s11106
          %s11108 = smul.addr %s11107, 128
          %s11109 = scalar_lea.hbm %s18, %s11108
          %s11110 = sshll.u32 %s11097, 4
          %s11111 = int_to_ptr.vmem [resolvable:$true] %s11110
          %11116 = dma.vmem_to_hbm [thread:$0]  %s11111, 4096, %s11109, %s11094, 256, 256, 16
        $region135: #{tpu_custom_call.1} parent=91 // pred_fallthru
          _
      $region92: #{tpu_custom_call.1} parent=5 // pred_fallthru
        _
      %p11117 = scmp.le.s32.totalorder 2, %s36
      // Predicated region
      $region136: #{tpu_custom_call.1} parent=5 // pred_check
        %p11118 = pneg %p11117
      $region137: #{tpu_custom_call.1} parent=5 // pred_check_branch
        %11120 = sbr.rel (%p11118) target = $region139
      $region138: #{tpu_custom_call.1} parent=5 // pred_region
        %s11121 = ssub.s32 %s36, 2
        // Predicated region
        $region140: #{tpu_custom_call.1} parent=138 // pred_check
          %p11122 = pneg %p469
        $region141: #{tpu_custom_call.1} parent=138 // pred_check_branch
          %11124 = sbr.rel (%p11122) target = $region143
        $region142: #{tpu_custom_call.1} parent=138 // pred_region
          %s11125 = sand.u32 %s454, 1
          %s11126 = scalar_lea.sflag [#allocation7], %s11125
          %s11127 = sand.u32 %s454, 1
          %s11128 = smul.addr %s11127, 256
          %s11129 = scalar_lea.vmem [#allocation19], %s11128
          %11130 = dma.done %s11126, 4096
        $region143: #{tpu_custom_call.1} parent=138 // pred_fallthru
          _
      $region139: #{tpu_custom_call.1} parent=5 // pred_fallthru
        _
    $region6: #{tpu_custom_call.1} parent=1 // loop_footer
      %s40 = sadd.s32 1, %s36
    $region7: #{tpu_custom_call.1} parent=1 // loop_footer_branch
      %35 = sbr.rel target = $region3
    $region8: #{tpu_custom_call.1} parent=1 // loop_exit
      _
    %11131 = vsyncpa [#allocation6], 1
    %s11132 = scalar_lea.sflag [#allocation6], 1
    %11133 = vsyncpa %s11132, 1
    %11134 = vsyncpa [#allocation9], 1
    %s11135 = scalar_lea.sflag [#allocation9], 1
    %11136 = vsyncpa %s11135, 1
    %11137 = vsyncpa [#allocation12], 1
    %11138 = vsyncpa [#allocation15], 1
    %11139 = vsyncpa [#allocation18], 1
    %11140 = vsyncpa [#allocation7], 1
    %s11141 = scalar_lea.sflag [#allocation7], 1
    %11142 = vsyncpa %s11141, 1

</llo_original>
